<compile_context>
chip_gen: v5e
topology: v5e:2x2
jax: 0.10.0
libtpu: 0.0.40
codegen_flags: <defaults>
</compile_context>

<pallas_src>
import functools
import math

import jax
import jax.numpy as jnp
from jax import lax
from jax.experimental import pallas as pl
from jax.experimental.pallas import tpu as pltpu

# ------------------------- small, SS2D-consistent config -------------------------
D_MODEL = 16                        # d_model
D_STATE = 4                         # N (d_state)
SSM_RATIO = 2.0
D_INNER = int(SSM_RATIO * D_MODEL)  # d_expand == d_inner = 32
DT_RANK = 4                         # R
K_DIRS = 4                          # ('h', 'h_flip', 'v', 'v_flip')
OUT_DIM = 32
H = 8
W = 8
L = H * W
B = 2


# ============ kernel 1: fused in_proj + depthwise 3x3 conv + SiLU (front-end) ============
def _frontend_kernel(xp_ref, win_ref, cw_ref, cb_ref, o_ref, *, Hc, Wcp, Hh, Ww):
    # xp_ref : (Hc*Wcp, Dm) one batch's spatially padded pixels (image at offset (1,1)).
    #          in_proj has NO bias, so in_proj(zero padding) == 0 == the conv's zero halo.
    # win_ref: (Dm, 2*Di) in_proj weight
    # cw_ref : (9, 2*Di) conv taps; z-half taps are 0 except the centre tap (=1) so the
    #          z channels pass through the tap loop unchanged.
    # cb_ref : (1, 2*Di) conv bias (z-half zeros)
    # o_ref  : (1, Hh, Ww, 2*Di) = [SiLU(conv(x)+b) | raw z]
    C2 = win_ref.shape[1]
    xz = jnp.dot(xp_ref[...], win_ref[...], preferred_element_type=jnp.float32)
    xz4 = xz.reshape(1, Hc, Wcp, C2)              # tile-aligned reshape (Wcp % 8 == 0)

    acc = jnp.zeros((1, Hh, Ww, C2), jnp.float32)
    for kh in range(3):
        for kw in range(3):
            tap = cw_ref[kh * 3 + kw:kh * 3 + kw + 1, :]          # (1, 2*Di)
            acc = acc + xz4[:, kh:kh + Hh, kw:kw + Ww, :] * tap
    acc = acc + cb_ref[...]

    act = acc * jax.nn.sigmoid(acc)                               # SiLU
    lane = lax.broadcasted_iota(jnp.int32, acc.shape, 3)
    o_ref[...] = jnp.where(lane < (C2 // 2), act, acc)            # x lanes -> SiLU, z lanes raw


def pallas_frontend(xpad2d, w_in_T, cw9, cb, Bn, Hc, Wcp, Hh, Ww):
    Dm = xpad2d.shape[1]
    C2 = w_in_T.shape[1]
    kern = functools.partial(_frontend_kernel, Hc=Hc, Wcp=Wcp, Hh=Hh, Ww=Ww)
    return pl.pallas_call(
        kern,
        out_shape=jax.ShapeDtypeStruct((Bn, Hh, Ww, C2), jnp.float32),
        grid=(Bn,),
        in_specs=[pl.BlockSpec((Hc * Wcp, Dm), lambda b: (b, 0)),
                  pl.BlockSpec((Dm, C2), lambda b: (0, 0)),
                  pl.BlockSpec((9, C2), lambda b: (0, 0)),
                  pl.BlockSpec((1, C2), lambda b: (0, 0))],
        out_specs=pl.BlockSpec((1, Hh, Ww, C2), lambda b: (b, 0, 0, 0)),
        compiler_params=pltpu.CompilerParams(dimension_semantics=("parallel",)),
    )(xpad2d, w_in_T, cw9, cb)


# ============ kernel 2: lane-folded selective scan over all K directions ============
def _scan_kernel(xs_ref, w1_ref, wdt_ref, bias_ref, a8_ref, wb_ref, wc_ref,
                 sel_ref, e3_ref, y_ref, dA_s, dBu_s, C_s):
    # xs_ref : (1, L*N, K*D) lane-folded inputs, row t*N+m is direction-folded u[t]
    #          (the N-repeat lets the (time, state) interleaved scratch be built with
    #           dense full-tile ops only: no sublane broadcasts / masked stores).
    # w1/wdt : block-diag x_proj(dt) / dt_proj; wb/wc: compact (KD, K*N) B/C projections.
    # a8/sel : (8, ...) per-tile (time-pair x state) patterns; e3: (K*N, K*D) 0/1 expander.
    # scratch: (L*N//8, 8, K*D) -> one (8,128) tile holds 2 time steps x N states.
    LN4, KD = xs_ref.shape[1], xs_ref.shape[2]
    Ln = y_ref.shape[1]
    Ns = LN4 // Ln
    NT = LN4 // 8
    KN = wb_ref.shape[1]

    u = xs_ref[0]                                                           # (L*N, KD)
    dts = jnp.dot(u, w1_ref[...], preferred_element_type=jnp.float32)       # (L*N, K*R)
    delta = jax.nn.softplus(
        jnp.dot(dts, wdt_ref[...], preferred_element_type=jnp.float32) + bias_ref[...])
    du = delta * u

    # dA = exp(delta * A): A replicated per (time-pair, state) row pattern.
    dA_s[...] = jnp.exp(delta.reshape(NT, 8, KD) * a8_ref[...][None])

    # dB*u and C via compact projections + 0/1 select/expand (no (N,KD,KD) dead weight).
    bmat = jnp.dot(u, wb_ref[...], preferred_element_type=jnp.float32)       # (L*N, K*N)
    bsel = (bmat.reshape(NT, 8, KN) * sel_ref[...][None]).reshape(LN4, KN)
    bexp = jnp.dot(bsel, e3_ref[...], preferred_element_type=jnp.float32)    # (L*N, KD)
    dBu_s[...] = (du * bexp).reshape(NT, 8, KD)

    cmat = jnp.dot(u, wc_ref[...], preferred_element_type=jnp.float32)
    csel = (cmat.reshape(NT, 8, KN) * sel_ref[...][None]).reshape(LN4, KN)
    C_s[...] = jnp.dot(csel, e3_ref[...], preferred_element_type=jnp.float32).reshape(NT, 8, KD)

    # sequential recurrence: per tile = 1 unmasked vld per tensor (2 steps), state = (N, KD)
    # slab, y written back as one unmasked (8, KD) tile per 8 steps.
    steps_per_tile = 8 // Ns
    tiles_per_block = 8 // steps_per_tile
    n_blocks = Ln // 8
    h = jnp.zeros((Ns, KD), jnp.float32)
    for blk in range(n_blocks):
        ys = []
        for jj in range(tiles_per_block):
            tile = blk * tiles_per_block + jj
            a_t = dA_s[tile]                                    # (8, KD)
            b_t = dBu_s[tile]
            c_t = C_s[tile]
            for half in range(steps_per_tile):
                s = half * Ns
                h = h * a_t[s:s + Ns, :] + b_t[s:s + Ns, :]     # (Ns, KD) slab update
                ys.append(jnp.sum(c_t[s:s + Ns, :] * h, axis=0, keepdims=True))
        y_ref[0, blk * 8:(blk + 1) * 8, :] = jnp.concatenate(ys, axis=0)


def pallas_multi_scan(xs_rep, W1, Wdt, bias_f, A8, Wb_c, Wc_c, Sel8, E3):
    Bn, LN4, KD = xs_rep.shape
    Ln = LN4 // D_STATE
    KR = W1.shape[1]
    KN = Wb_c.shape[1]
    return pl.pallas_call(
        _scan_kernel,
        out_shape=jax.ShapeDtypeStruct((Bn, Ln, KD), jnp.float32),
        grid=(Bn,),
        in_specs=[
            pl.BlockSpec((1, LN4, KD), lambda b: (b, 0, 0)),    # xs (lane folded, N-repeated)
            pl.BlockSpec((KD, KR), lambda b: (0, 0)),           # W1
            pl.BlockSpec((KR, KD), lambda b: (0, 0)),           # Wdt
            pl.BlockSpec((1, KD), lambda b: (0, 0)),            # dt bias
            pl.BlockSpec((8, KD), lambda b: (0, 0)),            # A (negative), tile pattern
            pl.BlockSpec((KD, KN), lambda b: (0, 0)),           # WB compact
            pl.BlockSpec((KD, KN), lambda b: (0, 0)),           # WC compact
            pl.BlockSpec((8, KN), lambda b: (0, 0)),            # state-select mask
            pl.BlockSpec((KN, KD), lambda b: (0, 0)),           # 0/1 lane expander
        ],
        out_specs=pl.BlockSpec((1, Ln, KD), lambda b: (b, 0, 0)),
        scratch_shapes=[pltpu.VMEM((LN4 // 8, 8, KD), jnp.float32)] * 3,   # dA, dB*u, C
        compiler_params=pltpu.CompilerParams(dimension_semantics=("parallel",)),
    )(xs_rep, W1, Wdt, bias_f, A8, Wb_c, Wc_c, Sel8, E3)


# ============ kernel 3: fused D-term + LayerNorm + SiLU(z) gate + out_proj (back-end) ============
def _tail_kernel(y_ref, xc_ref, z_ref, ds_ref, g_ref, b_ref, w_ref, o_ref):
    # D*u skip term collapses over the 4 directions to xc * sum_k D_k (merge is a sum of
    # inverse permutations of the same xc), so it is added here instead of inside the scan.
    y = y_ref[...] + xc_ref[...] * ds_ref[...]
    mu = jnp.mean(y, axis=-1, keepdims=True)
    var = jnp.mean((y - mu) ** 2, axis=-1, keepdims=True)
    yn = (y - mu) * lax.rsqrt(var + 1e-5)
    yn = yn * g_ref[...] + b_ref[...]
    z = z_ref[...]
    gated = yn * (z * jax.nn.sigmoid(z))                            # * SiLU(z)
    o_ref[...] = jnp.dot(gated, w_ref[...], preferred_element_type=jnp.float32)


def pallas_tail(y2d, xc2d, z2d, ds_sum, gamma, beta, w_out_T):
    M, Di = y2d.shape
    Dout = w_out_T.shape[1]
    rows = M // 2                    # split rows over 2 grid steps (both v7x TensorCores)
    return pl.pallas_call(
        _tail_kernel,
        out_shape=jax.ShapeDtypeStruct((M, Dout), jnp.float32),
        grid=(2,),
        in_specs=[pl.BlockSpec((rows, Di), lambda i: (i, 0)),
                  pl.BlockSpec((rows, Di), lambda i: (i, 0)),
                  pl.BlockSpec((rows, Di), lambda i: (i, 0)),
                  pl.BlockSpec((1, Di), lambda i: (0, 0)),
                  pl.BlockSpec((1, Di), lambda i: (0, 0)),
                  pl.BlockSpec((1, Di), lambda i: (0, 0)),
                  pl.BlockSpec((Di, Dout), lambda i: (0, 0))],
        out_specs=pl.BlockSpec((rows, Dout), lambda i: (i, 0)),
        compiler_params=pltpu.CompilerParams(dimension_semantics=("parallel",)),
    )(y2d, xc2d, z2d, ds_sum, gamma, beta, w_out_T)


# ================================ parameters ====================================
def init_params(key):
    keys = jax.random.split(key, 8)
    Dm, Di, N_, R_, K_ = D_MODEL, D_INNER, D_STATE, DT_RANK, K_DIRS
    KD, KR, KN = K_ * Di, K_ * R_, K_ * N_

    w_in = jax.random.normal(keys[0], (2 * Di, Dm), jnp.float32) / math.sqrt(Dm)
    conv_w = jax.random.normal(keys[1], (Di, 1, 3, 3), jnp.float32) * 0.1
    conv_b = jax.random.normal(keys[2], (Di,), jnp.float32) * 0.1

    CC = R_ + 2 * N_
    x_proj_w = jax.random.normal(keys[3], (K_, CC, Di), jnp.float32) / math.sqrt(Di)

    dt_std = R_ ** -0.5
    dt_proj_w = jax.random.uniform(keys[4], (K_, Di, R_), jnp.float32,
                                   minval=-dt_std, maxval=dt_std)
    dt_min, dt_max, dt_floor = 1e-3, 0.1, 1e-4
    dt = jnp.exp(jax.random.uniform(keys[5], (K_, Di), jnp.float32)
                 * (math.log(dt_max) - math.log(dt_min)) + math.log(dt_min))
    dt = jnp.maximum(dt, dt_floor)
    dt_bias = dt + jnp.log(-jnp.expm1(-dt))                      # inverse-softplus init (K, D)

    A_log = jnp.log(jnp.arange(1, N_ + 1, dtype=jnp.float32))
    A_log = jnp.broadcast_to(A_log, (K_, Di, N_))                # (K, D, N)
    Ds = jnp.ones((K_, Di), jnp.float32)

    gamma = jnp.ones((1, Di), jnp.float32)
    beta = jnp.zeros((1, Di), jnp.float32)
    w_out = jax.random.normal(keys[6], (OUT_DIM, Di), jnp.float32) / math.sqrt(Di)

    # ---- frontend folded weights ----
    cw_x = conv_w[:, 0].transpose(1, 2, 0).reshape(9, Di)        # (9, Di), row = kh*3+kw
    cw_z = jnp.zeros((9, Di), jnp.float32).at[4, :].set(1.0)     # centre tap passes z through
    cw9 = jnp.concatenate([cw_x, cw_z], axis=1)                  # (9, 2*Di)
    cb = jnp.concatenate([conv_b, jnp.zeros((Di,), jnp.float32)]).reshape(1, 2 * Di)

    # ---- lane-folded / compact block-diagonal weights for the scan kernel ----
    W1 = jnp.zeros((KD, KR), jnp.float32)
    Wdt = jnp.zeros((KR, KD), jnp.float32)
    Wb_c = jnp.zeros((KD, KN), jnp.float32)
    Wc_c = jnp.zeros((KD, KN), jnp.float32)
    for k in range(K_):
        ds_ = slice(k * Di, (k + 1) * Di)
        rs_ = slice(k * R_, (k + 1) * R_)
        ns_ = slice(k * N_, (k + 1) * N_)
        W1 = W1.at[ds_, rs_].set(x_proj_w[k, 0:R_, :].T)                       # (D, R)
        Wdt = Wdt.at[rs_, ds_].set(dt_proj_w[k].T)                             # (R, D)
        Wb_c = Wb_c.at[ds_, ns_].set(x_proj_w[k, R_:R_ + N_, :].T)             # (D, N)
        Wc_c = Wc_c.at[ds_, ns_].set(x_proj_w[k, R_ + N_:R_ + 2 * N_, :].T)    # (D, N)

    A_neg = jnp.transpose(-jnp.exp(A_log), (2, 0, 1)).reshape(N_, KD)          # (N, K*D)
    A8 = jnp.tile(A_neg, (8 // N_, 1))                                         # (8, K*D)
    Sel8 = jnp.tile(jnp.tile(jnp.eye(N_, dtype=jnp.float32), (1, K_)),
                    (8 // N_, 1))                                              # (8, K*N)
    E3 = jnp.kron(jnp.eye(K_, dtype=jnp.float32),
                  jnp.ones((N_, Di), jnp.float32))                             # (K*N, K*D)

    bias_f = dt_bias.reshape(1, KD)
    ds_sum = Ds.sum(axis=0).reshape(1, Di)                                     # D-term collapsed

    return dict(
        w_in_T=w_in.T, cw9=cw9, cb=cb,
        W1=W1, Wdt=Wdt, dt_bias_f=bias_f, A8=A8, Wb_c=Wb_c, Wc_c=Wc_c,
        Sel8=Sel8, E3=E3, ds_sum=ds_sum,
        gamma=gamma, beta=beta, w_out_T=w_out.T,
    )


# ================================= forward ======================================
def ss2d_forward(x, params):
    # x: [B, H, W, d_model]  (channel-last)
    Bn, Hh, Ww, Dm = x.shape
    Ln = Hh * Ww
    Di = D_INNER

    # spatially pad to a conv canvas (Wcp rounded to a multiple of 8, layout friendly).
    # NOTE: relies on in_proj having no bias, so in_proj(0-padding) == 0 == conv zero halo.
    Hc = Hh + 2
    Wcp = ((Ww + 2 + 7) // 8) * 8
    xpad = jnp.pad(x, ((0, 0), (1, Hc - Hh - 1), (1, Wcp - Ww - 1), (0, 0)))
    xpad2d = xpad.reshape(Bn * Hc * Wcp, Dm)

    # fused in_proj + depthwise conv + SiLU; batch on the grid (both v7x cores)
    xcz = pallas_frontend(xpad2d, params['w_in_T'], params['cw9'], params['cb'],
                          Bn, Hc, Wcp, Hh, Ww)
    xc = xcz[..., :Di]                 # SiLU(conv(x) + b)
    z_origin = xcz[..., Di:]           # raw z

    # scan directions with static flips / transposes (no dynamic gather), lane-folded;
    # lanes [k*Di, (k+1)*Di) = direction k = (h, h_flip, v, v_flip); rows N-repeated so the
    # scan kernel can build its (time, state)-interleaved scratch with dense ops only.
    x_h = xc.reshape(Bn, Ln, Di)
    x_v = xc.transpose(0, 2, 1, 3).reshape(Bn, Ln, Di)
    xs_fold = jnp.concatenate([x_h, x_h[:, ::-1, :], x_v, x_v[:, ::-1, :]], axis=-1)
    xs_rep = jnp.repeat(xs_fold, D_STATE, axis=1)                   # (B, L*N, K*Di)

    ys = pallas_multi_scan(xs_rep, params['W1'], params['Wdt'], params['dt_bias_f'],
                           params['A8'], params['Wb_c'], params['Wc_c'],
                           params['Sel8'], params['E3'])            # (B, L, K*Di)

    # merge: undo flips / transposes (static), sum over K  (== MultiScan.forward stack+sum)
    y0 = ys[:, :, 0:Di]
    y1 = ys[:, ::-1, Di:2 * Di]
    y2 = ys[:, :, 2 * Di:3 * Di].reshape(Bn, Ww, Hh, Di).transpose(0, 2, 1, 3).reshape(Bn, Ln, Di)
    y3 = ys[:, ::-1, 3 * Di:4 * Di].reshape(Bn, Ww, Hh, Di).transpose(0, 2, 1, 3).reshape(Bn, Ln, Di)
    y_sum = (y0 + y1 + y2 + y3).reshape(Bn * Ln, Di)

    # fused D-term + out_norm (LayerNorm) * SiLU(z) + out_proj over all B*L rows
    out = pallas_tail(y_sum, xc.reshape(Bn * Ln, Di), z_origin.reshape(Bn * Ln, Di),
                      params['ds_sum'], params['gamma'], params['beta'], params['w_out_T'])
    out = out.reshape(Bn, Hh, Ww, OUT_DIM)
    # dropout = Identity (dropout=0.0)
    return out, z_origin


# =================================== main =======================================
if __name__ == "__main__":
    key = jax.random.PRNGKey(0)
    kp, kx = jax.random.split(key)
    params = init_params(kp)
    x = jax.random.normal(kx, (B, H, W, D_MODEL), jnp.float32)

    fwd = jax.jit(lambda inp: ss2d_forward(inp, params))
    out, z_origin = fwd(x)
    jax.block_until_ready(out)
    jax.block_until_ready(z_origin)

    assert out.shape == (B, H, W, OUT_DIM)
    assert z_origin.shape == (B, H, W, D_INNER)
    print("KERNEL_OK")
</pallas_src>

<mosaic_0001>
module attributes {stable_mosaic.version = 11 : i64} {
  func.func @_frontend_kernel(%arg0: i32, %arg1: memref<160x16xf32, #tpu.memory_space<vmem>>, %arg2: memref<16x64xf32, #tpu.memory_space<vmem>>, %arg3: memref<9x64xf32, #tpu.memory_space<vmem>>, %arg4: memref<1x64xf32, #tpu.memory_space<vmem>>, %arg5: memref<1x8x8x64xf32, #tpu.memory_space<vmem>>) attributes {dimension_semantics = [#tpu.dimension_semantics<parallel>], iteration_bounds = array<i64: 2>, scalar_prefetch = 0 : i64, scratch_operands = 0 : i64, tpu.core_type = #tpu.core_type<tc>, window_params = [{transform_indices = @transform_0, window_bounds = array<i64: 160, 16>}, {pipeline_mode = #tpu.pipeline_mode<synchronous>, transform_indices = @transform_1, window_bounds = array<i64: 16, 64>}, {pipeline_mode = #tpu.pipeline_mode<synchronous>, transform_indices = @transform_2, window_bounds = array<i64: 9, 64>}, {pipeline_mode = #tpu.pipeline_mode<synchronous>, transform_indices = @transform_3, window_bounds = array<i64: 1, 64>}, {transform_indices = @transform_4, window_bounds = array<i64: 1, 8, 8, 64>}]} {
    %c0 = arith.constant 0 : index
    %c0_0 = arith.constant 0 : index
    %0 = vector.load %arg1[%c0, %c0_0] : memref<160x16xf32, #tpu.memory_space<vmem>>, vector<160x16xf32>
    %c0_1 = arith.constant 0 : index
    %c0_2 = arith.constant 0 : index
    %1 = vector.load %arg2[%c0_1, %c0_2] : memref<16x64xf32, #tpu.memory_space<vmem>>, vector<16x64xf32>
    %cst = arith.constant dense<0.000000e+00> : vector<160x64xf32>
    %2 = tpu.matmul %0, %1, %cst {dimension_numbers = #tpu.dot_dimension_numbers<[1], [0], [0], [1], [0, 0, 1, 1], [], []>} : vector<160x16xf32>, vector<16x64xf32>, vector<160x64xf32> -> vector<160x64xf32>
    %3 = vector.shape_cast %2 : vector<160x64xf32> to vector<1x10x16x64xf32>
    %cst_3 = arith.constant 0.000000e+00 : f32
    %4 = vector.broadcast %cst_3 : f32 to vector<1x8x8x64xf32>
    %c0_4 = arith.constant 0 : index
    %c0_5 = arith.constant 0 : index
    %5 = vector.load %arg3[%c0_4, %c0_5] : memref<9x64xf32, #tpu.memory_space<vmem>>, vector<1x64xf32>
    %6 = vector.extract_strided_slice %3 {offsets = [0, 0, 0, 0], sizes = [1, 8, 8, 64], strides = [1, 1, 1, 1]} : vector<1x10x16x64xf32> to vector<1x8x8x64xf32>
    %7 = vector.shape_cast %5 : vector<1x64xf32> to vector<1x1x1x64xf32>
    %8 = vector.broadcast %7 : vector<1x1x1x64xf32> to vector<1x8x8x64xf32>
    %9 = arith.mulf %6, %8 : vector<1x8x8x64xf32>
    %10 = arith.addf %4, %9 : vector<1x8x8x64xf32>
    %c1 = arith.constant 1 : index
    %c0_6 = arith.constant 0 : index
    %11 = vector.load %arg3[%c1, %c0_6] : memref<9x64xf32, #tpu.memory_space<vmem>>, vector<1x64xf32>
    %12 = vector.extract_strided_slice %3 {offsets = [0, 0, 1, 0], sizes = [1, 8, 8, 64], strides = [1, 1, 1, 1]} : vector<1x10x16x64xf32> to vector<1x8x8x64xf32>
    %13 = vector.shape_cast %11 : vector<1x64xf32> to vector<1x1x1x64xf32>
    %14 = vector.broadcast %13 : vector<1x1x1x64xf32> to vector<1x8x8x64xf32>
    %15 = arith.mulf %12, %14 : vector<1x8x8x64xf32>
    %16 = arith.addf %10, %15 : vector<1x8x8x64xf32>
    %c2 = arith.constant 2 : index
    %c0_7 = arith.constant 0 : index
    %17 = vector.load %arg3[%c2, %c0_7] : memref<9x64xf32, #tpu.memory_space<vmem>>, vector<1x64xf32>
    %18 = vector.extract_strided_slice %3 {offsets = [0, 0, 2, 0], sizes = [1, 8, 8, 64], strides = [1, 1, 1, 1]} : vector<1x10x16x64xf32> to vector<1x8x8x64xf32>
    %19 = vector.shape_cast %17 : vector<1x64xf32> to vector<1x1x1x64xf32>
    %20 = vector.broadcast %19 : vector<1x1x1x64xf32> to vector<1x8x8x64xf32>
    %21 = arith.mulf %18, %20 : vector<1x8x8x64xf32>
    %22 = arith.addf %16, %21 : vector<1x8x8x64xf32>
    %c3 = arith.constant 3 : index
    %c0_8 = arith.constant 0 : index
    %23 = vector.load %arg3[%c3, %c0_8] : memref<9x64xf32, #tpu.memory_space<vmem>>, vector<1x64xf32>
    %24 = vector.extract_strided_slice %3 {offsets = [0, 1, 0, 0], sizes = [1, 8, 8, 64], strides = [1, 1, 1, 1]} : vector<1x10x16x64xf32> to vector<1x8x8x64xf32>
    %25 = vector.shape_cast %23 : vector<1x64xf32> to vector<1x1x1x64xf32>
    %26 = vector.broadcast %25 : vector<1x1x1x64xf32> to vector<1x8x8x64xf32>
    %27 = arith.mulf %24, %26 : vector<1x8x8x64xf32>
    %28 = arith.addf %22, %27 : vector<1x8x8x64xf32>
    %c4 = arith.constant 4 : index
    %c0_9 = arith.constant 0 : index
    %29 = vector.load %arg3[%c4, %c0_9] : memref<9x64xf32, #tpu.memory_space<vmem>>, vector<1x64xf32>
    %30 = vector.extract_strided_slice %3 {offsets = [0, 1, 1, 0], sizes = [1, 8, 8, 64], strides = [1, 1, 1, 1]} : vector<1x10x16x64xf32> to vector<1x8x8x64xf32>
    %31 = vector.shape_cast %29 : vector<1x64xf32> to vector<1x1x1x64xf32>
    %32 = vector.broadcast %31 : vector<1x1x1x64xf32> to vector<1x8x8x64xf32>
    %33 = arith.mulf %30, %32 : vector<1x8x8x64xf32>
    %34 = arith.addf %28, %33 : vector<1x8x8x64xf32>
    %c5 = arith.constant 5 : index
    %c0_10 = arith.constant 0 : index
    %35 = vector.load %arg3[%c5, %c0_10] : memref<9x64xf32, #tpu.memory_space<vmem>>, vector<1x64xf32>
    %36 = vector.extract_strided_slice %3 {offsets = [0, 1, 2, 0], sizes = [1, 8, 8, 64], strides = [1, 1, 1, 1]} : vector<1x10x16x64xf32> to vector<1x8x8x64xf32>
    %37 = vector.shape_cast %35 : vector<1x64xf32> to vector<1x1x1x64xf32>
    %38 = vector.broadcast %37 : vector<1x1x1x64xf32> to vector<1x8x8x64xf32>
    %39 = arith.mulf %36, %38 : vector<1x8x8x64xf32>
    %40 = arith.addf %34, %39 : vector<1x8x8x64xf32>
    %c6 = arith.constant 6 : index
    %c0_11 = arith.constant 0 : index
    %41 = vector.load %arg3[%c6, %c0_11] : memref<9x64xf32, #tpu.memory_space<vmem>>, vector<1x64xf32>
    %42 = vector.extract_strided_slice %3 {offsets = [0, 2, 0, 0], sizes = [1, 8, 8, 64], strides = [1, 1, 1, 1]} : vector<1x10x16x64xf32> to vector<1x8x8x64xf32>
    %43 = vector.shape_cast %41 : vector<1x64xf32> to vector<1x1x1x64xf32>
    %44 = vector.broadcast %43 : vector<1x1x1x64xf32> to vector<1x8x8x64xf32>
    %45 = arith.mulf %42, %44 : vector<1x8x8x64xf32>
    %46 = arith.addf %40, %45 : vector<1x8x8x64xf32>
    %c7 = arith.constant 7 : index
    %c0_12 = arith.constant 0 : index
    %47 = vector.load %arg3[%c7, %c0_12] : memref<9x64xf32, #tpu.memory_space<vmem>>, vector<1x64xf32>
    %48 = vector.extract_strided_slice %3 {offsets = [0, 2, 1, 0], sizes = [1, 8, 8, 64], strides = [1, 1, 1, 1]} : vector<1x10x16x64xf32> to vector<1x8x8x64xf32>
    %49 = vector.shape_cast %47 : vector<1x64xf32> to vector<1x1x1x64xf32>
    %50 = vector.broadcast %49 : vector<1x1x1x64xf32> to vector<1x8x8x64xf32>
    %51 = arith.mulf %48, %50 : vector<1x8x8x64xf32>
    %52 = arith.addf %46, %51 : vector<1x8x8x64xf32>
    %c8 = arith.constant 8 : index
    %c0_13 = arith.constant 0 : index
    %53 = vector.load %arg3[%c8, %c0_13] : memref<9x64xf32, #tpu.memory_space<vmem>>, vector<1x64xf32>
    %54 = vector.extract_strided_slice %3 {offsets = [0, 2, 2, 0], sizes = [1, 8, 8, 64], strides = [1, 1, 1, 1]} : vector<1x10x16x64xf32> to vector<1x8x8x64xf32>
    %55 = vector.shape_cast %53 : vector<1x64xf32> to vector<1x1x1x64xf32>
    %56 = vector.broadcast %55 : vector<1x1x1x64xf32> to vector<1x8x8x64xf32>
    %57 = arith.mulf %54, %56 : vector<1x8x8x64xf32>
    %58 = arith.addf %52, %57 : vector<1x8x8x64xf32>
    %c0_14 = arith.constant 0 : index
    %c0_15 = arith.constant 0 : index
    %59 = vector.load %arg4[%c0_14, %c0_15] : memref<1x64xf32, #tpu.memory_space<vmem>>, vector<1x64xf32>
    %60 = vector.shape_cast %59 : vector<1x64xf32> to vector<1x1x1x64xf32>
    %61 = vector.broadcast %60 : vector<1x1x1x64xf32> to vector<1x8x8x64xf32>
    %62 = arith.addf %58, %61 : vector<1x8x8x64xf32>
    %63 = arith.negf %62 : vector<1x8x8x64xf32>
    %64 = math.exp %63 : vector<1x8x8x64xf32>
    %cst_16 = arith.constant 1.000000e+00 : f32
    %65 = vector.broadcast %cst_16 : f32 to vector<1x8x8x64xf32>
    %66 = arith.addf %65, %64 : vector<1x8x8x64xf32>
    %67 = arith.divf %65, %66 : vector<1x8x8x64xf32>
    %68 = arith.mulf %62, %67 : vector<1x8x8x64xf32>
    %69 = tpu.iota {dimensions = array<i32: 3>} : vector<1x8x8x64xi32>
    %c32_i32 = arith.constant 32 : i32
    %70 = vector.broadcast %c32_i32 : i32 to vector<1x8x8x64xi32>
    %71 = arith.cmpi slt, %69, %70 : vector<1x8x8x64xi32>
    %72 = arith.select %71, %68, %62 : vector<1x8x8x64xi1>, vector<1x8x8x64xf32>
    %c0_17 = arith.constant 0 : index
    %c0_18 = arith.constant 0 : index
    %c0_19 = arith.constant 0 : index
    %c0_20 = arith.constant 0 : index
    %73 = vector.load %arg5[%c0_17, %c0_18, %c0_19, %c0_20] : memref<1x8x8x64xf32, #tpu.memory_space<vmem>>, vector<1x8x8x64xf32>
    tpu.vector_store %arg5[%c0_17, %c0_18, %c0_19, %c0_20], %72 {strides = array<i32>} : memref<1x8x8x64xf32, #tpu.memory_space<vmem>>, vector<1x8x8x64xf32>,
    return
  }
  func.func @transform_0(%arg0: i32) -> (i32, i32) {
    %c0_i32 = arith.constant 0 : i32
    %c0_i32_0 = arith.constant 0 : i32
    return %arg0, %c0_i32 : i32, i32
  }
  func.func @transform_1(%arg0: i32) -> (i32, i32) {
    %c0_i32 = arith.constant 0 : i32
    %c0_i32_0 = arith.constant 0 : i32
    %c0_i32_1 = arith.constant 0 : i32
    return %c0_i32, %c0_i32_0 : i32, i32
  }
  func.func @transform_2(%arg0: i32) -> (i32, i32) {
    %c0_i32 = arith.constant 0 : i32
    %c0_i32_0 = arith.constant 0 : i32
    %c0_i32_1 = arith.constant 0 : i32
    return %c0_i32, %c0_i32_0 : i32, i32
  }
  func.func @transform_3(%arg0: i32) -> (i32, i32) {
    %c0_i32 = arith.constant 0 : i32
    %c0_i32_0 = arith.constant 0 : i32
    %c0_i32_1 = arith.constant 0 : i32
    return %c0_i32, %c0_i32_0 : i32, i32
  }
  func.func @transform_4(%arg0: i32) -> (i32, i32, i32, i32) {
    %c0_i32 = arith.constant 0 : i32
    %c0_i32_0 = arith.constant 0 : i32
    %c0_i32_1 = arith.constant 0 : i32
    %c0_i32_2 = arith.constant 0 : i32
    return %arg0, %c0_i32, %c0_i32_0, %c0_i32_1 : i32, i32, i32, i32
  }
}

module attributes {stable_mosaic.version = 11 : i64} {
  func.func @_scan_kernel(%arg0: i32, %arg1: memref<1x256x128xf32, #tpu.memory_space<vmem>>, %arg2: memref<128x16xf32, #tpu.memory_space<vmem>>, %arg3: memref<16x128xf32, #tpu.memory_space<vmem>>, %arg4: memref<1x128xf32, #tpu.memory_space<vmem>>, %arg5: memref<8x128xf32, #tpu.memory_space<vmem>>, %arg6: memref<128x16xf32, #tpu.memory_space<vmem>>, %arg7: memref<128x16xf32, #tpu.memory_space<vmem>>, %arg8: memref<8x16xf32, #tpu.memory_space<vmem>>, %arg9: memref<16x128xf32, #tpu.memory_space<vmem>>, %arg10: memref<1x64x128xf32, #tpu.memory_space<vmem>>, %arg11: memref<32x8x128xf32, #tpu.memory_space<vmem>>, %arg12: memref<32x8x128xf32, #tpu.memory_space<vmem>>, %arg13: memref<32x8x128xf32, #tpu.memory_space<vmem>>) attributes {dimension_semantics = [#tpu.dimension_semantics<parallel>], iteration_bounds = array<i64: 2>, scalar_prefetch = 0 : i64, scratch_operands = 3 : i64, tpu.core_type = #tpu.core_type<tc>, window_params = [{transform_indices = @transform_0, window_bounds = array<i64: 1, 256, 128>}, {pipeline_mode = #tpu.pipeline_mode<synchronous>, transform_indices = @transform_1, window_bounds = array<i64: 128, 16>}, {pipeline_mode = #tpu.pipeline_mode<synchronous>, transform_indices = @transform_2, window_bounds = array<i64: 16, 128>}, {pipeline_mode = #tpu.pipeline_mode<synchronous>, transform_indices = @transform_3, window_bounds = array<i64: 1, 128>}, {pipeline_mode = #tpu.pipeline_mode<synchronous>, transform_indices = @transform_4, window_bounds = array<i64: 8, 128>}, {pipeline_mode = #tpu.pipeline_mode<synchronous>, transform_indices = @transform_5, window_bounds = array<i64: 128, 16>}, {pipeline_mode = #tpu.pipeline_mode<synchronous>, transform_indices = @transform_6, window_bounds = array<i64: 128, 16>}, {pipeline_mode = #tpu.pipeline_mode<synchronous>, transform_indices = @transform_7, window_bounds = array<i64: 8, 16>}, {pipeline_mode = #tpu.pipeline_mode<synchronous>, transform_indices = @transform_8, window_bounds = array<i64: 16, 128>}, {transform_indices = @transform_9, window_bounds = array<i64: 1, 64, 128>}]} {
    %c0 = arith.constant 0 : index
    %c0_0 = arith.constant 0 : index
    %c0_1 = arith.constant 0 : index
    %0 = vector.load %arg1[%c0, %c0_0, %c0_1] : memref<1x256x128xf32, #tpu.memory_space<vmem>>, vector<1x256x128xf32>
    %1 = vector.shape_cast %0 : vector<1x256x128xf32> to vector<256x128xf32>
    %c0_2 = arith.constant 0 : index
    %c0_3 = arith.constant 0 : index
    %2 = vector.load %arg2[%c0_2, %c0_3] : memref<128x16xf32, #tpu.memory_space<vmem>>, vector<128x16xf32>
    %cst = arith.constant dense<0.000000e+00> : vector<256x16xf32>
    %3 = tpu.matmul %1, %2, %cst {dimension_numbers = #tpu.dot_dimension_numbers<[1], [0], [0], [1], [0, 0, 1, 1], [], []>} : vector<256x128xf32>, vector<128x16xf32>, vector<256x16xf32> -> vector<256x16xf32>
    %c0_4 = arith.constant 0 : index
    %c0_5 = arith.constant 0 : index
    %4 = vector.load %arg3[%c0_4, %c0_5] : memref<16x128xf32, #tpu.memory_space<vmem>>, vector<16x128xf32>
    %cst_6 = arith.constant dense<0.000000e+00> : vector<256x128xf32>
    %5 = tpu.matmul %3, %4, %cst_6 {dimension_numbers = #tpu.dot_dimension_numbers<[1], [0], [0], [1], [0, 0, 1, 1], [], []>} : vector<256x16xf32>, vector<16x128xf32>, vector<256x128xf32> -> vector<256x128xf32>
    %c0_7 = arith.constant 0 : index
    %c0_8 = arith.constant 0 : index
    %6 = vector.load %arg4[%c0_7, %c0_8] : memref<1x128xf32, #tpu.memory_space<vmem>>, vector<1x128xf32>
    %7 = vector.broadcast %6 : vector<1x128xf32> to vector<256x128xf32>
    %8 = arith.addf %5, %7 : vector<256x128xf32>
    %cst_9 = arith.constant 0.000000e+00 : f32
    %9 = vector.broadcast %cst_9 : f32 to vector<256x128xf32>
    %10 = arith.maximumf %8, %9 : vector<256x128xf32>
    %11 = vector.broadcast %cst_9 : f32 to vector<256x128xf32>
    %12 = arith.subf %8, %11 : vector<256x128xf32>
    %13 = arith.cmpf one, %12, %12 : vector<256x128xf32>
    %14 = vector.broadcast %cst_9 : f32 to vector<256x128xf32>
    %15 = arith.addf %8, %14 : vector<256x128xf32>
    %16 = math.absf %12 : vector<256x128xf32>
    %cst_10 = arith.constant 0.000000e+00 : f32
    %17 = vector.broadcast %cst_10 : f32 to vector<256x128xf32>
    %18 = arith.subf %17, %16 : vector<256x128xf32>
    %19 = math.exp %18 : vector<256x128xf32>
    %20 = math.log1p %19 : vector<256x128xf32>
    %21 = arith.addf %10, %20 : vector<256x128xf32>
    %22 = arith.select %13, %15, %21 : vector<256x128xi1>, vector<256x128xf32>
    %23 = arith.mulf %22, %1 : vector<256x128xf32>
    %24 = vector.shape_cast %22 : vector<256x128xf32> to vector<32x8x128xf32>
    %c0_11 = arith.constant 0 : index
    %c0_12 = arith.constant 0 : index
    %25 = vector.load %arg5[%c0_11, %c0_12] : memref<8x128xf32, #tpu.memory_space<vmem>>, vector<8x128xf32>
    %26 = vector.shape_cast %25 : vector<8x128xf32> to vector<1x8x128xf32>
    %27 = vector.broadcast %26 : vector<1x8x128xf32> to vector<32x8x128xf32>
    %28 = arith.mulf %24, %27 : vector<32x8x128xf32>
    %29 = math.exp %28 : vector<32x8x128xf32>
    %c0_13 = arith.constant 0 : index
    %c0_14 = arith.constant 0 : index
    %c0_15 = arith.constant 0 : index
    %30 = vector.load %arg11[%c0_13, %c0_14, %c0_15] : memref<32x8x128xf32, #tpu.memory_space<vmem>>, vector<32x8x128xf32>
    tpu.vector_store %arg11[%c0_13, %c0_14, %c0_15], %29 {strides = array<i32>} : memref<32x8x128xf32, #tpu.memory_space<vmem>>, vector<32x8x128xf32>,
    %c0_16 = arith.constant 0 : index
    %c0_17 = arith.constant 0 : index
    %31 = vector.load %arg6[%c0_16, %c0_17] : memref<128x16xf32, #tpu.memory_space<vmem>>, vector<128x16xf32>
    %cst_18 = arith.constant dense<0.000000e+00> : vector<256x16xf32>
    %32 = tpu.matmul %1, %31, %cst_18 {dimension_numbers = #tpu.dot_dimension_numbers<[1], [0], [0], [1], [0, 0, 1, 1], [], []>} : vector<256x128xf32>, vector<128x16xf32>, vector<256x16xf32> -> vector<256x16xf32>
    %33 = vector.shape_cast %32 : vector<256x16xf32> to vector<32x8x16xf32>
    %c0_19 = arith.constant 0 : index
    %c0_20 = arith.constant 0 : index
    %34 = vector.load %arg8[%c0_19, %c0_20] : memref<8x16xf32, #tpu.memory_space<vmem>>, vector<8x16xf32>
    %35 = vector.shape_cast %34 : vector<8x16xf32> to vector<1x8x16xf32>
    %36 = vector.broadcast %35 : vector<1x8x16xf32> to vector<32x8x16xf32>
    %37 = arith.mulf %33, %36 : vector<32x8x16xf32>
    %38 = vector.shape_cast %37 : vector<32x8x16xf32> to vector<256x16xf32>
    %c0_21 = arith.constant 0 : index
    %c0_22 = arith.constant 0 : index
    %39 = vector.load %arg9[%c0_21, %c0_22] : memref<16x128xf32, #tpu.memory_space<vmem>>, vector<16x128xf32>
    %cst_23 = arith.constant dense<0.000000e+00> : vector<256x128xf32>
    %40 = tpu.matmul %38, %39, %cst_23 {dimension_numbers = #tpu.dot_dimension_numbers<[1], [0], [0], [1], [0, 0, 1, 1], [], []>} : vector<256x16xf32>, vector<16x128xf32>, vector<256x128xf32> -> vector<256x128xf32>
    %41 = arith.mulf %23, %40 : vector<256x128xf32>
    %42 = vector.shape_cast %41 : vector<256x128xf32> to vector<32x8x128xf32>
    %c0_24 = arith.constant 0 : index
    %c0_25 = arith.constant 0 : index
    %c0_26 = arith.constant 0 : index
    %43 = vector.load %arg12[%c0_24, %c0_25, %c0_26] : memref<32x8x128xf32, #tpu.memory_space<vmem>>, vector<32x8x128xf32>
    tpu.vector_store %arg12[%c0_24, %c0_25, %c0_26], %42 {strides = array<i32>} : memref<32x8x128xf32, #tpu.memory_space<vmem>>, vector<32x8x128xf32>,
    %c0_27 = arith.constant 0 : index
    %c0_28 = arith.constant 0 : index
    %44 = vector.load %arg7[%c0_27, %c0_28] : memref<128x16xf32, #tpu.memory_space<vmem>>, vector<128x16xf32>
    %cst_29 = arith.constant dense<0.000000e+00> : vector<256x16xf32>
    %45 = tpu.matmul %1, %44, %cst_29 {dimension_numbers = #tpu.dot_dimension_numbers<[1], [0], [0], [1], [0, 0, 1, 1], [], []>} : vector<256x128xf32>, vector<128x16xf32>, vector<256x16xf32> -> vector<256x16xf32>
    %46 = vector.shape_cast %45 : vector<256x16xf32> to vector<32x8x16xf32>
    %c0_30 = arith.constant 0 : index
    %c0_31 = arith.constant 0 : index
    %47 = vector.load %arg8[%c0_30, %c0_31] : memref<8x16xf32, #tpu.memory_space<vmem>>, vector<8x16xf32>
    %48 = vector.shape_cast %47 : vector<8x16xf32> to vector<1x8x16xf32>
    %49 = vector.broadcast %48 : vector<1x8x16xf32> to vector<32x8x16xf32>
    %50 = arith.mulf %46, %49 : vector<32x8x16xf32>
    %51 = vector.shape_cast %50 : vector<32x8x16xf32> to vector<256x16xf32>
    %c0_32 = arith.constant 0 : index
    %c0_33 = arith.constant 0 : index
    %52 = vector.load %arg9[%c0_32, %c0_33] : memref<16x128xf32, #tpu.memory_space<vmem>>, vector<16x128xf32>
    %cst_34 = arith.constant dense<0.000000e+00> : vector<256x128xf32>
    %53 = tpu.matmul %51, %52, %cst_34 {dimension_numbers = #tpu.dot_dimension_numbers<[1], [0], [0], [1], [0, 0, 1, 1], [], []>} : vector<256x16xf32>, vector<16x128xf32>, vector<256x128xf32> -> vector<256x128xf32>
    %54 = vector.shape_cast %53 : vector<256x128xf32> to vector<32x8x128xf32>
    %c0_35 = arith.constant 0 : index
    %c0_36 = arith.constant 0 : index
    %c0_37 = arith.constant 0 : index
    %55 = vector.load %arg13[%c0_35, %c0_36, %c0_37] : memref<32x8x128xf32, #tpu.memory_space<vmem>>, vector<32x8x128xf32>
    tpu.vector_store %arg13[%c0_35, %c0_36, %c0_37], %54 {strides = array<i32>} : memref<32x8x128xf32, #tpu.memory_space<vmem>>, vector<32x8x128xf32>,
    %cst_38 = arith.constant 0.000000e+00 : f32
    %56 = vector.broadcast %cst_38 : f32 to vector<4x128xf32>
    %c0_39 = arith.constant 0 : index
    %c0_40 = arith.constant 0 : index
    %c0_41 = arith.constant 0 : index
    %57 = vector.load %arg11[%c0_39, %c0_40, %c0_41] : memref<32x8x128xf32, #tpu.memory_space<vmem>>, vector<1x8x128xf32>
    %58 = vector.shape_cast %57 : vector<1x8x128xf32> to vector<8x128xf32>
    %c0_42 = arith.constant 0 : index
    %c0_43 = arith.constant 0 : index
    %c0_44 = arith.constant 0 : index
    %59 = vector.load %arg12[%c0_42, %c0_43, %c0_44] : memref<32x8x128xf32, #tpu.memory_space<vmem>>, vector<1x8x128xf32>
    %60 = vector.shape_cast %59 : vector<1x8x128xf32> to vector<8x128xf32>
    %c0_45 = arith.constant 0 : index
    %c0_46 = arith.constant 0 : index
    %c0_47 = arith.constant 0 : index
    %61 = vector.load %arg13[%c0_45, %c0_46, %c0_47] : memref<32x8x128xf32, #tpu.memory_space<vmem>>, vector<1x8x128xf32>
    %62 = vector.shape_cast %61 : vector<1x8x128xf32> to vector<8x128xf32>
    %63 = vector.extract_strided_slice %58 {offsets = [0, 0], sizes = [4, 128], strides = [1, 1]} : vector<8x128xf32> to vector<4x128xf32>
    %64 = arith.mulf %56, %63 : vector<4x128xf32>
    %65 = vector.extract_strided_slice %60 {offsets = [0, 0], sizes = [4, 128], strides = [1, 1]} : vector<8x128xf32> to vector<4x128xf32>
    %66 = arith.addf %64, %65 : vector<4x128xf32>
    %67 = vector.extract_strided_slice %62 {offsets = [0, 0], sizes = [4, 128], strides = [1, 1]} : vector<8x128xf32> to vector<4x128xf32>
    %68 = arith.mulf %67, %66 : vector<4x128xf32>
    %cst_48 = arith.constant dense<0.000000e+00> : vector<128xf32>
    %69 = vector.multi_reduction <add>, %68, %cst_48 [0] : vector<4x128xf32> to vector<128xf32>
    %70 = vector.shape_cast %69 : vector<128xf32> to vector<1x128xf32>
    %71 = vector.extract_strided_slice %58 {offsets = [4, 0], sizes = [4, 128], strides = [1, 1]} : vector<8x128xf32> to vector<4x128xf32>
    %72 = arith.mulf %66, %71 : vector<4x128xf32>
    %73 = vector.extract_strided_slice %60 {offsets = [4, 0], sizes = [4, 128], strides = [1, 1]} : vector<8x128xf32> to vector<4x128xf32>
    %74 = arith.addf %72, %73 : vector<4x128xf32>
    %75 = vector.extract_strided_slice %62 {offsets = [4, 0], sizes = [4, 128], strides = [1, 1]} : vector<8x128xf32> to vector<4x128xf32>
    %76 = arith.mulf %75, %74 : vector<4x128xf32>
    %cst_49 = arith.constant dense<0.000000e+00> : vector<128xf32>
    %77 = vector.multi_reduction <add>, %76, %cst_49 [0] : vector<4x128xf32> to vector<128xf32>
    %78 = vector.shape_cast %77 : vector<128xf32> to vector<1x128xf32>
    %c1 = arith.constant 1 : index
    %c0_50 = arith.constant 0 : index
    %c0_51 = arith.constant 0 : index
    %79 = vector.load %arg11[%c1, %c0_50, %c0_51] : memref<32x8x128xf32, #tpu.memory_space<vmem>>, vector<1x8x128xf32>
    %80 = vector.shape_cast %79 : vector<1x8x128xf32> to vector<8x128xf32>
    %c1_52 = arith.constant 1 : index
    %c0_53 = arith.constant 0 : index
    %c0_54 = arith.constant 0 : index
    %81 = vector.load %arg12[%c1_52, %c0_53, %c0_54] : memref<32x8x128xf32, #tpu.memory_space<vmem>>, vector<1x8x128xf32>
    %82 = vector.shape_cast %81 : vector<1x8x128xf32> to vector<8x128xf32>
    %c1_55 = arith.constant 1 : index
    %c0_56 = arith.constant 0 : index
    %c0_57 = arith.constant 0 : index
    %83 = vector.load %arg13[%c1_55, %c0_56, %c0_57] : memref<32x8x128xf32, #tpu.memory_space<vmem>>, vector<1x8x128xf32>
    %84 = vector.shape_cast %83 : vector<1x8x128xf32> to vector<8x128xf32>
    %85 = vector.extract_strided_slice %80 {offsets = [0, 0], sizes = [4, 128], strides = [1, 1]} : vector<8x128xf32> to vector<4x128xf32>
    %86 = arith.mulf %74, %85 : vector<4x128xf32>
    %87 = vector.extract_strided_slice %82 {offsets = [0, 0], sizes = [4, 128], strides = [1, 1]} : vector<8x128xf32> to vector<4x128xf32>
    %88 = arith.addf %86, %87 : vector<4x128xf32>
    %89 = vector.extract_strided_slice %84 {offsets = [0, 0], sizes = [4, 128], strides = [1, 1]} : vector<8x128xf32> to vector<4x128xf32>
    %90 = arith.mulf %89, %88 : vector<4x128xf32>
    %cst_58 = arith.constant dense<0.000000e+00> : vector<128xf32>
    %91 = vector.multi_reduction <add>, %90, %cst_58 [0] : vector<4x128xf32> to vector<128xf32>
    %92 = vector.shape_cast %91 : vector<128xf32> to vector<1x128xf32>
    %93 = vector.extract_strided_slice %80 {offsets = [4, 0], sizes = [4, 128], strides = [1, 1]} : vector<8x128xf32> to vector<4x128xf32>
    %94 = arith.mulf %88, %93 : vector<4x128xf32>
    %95 = vector.extract_strided_slice %82 {offsets = [4, 0], sizes = [4, 128], strides = [1, 1]} : vector<8x128xf32> to vector<4x128xf32>
    %96 = arith.addf %94, %95 : vector<4x128xf32>
    %97 = vector.extract_strided_slice %84 {offsets = [4, 0], sizes = [4, 128], strides = [1, 1]} : vector<8x128xf32> to vector<4x128xf32>
    %98 = arith.mulf %97, %96 : vector<4x128xf32>
    %cst_59 = arith.constant dense<0.000000e+00> : vector<128xf32>
    %99 = vector.multi_reduction <add>, %98, %cst_59 [0] : vector<4x128xf32> to vector<128xf32>
    %100 = vector.shape_cast %99 : vector<128xf32> to vector<1x128xf32>
    %c2 = arith.constant 2 : index
    %c0_60 = arith.constant 0 : index
    %c0_61 = arith.constant 0 : index
    %101 = vector.load %arg11[%c2, %c0_60, %c0_61] : memref<32x8x128xf32, #tpu.memory_space<vmem>>, vector<1x8x128xf32>
    %102 = vector.shape_cast %101 : vector<1x8x128xf32> to vector<8x128xf32>
    %c2_62 = arith.constant 2 : index
    %c0_63 = arith.constant 0 : index
    %c0_64 = arith.constant 0 : index
    %103 = vector.load %arg12[%c2_62, %c0_63, %c0_64] : memref<32x8x128xf32, #tpu.memory_space<vmem>>, vector<1x8x128xf32>
    %104 = vector.shape_cast %103 : vector<1x8x128xf32> to vector<8x128xf32>
    %c2_65 = arith.constant 2 : index
    %c0_66 = arith.constant 0 : index
    %c0_67 = arith.constant 0 : index
    %105 = vector.load %arg13[%c2_65, %c0_66, %c0_67] : memref<32x8x128xf32, #tpu.memory_space<vmem>>, vector<1x8x128xf32>
    %106 = vector.shape_cast %105 : vector<1x8x128xf32> to vector<8x128xf32>
    %107 = vector.extract_strided_slice %102 {offsets = [0, 0], sizes = [4, 128], strides = [1, 1]} : vector<8x128xf32> to vector<4x128xf32>
    %108 = arith.mulf %96, %107 : vector<4x128xf32>
    %109 = vector.extract_strided_slice %104 {offsets = [0, 0], sizes = [4, 128], strides = [1, 1]} : vector<8x128xf32> to vector<4x128xf32>
    %110 = arith.addf %108, %109 : vector<4x128xf32>
    %111 = vector.extract_strided_slice %106 {offsets = [0, 0], sizes = [4, 128], strides = [1, 1]} : vector<8x128xf32> to vector<4x128xf32>
    %112 = arith.mulf %111, %110 : vector<4x128xf32>
    %cst_68 = arith.constant dense<0.000000e+00> : vector<128xf32>
    %113 = vector.multi_reduction <add>, %112, %cst_68 [0] : vector<4x128xf32> to vector<128xf32>
    %114 = vector.shape_cast %113 : vector<128xf32> to vector<1x128xf32>
    %115 = vector.extract_strided_slice %102 {offsets = [4, 0], sizes = [4, 128], strides = [1, 1]} : vector<8x128xf32> to vector<4x128xf32>
    %116 = arith.mulf %110, %115 : vector<4x128xf32>
    %117 = vector.extract_strided_slice %104 {offsets = [4, 0], sizes = [4, 128], strides = [1, 1]} : vector<8x128xf32> to vector<4x128xf32>
    %118 = arith.addf %116, %117 : vector<4x128xf32>
    %119 = vector.extract_strided_slice %106 {offsets = [4, 0], sizes = [4, 128], strides = [1, 1]} : vector<8x128xf32> to vector<4x128xf32>
    %120 = arith.mulf %119, %118 : vector<4x128xf32>
    %cst_69 = arith.constant dense<0.000000e+00> : vector<128xf32>
    %121 = vector.multi_reduction <add>, %120, %cst_69 [0] : vector<4x128xf32> to vector<128xf32>
    %122 = vector.shape_cast %121 : vector<128xf32> to vector<1x128xf32>
    %c3 = arith.constant 3 : index
    %c0_70 = arith.constant 0 : index
    %c0_71 = arith.constant 0 : index
    %123 = vector.load %arg11[%c3, %c0_70, %c0_71] : memref<32x8x128xf32, #tpu.memory_space<vmem>>, vector<1x8x128xf32>
    %124 = vector.shape_cast %123 : vector<1x8x128xf32> to vector<8x128xf32>
    %c3_72 = arith.constant 3 : index
    %c0_73 = arith.constant 0 : index
    %c0_74 = arith.constant 0 : index
    %125 = vector.load %arg12[%c3_72, %c0_73, %c0_74] : memref<32x8x128xf32, #tpu.memory_space<vmem>>, vector<1x8x128xf32>
    %126 = vector.shape_cast %125 : vector<1x8x128xf32> to vector<8x128xf32>
    %c3_75 = arith.constant 3 : index
    %c0_76 = arith.constant 0 : index
    %c0_77 = arith.constant 0 : index
    %127 = vector.load %arg13[%c3_75, %c0_76, %c0_77] : memref<32x8x128xf32, #tpu.memory_space<vmem>>, vector<1x8x128xf32>
    %128 = vector.shape_cast %127 : vector<1x8x128xf32> to vector<8x128xf32>
    %129 = vector.extract_strided_slice %124 {offsets = [0, 0], sizes = [4, 128], strides = [1, 1]} : vector<8x128xf32> to vector<4x128xf32>
    %130 = arith.mulf %118, %129 : vector<4x128xf32>
    %131 = vector.extract_strided_slice %126 {offsets = [0, 0], sizes = [4, 128], strides = [1, 1]} : vector<8x128xf32> to vector<4x128xf32>
    %132 = arith.addf %130, %131 : vector<4x128xf32>
    %133 = vector.extract_strided_slice %128 {offsets = [0, 0], sizes = [4, 128], strides = [1, 1]} : vector<8x128xf32> to vector<4x128xf32>
    %134 = arith.mulf %133, %132 : vector<4x128xf32>
    %cst_78 = arith.constant dense<0.000000e+00> : vector<128xf32>
    %135 = vector.multi_reduction <add>, %134, %cst_78 [0] : vector<4x128xf32> to vector<128xf32>
    %136 = vector.shape_cast %135 : vector<128xf32> to vector<1x128xf32>
    %137 = vector.extract_strided_slice %124 {offsets = [4, 0], sizes = [4, 128], strides = [1, 1]} : vector<8x128xf32> to vector<4x128xf32>
    %138 = arith.mulf %132, %137 : vector<4x128xf32>
    %139 = vector.extract_strided_slice %126 {offsets = [4, 0], sizes = [4, 128], strides = [1, 1]} : vector<8x128xf32> to vector<4x128xf32>
    %140 = arith.addf %138, %139 : vector<4x128xf32>
    %141 = vector.extract_strided_slice %128 {offsets = [4, 0], sizes = [4, 128], strides = [1, 1]} : vector<8x128xf32> to vector<4x128xf32>
    %142 = arith.mulf %141, %140 : vector<4x128xf32>
    %cst_79 = arith.constant dense<0.000000e+00> : vector<128xf32>
    %143 = vector.multi_reduction <add>, %142, %cst_79 [0] : vector<4x128xf32> to vector<128xf32>
    %144 = vector.shape_cast %143 : vector<128xf32> to vector<1x128xf32>
    %145 = tpu.concatenate %70, %78, %92, %100, %114, %122, %136, %144 in 0 : vector<1x128xf32>, vector<1x128xf32>, vector<1x128xf32>, vector<1x128xf32>, vector<1x128xf32>, vector<1x128xf32>, vector<1x128xf32>, vector<1x128xf32> -> vector<8x128xf32>
    %c0_80 = arith.constant 0 : index
    %c0_81 = arith.constant 0 : index
    %c0_82 = arith.constant 0 : index
    %146 = vector.load %arg10[%c0_80, %c0_81, %c0_82] : memref<1x64x128xf32, #tpu.memory_space<vmem>>, vector<1x8x128xf32>
    %147 = vector.shape_cast %146 : vector<1x8x128xf32> to vector<8x128xf32>
    %148 = vector.shape_cast %145 : vector<8x128xf32> to vector<1x8x128xf32>
    tpu.vector_store %arg10[%c0_80, %c0_81, %c0_82], %148 {strides = array<i32>} : memref<1x64x128xf32, #tpu.memory_space<vmem>>, vector<1x8x128xf32>,
    %c4 = arith.constant 4 : index
    %c0_83 = arith.constant 0 : index
    %c0_84 = arith.constant 0 : index
    %149 = vector.load %arg11[%c4, %c0_83, %c0_84] : memref<32x8x128xf32, #tpu.memory_space<vmem>>, vector<1x8x128xf32>
    %150 = vector.shape_cast %149 : vector<1x8x128xf32> to vector<8x128xf32>
    %c4_85 = arith.constant 4 : index
    %c0_86 = arith.constant 0 : index
    %c0_87 = arith.constant 0 : index
    %151 = vector.load %arg12[%c4_85, %c0_86, %c0_87] : memref<32x8x128xf32, #tpu.memory_space<vmem>>, vector<1x8x128xf32>
    %152 = vector.shape_cast %151 : vector<1x8x128xf32> to vector<8x128xf32>
    %c4_88 = arith.constant 4 : index
    %c0_89 = arith.constant 0 : index
    %c0_90 = arith.constant 0 : index
    %153 = vector.load %arg13[%c4_88, %c0_89, %c0_90] : memref<32x8x128xf32, #tpu.memory_space<vmem>>, vector<1x8x128xf32>
    %154 = vector.shape_cast %153 : vector<1x8x128xf32> to vector<8x128xf32>
    %155 = vector.extract_strided_slice %150 {offsets = [0, 0], sizes = [4, 128], strides = [1, 1]} : vector<8x128xf32> to vector<4x128xf32>
    %156 = arith.mulf %140, %155 : vector<4x128xf32>
    %157 = vector.extract_strided_slice %152 {offsets = [0, 0], sizes = [4, 128], strides = [1, 1]} : vector<8x128xf32> to vector<4x128xf32>
    %158 = arith.addf %156, %157 : vector<4x128xf32>
    %159 = vector.extract_strided_slice %154 {offsets = [0, 0], sizes = [4, 128], strides = [1, 1]} : vector<8x128xf32> to vector<4x128xf32>
    %160 = arith.mulf %159, %158 : vector<4x128xf32>
    %cst_91 = arith.constant dense<0.000000e+00> : vector<128xf32>
    %161 = vector.multi_reduction <add>, %160, %cst_91 [0] : vector<4x128xf32> to vector<128xf32>
    %162 = vector.shape_cast %161 : vector<128xf32> to vector<1x128xf32>
    %163 = vector.extract_strided_slice %150 {offsets = [4, 0], sizes = [4, 128], strides = [1, 1]} : vector<8x128xf32> to vector<4x128xf32>
    %164 = arith.mulf %158, %163 : vector<4x128xf32>
    %165 = vector.extract_strided_slice %152 {offsets = [4, 0], sizes = [4, 128], strides = [1, 1]} : vector<8x128xf32> to vector<4x128xf32>
    %166 = arith.addf %164, %165 : vector<4x128xf32>
    %167 = vector.extract_strided_slice %154 {offsets = [4, 0], sizes = [4, 128], strides = [1, 1]} : vector<8x128xf32> to vector<4x128xf32>
    %168 = arith.mulf %167, %166 : vector<4x128xf32>
    %cst_92 = arith.constant dense<0.000000e+00> : vector<128xf32>
    %169 = vector.multi_reduction <add>, %168, %cst_92 [0] : vector<4x128xf32> to vector<128xf32>
    %170 = vector.shape_cast %169 : vector<128xf32> to vector<1x128xf32>
    %c5 = arith.constant 5 : index
    %c0_93 = arith.constant 0 : index
    %c0_94 = arith.constant 0 : index
    %171 = vector.load %arg11[%c5, %c0_93, %c0_94] : memref<32x8x128xf32, #tpu.memory_space<vmem>>, vector<1x8x128xf32>
    %172 = vector.shape_cast %171 : vector<1x8x128xf32> to vector<8x128xf32>
    %c5_95 = arith.constant 5 : index
    %c0_96 = arith.constant 0 : index
    %c0_97 = arith.constant 0 : index
    %173 = vector.load %arg12[%c5_95, %c0_96, %c0_97] : memref<32x8x128xf32, #tpu.memory_space<vmem>>, vector<1x8x128xf32>
    %174 = vector.shape_cast %173 : vector<1x8x128xf32> to vector<8x128xf32>
    %c5_98 = arith.constant 5 : index
    %c0_99 = arith.constant 0 : index
    %c0_100 = arith.constant 0 : index
    %175 = vector.load %arg13[%c5_98, %c0_99, %c0_100] : memref<32x8x128xf32, #tpu.memory_space<vmem>>, vector<1x8x128xf32>
    %176 = vector.shape_cast %175 : vector<1x8x128xf32> to vector<8x128xf32>
    %177 = vector.extract_strided_slice %172 {offsets = [0, 0], sizes = [4, 128], strides = [1, 1]} : vector<8x128xf32> to vector<4x128xf32>
    %178 = arith.mulf %166, %177 : vector<4x128xf32>
    %179 = vector.extract_strided_slice %174 {offsets = [0, 0], sizes = [4, 128], strides = [1, 1]} : vector<8x128xf32> to vector<4x128xf32>
    %180 = arith.addf %178, %179 : vector<4x128xf32>
    %181 = vector.extract_strided_slice %176 {offsets = [0, 0], sizes = [4, 128], strides = [1, 1]} : vector<8x128xf32> to vector<4x128xf32>
    %182 = arith.mulf %181, %180 : vector<4x128xf32>
    %cst_101 = arith.constant dense<0.000000e+00> : vector<128xf32>
    %183 = vector.multi_reduction <add>, %182, %cst_101 [0] : vector<4x128xf32> to vector<128xf32>
    %184 = vector.shape_cast %183 : vector<128xf32> to vector<1x128xf32>
    %185 = vector.extract_strided_slice %172 {offsets = [4, 0], sizes = [4, 128], strides = [1, 1]} : vector<8x128xf32> to vector<4x128xf32>
    %186 = arith.mulf %180, %185 : vector<4x128xf32>
    %187 = vector.extract_strided_slice %174 {offsets = [4, 0], sizes = [4, 128], strides = [1, 1]} : vector<8x128xf32> to vector<4x128xf32>
    %188 = arith.addf %186, %187 : vector<4x128xf32>
    %189 = vector.extract_strided_slice %176 {offsets = [4, 0], sizes = [4, 128], strides = [1, 1]} : vector<8x128xf32> to vector<4x128xf32>
    %190 = arith.mulf %189, %188 : vector<4x128xf32>
    %cst_102 = arith.constant dense<0.000000e+00> : vector<128xf32>
    %191 = vector.multi_reduction <add>, %190, %cst_102 [0] : vector<4x128xf32> to vector<128xf32>
    %192 = vector.shape_cast %191 : vector<128xf32> to vector<1x128xf32>
    %c6 = arith.constant 6 : index
    %c0_103 = arith.constant 0 : index
    %c0_104 = arith.constant 0 : index
    %193 = vector.load %arg11[%c6, %c0_103, %c0_104] : memref<32x8x128xf32, #tpu.memory_space<vmem>>, vector<1x8x128xf32>
    %194 = vector.shape_cast %193 : vector<1x8x128xf32> to vector<8x128xf32>
    %c6_105 = arith.constant 6 : index
    %c0_106 = arith.constant 0 : index
    %c0_107 = arith.constant 0 : index
    %195 = vector.load %arg12[%c6_105, %c0_106, %c0_107] : memref<32x8x128xf32, #tpu.memory_space<vmem>>, vector<1x8x128xf32>
    %196 = vector.shape_cast %195 : vector<1x8x128xf32> to vector<8x128xf32>
    %c6_108 = arith.constant 6 : index
    %c0_109 = arith.constant 0 : index
    %c0_110 = arith.constant 0 : index
    %197 = vector.load %arg13[%c6_108, %c0_109, %c0_110] : memref<32x8x128xf32, #tpu.memory_space<vmem>>, vector<1x8x128xf32>
    %198 = vector.shape_cast %197 : vector<1x8x128xf32> to vector<8x128xf32>
    %199 = vector.extract_strided_slice %194 {offsets = [0, 0], sizes = [4, 128], strides = [1, 1]} : vector<8x128xf32> to vector<4x128xf32>
    %200 = arith.mulf %188, %199 : vector<4x128xf32>
    %201 = vector.extract_strided_slice %196 {offsets = [0, 0], sizes = [4, 128], strides = [1, 1]} : vector<8x128xf32> to vector<4x128xf32>
    %202 = arith.addf %200, %201 : vector<4x128xf32>
    %203 = vector.extract_strided_slice %198 {offsets = [0, 0], sizes = [4, 128], strides = [1, 1]} : vector<8x128xf32> to vector<4x128xf32>
    %204 = arith.mulf %203, %202 : vector<4x128xf32>
    %cst_111 = arith.constant dense<0.000000e+00> : vector<128xf32>
    %205 = vector.multi_reduction <add>, %204, %cst_111 [0] : vector<4x128xf32> to vector<128xf32>
    %206 = vector.shape_cast %205 : vector<128xf32> to vector<1x128xf32>
    %207 = vector.extract_strided_slice %194 {offsets = [4, 0], sizes = [4, 128], strides = [1, 1]} : vector<8x128xf32> to vector<4x128xf32>
    %208 = arith.mulf %202, %207 : vector<4x128xf32>
    %209 = vector.extract_strided_slice %196 {offsets = [4, 0], sizes = [4, 128], strides = [1, 1]} : vector<8x128xf32> to vector<4x128xf32>
    %210 = arith.addf %208, %209 : vector<4x128xf32>
    %211 = vector.extract_strided_slice %198 {offsets = [4, 0], sizes = [4, 128], strides = [1, 1]} : vector<8x128xf32> to vector<4x128xf32>
    %212 = arith.mulf %211, %210 : vector<4x128xf32>
    %cst_112 = arith.constant dense<0.000000e+00> : vector<128xf32>
    %213 = vector.multi_reduction <add>, %212, %cst_112 [0] : vector<4x128xf32> to vector<128xf32>
    %214 = vector.shape_cast %213 : vector<128xf32> to vector<1x128xf32>
    %c7 = arith.constant 7 : index
    %c0_113 = arith.constant 0 : index
    %c0_114 = arith.constant 0 : index
    %215 = vector.load %arg11[%c7, %c0_113, %c0_114] : memref<32x8x128xf32, #tpu.memory_space<vmem>>, vector<1x8x128xf32>
    %216 = vector.shape_cast %215 : vector<1x8x128xf32> to vector<8x128xf32>
    %c7_115 = arith.constant 7 : index
    %c0_116 = arith.constant 0 : index
    %c0_117 = arith.constant 0 : index
    %217 = vector.load %arg12[%c7_115, %c0_116, %c0_117] : memref<32x8x128xf32, #tpu.memory_space<vmem>>, vector<1x8x128xf32>
    %218 = vector.shape_cast %217 : vector<1x8x128xf32> to vector<8x128xf32>
    %c7_118 = arith.constant 7 : index
    %c0_119 = arith.constant 0 : index
    %c0_120 = arith.constant 0 : index
    %219 = vector.load %arg13[%c7_118, %c0_119, %c0_120] : memref<32x8x128xf32, #tpu.memory_space<vmem>>, vector<1x8x128xf32>
    %220 = vector.shape_cast %219 : vector<1x8x128xf32> to vector<8x128xf32>
    %221 = vector.extract_strided_slice %216 {offsets = [0, 0], sizes = [4, 128], strides = [1, 1]} : vector<8x128xf32> to vector<4x128xf32>
    %222 = arith.mulf %210, %221 : vector<4x128xf32>
    %223 = vector.extract_strided_slice %218 {offsets = [0, 0], sizes = [4, 128], strides = [1, 1]} : vector<8x128xf32> to vector<4x128xf32>
    %224 = arith.addf %222, %223 : vector<4x128xf32>
    %225 = vector.extract_strided_slice %220 {offsets = [0, 0], sizes = [4, 128], strides = [1, 1]} : vector<8x128xf32> to vector<4x128xf32>
    %226 = arith.mulf %225, %224 : vector<4x128xf32>
    %cst_121 = arith.constant dense<0.000000e+00> : vector<128xf32>
    %227 = vector.multi_reduction <add>, %226, %cst_121 [0] : vector<4x128xf32> to vector<128xf32>
    %228 = vector.shape_cast %227 : vector<128xf32> to vector<1x128xf32>
    %229 = vector.extract_strided_slice %216 {offsets = [4, 0], sizes = [4, 128], strides = [1, 1]} : vector<8x128xf32> to vector<4x128xf32>
    %230 = arith.mulf %224, %229 : vector<4x128xf32>
    %231 = vector.extract_strided_slice %218 {offsets = [4, 0], sizes = [4, 128], strides = [1, 1]} : vector<8x128xf32> to vector<4x128xf32>
    %232 = arith.addf %230, %231 : vector<4x128xf32>
    %233 = vector.extract_strided_slice %220 {offsets = [4, 0], sizes = [4, 128], strides = [1, 1]} : vector<8x128xf32> to vector<4x128xf32>
    %234 = arith.mulf %233, %232 : vector<4x128xf32>
    %cst_122 = arith.constant dense<0.000000e+00> : vector<128xf32>
    %235 = vector.multi_reduction <add>, %234, %cst_122 [0] : vector<4x128xf32> to vector<128xf32>
    %236 = vector.shape_cast %235 : vector<128xf32> to vector<1x128xf32>
    %237 = tpu.concatenate %162, %170, %184, %192, %206, %214, %228, %236 in 0 : vector<1x128xf32>, vector<1x128xf32>, vector<1x128xf32>, vector<1x128xf32>, vector<1x128xf32>, vector<1x128xf32>, vector<1x128xf32>, vector<1x128xf32> -> vector<8x128xf32>
    %c0_123 = arith.constant 0 : index
    %c8 = arith.constant 8 : index
    %c0_124 = arith.constant 0 : index
    %238 = vector.load %arg10[%c0_123, %c8, %c0_124] : memref<1x64x128xf32, #tpu.memory_space<vmem>>, vector<1x8x128xf32>
    %239 = vector.shape_cast %238 : vector<1x8x128xf32> to vector<8x128xf32>
    %240 = vector.shape_cast %237 : vector<8x128xf32> to vector<1x8x128xf32>
    tpu.vector_store %arg10[%c0_123, %c8, %c0_124], %240 {strides = array<i32>} : memref<1x64x128xf32, #tpu.memory_space<vmem>>, vector<1x8x128xf32>,
    %c8_125 = arith.constant 8 : index
    %c0_126 = arith.constant 0 : index
    %c0_127 = arith.constant 0 : index
    %241 = vector.load %arg11[%c8_125, %c0_126, %c0_127] : memref<32x8x128xf32, #tpu.memory_space<vmem>>, vector<1x8x128xf32>
    %242 = vector.shape_cast %241 : vector<1x8x128xf32> to vector<8x128xf32>
    %c8_128 = arith.constant 8 : index
    %c0_129 = arith.constant 0 : index
    %c0_130 = arith.constant 0 : index
    %243 = vector.load %arg12[%c8_128, %c0_129, %c0_130] : memref<32x8x128xf32, #tpu.memory_space<vmem>>, vector<1x8x128xf32>
    %244 = vector.shape_cast %243 : vector<1x8x128xf32> to vector<8x128xf32>
    %c8_131 = arith.constant 8 : index
    %c0_132 = arith.constant 0 : index
    %c0_133 = arith.constant 0 : index
    %245 = vector.load %arg13[%c8_131, %c0_132, %c0_133] : memref<32x8x128xf32, #tpu.memory_space<vmem>>, vector<1x8x128xf32>
    %246 = vector.shape_cast %245 : vector<1x8x128xf32> to vector<8x128xf32>
    %247 = vector.extract_strided_slice %242 {offsets = [0, 0], sizes = [4, 128], strides = [1, 1]} : vector<8x128xf32> to vector<4x128xf32>
    %248 = arith.mulf %232, %247 : vector<4x128xf32>
    %249 = vector.extract_strided_slice %244 {offsets = [0, 0], sizes = [4, 128], strides = [1, 1]} : vector<8x128xf32> to vector<4x128xf32>
    %250 = arith.addf %248, %249 : vector<4x128xf32>
    %251 = vector.extract_strided_slice %246 {offsets = [0, 0], sizes = [4, 128], strides = [1, 1]} : vector<8x128xf32> to vector<4x128xf32>
    %252 = arith.mulf %251, %250 : vector<4x128xf32>
    %cst_134 = arith.constant dense<0.000000e+00> : vector<128xf32>
    %253 = vector.multi_reduction <add>, %252, %cst_134 [0] : vector<4x128xf32> to vector<128xf32>
    %254 = vector.shape_cast %253 : vector<128xf32> to vector<1x128xf32>
    %255 = vector.extract_strided_slice %242 {offsets = [4, 0], sizes = [4, 128], strides = [1, 1]} : vector<8x128xf32> to vector<4x128xf32>
    %256 = arith.mulf %250, %255 : vector<4x128xf32>
    %257 = vector.extract_strided_slice %244 {offsets = [4, 0], sizes = [4, 128], strides = [1, 1]} : vector<8x128xf32> to vector<4x128xf32>
    %258 = arith.addf %256, %257 : vector<4x128xf32>
    %259 = vector.extract_strided_slice %246 {offsets = [4, 0], sizes = [4, 128], strides = [1, 1]} : vector<8x128xf32> to vector<4x128xf32>
    %260 = arith.mulf %259, %258 : vector<4x128xf32>
    %cst_135 = arith.constant dense<0.000000e+00> : vector<128xf32>
    %261 = vector.multi_reduction <add>, %260, %cst_135 [0] : vector<4x128xf32> to vector<128xf32>
    %262 = vector.shape_cast %261 : vector<128xf32> to vector<1x128xf32>
    %c9 = arith.constant 9 : index
    %c0_136 = arith.constant 0 : index
    %c0_137 = arith.constant 0 : index
    %263 = vector.load %arg11[%c9, %c0_136, %c0_137] : memref<32x8x128xf32, #tpu.memory_space<vmem>>, vector<1x8x128xf32>
    %264 = vector.shape_cast %263 : vector<1x8x128xf32> to vector<8x128xf32>
    %c9_138 = arith.constant 9 : index
    %c0_139 = arith.constant 0 : index
    %c0_140 = arith.constant 0 : index
    %265 = vector.load %arg12[%c9_138, %c0_139, %c0_140] : memref<32x8x128xf32, #tpu.memory_space<vmem>>, vector<1x8x128xf32>
    %266 = vector.shape_cast %265 : vector<1x8x128xf32> to vector<8x128xf32>
    %c9_141 = arith.constant 9 : index
    %c0_142 = arith.constant 0 : index
    %c0_143 = arith.constant 0 : index
    %267 = vector.load %arg13[%c9_141, %c0_142, %c0_143] : memref<32x8x128xf32, #tpu.memory_space<vmem>>, vector<1x8x128xf32>
    %268 = vector.shape_cast %267 : vector<1x8x128xf32> to vector<8x128xf32>
    %269 = vector.extract_strided_slice %264 {offsets = [0, 0], sizes = [4, 128], strides = [1, 1]} : vector<8x128xf32> to vector<4x128xf32>
    %270 = arith.mulf %258, %269 : vector<4x128xf32>
    %271 = vector.extract_strided_slice %266 {offsets = [0, 0], sizes = [4, 128], strides = [1, 1]} : vector<8x128xf32> to vector<4x128xf32>
    %272 = arith.addf %270, %271 : vector<4x128xf32>
    %273 = vector.extract_strided_slice %268 {offsets = [0, 0], sizes = [4, 128], strides = [1, 1]} : vector<8x128xf32> to vector<4x128xf32>
    %274 = arith.mulf %273, %272 : vector<4x128xf32>
    %cst_144 = arith.constant dense<0.000000e+00> : vector<128xf32>
    %275 = vector.multi_reduction <add>, %274, %cst_144 [0] : vector<4x128xf32> to vector<128xf32>
    %276 = vector.shape_cast %275 : vector<128xf32> to vector<1x128xf32>
    %277 = vector.extract_strided_slice %264 {offsets = [4, 0], sizes = [4, 128], strides = [1, 1]} : vector<8x128xf32> to vector<4x128xf32>
    %278 = arith.mulf %272, %277 : vector<4x128xf32>
    %279 = vector.extract_strided_slice %266 {offsets = [4, 0], sizes = [4, 128], strides = [1, 1]} : vector<8x128xf32> to vector<4x128xf32>
    %280 = arith.addf %278, %279 : vector<4x128xf32>
    %281 = vector.extract_strided_slice %268 {offsets = [4, 0], sizes = [4, 128], strides = [1, 1]} : vector<8x128xf32> to vector<4x128xf32>
    %282 = arith.mulf %281, %280 : vector<4x128xf32>
    %cst_145 = arith.constant dense<0.000000e+00> : vector<128xf32>
    %283 = vector.multi_reduction <add>, %282, %cst_145 [0] : vector<4x128xf32> to vector<128xf32>
    %284 = vector.shape_cast %283 : vector<128xf32> to vector<1x128xf32>
    %c10 = arith.constant 10 : index
    %c0_146 = arith.constant 0 : index
    %c0_147 = arith.constant 0 : index
    %285 = vector.load %arg11[%c10, %c0_146, %c0_147] : memref<32x8x128xf32, #tpu.memory_space<vmem>>, vector<1x8x128xf32>
    %286 = vector.shape_cast %285 : vector<1x8x128xf32> to vector<8x128xf32>
    %c10_148 = arith.constant 10 : index
    %c0_149 = arith.constant 0 : index
    %c0_150 = arith.constant 0 : index
    %287 = vector.load %arg12[%c10_148, %c0_149, %c0_150] : memref<32x8x128xf32, #tpu.memory_space<vmem>>, vector<1x8x128xf32>
    %288 = vector.shape_cast %287 : vector<1x8x128xf32> to vector<8x128xf32>
    %c10_151 = arith.constant 10 : index
    %c0_152 = arith.constant 0 : index
    %c0_153 = arith.constant 0 : index
    %289 = vector.load %arg13[%c10_151, %c0_152, %c0_153] : memref<32x8x128xf32, #tpu.memory_space<vmem>>, vector<1x8x128xf32>
    %290 = vector.shape_cast %289 : vector<1x8x128xf32> to vector<8x128xf32>
    %291 = vector.extract_strided_slice %286 {offsets = [0, 0], sizes = [4, 128], strides = [1, 1]} : vector<8x128xf32> to vector<4x128xf32>
    %292 = arith.mulf %280, %291 : vector<4x128xf32>
    %293 = vector.extract_strided_slice %288 {offsets = [0, 0], sizes = [4, 128], strides = [1, 1]} : vector<8x128xf32> to vector<4x128xf32>
    %294 = arith.addf %292, %293 : vector<4x128xf32>
    %295 = vector.extract_strided_slice %290 {offsets = [0, 0], sizes = [4, 128], strides = [1, 1]} : vector<8x128xf32> to vector<4x128xf32>
    %296 = arith.mulf %295, %294 : vector<4x128xf32>
    %cst_154 = arith.constant dense<0.000000e+00> : vector<128xf32>
    %297 = vector.multi_reduction <add>, %296, %cst_154 [0] : vector<4x128xf32> to vector<128xf32>
    %298 = vector.shape_cast %297 : vector<128xf32> to vector<1x128xf32>
    %299 = vector.extract_strided_slice %286 {offsets = [4, 0], sizes = [4, 128], strides = [1, 1]} : vector<8x128xf32> to vector<4x128xf32>
    %300 = arith.mulf %294, %299 : vector<4x128xf32>
    %301 = vector.extract_strided_slice %288 {offsets = [4, 0], sizes = [4, 128], strides = [1, 1]} : vector<8x128xf32> to vector<4x128xf32>
    %302 = arith.addf %300, %301 : vector<4x128xf32>
    %303 = vector.extract_strided_slice %290 {offsets = [4, 0], sizes = [4, 128], strides = [1, 1]} : vector<8x128xf32> to vector<4x128xf32>
    %304 = arith.mulf %303, %302 : vector<4x128xf32>
    %cst_155 = arith.constant dense<0.000000e+00> : vector<128xf32>
    %305 = vector.multi_reduction <add>, %304, %cst_155 [0] : vector<4x128xf32> to vector<128xf32>
    %306 = vector.shape_cast %305 : vector<128xf32> to vector<1x128xf32>
    %c11 = arith.constant 11 : index
    %c0_156 = arith.constant 0 : index
    %c0_157 = arith.constant 0 : index
    %307 = vector.load %arg11[%c11, %c0_156, %c0_157] : memref<32x8x128xf32, #tpu.memory_space<vmem>>, vector<1x8x128xf32>
    %308 = vector.shape_cast %307 : vector<1x8x128xf32> to vector<8x128xf32>
    %c11_158 = arith.constant 11 : index
    %c0_159 = arith.constant 0 : index
    %c0_160 = arith.constant 0 : index
    %309 = vector.load %arg12[%c11_158, %c0_159, %c0_160] : memref<32x8x128xf32, #tpu.memory_space<vmem>>, vector<1x8x128xf32>
    %310 = vector.shape_cast %309 : vector<1x8x128xf32> to vector<8x128xf32>
    %c11_161 = arith.constant 11 : index
    %c0_162 = arith.constant 0 : index
    %c0_163 = arith.constant 0 : index
    %311 = vector.load %arg13[%c11_161, %c0_162, %c0_163] : memref<32x8x128xf32, #tpu.memory_space<vmem>>, vector<1x8x128xf32>
    %312 = vector.shape_cast %311 : vector<1x8x128xf32> to vector<8x128xf32>
    %313 = vector.extract_strided_slice %308 {offsets = [0, 0], sizes = [4, 128], strides = [1, 1]} : vector<8x128xf32> to vector<4x128xf32>
    %314 = arith.mulf %302, %313 : vector<4x128xf32>
    %315 = vector.extract_strided_slice %310 {offsets = [0, 0], sizes = [4, 128], strides = [1, 1]} : vector<8x128xf32> to vector<4x128xf32>
    %316 = arith.addf %314, %315 : vector<4x128xf32>
    %317 = vector.extract_strided_slice %312 {offsets = [0, 0], sizes = [4, 128], strides = [1, 1]} : vector<8x128xf32> to vector<4x128xf32>
    %318 = arith.mulf %317, %316 : vector<4x128xf32>
    %cst_164 = arith.constant dense<0.000000e+00> : vector<128xf32>
    %319 = vector.multi_reduction <add>, %318, %cst_164 [0] : vector<4x128xf32> to vector<128xf32>
    %320 = vector.shape_cast %319 : vector<128xf32> to vector<1x128xf32>
    %321 = vector.extract_strided_slice %308 {offsets = [4, 0], sizes = [4, 128], strides = [1, 1]} : vector<8x128xf32> to vector<4x128xf32>
    %322 = arith.mulf %316, %321 : vector<4x128xf32>
    %323 = vector.extract_strided_slice %310 {offsets = [4, 0], sizes = [4, 128], strides = [1, 1]} : vector<8x128xf32> to vector<4x128xf32>
    %324 = arith.addf %322, %323 : vector<4x128xf32>
    %325 = vector.extract_strided_slice %312 {offsets = [4, 0], sizes = [4, 128], strides = [1, 1]} : vector<8x128xf32> to vector<4x128xf32>
    %326 = arith.mulf %325, %324 : vector<4x128xf32>
    %cst_165 = arith.constant dense<0.000000e+00> : vector<128xf32>
    %327 = vector.multi_reduction <add>, %326, %cst_165 [0] : vector<4x128xf32> to vector<128xf32>
    %328 = vector.shape_cast %327 : vector<128xf32> to vector<1x128xf32>
    %329 = tpu.concatenate %254, %262, %276, %284, %298, %306, %320, %328 in 0 : vector<1x128xf32>, vector<1x128xf32>, vector<1x128xf32>, vector<1x128xf32>, vector<1x128xf32>, vector<1x128xf32>, vector<1x128xf32>, vector<1x128xf32> -> vector<8x128xf32>
    %c0_166 = arith.constant 0 : index
    %c16 = arith.constant 16 : index
    %c0_167 = arith.constant 0 : index
    %330 = vector.load %arg10[%c0_166, %c16, %c0_167] : memref<1x64x128xf32, #tpu.memory_space<vmem>>, vector<1x8x128xf32>
    %331 = vector.shape_cast %330 : vector<1x8x128xf32> to vector<8x128xf32>
    %332 = vector.shape_cast %329 : vector<8x128xf32> to vector<1x8x128xf32>
    tpu.vector_store %arg10[%c0_166, %c16, %c0_167], %332 {strides = array<i32>} : memref<1x64x128xf32, #tpu.memory_space<vmem>>, vector<1x8x128xf32>,
    %c12 = arith.constant 12 : index
    %c0_168 = arith.constant 0 : index
    %c0_169 = arith.constant 0 : index
    %333 = vector.load %arg11[%c12, %c0_168, %c0_169] : memref<32x8x128xf32, #tpu.memory_space<vmem>>, vector<1x8x128xf32>
    %334 = vector.shape_cast %333 : vector<1x8x128xf32> to vector<8x128xf32>
    %c12_170 = arith.constant 12 : index
    %c0_171 = arith.constant 0 : index
    %c0_172 = arith.constant 0 : index
    %335 = vector.load %arg12[%c12_170, %c0_171, %c0_172] : memref<32x8x128xf32, #tpu.memory_space<vmem>>, vector<1x8x128xf32>
    %336 = vector.shape_cast %335 : vector<1x8x128xf32> to vector<8x128xf32>
    %c12_173 = arith.constant 12 : index
    %c0_174 = arith.constant 0 : index
    %c0_175 = arith.constant 0 : index
    %337 = vector.load %arg13[%c12_173, %c0_174, %c0_175] : memref<32x8x128xf32, #tpu.memory_space<vmem>>, vector<1x8x128xf32>
    %338 = vector.shape_cast %337 : vector<1x8x128xf32> to vector<8x128xf32>
    %339 = vector.extract_strided_slice %334 {offsets = [0, 0], sizes = [4, 128], strides = [1, 1]} : vector<8x128xf32> to vector<4x128xf32>
    %340 = arith.mulf %324, %339 : vector<4x128xf32>
    %341 = vector.extract_strided_slice %336 {offsets = [0, 0], sizes = [4, 128], strides = [1, 1]} : vector<8x128xf32> to vector<4x128xf32>
    %342 = arith.addf %340, %341 : vector<4x128xf32>
    %343 = vector.extract_strided_slice %338 {offsets = [0, 0], sizes = [4, 128], strides = [1, 1]} : vector<8x128xf32> to vector<4x128xf32>
    %344 = arith.mulf %343, %342 : vector<4x128xf32>
    %cst_176 = arith.constant dense<0.000000e+00> : vector<128xf32>
    %345 = vector.multi_reduction <add>, %344, %cst_176 [0] : vector<4x128xf32> to vector<128xf32>
    %346 = vector.shape_cast %345 : vector<128xf32> to vector<1x128xf32>
    %347 = vector.extract_strided_slice %334 {offsets = [4, 0], sizes = [4, 128], strides = [1, 1]} : vector<8x128xf32> to vector<4x128xf32>
    %348 = arith.mulf %342, %347 : vector<4x128xf32>
    %349 = vector.extract_strided_slice %336 {offsets = [4, 0], sizes = [4, 128], strides = [1, 1]} : vector<8x128xf32> to vector<4x128xf32>
    %350 = arith.addf %348, %349 : vector<4x128xf32>
    %351 = vector.extract_strided_slice %338 {offsets = [4, 0], sizes = [4, 128], strides = [1, 1]} : vector<8x128xf32> to vector<4x128xf32>
    %352 = arith.mulf %351, %350 : vector<4x128xf32>
    %cst_177 = arith.constant dense<0.000000e+00> : vector<128xf32>
    %353 = vector.multi_reduction <add>, %352, %cst_177 [0] : vector<4x128xf32> to vector<128xf32>
    %354 = vector.shape_cast %353 : vector<128xf32> to vector<1x128xf32>
    %c13 = arith.constant 13 : index
    %c0_178 = arith.constant 0 : index
    %c0_179 = arith.constant 0 : index
    %355 = vector.load %arg11[%c13, %c0_178, %c0_179] : memref<32x8x128xf32, #tpu.memory_space<vmem>>, vector<1x8x128xf32>
    %356 = vector.shape_cast %355 : vector<1x8x128xf32> to vector<8x128xf32>
    %c13_180 = arith.constant 13 : index
    %c0_181 = arith.constant 0 : index
    %c0_182 = arith.constant 0 : index
    %357 = vector.load %arg12[%c13_180, %c0_181, %c0_182] : memref<32x8x128xf32, #tpu.memory_space<vmem>>, vector<1x8x128xf32>
    %358 = vector.shape_cast %357 : vector<1x8x128xf32> to vector<8x128xf32>
    %c13_183 = arith.constant 13 : index
    %c0_184 = arith.constant 0 : index
    %c0_185 = arith.constant 0 : index
    %359 = vector.load %arg13[%c13_183, %c0_184, %c0_185] : memref<32x8x128xf32, #tpu.memory_space<vmem>>, vector<1x8x128xf32>
    %360 = vector.shape_cast %359 : vector<1x8x128xf32> to vector<8x128xf32>
    %361 = vector.extract_strided_slice %356 {offsets = [0, 0], sizes = [4, 128], strides = [1, 1]} : vector<8x128xf32> to vector<4x128xf32>
    %362 = arith.mulf %350, %361 : vector<4x128xf32>
    %363 = vector.extract_strided_slice %358 {offsets = [0, 0], sizes = [4, 128], strides = [1, 1]} : vector<8x128xf32> to vector<4x128xf32>
    %364 = arith.addf %362, %363 : vector<4x128xf32>
    %365 = vector.extract_strided_slice %360 {offsets = [0, 0], sizes = [4, 128], strides = [1, 1]} : vector<8x128xf32> to vector<4x128xf32>
    %366 = arith.mulf %365, %364 : vector<4x128xf32>
    %cst_186 = arith.constant dense<0.000000e+00> : vector<128xf32>
    %367 = vector.multi_reduction <add>, %366, %cst_186 [0] : vector<4x128xf32> to vector<128xf32>
    %368 = vector.shape_cast %367 : vector<128xf32> to vector<1x128xf32>
    %369 = vector.extract_strided_slice %356 {offsets = [4, 0], sizes = [4, 128], strides = [1, 1]} : vector<8x128xf32> to vector<4x128xf32>
    %370 = arith.mulf %364, %369 : vector<4x128xf32>
    %371 = vector.extract_strided_slice %358 {offsets = [4, 0], sizes = [4, 128], strides = [1, 1]} : vector<8x128xf32> to vector<4x128xf32>
    %372 = arith.addf %370, %371 : vector<4x128xf32>
    %373 = vector.extract_strided_slice %360 {offsets = [4, 0], sizes = [4, 128], strides = [1, 1]} : vector<8x128xf32> to vector<4x128xf32>
    %374 = arith.mulf %373, %372 : vector<4x128xf32>
    %cst_187 = arith.constant dense<0.000000e+00> : vector<128xf32>
    %375 = vector.multi_reduction <add>, %374, %cst_187 [0] : vector<4x128xf32> to vector<128xf32>
    %376 = vector.shape_cast %375 : vector<128xf32> to vector<1x128xf32>
    %c14 = arith.constant 14 : index
    %c0_188 = arith.constant 0 : index
    %c0_189 = arith.constant 0 : index
    %377 = vector.load %arg11[%c14, %c0_188, %c0_189] : memref<32x8x128xf32, #tpu.memory_space<vmem>>, vector<1x8x128xf32>
    %378 = vector.shape_cast %377 : vector<1x8x128xf32> to vector<8x128xf32>
    %c14_190 = arith.constant 14 : index
    %c0_191 = arith.constant 0 : index
    %c0_192 = arith.constant 0 : index
    %379 = vector.load %arg12[%c14_190, %c0_191, %c0_192] : memref<32x8x128xf32, #tpu.memory_space<vmem>>, vector<1x8x128xf32>
    %380 = vector.shape_cast %379 : vector<1x8x128xf32> to vector<8x128xf32>
    %c14_193 = arith.constant 14 : index
    %c0_194 = arith.constant 0 : index
    %c0_195 = arith.constant 0 : index
    %381 = vector.load %arg13[%c14_193, %c0_194, %c0_195] : memref<32x8x128xf32, #tpu.memory_space<vmem>>, vector<1x8x128xf32>
    %382 = vector.shape_cast %381 : vector<1x8x128xf32> to vector<8x128xf32>
    %383 = vector.extract_strided_slice %378 {offsets = [0, 0], sizes = [4, 128], strides = [1, 1]} : vector<8x128xf32> to vector<4x128xf32>
    %384 = arith.mulf %372, %383 : vector<4x128xf32>
    %385 = vector.extract_strided_slice %380 {offsets = [0, 0], sizes = [4, 128], strides = [1, 1]} : vector<8x128xf32> to vector<4x128xf32>
    %386 = arith.addf %384, %385 : vector<4x128xf32>
    %387 = vector.extract_strided_slice %382 {offsets = [0, 0], sizes = [4, 128], strides = [1, 1]} : vector<8x128xf32> to vector<4x128xf32>
    %388 = arith.mulf %387, %386 : vector<4x128xf32>
    %cst_196 = arith.constant dense<0.000000e+00> : vector<128xf32>
    %389 = vector.multi_reduction <add>, %388, %cst_196 [0] : vector<4x128xf32> to vector<128xf32>
    %390 = vector.shape_cast %389 : vector<128xf32> to vector<1x128xf32>
    %391 = vector.extract_strided_slice %378 {offsets = [4, 0], sizes = [4, 128], strides = [1, 1]} : vector<8x128xf32> to vector<4x128xf32>
    %392 = arith.mulf %386, %391 : vector<4x128xf32>
    %393 = vector.extract_strided_slice %380 {offsets = [4, 0], sizes = [4, 128], strides = [1, 1]} : vector<8x128xf32> to vector<4x128xf32>
    %394 = arith.addf %392, %393 : vector<4x128xf32>
    %395 = vector.extract_strided_slice %382 {offsets = [4, 0], sizes = [4, 128], strides = [1, 1]} : vector<8x128xf32> to vector<4x128xf32>
    %396 = arith.mulf %395, %394 : vector<4x128xf32>
    %cst_197 = arith.constant dense<0.000000e+00> : vector<128xf32>
    %397 = vector.multi_reduction <add>, %396, %cst_197 [0] : vector<4x128xf32> to vector<128xf32>
    %398 = vector.shape_cast %397 : vector<128xf32> to vector<1x128xf32>
    %c15 = arith.constant 15 : index
    %c0_198 = arith.constant 0 : index
    %c0_199 = arith.constant 0 : index
    %399 = vector.load %arg11[%c15, %c0_198, %c0_199] : memref<32x8x128xf32, #tpu.memory_space<vmem>>, vector<1x8x128xf32>
    %400 = vector.shape_cast %399 : vector<1x8x128xf32> to vector<8x128xf32>
    %c15_200 = arith.constant 15 : index
    %c0_201 = arith.constant 0 : index
    %c0_202 = arith.constant 0 : index
    %401 = vector.load %arg12[%c15_200, %c0_201, %c0_202] : memref<32x8x128xf32, #tpu.memory_space<vmem>>, vector<1x8x128xf32>
    %402 = vector.shape_cast %401 : vector<1x8x128xf32> to vector<8x128xf32>
    %c15_203 = arith.constant 15 : index
    %c0_204 = arith.constant 0 : index
    %c0_205 = arith.constant 0 : index
    %403 = vector.load %arg13[%c15_203, %c0_204, %c0_205] : memref<32x8x128xf32, #tpu.memory_space<vmem>>, vector<1x8x128xf32>
    %404 = vector.shape_cast %403 : vector<1x8x128xf32> to vector<8x128xf32>
    %405 = vector.extract_strided_slice %400 {offsets = [0, 0], sizes = [4, 128], strides = [1, 1]} : vector<8x128xf32> to vector<4x128xf32>
    %406 = arith.mulf %394, %405 : vector<4x128xf32>
    %407 = vector.extract_strided_slice %402 {offsets = [0, 0], sizes = [4, 128], strides = [1, 1]} : vector<8x128xf32> to vector<4x128xf32>
    %408 = arith.addf %406, %407 : vector<4x128xf32>
    %409 = vector.extract_strided_slice %404 {offsets = [0, 0], sizes = [4, 128], strides = [1, 1]} : vector<8x128xf32> to vector<4x128xf32>
    %410 = arith.mulf %409, %408 : vector<4x128xf32>
    %cst_206 = arith.constant dense<0.000000e+00> : vector<128xf32>
    %411 = vector.multi_reduction <add>, %410, %cst_206 [0] : vector<4x128xf32> to vector<128xf32>
    %412 = vector.shape_cast %411 : vector<128xf32> to vector<1x128xf32>
    %413 = vector.extract_strided_slice %400 {offsets = [4, 0], sizes = [4, 128], strides = [1, 1]} : vector<8x128xf32> to vector<4x128xf32>
    %414 = arith.mulf %408, %413 : vector<4x128xf32>
    %415 = vector.extract_strided_slice %402 {offsets = [4, 0], sizes = [4, 128], strides = [1, 1]} : vector<8x128xf32> to vector<4x128xf32>
    %416 = arith.addf %414, %415 : vector<4x128xf32>
    %417 = vector.extract_strided_slice %404 {offsets = [4, 0], sizes = [4, 128], strides = [1, 1]} : vector<8x128xf32> to vector<4x128xf32>
    %418 = arith.mulf %417, %416 : vector<4x128xf32>
    %cst_207 = arith.constant dense<0.000000e+00> : vector<128xf32>
    %419 = vector.multi_reduction <add>, %418, %cst_207 [0] : vector<4x128xf32> to vector<128xf32>
    %420 = vector.shape_cast %419 : vector<128xf32> to vector<1x128xf32>
    %421 = tpu.concatenate %346, %354, %368, %376, %390, %398, %412, %420 in 0 : vector<1x128xf32>, vector<1x128xf32>, vector<1x128xf32>, vector<1x128xf32>, vector<1x128xf32>, vector<1x128xf32>, vector<1x128xf32>, vector<1x128xf32> -> vector<8x128xf32>
    %c0_208 = arith.constant 0 : index
    %c24 = arith.constant 24 : index
    %c0_209 = arith.constant 0 : index
    %422 = vector.load %arg10[%c0_208, %c24, %c0_209] : memref<1x64x128xf32, #tpu.memory_space<vmem>>, vector<1x8x128xf32>
    %423 = vector.shape_cast %422 : vector<1x8x128xf32> to vector<8x128xf32>
    %424 = vector.shape_cast %421 : vector<8x128xf32> to vector<1x8x128xf32>
    tpu.vector_store %arg10[%c0_208, %c24, %c0_209], %424 {strides = array<i32>} : memref<1x64x128xf32, #tpu.memory_space<vmem>>, vector<1x8x128xf32>,
    %c16_210 = arith.constant 16 : index
    %c0_211 = arith.constant 0 : index
    %c0_212 = arith.constant 0 : index
    %425 = vector.load %arg11[%c16_210, %c0_211, %c0_212] : memref<32x8x128xf32, #tpu.memory_space<vmem>>, vector<1x8x128xf32>
    %426 = vector.shape_cast %425 : vector<1x8x128xf32> to vector<8x128xf32>
    %c16_213 = arith.constant 16 : index
    %c0_214 = arith.constant 0 : index
    %c0_215 = arith.constant 0 : index
    %427 = vector.load %arg12[%c16_213, %c0_214, %c0_215] : memref<32x8x128xf32, #tpu.memory_space<vmem>>, vector<1x8x128xf32>
    %428 = vector.shape_cast %427 : vector<1x8x128xf32> to vector<8x128xf32>
    %c16_216 = arith.constant 16 : index
    %c0_217 = arith.constant 0 : index
    %c0_218 = arith.constant 0 : index
    %429 = vector.load %arg13[%c16_216, %c0_217, %c0_218] : memref<32x8x128xf32, #tpu.memory_space<vmem>>, vector<1x8x128xf32>
    %430 = vector.shape_cast %429 : vector<1x8x128xf32> to vector<8x128xf32>
    %431 = vector.extract_strided_slice %426 {offsets = [0, 0], sizes = [4, 128], strides = [1, 1]} : vector<8x128xf32> to vector<4x128xf32>
    %432 = arith.mulf %416, %431 : vector<4x128xf32>
    %433 = vector.extract_strided_slice %428 {offsets = [0, 0], sizes = [4, 128], strides = [1, 1]} : vector<8x128xf32> to vector<4x128xf32>
    %434 = arith.addf %432, %433 : vector<4x128xf32>
    %435 = vector.extract_strided_slice %430 {offsets = [0, 0], sizes = [4, 128], strides = [1, 1]} : vector<8x128xf32> to vector<4x128xf32>
    %436 = arith.mulf %435, %434 : vector<4x128xf32>
    %cst_219 = arith.constant dense<0.000000e+00> : vector<128xf32>
    %437 = vector.multi_reduction <add>, %436, %cst_219 [0] : vector<4x128xf32> to vector<128xf32>
    %438 = vector.shape_cast %437 : vector<128xf32> to vector<1x128xf32>
    %439 = vector.extract_strided_slice %426 {offsets = [4, 0], sizes = [4, 128], strides = [1, 1]} : vector<8x128xf32> to vector<4x128xf32>
    %440 = arith.mulf %434, %439 : vector<4x128xf32>
    %441 = vector.extract_strided_slice %428 {offsets = [4, 0], sizes = [4, 128], strides = [1, 1]} : vector<8x128xf32> to vector<4x128xf32>
    %442 = arith.addf %440, %441 : vector<4x128xf32>
    %443 = vector.extract_strided_slice %430 {offsets = [4, 0], sizes = [4, 128], strides = [1, 1]} : vector<8x128xf32> to vector<4x128xf32>
    %444 = arith.mulf %443, %442 : vector<4x128xf32>
    %cst_220 = arith.constant dense<0.000000e+00> : vector<128xf32>
    %445 = vector.multi_reduction <add>, %444, %cst_220 [0] : vector<4x128xf32> to vector<128xf32>
    %446 = vector.shape_cast %445 : vector<128xf32> to vector<1x128xf32>
    %c17 = arith.constant 17 : index
    %c0_221 = arith.constant 0 : index
    %c0_222 = arith.constant 0 : index
    %447 = vector.load %arg11[%c17, %c0_221, %c0_222] : memref<32x8x128xf32, #tpu.memory_space<vmem>>, vector<1x8x128xf32>
    %448 = vector.shape_cast %447 : vector<1x8x128xf32> to vector<8x128xf32>
    %c17_223 = arith.constant 17 : index
    %c0_224 = arith.constant 0 : index
    %c0_225 = arith.constant 0 : index
    %449 = vector.load %arg12[%c17_223, %c0_224, %c0_225] : memref<32x8x128xf32, #tpu.memory_space<vmem>>, vector<1x8x128xf32>
    %450 = vector.shape_cast %449 : vector<1x8x128xf32> to vector<8x128xf32>
    %c17_226 = arith.constant 17 : index
    %c0_227 = arith.constant 0 : index
    %c0_228 = arith.constant 0 : index
    %451 = vector.load %arg13[%c17_226, %c0_227, %c0_228] : memref<32x8x128xf32, #tpu.memory_space<vmem>>, vector<1x8x128xf32>
    %452 = vector.shape_cast %451 : vector<1x8x128xf32> to vector<8x128xf32>
    %453 = vector.extract_strided_slice %448 {offsets = [0, 0], sizes = [4, 128], strides = [1, 1]} : vector<8x128xf32> to vector<4x128xf32>
    %454 = arith.mulf %442, %453 : vector<4x128xf32>
    %455 = vector.extract_strided_slice %450 {offsets = [0, 0], sizes = [4, 128], strides = [1, 1]} : vector<8x128xf32> to vector<4x128xf32>
    %456 = arith.addf %454, %455 : vector<4x128xf32>
    %457 = vector.extract_strided_slice %452 {offsets = [0, 0], sizes = [4, 128], strides = [1, 1]} : vector<8x128xf32> to vector<4x128xf32>
    %458 = arith.mulf %457, %456 : vector<4x128xf32>
    %cst_229 = arith.constant dense<0.000000e+00> : vector<128xf32>
    %459 = vector.multi_reduction <add>, %458, %cst_229 [0] : vector<4x128xf32> to vector<128xf32>
    %460 = vector.shape_cast %459 : vector<128xf32> to vector<1x128xf32>
    %461 = vector.extract_strided_slice %448 {offsets = [4, 0], sizes = [4, 128], strides = [1, 1]} : vector<8x128xf32> to vector<4x128xf32>
    %462 = arith.mulf %456, %461 : vector<4x128xf32>
    %463 = vector.extract_strided_slice %450 {offsets = [4, 0], sizes = [4, 128], strides = [1, 1]} : vector<8x128xf32> to vector<4x128xf32>
    %464 = arith.addf %462, %463 : vector<4x128xf32>
    %465 = vector.extract_strided_slice %452 {offsets = [4, 0], sizes = [4, 128], strides = [1, 1]} : vector<8x128xf32> to vector<4x128xf32>
    %466 = arith.mulf %465, %464 : vector<4x128xf32>
    %cst_230 = arith.constant dense<0.000000e+00> : vector<128xf32>
    %467 = vector.multi_reduction <add>, %466, %cst_230 [0] : vector<4x128xf32> to vector<128xf32>
    %468 = vector.shape_cast %467 : vector<128xf32> to vector<1x128xf32>
    %c18 = arith.constant 18 : index
    %c0_231 = arith.constant 0 : index
    %c0_232 = arith.constant 0 : index
    %469 = vector.load %arg11[%c18, %c0_231, %c0_232] : memref<32x8x128xf32, #tpu.memory_space<vmem>>, vector<1x8x128xf32>
    %470 = vector.shape_cast %469 : vector<1x8x128xf32> to vector<8x128xf32>
    %c18_233 = arith.constant 18 : index
    %c0_234 = arith.constant 0 : index
    %c0_235 = arith.constant 0 : index
    %471 = vector.load %arg12[%c18_233, %c0_234, %c0_235] : memref<32x8x128xf32, #tpu.memory_space<vmem>>, vector<1x8x128xf32>
    %472 = vector.shape_cast %471 : vector<1x8x128xf32> to vector<8x128xf32>
    %c18_236 = arith.constant 18 : index
    %c0_237 = arith.constant 0 : index
    %c0_238 = arith.constant 0 : index
    %473 = vector.load %arg13[%c18_236, %c0_237, %c0_238] : memref<32x8x128xf32, #tpu.memory_space<vmem>>, vector<1x8x128xf32>
    %474 = vector.shape_cast %473 : vector<1x8x128xf32> to vector<8x128xf32>
    %475 = vector.extract_strided_slice %470 {offsets = [0, 0], sizes = [4, 128], strides = [1, 1]} : vector<8x128xf32> to vector<4x128xf32>
    %476 = arith.mulf %464, %475 : vector<4x128xf32>
    %477 = vector.extract_strided_slice %472 {offsets = [0, 0], sizes = [4, 128], strides = [1, 1]} : vector<8x128xf32> to vector<4x128xf32>
    %478 = arith.addf %476, %477 : vector<4x128xf32>
    %479 = vector.extract_strided_slice %474 {offsets = [0, 0], sizes = [4, 128], strides = [1, 1]} : vector<8x128xf32> to vector<4x128xf32>
    %480 = arith.mulf %479, %478 : vector<4x128xf32>
    %cst_239 = arith.constant dense<0.000000e+00> : vector<128xf32>
    %481 = vector.multi_reduction <add>, %480, %cst_239 [0] : vector<4x128xf32> to vector<128xf32>
    %482 = vector.shape_cast %481 : vector<128xf32> to vector<1x128xf32>
    %483 = vector.extract_strided_slice %470 {offsets = [4, 0], sizes = [4, 128], strides = [1, 1]} : vector<8x128xf32> to vector<4x128xf32>
    %484 = arith.mulf %478, %483 : vector<4x128xf32>
    %485 = vector.extract_strided_slice %472 {offsets = [4, 0], sizes = [4, 128], strides = [1, 1]} : vector<8x128xf32> to vector<4x128xf32>
    %486 = arith.addf %484, %485 : vector<4x128xf32>
    %487 = vector.extract_strided_slice %474 {offsets = [4, 0], sizes = [4, 128], strides = [1, 1]} : vector<8x128xf32> to vector<4x128xf32>
    %488 = arith.mulf %487, %486 : vector<4x128xf32>
    %cst_240 = arith.constant dense<0.000000e+00> : vector<128xf32>
    %489 = vector.multi_reduction <add>, %488, %cst_240 [0] : vector<4x128xf32> to vector<128xf32>
    %490 = vector.shape_cast %489 : vector<128xf32> to vector<1x128xf32>
    %c19 = arith.constant 19 : index
    %c0_241 = arith.constant 0 : index
    %c0_242 = arith.constant 0 : index
    %491 = vector.load %arg11[%c19, %c0_241, %c0_242] : memref<32x8x128xf32, #tpu.memory_space<vmem>>, vector<1x8x128xf32>
    %492 = vector.shape_cast %491 : vector<1x8x128xf32> to vector<8x128xf32>
    %c19_243 = arith.constant 19 : index
    %c0_244 = arith.constant 0 : index
    %c0_245 = arith.constant 0 : index
    %493 = vector.load %arg12[%c19_243, %c0_244, %c0_245] : memref<32x8x128xf32, #tpu.memory_space<vmem>>, vector<1x8x128xf32>
    %494 = vector.shape_cast %493 : vector<1x8x128xf32> to vector<8x128xf32>
    %c19_246 = arith.constant 19 : index
    %c0_247 = arith.constant 0 : index
    %c0_248 = arith.constant 0 : index
    %495 = vector.load %arg13[%c19_246, %c0_247, %c0_248] : memref<32x8x128xf32, #tpu.memory_space<vmem>>, vector<1x8x128xf32>
    %496 = vector.shape_cast %495 : vector<1x8x128xf32> to vector<8x128xf32>
    %497 = vector.extract_strided_slice %492 {offsets = [0, 0], sizes = [4, 128], strides = [1, 1]} : vector<8x128xf32> to vector<4x128xf32>
    %498 = arith.mulf %486, %497 : vector<4x128xf32>
    %499 = vector.extract_strided_slice %494 {offsets = [0, 0], sizes = [4, 128], strides = [1, 1]} : vector<8x128xf32> to vector<4x128xf32>
    %500 = arith.addf %498, %499 : vector<4x128xf32>
    %501 = vector.extract_strided_slice %496 {offsets = [0, 0], sizes = [4, 128], strides = [1, 1]} : vector<8x128xf32> to vector<4x128xf32>
    %502 = arith.mulf %501, %500 : vector<4x128xf32>
    %cst_249 = arith.constant dense<0.000000e+00> : vector<128xf32>
    %503 = vector.multi_reduction <add>, %502, %cst_249 [0] : vector<4x128xf32> to vector<128xf32>
    %504 = vector.shape_cast %503 : vector<128xf32> to vector<1x128xf32>
    %505 = vector.extract_strided_slice %492 {offsets = [4, 0], sizes = [4, 128], strides = [1, 1]} : vector<8x128xf32> to vector<4x128xf32>
    %506 = arith.mulf %500, %505 : vector<4x128xf32>
    %507 = vector.extract_strided_slice %494 {offsets = [4, 0], sizes = [4, 128], strides = [1, 1]} : vector<8x128xf32> to vector<4x128xf32>
    %508 = arith.addf %506, %507 : vector<4x128xf32>
    %509 = vector.extract_strided_slice %496 {offsets = [4, 0], sizes = [4, 128], strides = [1, 1]} : vector<8x128xf32> to vector<4x128xf32>
    %510 = arith.mulf %509, %508 : vector<4x128xf32>
    %cst_250 = arith.constant dense<0.000000e+00> : vector<128xf32>
    %511 = vector.multi_reduction <add>, %510, %cst_250 [0] : vector<4x128xf32> to vector<128xf32>
    %512 = vector.shape_cast %511 : vector<128xf32> to vector<1x128xf32>
    %513 = tpu.concatenate %438, %446, %460, %468, %482, %490, %504, %512 in 0 : vector<1x128xf32>, vector<1x128xf32>, vector<1x128xf32>, vector<1x128xf32>, vector<1x128xf32>, vector<1x128xf32>, vector<1x128xf32>, vector<1x128xf32> -> vector<8x128xf32>
    %c0_251 = arith.constant 0 : index
    %c32 = arith.constant 32 : index
    %c0_252 = arith.constant 0 : index
    %514 = vector.load %arg10[%c0_251, %c32, %c0_252] : memref<1x64x128xf32, #tpu.memory_space<vmem>>, vector<1x8x128xf32>
    %515 = vector.shape_cast %514 : vector<1x8x128xf32> to vector<8x128xf32>
    %516 = vector.shape_cast %513 : vector<8x128xf32> to vector<1x8x128xf32>
    tpu.vector_store %arg10[%c0_251, %c32, %c0_252], %516 {strides = array<i32>} : memref<1x64x128xf32, #tpu.memory_space<vmem>>, vector<1x8x128xf32>,
    %c20 = arith.constant 20 : index
    %c0_253 = arith.constant 0 : index
    %c0_254 = arith.constant 0 : index
    %517 = vector.load %arg11[%c20, %c0_253, %c0_254] : memref<32x8x128xf32, #tpu.memory_space<vmem>>, vector<1x8x128xf32>
    %518 = vector.shape_cast %517 : vector<1x8x128xf32> to vector<8x128xf32>
    %c20_255 = arith.constant 20 : index
    %c0_256 = arith.constant 0 : index
    %c0_257 = arith.constant 0 : index
    %519 = vector.load %arg12[%c20_255, %c0_256, %c0_257] : memref<32x8x128xf32, #tpu.memory_space<vmem>>, vector<1x8x128xf32>
    %520 = vector.shape_cast %519 : vector<1x8x128xf32> to vector<8x128xf32>
    %c20_258 = arith.constant 20 : index
    %c0_259 = arith.constant 0 : index
    %c0_260 = arith.constant 0 : index
    %521 = vector.load %arg13[%c20_258, %c0_259, %c0_260] : memref<32x8x128xf32, #tpu.memory_space<vmem>>, vector<1x8x128xf32>
    %522 = vector.shape_cast %521 : vector<1x8x128xf32> to vector<8x128xf32>
    %523 = vector.extract_strided_slice %518 {offsets = [0, 0], sizes = [4, 128], strides = [1, 1]} : vector<8x128xf32> to vector<4x128xf32>
    %524 = arith.mulf %508, %523 : vector<4x128xf32>
    %525 = vector.extract_strided_slice %520 {offsets = [0, 0], sizes = [4, 128], strides = [1, 1]} : vector<8x128xf32> to vector<4x128xf32>
    %526 = arith.addf %524, %525 : vector<4x128xf32>
    %527 = vector.extract_strided_slice %522 {offsets = [0, 0], sizes = [4, 128], strides = [1, 1]} : vector<8x128xf32> to vector<4x128xf32>
    %528 = arith.mulf %527, %526 : vector<4x128xf32>
    %cst_261 = arith.constant dense<0.000000e+00> : vector<128xf32>
    %529 = vector.multi_reduction <add>, %528, %cst_261 [0] : vector<4x128xf32> to vector<128xf32>
    %530 = vector.shape_cast %529 : vector<128xf32> to vector<1x128xf32>
    %531 = vector.extract_strided_slice %518 {offsets = [4, 0], sizes = [4, 128], strides = [1, 1]} : vector<8x128xf32> to vector<4x128xf32>
    %532 = arith.mulf %526, %531 : vector<4x128xf32>
    %533 = vector.extract_strided_slice %520 {offsets = [4, 0], sizes = [4, 128], strides = [1, 1]} : vector<8x128xf32> to vector<4x128xf32>
    %534 = arith.addf %532, %533 : vector<4x128xf32>
    %535 = vector.extract_strided_slice %522 {offsets = [4, 0], sizes = [4, 128], strides = [1, 1]} : vector<8x128xf32> to vector<4x128xf32>
    %536 = arith.mulf %535, %534 : vector<4x128xf32>
    %cst_262 = arith.constant dense<0.000000e+00> : vector<128xf32>
    %537 = vector.multi_reduction <add>, %536, %cst_262 [0] : vector<4x128xf32> to vector<128xf32>
    %538 = vector.shape_cast %537 : vector<128xf32> to vector<1x128xf32>
    %c21 = arith.constant 21 : index
    %c0_263 = arith.constant 0 : index
    %c0_264 = arith.constant 0 : index
    %539 = vector.load %arg11[%c21, %c0_263, %c0_264] : memref<32x8x128xf32, #tpu.memory_space<vmem>>, vector<1x8x128xf32>
    %540 = vector.shape_cast %539 : vector<1x8x128xf32> to vector<8x128xf32>
    %c21_265 = arith.constant 21 : index
    %c0_266 = arith.constant 0 : index
    %c0_267 = arith.constant 0 : index
    %541 = vector.load %arg12[%c21_265, %c0_266, %c0_267] : memref<32x8x128xf32, #tpu.memory_space<vmem>>, vector<1x8x128xf32>
    %542 = vector.shape_cast %541 : vector<1x8x128xf32> to vector<8x128xf32>
    %c21_268 = arith.constant 21 : index
    %c0_269 = arith.constant 0 : index
    %c0_270 = arith.constant 0 : index
    %543 = vector.load %arg13[%c21_268, %c0_269, %c0_270] : memref<32x8x128xf32, #tpu.memory_space<vmem>>, vector<1x8x128xf32>
    %544 = vector.shape_cast %543 : vector<1x8x128xf32> to vector<8x128xf32>
    %545 = vector.extract_strided_slice %540 {offsets = [0, 0], sizes = [4, 128], strides = [1, 1]} : vector<8x128xf32> to vector<4x128xf32>
    %546 = arith.mulf %534, %545 : vector<4x128xf32>
    %547 = vector.extract_strided_slice %542 {offsets = [0, 0], sizes = [4, 128], strides = [1, 1]} : vector<8x128xf32> to vector<4x128xf32>
    %548 = arith.addf %546, %547 : vector<4x128xf32>
    %549 = vector.extract_strided_slice %544 {offsets = [0, 0], sizes = [4, 128], strides = [1, 1]} : vector<8x128xf32> to vector<4x128xf32>
    %550 = arith.mulf %549, %548 : vector<4x128xf32>
    %cst_271 = arith.constant dense<0.000000e+00> : vector<128xf32>
    %551 = vector.multi_reduction <add>, %550, %cst_271 [0] : vector<4x128xf32> to vector<128xf32>
    %552 = vector.shape_cast %551 : vector<128xf32> to vector<1x128xf32>
    %553 = vector.extract_strided_slice %540 {offsets = [4, 0], sizes = [4, 128], strides = [1, 1]} : vector<8x128xf32> to vector<4x128xf32>
    %554 = arith.mulf %548, %553 : vector<4x128xf32>
    %555 = vector.extract_strided_slice %542 {offsets = [4, 0], sizes = [4, 128], strides = [1, 1]} : vector<8x128xf32> to vector<4x128xf32>
    %556 = arith.addf %554, %555 : vector<4x128xf32>
    %557 = vector.extract_strided_slice %544 {offsets = [4, 0], sizes = [4, 128], strides = [1, 1]} : vector<8x128xf32> to vector<4x128xf32>
    %558 = arith.mulf %557, %556 : vector<4x128xf32>
    %cst_272 = arith.constant dense<0.000000e+00> : vector<128xf32>
    %559 = vector.multi_reduction <add>, %558, %cst_272 [0] : vector<4x128xf32> to vector<128xf32>
    %560 = vector.shape_cast %559 : vector<128xf32> to vector<1x128xf32>
    %c22 = arith.constant 22 : index
    %c0_273 = arith.constant 0 : index
    %c0_274 = arith.constant 0 : index
    %561 = vector.load %arg11[%c22, %c0_273, %c0_274] : memref<32x8x128xf32, #tpu.memory_space<vmem>>, vector<1x8x128xf32>
    %562 = vector.shape_cast %561 : vector<1x8x128xf32> to vector<8x128xf32>
    %c22_275 = arith.constant 22 : index
    %c0_276 = arith.constant 0 : index
    %c0_277 = arith.constant 0 : index
    %563 = vector.load %arg12[%c22_275, %c0_276, %c0_277] : memref<32x8x128xf32, #tpu.memory_space<vmem>>, vector<1x8x128xf32>
    %564 = vector.shape_cast %563 : vector<1x8x128xf32> to vector<8x128xf32>
    %c22_278 = arith.constant 22 : index
    %c0_279 = arith.constant 0 : index
    %c0_280 = arith.constant 0 : index
    %565 = vector.load %arg13[%c22_278, %c0_279, %c0_280] : memref<32x8x128xf32, #tpu.memory_space<vmem>>, vector<1x8x128xf32>
    %566 = vector.shape_cast %565 : vector<1x8x128xf32> to vector<8x128xf32>
    %567 = vector.extract_strided_slice %562 {offsets = [0, 0], sizes = [4, 128], strides = [1, 1]} : vector<8x128xf32> to vector<4x128xf32>
    %568 = arith.mulf %556, %567 : vector<4x128xf32>
    %569 = vector.extract_strided_slice %564 {offsets = [0, 0], sizes = [4, 128], strides = [1, 1]} : vector<8x128xf32> to vector<4x128xf32>
    %570 = arith.addf %568, %569 : vector<4x128xf32>
    %571 = vector.extract_strided_slice %566 {offsets = [0, 0], sizes = [4, 128], strides = [1, 1]} : vector<8x128xf32> to vector<4x128xf32>
    %572 = arith.mulf %571, %570 : vector<4x128xf32>
    %cst_281 = arith.constant dense<0.000000e+00> : vector<128xf32>
    %573 = vector.multi_reduction <add>, %572, %cst_281 [0] : vector<4x128xf32> to vector<128xf32>
    %574 = vector.shape_cast %573 : vector<128xf32> to vector<1x128xf32>
    %575 = vector.extract_strided_slice %562 {offsets = [4, 0], sizes = [4, 128], strides = [1, 1]} : vector<8x128xf32> to vector<4x128xf32>
    %576 = arith.mulf %570, %575 : vector<4x128xf32>
    %577 = vector.extract_strided_slice %564 {offsets = [4, 0], sizes = [4, 128], strides = [1, 1]} : vector<8x128xf32> to vector<4x128xf32>
    %578 = arith.addf %576, %577 : vector<4x128xf32>
    %579 = vector.extract_strided_slice %566 {offsets = [4, 0], sizes = [4, 128], strides = [1, 1]} : vector<8x128xf32> to vector<4x128xf32>
    %580 = arith.mulf %579, %578 : vector<4x128xf32>
    %cst_282 = arith.constant dense<0.000000e+00> : vector<128xf32>
    %581 = vector.multi_reduction <add>, %580, %cst_282 [0] : vector<4x128xf32> to vector<128xf32>
    %582 = vector.shape_cast %581 : vector<128xf32> to vector<1x128xf32>
    %c23 = arith.constant 23 : index
    %c0_283 = arith.constant 0 : index
    %c0_284 = arith.constant 0 : index
    %583 = vector.load %arg11[%c23, %c0_283, %c0_284] : memref<32x8x128xf32, #tpu.memory_space<vmem>>, vector<1x8x128xf32>
    %584 = vector.shape_cast %583 : vector<1x8x128xf32> to vector<8x128xf32>
    %c23_285 = arith.constant 23 : index
    %c0_286 = arith.constant 0 : index
    %c0_287 = arith.constant 0 : index
    %585 = vector.load %arg12[%c23_285, %c0_286, %c0_287] : memref<32x8x128xf32, #tpu.memory_space<vmem>>, vector<1x8x128xf32>
    %586 = vector.shape_cast %585 : vector<1x8x128xf32> to vector<8x128xf32>
    %c23_288 = arith.constant 23 : index
    %c0_289 = arith.constant 0 : index
    %c0_290 = arith.constant 0 : index
    %587 = vector.load %arg13[%c23_288, %c0_289, %c0_290] : memref<32x8x128xf32, #tpu.memory_space<vmem>>, vector<1x8x128xf32>
    %588 = vector.shape_cast %587 : vector<1x8x128xf32> to vector<8x128xf32>
    %589 = vector.extract_strided_slice %584 {offsets = [0, 0], sizes = [4, 128], strides = [1, 1]} : vector<8x128xf32> to vector<4x128xf32>
    %590 = arith.mulf %578, %589 : vector<4x128xf32>
    %591 = vector.extract_strided_slice %586 {offsets = [0, 0], sizes = [4, 128], strides = [1, 1]} : vector<8x128xf32> to vector<4x128xf32>
    %592 = arith.addf %590, %591 : vector<4x128xf32>
    %593 = vector.extract_strided_slice %588 {offsets = [0, 0], sizes = [4, 128], strides = [1, 1]} : vector<8x128xf32> to vector<4x128xf32>
    %594 = arith.mulf %593, %592 : vector<4x128xf32>
    %cst_291 = arith.constant dense<0.000000e+00> : vector<128xf32>
    %595 = vector.multi_reduction <add>, %594, %cst_291 [0] : vector<4x128xf32> to vector<128xf32>
    %596 = vector.shape_cast %595 : vector<128xf32> to vector<1x128xf32>
    %597 = vector.extract_strided_slice %584 {offsets = [4, 0], sizes = [4, 128], strides = [1, 1]} : vector<8x128xf32> to vector<4x128xf32>
    %598 = arith.mulf %592, %597 : vector<4x128xf32>
    %599 = vector.extract_strided_slice %586 {offsets = [4, 0], sizes = [4, 128], strides = [1, 1]} : vector<8x128xf32> to vector<4x128xf32>
    %600 = arith.addf %598, %599 : vector<4x128xf32>
    %601 = vector.extract_strided_slice %588 {offsets = [4, 0], sizes = [4, 128], strides = [1, 1]} : vector<8x128xf32> to vector<4x128xf32>
    %602 = arith.mulf %601, %600 : vector<4x128xf32>
    %cst_292 = arith.constant dense<0.000000e+00> : vector<128xf32>
    %603 = vector.multi_reduction <add>, %602, %cst_292 [0] : vector<4x128xf32> to vector<128xf32>
    %604 = vector.shape_cast %603 : vector<128xf32> to vector<1x128xf32>
    %605 = tpu.concatenate %530, %538, %552, %560, %574, %582, %596, %604 in 0 : vector<1x128xf32>, vector<1x128xf32>, vector<1x128xf32>, vector<1x128xf32>, vector<1x128xf32>, vector<1x128xf32>, vector<1x128xf32>, vector<1x128xf32> -> vector<8x128xf32>
    %c0_293 = arith.constant 0 : index
    %c40 = arith.constant 40 : index
    %c0_294 = arith.constant 0 : index
    %606 = vector.load %arg10[%c0_293, %c40, %c0_294] : memref<1x64x128xf32, #tpu.memory_space<vmem>>, vector<1x8x128xf32>
    %607 = vector.shape_cast %606 : vector<1x8x128xf32> to vector<8x128xf32>
    %608 = vector.shape_cast %605 : vector<8x128xf32> to vector<1x8x128xf32>
    tpu.vector_store %arg10[%c0_293, %c40, %c0_294], %608 {strides = array<i32>} : memref<1x64x128xf32, #tpu.memory_space<vmem>>, vector<1x8x128xf32>,
    %c24_295 = arith.constant 24 : index
    %c0_296 = arith.constant 0 : index
    %c0_297 = arith.constant 0 : index
    %609 = vector.load %arg11[%c24_295, %c0_296, %c0_297] : memref<32x8x128xf32, #tpu.memory_space<vmem>>, vector<1x8x128xf32>
    %610 = vector.shape_cast %609 : vector<1x8x128xf32> to vector<8x128xf32>
    %c24_298 = arith.constant 24 : index
    %c0_299 = arith.constant 0 : index
    %c0_300 = arith.constant 0 : index
    %611 = vector.load %arg12[%c24_298, %c0_299, %c0_300] : memref<32x8x128xf32, #tpu.memory_space<vmem>>, vector<1x8x128xf32>
    %612 = vector.shape_cast %611 : vector<1x8x128xf32> to vector<8x128xf32>
    %c24_301 = arith.constant 24 : index
    %c0_302 = arith.constant 0 : index
    %c0_303 = arith.constant 0 : index
    %613 = vector.load %arg13[%c24_301, %c0_302, %c0_303] : memref<32x8x128xf32, #tpu.memory_space<vmem>>, vector<1x8x128xf32>
    %614 = vector.shape_cast %613 : vector<1x8x128xf32> to vector<8x128xf32>
    %615 = vector.extract_strided_slice %610 {offsets = [0, 0], sizes = [4, 128], strides = [1, 1]} : vector<8x128xf32> to vector<4x128xf32>
    %616 = arith.mulf %600, %615 : vector<4x128xf32>
    %617 = vector.extract_strided_slice %612 {offsets = [0, 0], sizes = [4, 128], strides = [1, 1]} : vector<8x128xf32> to vector<4x128xf32>
    %618 = arith.addf %616, %617 : vector<4x128xf32>
    %619 = vector.extract_strided_slice %614 {offsets = [0, 0], sizes = [4, 128], strides = [1, 1]} : vector<8x128xf32> to vector<4x128xf32>
    %620 = arith.mulf %619, %618 : vector<4x128xf32>
    %cst_304 = arith.constant dense<0.000000e+00> : vector<128xf32>
    %621 = vector.multi_reduction <add>, %620, %cst_304 [0] : vector<4x128xf32> to vector<128xf32>
    %622 = vector.shape_cast %621 : vector<128xf32> to vector<1x128xf32>
    %623 = vector.extract_strided_slice %610 {offsets = [4, 0], sizes = [4, 128], strides = [1, 1]} : vector<8x128xf32> to vector<4x128xf32>
    %624 = arith.mulf %618, %623 : vector<4x128xf32>
    %625 = vector.extract_strided_slice %612 {offsets = [4, 0], sizes = [4, 128], strides = [1, 1]} : vector<8x128xf32> to vector<4x128xf32>
    %626 = arith.addf %624, %625 : vector<4x128xf32>
    %627 = vector.extract_strided_slice %614 {offsets = [4, 0], sizes = [4, 128], strides = [1, 1]} : vector<8x128xf32> to vector<4x128xf32>
    %628 = arith.mulf %627, %626 : vector<4x128xf32>
    %cst_305 = arith.constant dense<0.000000e+00> : vector<128xf32>
    %629 = vector.multi_reduction <add>, %628, %cst_305 [0] : vector<4x128xf32> to vector<128xf32>
    %630 = vector.shape_cast %629 : vector<128xf32> to vector<1x128xf32>
    %c25 = arith.constant 25 : index
    %c0_306 = arith.constant 0 : index
    %c0_307 = arith.constant 0 : index
    %631 = vector.load %arg11[%c25, %c0_306, %c0_307] : memref<32x8x128xf32, #tpu.memory_space<vmem>>, vector<1x8x128xf32>
    %632 = vector.shape_cast %631 : vector<1x8x128xf32> to vector<8x128xf32>
    %c25_308 = arith.constant 25 : index
    %c0_309 = arith.constant 0 : index
    %c0_310 = arith.constant 0 : index
    %633 = vector.load %arg12[%c25_308, %c0_309, %c0_310] : memref<32x8x128xf32, #tpu.memory_space<vmem>>, vector<1x8x128xf32>
    %634 = vector.shape_cast %633 : vector<1x8x128xf32> to vector<8x128xf32>
    %c25_311 = arith.constant 25 : index
    %c0_312 = arith.constant 0 : index
    %c0_313 = arith.constant 0 : index
    %635 = vector.load %arg13[%c25_311, %c0_312, %c0_313] : memref<32x8x128xf32, #tpu.memory_space<vmem>>, vector<1x8x128xf32>
    %636 = vector.shape_cast %635 : vector<1x8x128xf32> to vector<8x128xf32>
    %637 = vector.extract_strided_slice %632 {offsets = [0, 0], sizes = [4, 128], strides = [1, 1]} : vector<8x128xf32> to vector<4x128xf32>
    %638 = arith.mulf %626, %637 : vector<4x128xf32>
    %639 = vector.extract_strided_slice %634 {offsets = [0, 0], sizes = [4, 128], strides = [1, 1]} : vector<8x128xf32> to vector<4x128xf32>
    %640 = arith.addf %638, %639 : vector<4x128xf32>
    %641 = vector.extract_strided_slice %636 {offsets = [0, 0], sizes = [4, 128], strides = [1, 1]} : vector<8x128xf32> to vector<4x128xf32>
    %642 = arith.mulf %641, %640 : vector<4x128xf32>
    %cst_314 = arith.constant dense<0.000000e+00> : vector<128xf32>
    %643 = vector.multi_reduction <add>, %642, %cst_314 [0] : vector<4x128xf32> to vector<128xf32>
    %644 = vector.shape_cast %643 : vector<128xf32> to vector<1x128xf32>
    %645 = vector.extract_strided_slice %632 {offsets = [4, 0], sizes = [4, 128], strides = [1, 1]} : vector<8x128xf32> to vector<4x128xf32>
    %646 = arith.mulf %640, %645 : vector<4x128xf32>
    %647 = vector.extract_strided_slice %634 {offsets = [4, 0], sizes = [4, 128], strides = [1, 1]} : vector<8x128xf32> to vector<4x128xf32>
    %648 = arith.addf %646, %647 : vector<4x128xf32>
    %649 = vector.extract_strided_slice %636 {offsets = [4, 0], sizes = [4, 128], strides = [1, 1]} : vector<8x128xf32> to vector<4x128xf32>
    %650 = arith.mulf %649, %648 : vector<4x128xf32>
    %cst_315 = arith.constant dense<0.000000e+00> : vector<128xf32>
    %651 = vector.multi_reduction <add>, %650, %cst_315 [0] : vector<4x128xf32> to vector<128xf32>
    %652 = vector.shape_cast %651 : vector<128xf32> to vector<1x128xf32>
    %c26 = arith.constant 26 : index
    %c0_316 = arith.constant 0 : index
    %c0_317 = arith.constant 0 : index
    %653 = vector.load %arg11[%c26, %c0_316, %c0_317] : memref<32x8x128xf32, #tpu.memory_space<vmem>>, vector<1x8x128xf32>
    %654 = vector.shape_cast %653 : vector<1x8x128xf32> to vector<8x128xf32>
    %c26_318 = arith.constant 26 : index
    %c0_319 = arith.constant 0 : index
    %c0_320 = arith.constant 0 : index
    %655 = vector.load %arg12[%c26_318, %c0_319, %c0_320] : memref<32x8x128xf32, #tpu.memory_space<vmem>>, vector<1x8x128xf32>
    %656 = vector.shape_cast %655 : vector<1x8x128xf32> to vector<8x128xf32>
    %c26_321 = arith.constant 26 : index
    %c0_322 = arith.constant 0 : index
    %c0_323 = arith.constant 0 : index
    %657 = vector.load %arg13[%c26_321, %c0_322, %c0_323] : memref<32x8x128xf32, #tpu.memory_space<vmem>>, vector<1x8x128xf32>
    %658 = vector.shape_cast %657 : vector<1x8x128xf32> to vector<8x128xf32>
    %659 = vector.extract_strided_slice %654 {offsets = [0, 0], sizes = [4, 128], strides = [1, 1]} : vector<8x128xf32> to vector<4x128xf32>
    %660 = arith.mulf %648, %659 : vector<4x128xf32>
    %661 = vector.extract_strided_slice %656 {offsets = [0, 0], sizes = [4, 128], strides = [1, 1]} : vector<8x128xf32> to vector<4x128xf32>
    %662 = arith.addf %660, %661 : vector<4x128xf32>
    %663 = vector.extract_strided_slice %658 {offsets = [0, 0], sizes = [4, 128], strides = [1, 1]} : vector<8x128xf32> to vector<4x128xf32>
    %664 = arith.mulf %663, %662 : vector<4x128xf32>
    %cst_324 = arith.constant dense<0.000000e+00> : vector<128xf32>
    %665 = vector.multi_reduction <add>, %664, %cst_324 [0] : vector<4x128xf32> to vector<128xf32>
    %666 = vector.shape_cast %665 : vector<128xf32> to vector<1x128xf32>
    %667 = vector.extract_strided_slice %654 {offsets = [4, 0], sizes = [4, 128], strides = [1, 1]} : vector<8x128xf32> to vector<4x128xf32>
    %668 = arith.mulf %662, %667 : vector<4x128xf32>
    %669 = vector.extract_strided_slice %656 {offsets = [4, 0], sizes = [4, 128], strides = [1, 1]} : vector<8x128xf32> to vector<4x128xf32>
    %670 = arith.addf %668, %669 : vector<4x128xf32>
    %671 = vector.extract_strided_slice %658 {offsets = [4, 0], sizes = [4, 128], strides = [1, 1]} : vector<8x128xf32> to vector<4x128xf32>
    %672 = arith.mulf %671, %670 : vector<4x128xf32>
    %cst_325 = arith.constant dense<0.000000e+00> : vector<128xf32>
    %673 = vector.multi_reduction <add>, %672, %cst_325 [0] : vector<4x128xf32> to vector<128xf32>
    %674 = vector.shape_cast %673 : vector<128xf32> to vector<1x128xf32>
    %c27 = arith.constant 27 : index
    %c0_326 = arith.constant 0 : index
    %c0_327 = arith.constant 0 : index
    %675 = vector.load %arg11[%c27, %c0_326, %c0_327] : memref<32x8x128xf32, #tpu.memory_space<vmem>>, vector<1x8x128xf32>
    %676 = vector.shape_cast %675 : vector<1x8x128xf32> to vector<8x128xf32>
    %c27_328 = arith.constant 27 : index
    %c0_329 = arith.constant 0 : index
    %c0_330 = arith.constant 0 : index
    %677 = vector.load %arg12[%c27_328, %c0_329, %c0_330] : memref<32x8x128xf32, #tpu.memory_space<vmem>>, vector<1x8x128xf32>
    %678 = vector.shape_cast %677 : vector<1x8x128xf32> to vector<8x128xf32>
    %c27_331 = arith.constant 27 : index
    %c0_332 = arith.constant 0 : index
    %c0_333 = arith.constant 0 : index
    %679 = vector.load %arg13[%c27_331, %c0_332, %c0_333] : memref<32x8x128xf32, #tpu.memory_space<vmem>>, vector<1x8x128xf32>
    %680 = vector.shape_cast %679 : vector<1x8x128xf32> to vector<8x128xf32>
    %681 = vector.extract_strided_slice %676 {offsets = [0, 0], sizes = [4, 128], strides = [1, 1]} : vector<8x128xf32> to vector<4x128xf32>
    %682 = arith.mulf %670, %681 : vector<4x128xf32>
    %683 = vector.extract_strided_slice %678 {offsets = [0, 0], sizes = [4, 128], strides = [1, 1]} : vector<8x128xf32> to vector<4x128xf32>
    %684 = arith.addf %682, %683 : vector<4x128xf32>
    %685 = vector.extract_strided_slice %680 {offsets = [0, 0], sizes = [4, 128], strides = [1, 1]} : vector<8x128xf32> to vector<4x128xf32>
    %686 = arith.mulf %685, %684 : vector<4x128xf32>
    %cst_334 = arith.constant dense<0.000000e+00> : vector<128xf32>
    %687 = vector.multi_reduction <add>, %686, %cst_334 [0] : vector<4x128xf32> to vector<128xf32>
    %688 = vector.shape_cast %687 : vector<128xf32> to vector<1x128xf32>
    %689 = vector.extract_strided_slice %676 {offsets = [4, 0], sizes = [4, 128], strides = [1, 1]} : vector<8x128xf32> to vector<4x128xf32>
    %690 = arith.mulf %684, %689 : vector<4x128xf32>
    %691 = vector.extract_strided_slice %678 {offsets = [4, 0], sizes = [4, 128], strides = [1, 1]} : vector<8x128xf32> to vector<4x128xf32>
    %692 = arith.addf %690, %691 : vector<4x128xf32>
    %693 = vector.extract_strided_slice %680 {offsets = [4, 0], sizes = [4, 128], strides = [1, 1]} : vector<8x128xf32> to vector<4x128xf32>
    %694 = arith.mulf %693, %692 : vector<4x128xf32>
    %cst_335 = arith.constant dense<0.000000e+00> : vector<128xf32>
    %695 = vector.multi_reduction <add>, %694, %cst_335 [0] : vector<4x128xf32> to vector<128xf32>
    %696 = vector.shape_cast %695 : vector<128xf32> to vector<1x128xf32>
    %697 = tpu.concatenate %622, %630, %644, %652, %666, %674, %688, %696 in 0 : vector<1x128xf32>, vector<1x128xf32>, vector<1x128xf32>, vector<1x128xf32>, vector<1x128xf32>, vector<1x128xf32>, vector<1x128xf32>, vector<1x128xf32> -> vector<8x128xf32>
    %c0_336 = arith.constant 0 : index
    %c48 = arith.constant 48 : index
    %c0_337 = arith.constant 0 : index
    %698 = vector.load %arg10[%c0_336, %c48, %c0_337] : memref<1x64x128xf32, #tpu.memory_space<vmem>>, vector<1x8x128xf32>
    %699 = vector.shape_cast %698 : vector<1x8x128xf32> to vector<8x128xf32>
    %700 = vector.shape_cast %697 : vector<8x128xf32> to vector<1x8x128xf32>
    tpu.vector_store %arg10[%c0_336, %c48, %c0_337], %700 {strides = array<i32>} : memref<1x64x128xf32, #tpu.memory_space<vmem>>, vector<1x8x128xf32>,
    %c28 = arith.constant 28 : index
    %c0_338 = arith.constant 0 : index
    %c0_339 = arith.constant 0 : index
    %701 = vector.load %arg11[%c28, %c0_338, %c0_339] : memref<32x8x128xf32, #tpu.memory_space<vmem>>, vector<1x8x128xf32>
    %702 = vector.shape_cast %701 : vector<1x8x128xf32> to vector<8x128xf32>
    %c28_340 = arith.constant 28 : index
    %c0_341 = arith.constant 0 : index
    %c0_342 = arith.constant 0 : index
    %703 = vector.load %arg12[%c28_340, %c0_341, %c0_342] : memref<32x8x128xf32, #tpu.memory_space<vmem>>, vector<1x8x128xf32>
    %704 = vector.shape_cast %703 : vector<1x8x128xf32> to vector<8x128xf32>
    %c28_343 = arith.constant 28 : index
    %c0_344 = arith.constant 0 : index
    %c0_345 = arith.constant 0 : index
    %705 = vector.load %arg13[%c28_343, %c0_344, %c0_345] : memref<32x8x128xf32, #tpu.memory_space<vmem>>, vector<1x8x128xf32>
    %706 = vector.shape_cast %705 : vector<1x8x128xf32> to vector<8x128xf32>
    %707 = vector.extract_strided_slice %702 {offsets = [0, 0], sizes = [4, 128], strides = [1, 1]} : vector<8x128xf32> to vector<4x128xf32>
    %708 = arith.mulf %692, %707 : vector<4x128xf32>
    %709 = vector.extract_strided_slice %704 {offsets = [0, 0], sizes = [4, 128], strides = [1, 1]} : vector<8x128xf32> to vector<4x128xf32>
    %710 = arith.addf %708, %709 : vector<4x128xf32>
    %711 = vector.extract_strided_slice %706 {offsets = [0, 0], sizes = [4, 128], strides = [1, 1]} : vector<8x128xf32> to vector<4x128xf32>
    %712 = arith.mulf %711, %710 : vector<4x128xf32>
    %cst_346 = arith.constant dense<0.000000e+00> : vector<128xf32>
    %713 = vector.multi_reduction <add>, %712, %cst_346 [0] : vector<4x128xf32> to vector<128xf32>
    %714 = vector.shape_cast %713 : vector<128xf32> to vector<1x128xf32>
    %715 = vector.extract_strided_slice %702 {offsets = [4, 0], sizes = [4, 128], strides = [1, 1]} : vector<8x128xf32> to vector<4x128xf32>
    %716 = arith.mulf %710, %715 : vector<4x128xf32>
    %717 = vector.extract_strided_slice %704 {offsets = [4, 0], sizes = [4, 128], strides = [1, 1]} : vector<8x128xf32> to vector<4x128xf32>
    %718 = arith.addf %716, %717 : vector<4x128xf32>
    %719 = vector.extract_strided_slice %706 {offsets = [4, 0], sizes = [4, 128], strides = [1, 1]} : vector<8x128xf32> to vector<4x128xf32>
    %720 = arith.mulf %719, %718 : vector<4x128xf32>
    %cst_347 = arith.constant dense<0.000000e+00> : vector<128xf32>
    %721 = vector.multi_reduction <add>, %720, %cst_347 [0] : vector<4x128xf32> to vector<128xf32>
    %722 = vector.shape_cast %721 : vector<128xf32> to vector<1x128xf32>
    %c29 = arith.constant 29 : index
    %c0_348 = arith.constant 0 : index
    %c0_349 = arith.constant 0 : index
    %723 = vector.load %arg11[%c29, %c0_348, %c0_349] : memref<32x8x128xf32, #tpu.memory_space<vmem>>, vector<1x8x128xf32>
    %724 = vector.shape_cast %723 : vector<1x8x128xf32> to vector<8x128xf32>
    %c29_350 = arith.constant 29 : index
    %c0_351 = arith.constant 0 : index
    %c0_352 = arith.constant 0 : index
    %725 = vector.load %arg12[%c29_350, %c0_351, %c0_352] : memref<32x8x128xf32, #tpu.memory_space<vmem>>, vector<1x8x128xf32>
    %726 = vector.shape_cast %725 : vector<1x8x128xf32> to vector<8x128xf32>
    %c29_353 = arith.constant 29 : index
    %c0_354 = arith.constant 0 : index
    %c0_355 = arith.constant 0 : index
    %727 = vector.load %arg13[%c29_353, %c0_354, %c0_355] : memref<32x8x128xf32, #tpu.memory_space<vmem>>, vector<1x8x128xf32>
    %728 = vector.shape_cast %727 : vector<1x8x128xf32> to vector<8x128xf32>
    %729 = vector.extract_strided_slice %724 {offsets = [0, 0], sizes = [4, 128], strides = [1, 1]} : vector<8x128xf32> to vector<4x128xf32>
    %730 = arith.mulf %718, %729 : vector<4x128xf32>
    %731 = vector.extract_strided_slice %726 {offsets = [0, 0], sizes = [4, 128], strides = [1, 1]} : vector<8x128xf32> to vector<4x128xf32>
    %732 = arith.addf %730, %731 : vector<4x128xf32>
    %733 = vector.extract_strided_slice %728 {offsets = [0, 0], sizes = [4, 128], strides = [1, 1]} : vector<8x128xf32> to vector<4x128xf32>
    %734 = arith.mulf %733, %732 : vector<4x128xf32>
    %cst_356 = arith.constant dense<0.000000e+00> : vector<128xf32>
    %735 = vector.multi_reduction <add>, %734, %cst_356 [0] : vector<4x128xf32> to vector<128xf32>
    %736 = vector.shape_cast %735 : vector<128xf32> to vector<1x128xf32>
    %737 = vector.extract_strided_slice %724 {offsets = [4, 0], sizes = [4, 128], strides = [1, 1]} : vector<8x128xf32> to vector<4x128xf32>
    %738 = arith.mulf %732, %737 : vector<4x128xf32>
    %739 = vector.extract_strided_slice %726 {offsets = [4, 0], sizes = [4, 128], strides = [1, 1]} : vector<8x128xf32> to vector<4x128xf32>
    %740 = arith.addf %738, %739 : vector<4x128xf32>
    %741 = vector.extract_strided_slice %728 {offsets = [4, 0], sizes = [4, 128], strides = [1, 1]} : vector<8x128xf32> to vector<4x128xf32>
    %742 = arith.mulf %741, %740 : vector<4x128xf32>
    %cst_357 = arith.constant dense<0.000000e+00> : vector<128xf32>
    %743 = vector.multi_reduction <add>, %742, %cst_357 [0] : vector<4x128xf32> to vector<128xf32>
    %744 = vector.shape_cast %743 : vector<128xf32> to vector<1x128xf32>
    %c30 = arith.constant 30 : index
    %c0_358 = arith.constant 0 : index
    %c0_359 = arith.constant 0 : index
    %745 = vector.load %arg11[%c30, %c0_358, %c0_359] : memref<32x8x128xf32, #tpu.memory_space<vmem>>, vector<1x8x128xf32>
    %746 = vector.shape_cast %745 : vector<1x8x128xf32> to vector<8x128xf32>
    %c30_360 = arith.constant 30 : index
    %c0_361 = arith.constant 0 : index
    %c0_362 = arith.constant 0 : index
    %747 = vector.load %arg12[%c30_360, %c0_361, %c0_362] : memref<32x8x128xf32, #tpu.memory_space<vmem>>, vector<1x8x128xf32>
    %748 = vector.shape_cast %747 : vector<1x8x128xf32> to vector<8x128xf32>
    %c30_363 = arith.constant 30 : index
    %c0_364 = arith.constant 0 : index
    %c0_365 = arith.constant 0 : index
    %749 = vector.load %arg13[%c30_363, %c0_364, %c0_365] : memref<32x8x128xf32, #tpu.memory_space<vmem>>, vector<1x8x128xf32>
    %750 = vector.shape_cast %749 : vector<1x8x128xf32> to vector<8x128xf32>
    %751 = vector.extract_strided_slice %746 {offsets = [0, 0], sizes = [4, 128], strides = [1, 1]} : vector<8x128xf32> to vector<4x128xf32>
    %752 = arith.mulf %740, %751 : vector<4x128xf32>
    %753 = vector.extract_strided_slice %748 {offsets = [0, 0], sizes = [4, 128], strides = [1, 1]} : vector<8x128xf32> to vector<4x128xf32>
    %754 = arith.addf %752, %753 : vector<4x128xf32>
    %755 = vector.extract_strided_slice %750 {offsets = [0, 0], sizes = [4, 128], strides = [1, 1]} : vector<8x128xf32> to vector<4x128xf32>
    %756 = arith.mulf %755, %754 : vector<4x128xf32>
    %cst_366 = arith.constant dense<0.000000e+00> : vector<128xf32>
    %757 = vector.multi_reduction <add>, %756, %cst_366 [0] : vector<4x128xf32> to vector<128xf32>
    %758 = vector.shape_cast %757 : vector<128xf32> to vector<1x128xf32>
    %759 = vector.extract_strided_slice %746 {offsets = [4, 0], sizes = [4, 128], strides = [1, 1]} : vector<8x128xf32> to vector<4x128xf32>
    %760 = arith.mulf %754, %759 : vector<4x128xf32>
    %761 = vector.extract_strided_slice %748 {offsets = [4, 0], sizes = [4, 128], strides = [1, 1]} : vector<8x128xf32> to vector<4x128xf32>
    %762 = arith.addf %760, %761 : vector<4x128xf32>
    %763 = vector.extract_strided_slice %750 {offsets = [4, 0], sizes = [4, 128], strides = [1, 1]} : vector<8x128xf32> to vector<4x128xf32>
    %764 = arith.mulf %763, %762 : vector<4x128xf32>
    %cst_367 = arith.constant dense<0.000000e+00> : vector<128xf32>
    %765 = vector.multi_reduction <add>, %764, %cst_367 [0] : vector<4x128xf32> to vector<128xf32>
    %766 = vector.shape_cast %765 : vector<128xf32> to vector<1x128xf32>
    %c31 = arith.constant 31 : index
    %c0_368 = arith.constant 0 : index
    %c0_369 = arith.constant 0 : index
    %767 = vector.load %arg11[%c31, %c0_368, %c0_369] : memref<32x8x128xf32, #tpu.memory_space<vmem>>, vector<1x8x128xf32>
    %768 = vector.shape_cast %767 : vector<1x8x128xf32> to vector<8x128xf32>
    %c31_370 = arith.constant 31 : index
    %c0_371 = arith.constant 0 : index
    %c0_372 = arith.constant 0 : index
    %769 = vector.load %arg12[%c31_370, %c0_371, %c0_372] : memref<32x8x128xf32, #tpu.memory_space<vmem>>, vector<1x8x128xf32>
    %770 = vector.shape_cast %769 : vector<1x8x128xf32> to vector<8x128xf32>
    %c31_373 = arith.constant 31 : index
    %c0_374 = arith.constant 0 : index
    %c0_375 = arith.constant 0 : index
    %771 = vector.load %arg13[%c31_373, %c0_374, %c0_375] : memref<32x8x128xf32, #tpu.memory_space<vmem>>, vector<1x8x128xf32>
    %772 = vector.shape_cast %771 : vector<1x8x128xf32> to vector<8x128xf32>
    %773 = vector.extract_strided_slice %768 {offsets = [0, 0], sizes = [4, 128], strides = [1, 1]} : vector<8x128xf32> to vector<4x128xf32>
    %774 = arith.mulf %762, %773 : vector<4x128xf32>
    %775 = vector.extract_strided_slice %770 {offsets = [0, 0], sizes = [4, 128], strides = [1, 1]} : vector<8x128xf32> to vector<4x128xf32>
    %776 = arith.addf %774, %775 : vector<4x128xf32>
    %777 = vector.extract_strided_slice %772 {offsets = [0, 0], sizes = [4, 128], strides = [1, 1]} : vector<8x128xf32> to vector<4x128xf32>
    %778 = arith.mulf %777, %776 : vector<4x128xf32>
    %cst_376 = arith.constant dense<0.000000e+00> : vector<128xf32>
    %779 = vector.multi_reduction <add>, %778, %cst_376 [0] : vector<4x128xf32> to vector<128xf32>
    %780 = vector.shape_cast %779 : vector<128xf32> to vector<1x128xf32>
    %781 = vector.extract_strided_slice %768 {offsets = [4, 0], sizes = [4, 128], strides = [1, 1]} : vector<8x128xf32> to vector<4x128xf32>
    %782 = arith.mulf %776, %781 : vector<4x128xf32>
    %783 = vector.extract_strided_slice %770 {offsets = [4, 0], sizes = [4, 128], strides = [1, 1]} : vector<8x128xf32> to vector<4x128xf32>
    %784 = arith.addf %782, %783 : vector<4x128xf32>
    %785 = vector.extract_strided_slice %772 {offsets = [4, 0], sizes = [4, 128], strides = [1, 1]} : vector<8x128xf32> to vector<4x128xf32>
    %786 = arith.mulf %785, %784 : vector<4x128xf32>
    %cst_377 = arith.constant dense<0.000000e+00> : vector<128xf32>
    %787 = vector.multi_reduction <add>, %786, %cst_377 [0] : vector<4x128xf32> to vector<128xf32>
    %788 = vector.shape_cast %787 : vector<128xf32> to vector<1x128xf32>
    %789 = tpu.concatenate %714, %722, %736, %744, %758, %766, %780, %788 in 0 : vector<1x128xf32>, vector<1x128xf32>, vector<1x128xf32>, vector<1x128xf32>, vector<1x128xf32>, vector<1x128xf32>, vector<1x128xf32>, vector<1x128xf32> -> vector<8x128xf32>
    %c0_378 = arith.constant 0 : index
    %c56 = arith.constant 56 : index
    %c0_379 = arith.constant 0 : index
    %790 = vector.load %arg10[%c0_378, %c56, %c0_379] : memref<1x64x128xf32, #tpu.memory_space<vmem>>, vector<1x8x128xf32>
    %791 = vector.shape_cast %790 : vector<1x8x128xf32> to vector<8x128xf32>
    %792 = vector.shape_cast %789 : vector<8x128xf32> to vector<1x8x128xf32>
    tpu.vector_store %arg10[%c0_378, %c56, %c0_379], %792 {strides = array<i32>} : memref<1x64x128xf32, #tpu.memory_space<vmem>>, vector<1x8x128xf32>,
    return
  }
  func.func @transform_0(%arg0: i32) -> (i32, i32, i32) {
    %c0_i32 = arith.constant 0 : i32
    %c0_i32_0 = arith.constant 0 : i32
    %c0_i32_1 = arith.constant 0 : i32
    return %arg0, %c0_i32, %c0_i32_0 : i32, i32, i32
  }
  func.func @transform_1(%arg0: i32) -> (i32, i32) {
    %c0_i32 = arith.constant 0 : i32
    %c0_i32_0 = arith.constant 0 : i32
    %c0_i32_1 = arith.constant 0 : i32
    return %c0_i32, %c0_i32_0 : i32, i32
  }
  func.func @transform_2(%arg0: i32) -> (i32, i32) {
    %c0_i32 = arith.constant 0 : i32
    %c0_i32_0 = arith.constant 0 : i32
    %c0_i32_1 = arith.constant 0 : i32
    return %c0_i32, %c0_i32_0 : i32, i32
  }
  func.func @transform_3(%arg0: i32) -> (i32, i32) {
    %c0_i32 = arith.constant 0 : i32
    %c0_i32_0 = arith.constant 0 : i32
    %c0_i32_1 = arith.constant 0 : i32
    return %c0_i32, %c0_i32_0 : i32, i32
  }
  func.func @transform_4(%arg0: i32) -> (i32, i32) {
    %c0_i32 = arith.constant 0 : i32
    %c0_i32_0 = arith.constant 0 : i32
    %c0_i32_1 = arith.constant 0 : i32
    return %c0_i32, %c0_i32_0 : i32, i32
  }
  func.func @transform_5(%arg0: i32) -> (i32, i32) {
    %c0_i32 = arith.constant 0 : i32
    %c0_i32_0 = arith.constant 0 : i32
    %c0_i32_1 = arith.constant 0 : i32
    return %c0_i32, %c0_i32_0 : i32, i32
  }
  func.func @transform_6(%arg0: i32) -> (i32, i32) {
    %c0_i32 = arith.constant 0 : i32
    %c0_i32_0 = arith.constant 0 : i32
    %c0_i32_1 = arith.constant 0 : i32
    return %c0_i32, %c0_i32_0 : i32, i32
  }
  func.func @transform_7(%arg0: i32) -> (i32, i32) {
    %c0_i32 = arith.constant 0 : i32
    %c0_i32_0 = arith.constant 0 : i32
    %c0_i32_1 = arith.constant 0 : i32
    return %c0_i32, %c0_i32_0 : i32, i32
  }
  func.func @transform_8(%arg0: i32) -> (i32, i32) {
    %c0_i32 = arith.constant 0 : i32
    %c0_i32_0 = arith.constant 0 : i32
    %c0_i32_1 = arith.constant 0 : i32
    return %c0_i32, %c0_i32_0 : i32, i32
  }
  func.func @transform_9(%arg0: i32) -> (i32, i32, i32) {
    %c0_i32 = arith.constant 0 : i32
    %c0_i32_0 = arith.constant 0 : i32
    %c0_i32_1 = arith.constant 0 : i32
    return %arg0, %c0_i32, %c0_i32_0 : i32, i32, i32
  }
}

module attributes {stable_mosaic.version = 11 : i64} {
  func.func @_tail_kernel(%arg0: i32, %arg1: memref<64x32xf32, #tpu.memory_space<vmem>>, %arg2: memref<64x32xf32, #tpu.memory_space<vmem>>, %arg3: memref<64x32xf32, #tpu.memory_space<vmem>>, %arg4: memref<1x32xf32, #tpu.memory_space<vmem>>, %arg5: memref<1x32xf32, #tpu.memory_space<vmem>>, %arg6: memref<1x32xf32, #tpu.memory_space<vmem>>, %arg7: memref<32x32xf32, #tpu.memory_space<vmem>>, %arg8: memref<64x32xf32, #tpu.memory_space<vmem>>) attributes {dimension_semantics = [#tpu.dimension_semantics<parallel>], iteration_bounds = array<i64: 2>, scalar_prefetch = 0 : i64, scratch_operands = 0 : i64, tpu.core_type = #tpu.core_type<tc>, window_params = [{transform_indices = @transform_0, window_bounds = array<i64: 64, 32>}, {transform_indices = @transform_1, window_bounds = array<i64: 64, 32>}, {transform_indices = @transform_2, window_bounds = array<i64: 64, 32>}, {pipeline_mode = #tpu.pipeline_mode<synchronous>, transform_indices = @transform_3, window_bounds = array<i64: 1, 32>}, {pipeline_mode = #tpu.pipeline_mode<synchronous>, transform_indices = @transform_4, window_bounds = array<i64: 1, 32>}, {pipeline_mode = #tpu.pipeline_mode<synchronous>, transform_indices = @transform_5, window_bounds = array<i64: 1, 32>}, {pipeline_mode = #tpu.pipeline_mode<synchronous>, transform_indices = @transform_6, window_bounds = array<i64: 32, 32>}, {transform_indices = @transform_7, window_bounds = array<i64: 64, 32>}]} {
    %c0 = arith.constant 0 : index
    %c0_0 = arith.constant 0 : index
    %0 = vector.load %arg1[%c0, %c0_0] : memref<64x32xf32, #tpu.memory_space<vmem>>, vector<64x32xf32>
    %c0_1 = arith.constant 0 : index
    %c0_2 = arith.constant 0 : index
    %1 = vector.load %arg2[%c0_1, %c0_2] : memref<64x32xf32, #tpu.memory_space<vmem>>, vector<64x32xf32>
    %c0_3 = arith.constant 0 : index
    %c0_4 = arith.constant 0 : index
    %2 = vector.load %arg4[%c0_3, %c0_4] : memref<1x32xf32, #tpu.memory_space<vmem>>, vector<1x32xf32>
    %3 = vector.broadcast %2 : vector<1x32xf32> to vector<64x32xf32>
    %4 = arith.mulf %1, %3 : vector<64x32xf32>
    %5 = arith.addf %0, %4 : vector<64x32xf32>
    %cst = arith.constant dense<0.000000e+00> : vector<64xf32>
    %6 = vector.multi_reduction <add>, %5, %cst [1] : vector<64x32xf32> to vector<64xf32>
    %7 = vector.shape_cast %6 : vector<64xf32> to vector<64x1xf32>
    %cst_5 = arith.constant 3.200000e+01 : f32
    %8 = vector.broadcast %cst_5 : f32 to vector<64x1xf32>
    %9 = arith.divf %7, %8 : vector<64x1xf32>
    %10 = vector.broadcast %9 : vector<64x1xf32> to vector<64x32xf32>
    %11 = arith.subf %5, %10 : vector<64x32xf32>
    %12 = arith.mulf %11, %11 : vector<64x32xf32>
    %cst_6 = arith.constant dense<0.000000e+00> : vector<64xf32>
    %13 = vector.multi_reduction <add>, %12, %cst_6 [1] : vector<64x32xf32> to vector<64xf32>
    %14 = vector.shape_cast %13 : vector<64xf32> to vector<64x1xf32>
    %cst_7 = arith.constant 3.200000e+01 : f32
    %15 = vector.broadcast %cst_7 : f32 to vector<64x1xf32>
    %16 = arith.divf %14, %15 : vector<64x1xf32>
    %17 = vector.broadcast %9 : vector<64x1xf32> to vector<64x32xf32>
    %18 = arith.subf %5, %17 : vector<64x32xf32>
    %cst_8 = arith.constant 9.99999974E-6 : f32
    %19 = vector.broadcast %cst_8 : f32 to vector<64x1xf32>
    %20 = arith.addf %16, %19 : vector<64x1xf32>
    %21 = math.rsqrt %20 : vector<64x1xf32>
    %22 = vector.broadcast %21 : vector<64x1xf32> to vector<64x32xf32>
    %23 = arith.mulf %18, %22 : vector<64x32xf32>
    %c0_9 = arith.constant 0 : index
    %c0_10 = arith.constant 0 : index
    %24 = vector.load %arg5[%c0_9, %c0_10] : memref<1x32xf32, #tpu.memory_space<vmem>>, vector<1x32xf32>
    %25 = vector.broadcast %24 : vector<1x32xf32> to vector<64x32xf32>
    %26 = arith.mulf %23, %25 : vector<64x32xf32>
    %c0_11 = arith.constant 0 : index
    %c0_12 = arith.constant 0 : index
    %27 = vector.load %arg6[%c0_11, %c0_12] : memref<1x32xf32, #tpu.memory_space<vmem>>, vector<1x32xf32>
    %28 = vector.broadcast %27 : vector<1x32xf32> to vector<64x32xf32>
    %29 = arith.addf %26, %28 : vector<64x32xf32>
    %c0_13 = arith.constant 0 : index
    %c0_14 = arith.constant 0 : index
    %30 = vector.load %arg3[%c0_13, %c0_14] : memref<64x32xf32, #tpu.memory_space<vmem>>, vector<64x32xf32>
    %31 = arith.negf %30 : vector<64x32xf32>
    %32 = math.exp %31 : vector<64x32xf32>
    %cst_15 = arith.constant 1.000000e+00 : f32
    %33 = vector.broadcast %cst_15 : f32 to vector<64x32xf32>
    %34 = arith.addf %33, %32 : vector<64x32xf32>
    %35 = arith.divf %33, %34 : vector<64x32xf32>
    %36 = arith.mulf %30, %35 : vector<64x32xf32>
    %37 = arith.mulf %29, %36 : vector<64x32xf32>
    %c0_16 = arith.constant 0 : index
    %c0_17 = arith.constant 0 : index
    %38 = vector.load %arg7[%c0_16, %c0_17] : memref<32x32xf32, #tpu.memory_space<vmem>>, vector<32x32xf32>
    %cst_18 = arith.constant dense<0.000000e+00> : vector<64x32xf32>
    %39 = tpu.matmul %37, %38, %cst_18 {dimension_numbers = #tpu.dot_dimension_numbers<[1], [0], [0], [1], [0, 0, 1, 1], [], []>} : vector<64x32xf32>, vector<32x32xf32>, vector<64x32xf32> -> vector<64x32xf32>
    %c0_19 = arith.constant 0 : index
    %c0_20 = arith.constant 0 : index
    %40 = vector.load %arg8[%c0_19, %c0_20] : memref<64x32xf32, #tpu.memory_space<vmem>>, vector<64x32xf32>
    tpu.vector_store %arg8[%c0_19, %c0_20], %39 {strides = array<i32>} : memref<64x32xf32, #tpu.memory_space<vmem>>, vector<64x32xf32>,
    return
  }
  func.func @transform_0(%arg0: i32) -> (i32, i32) {
    %c0_i32 = arith.constant 0 : i32
    %c0_i32_0 = arith.constant 0 : i32
    return %arg0, %c0_i32 : i32, i32
  }
  func.func @transform_1(%arg0: i32) -> (i32, i32) {
    %c0_i32 = arith.constant 0 : i32
    %c0_i32_0 = arith.constant 0 : i32
    return %arg0, %c0_i32 : i32, i32
  }
  func.func @transform_2(%arg0: i32) -> (i32, i32) {
    %c0_i32 = arith.constant 0 : i32
    %c0_i32_0 = arith.constant 0 : i32
    return %arg0, %c0_i32 : i32, i32
  }
  func.func @transform_3(%arg0: i32) -> (i32, i32) {
    %c0_i32 = arith.constant 0 : i32
    %c0_i32_0 = arith.constant 0 : i32
    %c0_i32_1 = arith.constant 0 : i32
    return %c0_i32, %c0_i32_0 : i32, i32
  }
  func.func @transform_4(%arg0: i32) -> (i32, i32) {
    %c0_i32 = arith.constant 0 : i32
    %c0_i32_0 = arith.constant 0 : i32
    %c0_i32_1 = arith.constant 0 : i32
    return %c0_i32, %c0_i32_0 : i32, i32
  }
  func.func @transform_5(%arg0: i32) -> (i32, i32) {
    %c0_i32 = arith.constant 0 : i32
    %c0_i32_0 = arith.constant 0 : i32
    %c0_i32_1 = arith.constant 0 : i32
    return %c0_i32, %c0_i32_0 : i32, i32
  }
  func.func @transform_6(%arg0: i32) -> (i32, i32) {
    %c0_i32 = arith.constant 0 : i32
    %c0_i32_0 = arith.constant 0 : i32
    %c0_i32_1 = arith.constant 0 : i32
    return %c0_i32, %c0_i32_0 : i32, i32
  }
  func.func @transform_7(%arg0: i32) -> (i32, i32) {
    %c0_i32 = arith.constant 0 : i32
    %c0_i32_0 = arith.constant 0 : i32
    return %arg0, %c0_i32 : i32, i32
  }
}

</mosaic_0001>

<llo_original>
// kernel: _lambda_.3
$region0: #{_lambda_.3}
  #allocation0 [shape = 'u32[]', space=smem, size = 0x4, offset = 0x4, fixed_abs, tag = 'smem constant byte address 0x4 - core index']
  #allocation1 [shape = 'u32[72,128]{1,0:T(1,128)}', space=vmem, size = 0x9000, scoped, tag = 'internal scratch']
  %s0 = inlined_call_operand.vmem [shape: f32[320,16], index: 0, kind: input, shape index: {}]
  %s1 = inlined_call_operand.vmem [shape: f32[16,64], index: 1, kind: input, shape index: {}]
  %s2 = inlined_call_operand.vmem [shape: f32[9,64], index: 2, kind: input, shape index: {}]
  %s3 = inlined_call_operand.vmem [shape: f32[1,64], index: 3, kind: input, shape index: {}]
  %s4 = inlined_call_operand.vmem [shape: f32[2,8,8,64], index: 4, kind: output, shape index: {}]
  %s5 = sld [smem:[#allocation0]]
  $region49: #{_lambda_.3} parent=0
    _
  %s7 = ssub.s32 1, %s5
  %s8 = scalar_select 0, %s7, %s5
  loop: start=0, step=1, limit=4
  $region2: #{_lambda_.3} parent=0 // loop_pre_header
    _
  $region3: #{_lambda_.3} parent=0 // loop_header
    %s10 = sphi 0, %s14
    %p11 = scmp.ge.s32.totalorder %s10, 4
    %s20 = sphi 0, %s22
    %s23 = sphi 0, %s20
    %s24 = sphi 0, %s23
    %s40 = sphi 0, %s24
    %s44 = sphi 0, %s44
    %s46 = sphi 0, %s44
    %s47 = sphi 0, %s46
    %s61 = sphi 0, %s47
    %s65 = sphi 0, %s65
    %s67 = sphi 0, %s65
    %s68 = sphi 0, %s67
    %s82 = sphi 0, %s68
    %s86 = sphi 0, %s86
    %s88 = sphi 0, %s86
    %s89 = sphi 0, %s88
    %s103 = sphi 0, %s89
    %s109 = sphi 0, %s111
    %s112 = sphi 0, %s109
    %s113 = sphi 0, %s112
    %s129 = sphi 0, %s113
  $region4: #{_lambda_.3} parent=0 // loop_header_branch
    %13 = sbr.rel (%p11) target = $region8
  $region5: #{_lambda_.3} parent=0 // loop_body
    %s15 = ssub.s32 %s10, 1
    %s16 = ssub.s32 %s10, 2
    %s17 = sadd.s32 %s10, 1
    %s18 = ssub.s32 %s10, %s17
    %p19 = scmp.eq.s32.totalorder %s18, 0
    %s21 = sadd.s32 %s20, 1
    %s22 = scalar_select %p19, %s20, %s21
    %p25 = pneg %p19
    %p26 = scmp.eq.s32.totalorder %s10, 1
    %p27 = por %p25, %p26
    %p28 = scmp.ne.s32.totalorder %s20, %s23
    %p29 = scmp.eq.s32.totalorder %s10, 0
    %p30 = por %p28, %p29
    %p31 = scmp.ne.s32.totalorder %s20, %s23
    %p32 = scmp.eq.s32.totalorder %s15, 1
    %p33 = por %p31, %p32
    %p34 = scmp.ne.s32.totalorder %s23, %s24
    %p35 = scmp.eq.s32.totalorder %s15, 0
    %p36 = por %p34, %p35
    %p37 = scmp.ne.s32.totalorder %s23, %s24
    %p38 = scmp.eq.s32.totalorder %s16, 1
    %p39 = por %p37, %p38
    %p41 = scmp.ne.s32.totalorder %s24, %s40
    %p42 = scmp.eq.s32.totalorder %s16, 0
    %p43 = por %p41, %p42
    %s45 = sadd.s32 %s44, 1
    %p48 = scmp.eq.s32.totalorder %s10, 1
    %p49 = scmp.ne.s32.totalorder %s44, %s46
    %p50 = scmp.eq.s32.totalorder %s10, 0
    %p51 = por %p49, %p50
    %p52 = scmp.ne.s32.totalorder %s44, %s46
    %p53 = scmp.eq.s32.totalorder %s15, 1
    %p54 = por %p52, %p53
    %p55 = scmp.ne.s32.totalorder %s46, %s47
    %p56 = scmp.eq.s32.totalorder %s15, 0
    %p57 = por %p55, %p56
    %p58 = scmp.ne.s32.totalorder %s46, %s47
    %p59 = scmp.eq.s32.totalorder %s16, 1
    %p60 = por %p58, %p59
    %p62 = scmp.ne.s32.totalorder %s47, %s61
    %p63 = scmp.eq.s32.totalorder %s16, 0
    %p64 = por %p62, %p63
    %s66 = sadd.s32 %s65, 1
    %p69 = scmp.eq.s32.totalorder %s10, 1
    %p70 = scmp.ne.s32.totalorder %s65, %s67
    %p71 = scmp.eq.s32.totalorder %s10, 0
    %p72 = por %p70, %p71
    %p73 = scmp.ne.s32.totalorder %s65, %s67
    %p74 = scmp.eq.s32.totalorder %s15, 1
    %p75 = por %p73, %p74
    %p76 = scmp.ne.s32.totalorder %s67, %s68
    %p77 = scmp.eq.s32.totalorder %s15, 0
    %p78 = por %p76, %p77
    %p79 = scmp.ne.s32.totalorder %s67, %s68
    %p80 = scmp.eq.s32.totalorder %s16, 1
    %p81 = por %p79, %p80
    %p83 = scmp.ne.s32.totalorder %s68, %s82
    %p84 = scmp.eq.s32.totalorder %s16, 0
    %p85 = por %p83, %p84
    %s87 = sadd.s32 %s86, 1
    %p90 = scmp.eq.s32.totalorder %s10, 1
    %p91 = scmp.ne.s32.totalorder %s86, %s88
    %p92 = scmp.eq.s32.totalorder %s10, 0
    %p93 = por %p91, %p92
    %p94 = scmp.ne.s32.totalorder %s86, %s88
    %p95 = scmp.eq.s32.totalorder %s15, 1
    %p96 = por %p94, %p95
    %p97 = scmp.ne.s32.totalorder %s88, %s89
    %p98 = scmp.eq.s32.totalorder %s15, 0
    %p99 = por %p97, %p98
    %p100 = scmp.ne.s32.totalorder %s88, %s89
    %p101 = scmp.eq.s32.totalorder %s16, 1
    %p102 = por %p100, %p101
    %p104 = scmp.ne.s32.totalorder %s89, %s103
    %p105 = scmp.eq.s32.totalorder %s16, 0
    %p106 = por %p104, %p105
    %s107 = ssub.s32 %s10, %s17
    %p108 = scmp.eq.s32.totalorder %s107, 0
    %s110 = sadd.s32 %s109, 1
    %s111 = scalar_select %p108, %s109, %s110
    %p114 = pneg %p108
    %p115 = scmp.eq.s32.totalorder %s10, 1
    %p116 = por %p114, %p115
    %p117 = scmp.ne.s32.totalorder %s109, %s112
    %p118 = scmp.eq.s32.totalorder %s10, 0
    %p119 = por %p117, %p118
    %p120 = scmp.ne.s32.totalorder %s109, %s112
    %p121 = scmp.eq.s32.totalorder %s15, 1
    %p122 = por %p120, %p121
    %p123 = scmp.ne.s32.totalorder %s112, %s113
    %p124 = scmp.eq.s32.totalorder %s15, 0
    %p125 = por %p123, %p124
    %p126 = scmp.ne.s32.totalorder %s112, %s113
    %p127 = scmp.eq.s32.totalorder %s16, 1
    %p128 = por %p126, %p127
    %p130 = scmp.ne.s32.totalorder %s113, %s129
    %p131 = scmp.eq.s32.totalorder %s16, 0
    %p132 = por %p130, %p131
    %p133 = scmp.le.s32.totalorder 1, %s10
    %p134 = scmp.lt.s32.totalorder %s10, 3
    %p135 = pnand %p133, %p134
    %p136 = pneg %p135
    // Predicated region
    $region9: #{_lambda_.3} parent=5 // pred_check
      _
    $region10: #{_lambda_.3} parent=5 // pred_check_branch
      %138 = sbr.rel (%p135) target = $region12
    $region11: #{_lambda_.3} parent=5 // pred_region
      %s139 = ssub.s32 %s10, 1
      // Predicated region
      $region13: #{_lambda_.3} parent=11 // pred_check
        %p140 = pneg %p57
      $region14: #{_lambda_.3} parent=11 // pred_check_branch
        %142 = sbr.rel (%p140) target = $region16
      $region15: #{_lambda_.3} parent=11 // pred_region
        _
      $region16: #{_lambda_.3} parent=11 // pred_fallthru
        _
      // Predicated region
      $region17: #{_lambda_.3} parent=11 // pred_check
        %p143 = pneg %p78
      $region18: #{_lambda_.3} parent=11 // pred_check_branch
        %145 = sbr.rel (%p143) target = $region20
      $region19: #{_lambda_.3} parent=11 // pred_region
        _
      $region20: #{_lambda_.3} parent=11 // pred_fallthru
        _
      // Predicated region
      $region21: #{_lambda_.3} parent=11 // pred_check
        %p146 = pneg %p99
      $region22: #{_lambda_.3} parent=11 // pred_check_branch
        %148 = sbr.rel (%p146) target = $region24
      $region23: #{_lambda_.3} parent=11 // pred_region
        _
      $region24: #{_lambda_.3} parent=11 // pred_fallthru
        _
    $region12: #{_lambda_.3} parent=5 // pred_fallthru
      _
    %p149 = scmp.lt.s32.totalorder %s10, 2
    // Predicated region
    $region25: #{_lambda_.3} parent=5 // pred_check
      %p150 = pneg %p149
    $region26: #{_lambda_.3} parent=5 // pred_check_branch
      %152 = sbr.rel (%p150) target = $region28
    $region27: #{_lambda_.3} parent=5 // pred_region
      // Predicated region
      $region29: #{_lambda_.3} parent=27 // pred_check
        %p153 = pneg %p30
      $region30: #{_lambda_.3} parent=27 // pred_check_branch
        %155 = sbr.rel (%p153) target = $region32
      $region31: #{_lambda_.3} parent=27 // pred_region
        %s156 = smul.u32 20, %s10
        %p157 = scmp.lt.s32.totalorder %s156, 39
        %s158 = scalar_select %p157, %s156, 39
        %s159 = smul.addr %s158, 8
        %s160 = scalar_lea.vmem %s0, %s159
        %s161 = smul.u32 20, %s10
      $region32: #{_lambda_.3} parent=27 // pred_fallthru
        _
    $region28: #{_lambda_.3} parent=5 // pred_fallthru
      _
    %p162 = scmp.le.s32.totalorder 1, %s10
    %p163 = scmp.lt.s32.totalorder %s10, 3
    %p164 = pnand %p162, %p163
    %p165 = pneg %p164
    // Predicated region
    $region33: #{_lambda_.3} parent=5 // pred_check
      _
    $region34: #{_lambda_.3} parent=5 // pred_check_branch
      %167 = sbr.rel (%p164) target = $region36
    $region35: #{_lambda_.3} parent=5 // pred_region
      %s168 = ssub.s32 %s10, 1
      %s169 = smul.u32 20, %s15
      %p170 = scmp.lt.s32.totalorder %s169, 39
      %s171 = scalar_select %p170, %s169, 39
      %s172 = smul.addr %s171, 8
      %s173 = scalar_lea.vmem %s0, %s172
      %p174 = pneg %p36
      %p175 = pneg %p33
      %p176 = pneg %p57
      %p177 = pneg %p54
      %p178 = pneg %p78
      %p179 = pneg %p75
      %p180 = pneg %p99
      %p181 = pneg %p96
      %p182 = pneg %p125
      %p183 = pneg %p122
      %p184 = scmp.lt.s32.totalorder %s15, 1
      %s185 = scalar_select %p184, %s15, 1
      %s186 = smul.addr %s185, 8
      %s187 = smul.addr %s186, 8
      %s188 = scalar_lea.vmem %s4, %s187
      %s189 = smul.u32 20, %s15
      %p190 = scmp.lt.s32.totalorder %s189, 39
      %s191 = scalar_select %p190, %s189, 39
      %s192 = smul.addr %s191, 8
      %s193 = scalar_lea.vmem %s0, %s192
      %s194 = smul.u32 20, %s15
      %p195 = scmp.lt.s32.totalorder %s15, 1
      %s196 = scalar_select %p195, %s15, 1
      %s197 = smul.addr %s196, 8
      %s198 = smul.addr %s197, 8
      %s199 = scalar_lea.vmem %s4, %s198
      %v200 = vld [vmem:[%s193] sm:$0xff]
      %v201 = vld [vmem:[%s193 + $0x8] sm:$0xff]
      %v202 = vld [vmem:[%s193 + $0x10] sm:$0xff]
      %v203 = vld [vmem:[%s193 + $0x18] sm:$0xff]
      %v204 = vld [vmem:[%s193 + $0x20] sm:$0xff]
      %v205 = vld [vmem:[%s193 + $0x28] sm:$0xff]
      %v206 = vld [vmem:[%s193 + $0x30] sm:$0xff]
      %v207 = vld [vmem:[%s193 + $0x38] sm:$0xff]
      %v208 = vld [vmem:[%s193 + $0x40] sm:$0xff]
      %v209 = vld [vmem:[%s193 + $0x48] sm:$0xff]
      %v210 = vld [vmem:[%s193 + $0x50] sm:$0xff]
      %v211 = vld [vmem:[%s193 + $0x58] sm:$0xff]
      %v212 = vld [vmem:[%s193 + $0x60] sm:$0xff]
      %v213 = vld [vmem:[%s193 + $0x68] sm:$0xff]
      %v214 = vld [vmem:[%s193 + $0x70] sm:$0xff]
      %v215 = vld [vmem:[%s193 + $0x78] sm:$0xff]
      %v216 = vld [vmem:[%s193 + $0x80] sm:$0xff]
      %v217 = vld [vmem:[%s193 + $0x88] sm:$0xff]
      %v218 = vld [vmem:[%s193 + $0x90] sm:$0xff]
      %v219 = vld [vmem:[%s193 + $0x98] sm:$0xff]
      %v220 = vld [vmem:[%s1] sm:$0xff]
      %v221 = vld [vmem:[%s1 + $0x8] sm:$0xff]
      %vm222 = vcmask 130048
      %v224 = vsel %vm222, %v200, 0
      %v227 = vsel %vm222, %v201, 0
      %v230 = vsel %vm222, %v202, 0
      %v233 = vsel %vm222, %v203, 0
      %v236 = vsel %vm222, %v204, 0
      %v239 = vsel %vm222, %v205, 0
      %v242 = vsel %vm222, %v206, 0
      %v245 = vsel %vm222, %v207, 0
      %v248 = vsel %vm222, %v208, 0
      %v251 = vsel %vm222, %v209, 0
      %v254 = vsel %vm222, %v210, 0
      %v257 = vsel %vm222, %v211, 0
      %v260 = vsel %vm222, %v212, 0
      %v263 = vsel %vm222, %v213, 0
      %v266 = vsel %vm222, %v214, 0
      %v269 = vsel %vm222, %v215, 0
      %v272 = vsel %vm222, %v216, 0
      %v275 = vsel %vm222, %v217, 0
      %v278 = vsel %vm222, %v218, 0
      %v281 = vsel %vm222, %v219, 0
      %283 = vmatpush.msra.mxu0 0.0
      %284 = vmatpush.msra.mxu0 0.0
      %285 = vmatpush.msra.mxu0 0.0
      %286 = vmatpush.msra.mxu0 0.0
      %287 = vmatpush.msra.mxu0 0.0
      %288 = vmatpush.msra.mxu0 0.0
      %289 = vmatpush.msra.mxu0 0.0
      %290 = vmatpush.msra.mxu0 0.0
      %291 = vmatpush.msra.mxu0 0.0
      %292 = vmatpush.msra.mxu0 0.0
      %293 = vmatpush.msra.mxu0 0.0
      %294 = vmatpush.msra.mxu0 0.0
      %295 = vmatpush.msra.mxu0 0.0
      %296 = vmatpush.msra.mxu0 0.0
      %297 = vmatpush.msra.mxu0 %v221
      %298 = vmatpush.msra.mxu0 %v220
      %299 = vmatmul.f32.gmra.mxu0 %v224
      %v300 = vpop.f32.mrf.mxu0
      %v301 = vadd.f32 0.0, %v300
      %302 = vmatmul.f32.gmra.mxu0 %v227
      %v303 = vpop.f32.mrf.mxu0
      %v304 = vadd.f32 0.0, %v303
      %305 = vmatmul.f32.gmra.mxu0 %v230
      %v306 = vpop.f32.mrf.mxu0
      %v307 = vadd.f32 0.0, %v306
      %308 = vmatmul.f32.gmra.mxu0 %v233
      %v309 = vpop.f32.mrf.mxu0
      %v310 = vadd.f32 0.0, %v309
      %311 = vmatmul.f32.gmra.mxu0 %v236
      %v312 = vpop.f32.mrf.mxu0
      %v313 = vadd.f32 0.0, %v312
      %314 = vmatmul.f32.gmra.mxu0 %v239
      %v315 = vpop.f32.mrf.mxu0
      %v316 = vadd.f32 0.0, %v315
      %317 = vmatmul.f32.gmra.mxu0 %v242
      %v318 = vpop.f32.mrf.mxu0
      %v319 = vadd.f32 0.0, %v318
      %320 = vmatmul.f32.gmra.mxu0 %v245
      %v321 = vpop.f32.mrf.mxu0
      %v322 = vadd.f32 0.0, %v321
      %323 = vmatmul.f32.gmra.mxu0 %v248
      %v324 = vpop.f32.mrf.mxu0
      %v325 = vadd.f32 0.0, %v324
      %326 = vmatmul.f32.gmra.mxu0 %v251
      %v327 = vpop.f32.mrf.mxu0
      %v328 = vadd.f32 0.0, %v327
      %329 = vmatmul.f32.gmra.mxu0 %v254
      %v330 = vpop.f32.mrf.mxu0
      %v331 = vadd.f32 0.0, %v330
      %332 = vmatmul.f32.gmra.mxu0 %v257
      %v333 = vpop.f32.mrf.mxu0
      %v334 = vadd.f32 0.0, %v333
      %335 = vmatmul.f32.gmra.mxu0 %v260
      %v336 = vpop.f32.mrf.mxu0
      %v337 = vadd.f32 0.0, %v336
      %338 = vmatmul.f32.gmra.mxu0 %v263
      %v339 = vpop.f32.mrf.mxu0
      %v340 = vadd.f32 0.0, %v339
      %341 = vmatmul.f32.gmra.mxu0 %v266
      %v342 = vpop.f32.mrf.mxu0
      %v343 = vadd.f32 0.0, %v342
      %344 = vmatmul.f32.gmra.mxu0 %v269
      %v345 = vpop.f32.mrf.mxu0
      %v346 = vadd.f32 0.0, %v345
      %347 = vmatmul.f32.gmra.mxu0 %v272
      %v348 = vpop.f32.mrf.mxu0
      %v349 = vadd.f32 0.0, %v348
      %350 = vmatmul.f32.gmra.mxu0 %v275
      %v351 = vpop.f32.mrf.mxu0
      %v352 = vadd.f32 0.0, %v351
      %353 = vmatmul.f32.gmra.mxu0 %v278
      %v354 = vpop.f32.mrf.mxu0
      %v355 = vadd.f32 0.0, %v354
      %356 = vmatmul.f32.gmra.mxu0 %v281
      %v357 = vpop.f32.mrf.mxu0
      %v358 = vadd.f32 0.0, %v357
      %359 = vdwg.mxu0
      %v360 = vld [vmem:[%s2] sm:$0x1]
      %v361 = vperm.slane %v360, 0
      %v362 = vmul.f32 %v301, %v361
      %v363 = vmul.f32 %v307, %v361
      %v364 = vmul.f32 %v313, %v361
      %v365 = vmul.f32 %v319, %v361
      %v366 = vmul.f32 %v325, %v361
      %v367 = vmul.f32 %v331, %v361
      %v368 = vmul.f32 %v337, %v361
      %v369 = vmul.f32 %v343, %v361
      %v370 = vadd.f32 %v362, 0.0
      %v371 = vadd.f32 %v363, 0.0
      %v372 = vadd.f32 %v364, 0.0
      %v373 = vadd.f32 %v365, 0.0
      %v374 = vadd.f32 %v366, 0.0
      %v375 = vadd.f32 %v367, 0.0
      %v376 = vadd.f32 %v368, 0.0
      %v377 = vadd.f32 %v369, 0.0
      %v378 = vld [vmem:[%s2 + $0x1] sm:$0x1]
      %v379 = vperm.slane %v378, 0
      %v380 = vmul.f32 %v301, %v379
      %v381 = vmul.f32 %v304, %v379
      %v382 = vmul.f32 %v307, %v379
      %v383 = vmul.f32 %v310, %v379
      %v384 = vmul.f32 %v313, %v379
      %v385 = vmul.f32 %v316, %v379
      %v386 = vmul.f32 %v319, %v379
      %v387 = vmul.f32 %v322, %v379
      %v388 = vmul.f32 %v325, %v379
      %v389 = vmul.f32 %v328, %v379
      %v390 = vmul.f32 %v331, %v379
      %v391 = vmul.f32 %v334, %v379
      %v392 = vmul.f32 %v337, %v379
      %v393 = vmul.f32 %v340, %v379
      %v394 = vmul.f32 %v343, %v379
      %v395 = vmul.f32 %v346, %v379
      %vm412 = vcmask 1046528
      %v413 = vrot.slane %v380, 1
      %v414 = vrot.slane %v381, 1
      %v415 = vsel %vm412, %v413, %v414
      %v416 = vrot.slane %v382, 1
      %v417 = vrot.slane %v383, 1
      %v418 = vsel %vm412, %v416, %v417
      %v419 = vrot.slane %v384, 1
      %v420 = vrot.slane %v385, 1
      %v421 = vsel %vm412, %v419, %v420
      %v422 = vrot.slane %v386, 1
      %v423 = vrot.slane %v387, 1
      %v424 = vsel %vm412, %v422, %v423
      %v425 = vrot.slane %v388, 1
      %v426 = vrot.slane %v389, 1
      %v427 = vsel %vm412, %v425, %v426
      %v428 = vrot.slane %v390, 1
      %v429 = vrot.slane %v391, 1
      %v430 = vsel %vm412, %v428, %v429
      %v431 = vrot.slane %v392, 1
      %v432 = vrot.slane %v393, 1
      %v433 = vsel %vm412, %v431, %v432
      %v434 = vrot.slane %v394, 1
      %v435 = vrot.slane %v395, 1
      %v436 = vsel %vm412, %v434, %v435
      %v445 = vadd.f32 %v370, %v415
      %v446 = vadd.f32 %v371, %v418
      %v447 = vadd.f32 %v372, %v421
      %v448 = vadd.f32 %v373, %v424
      %v449 = vadd.f32 %v374, %v427
      %v450 = vadd.f32 %v375, %v430
      %v451 = vadd.f32 %v376, %v433
      %v452 = vadd.f32 %v377, %v436
      %v453 = vld [vmem:[%s2 + $0x2] sm:$0x1]
      %v454 = vperm.slane %v453, 0
      %v455 = vmul.f32 %v301, %v454
      %v456 = vmul.f32 %v304, %v454
      %v457 = vmul.f32 %v307, %v454
      %v458 = vmul.f32 %v310, %v454
      %v459 = vmul.f32 %v313, %v454
      %v460 = vmul.f32 %v316, %v454
      %v461 = vmul.f32 %v319, %v454
      %v462 = vmul.f32 %v322, %v454
      %v463 = vmul.f32 %v325, %v454
      %v464 = vmul.f32 %v328, %v454
      %v465 = vmul.f32 %v331, %v454
      %v466 = vmul.f32 %v334, %v454
      %v467 = vmul.f32 %v337, %v454
      %v468 = vmul.f32 %v340, %v454
      %v469 = vmul.f32 %v343, %v454
      %v470 = vmul.f32 %v346, %v454
      %vm487 = vcmask 1045504
      %v488 = vrot.slane %v455, 2
      %v489 = vrot.slane %v456, 2
      %v490 = vsel %vm487, %v488, %v489
      %v491 = vrot.slane %v457, 2
      %v492 = vrot.slane %v458, 2
      %v493 = vsel %vm487, %v491, %v492
      %v494 = vrot.slane %v459, 2
      %v495 = vrot.slane %v460, 2
      %v496 = vsel %vm487, %v494, %v495
      %v497 = vrot.slane %v461, 2
      %v498 = vrot.slane %v462, 2
      %v499 = vsel %vm487, %v497, %v498
      %v500 = vrot.slane %v463, 2
      %v501 = vrot.slane %v464, 2
      %v502 = vsel %vm487, %v500, %v501
      %v503 = vrot.slane %v465, 2
      %v504 = vrot.slane %v466, 2
      %v505 = vsel %vm487, %v503, %v504
      %v506 = vrot.slane %v467, 2
      %v507 = vrot.slane %v468, 2
      %v508 = vsel %vm487, %v506, %v507
      %v509 = vrot.slane %v469, 2
      %v510 = vrot.slane %v470, 2
      %v511 = vsel %vm487, %v509, %v510
      %v520 = vadd.f32 %v445, %v490
      %v521 = vadd.f32 %v446, %v493
      %v522 = vadd.f32 %v447, %v496
      %v523 = vadd.f32 %v448, %v499
      %v524 = vadd.f32 %v449, %v502
      %v525 = vadd.f32 %v450, %v505
      %v526 = vadd.f32 %v451, %v508
      %v527 = vadd.f32 %v452, %v511
      %v528 = vld [vmem:[%s2 + $0x3] sm:$0x1]
      %v529 = vperm.slane %v528, 0
      %v530 = vmul.f32 %v307, %v529
      %v531 = vmul.f32 %v313, %v529
      %v532 = vmul.f32 %v319, %v529
      %v533 = vmul.f32 %v325, %v529
      %v534 = vmul.f32 %v331, %v529
      %v535 = vmul.f32 %v337, %v529
      %v536 = vmul.f32 %v343, %v529
      %v537 = vmul.f32 %v349, %v529
      %v538 = vadd.f32 %v520, %v530
      %v539 = vadd.f32 %v521, %v531
      %v540 = vadd.f32 %v522, %v532
      %v541 = vadd.f32 %v523, %v533
      %v542 = vadd.f32 %v524, %v534
      %v543 = vadd.f32 %v525, %v535
      %v544 = vadd.f32 %v526, %v536
      %v545 = vadd.f32 %v527, %v537
      %v546 = vld [vmem:[%s2 + $0x4] sm:$0x1]
      %v547 = vperm.slane %v546, 0
      %v548 = vmul.f32 %v307, %v547
      %v549 = vmul.f32 %v310, %v547
      %v550 = vmul.f32 %v313, %v547
      %v551 = vmul.f32 %v316, %v547
      %v552 = vmul.f32 %v319, %v547
      %v553 = vmul.f32 %v322, %v547
      %v554 = vmul.f32 %v325, %v547
      %v555 = vmul.f32 %v328, %v547
      %v556 = vmul.f32 %v331, %v547
      %v557 = vmul.f32 %v334, %v547
      %v558 = vmul.f32 %v337, %v547
      %v559 = vmul.f32 %v340, %v547
      %v560 = vmul.f32 %v343, %v547
      %v561 = vmul.f32 %v346, %v547
      %v562 = vmul.f32 %v349, %v547
      %v563 = vmul.f32 %v352, %v547
      %v580 = vrot.slane %v548, 1
      %v581 = vrot.slane %v549, 1
      %v582 = vsel %vm412, %v580, %v581
      %v583 = vrot.slane %v550, 1
      %v584 = vrot.slane %v551, 1
      %v585 = vsel %vm412, %v583, %v584
      %v586 = vrot.slane %v552, 1
      %v587 = vrot.slane %v553, 1
      %v588 = vsel %vm412, %v586, %v587
      %v589 = vrot.slane %v554, 1
      %v590 = vrot.slane %v555, 1
      %v591 = vsel %vm412, %v589, %v590
      %v592 = vrot.slane %v556, 1
      %v593 = vrot.slane %v557, 1
      %v594 = vsel %vm412, %v592, %v593
      %v595 = vrot.slane %v558, 1
      %v596 = vrot.slane %v559, 1
      %v597 = vsel %vm412, %v595, %v596
      %v598 = vrot.slane %v560, 1
      %v599 = vrot.slane %v561, 1
      %v600 = vsel %vm412, %v598, %v599
      %v601 = vrot.slane %v562, 1
      %v602 = vrot.slane %v563, 1
      %v603 = vsel %vm412, %v601, %v602
      %v612 = vadd.f32 %v538, %v582
      %v613 = vadd.f32 %v539, %v585
      %v614 = vadd.f32 %v540, %v588
      %v615 = vadd.f32 %v541, %v591
      %v616 = vadd.f32 %v542, %v594
      %v617 = vadd.f32 %v543, %v597
      %v618 = vadd.f32 %v544, %v600
      %v619 = vadd.f32 %v545, %v603
      %v620 = vld [vmem:[%s2 + $0x5] sm:$0x1]
      %v621 = vperm.slane %v620, 0
      %v622 = vmul.f32 %v307, %v621
      %v623 = vmul.f32 %v310, %v621
      %v624 = vmul.f32 %v313, %v621
      %v625 = vmul.f32 %v316, %v621
      %v626 = vmul.f32 %v319, %v621
      %v627 = vmul.f32 %v322, %v621
      %v628 = vmul.f32 %v325, %v621
      %v629 = vmul.f32 %v328, %v621
      %v630 = vmul.f32 %v331, %v621
      %v631 = vmul.f32 %v334, %v621
      %v632 = vmul.f32 %v337, %v621
      %v633 = vmul.f32 %v340, %v621
      %v634 = vmul.f32 %v343, %v621
      %v635 = vmul.f32 %v346, %v621
      %v636 = vmul.f32 %v349, %v621
      %v637 = vmul.f32 %v352, %v621
      %v654 = vrot.slane %v622, 2
      %v655 = vrot.slane %v623, 2
      %v656 = vsel %vm487, %v654, %v655
      %v657 = vrot.slane %v624, 2
      %v658 = vrot.slane %v625, 2
      %v659 = vsel %vm487, %v657, %v658
      %v660 = vrot.slane %v626, 2
      %v661 = vrot.slane %v627, 2
      %v662 = vsel %vm487, %v660, %v661
      %v663 = vrot.slane %v628, 2
      %v664 = vrot.slane %v629, 2
      %v665 = vsel %vm487, %v663, %v664
      %v666 = vrot.slane %v630, 2
      %v667 = vrot.slane %v631, 2
      %v668 = vsel %vm487, %v666, %v667
      %v669 = vrot.slane %v632, 2
      %v670 = vrot.slane %v633, 2
      %v671 = vsel %vm487, %v669, %v670
      %v672 = vrot.slane %v634, 2
      %v673 = vrot.slane %v635, 2
      %v674 = vsel %vm487, %v672, %v673
      %v675 = vrot.slane %v636, 2
      %v676 = vrot.slane %v637, 2
      %v677 = vsel %vm487, %v675, %v676
      %v686 = vadd.f32 %v612, %v656
      %v687 = vadd.f32 %v613, %v659
      %v688 = vadd.f32 %v614, %v662
      %v689 = vadd.f32 %v615, %v665
      %v690 = vadd.f32 %v616, %v668
      %v691 = vadd.f32 %v617, %v671
      %v692 = vadd.f32 %v618, %v674
      %v693 = vadd.f32 %v619, %v677
      %v694 = vld [vmem:[%s2 + $0x6] sm:$0x1]
      %v695 = vperm.slane %v694, 0
      %v696 = vmul.f32 %v313, %v695
      %v697 = vmul.f32 %v319, %v695
      %v698 = vmul.f32 %v325, %v695
      %v699 = vmul.f32 %v331, %v695
      %v700 = vmul.f32 %v337, %v695
      %v701 = vmul.f32 %v343, %v695
      %v702 = vmul.f32 %v349, %v695
      %v703 = vmul.f32 %v355, %v695
      %v704 = vadd.f32 %v686, %v696
      %v705 = vadd.f32 %v687, %v697
      %v706 = vadd.f32 %v688, %v698
      %v707 = vadd.f32 %v689, %v699
      %v708 = vadd.f32 %v690, %v700
      %v709 = vadd.f32 %v691, %v701
      %v710 = vadd.f32 %v692, %v702
      %v711 = vadd.f32 %v693, %v703
      %v712 = vld [vmem:[%s2 + $0x7] sm:$0x1]
      %v713 = vperm.slane %v712, 0
      %v714 = vmul.f32 %v313, %v713
      %v715 = vmul.f32 %v316, %v713
      %v716 = vmul.f32 %v319, %v713
      %v717 = vmul.f32 %v322, %v713
      %v718 = vmul.f32 %v325, %v713
      %v719 = vmul.f32 %v328, %v713
      %v720 = vmul.f32 %v331, %v713
      %v721 = vmul.f32 %v334, %v713
      %v722 = vmul.f32 %v337, %v713
      %v723 = vmul.f32 %v340, %v713
      %v724 = vmul.f32 %v343, %v713
      %v725 = vmul.f32 %v346, %v713
      %v726 = vmul.f32 %v349, %v713
      %v727 = vmul.f32 %v352, %v713
      %v728 = vmul.f32 %v355, %v713
      %v729 = vmul.f32 %v358, %v713
      %v746 = vrot.slane %v714, 1
      %v747 = vrot.slane %v715, 1
      %v748 = vsel %vm412, %v746, %v747
      %v749 = vrot.slane %v716, 1
      %v750 = vrot.slane %v717, 1
      %v751 = vsel %vm412, %v749, %v750
      %v752 = vrot.slane %v718, 1
      %v753 = vrot.slane %v719, 1
      %v754 = vsel %vm412, %v752, %v753
      %v755 = vrot.slane %v720, 1
      %v756 = vrot.slane %v721, 1
      %v757 = vsel %vm412, %v755, %v756
      %v758 = vrot.slane %v722, 1
      %v759 = vrot.slane %v723, 1
      %v760 = vsel %vm412, %v758, %v759
      %v761 = vrot.slane %v724, 1
      %v762 = vrot.slane %v725, 1
      %v763 = vsel %vm412, %v761, %v762
      %v764 = vrot.slane %v726, 1
      %v765 = vrot.slane %v727, 1
      %v766 = vsel %vm412, %v764, %v765
      %v767 = vrot.slane %v728, 1
      %v768 = vrot.slane %v729, 1
      %v769 = vsel %vm412, %v767, %v768
      %v778 = vadd.f32 %v704, %v748
      %v779 = vadd.f32 %v705, %v751
      %v780 = vadd.f32 %v706, %v754
      %v781 = vadd.f32 %v707, %v757
      %v782 = vadd.f32 %v708, %v760
      %v783 = vadd.f32 %v709, %v763
      %v784 = vadd.f32 %v710, %v766
      %v785 = vadd.f32 %v711, %v769
      %v786 = vld [vmem:[%s2 + $0x8] sm:$0x1]
      %v787 = vperm.slane %v786, 0
      %v788 = vmul.f32 %v313, %v787
      %v789 = vmul.f32 %v316, %v787
      %v790 = vmul.f32 %v319, %v787
      %v791 = vmul.f32 %v322, %v787
      %v792 = vmul.f32 %v325, %v787
      %v793 = vmul.f32 %v328, %v787
      %v794 = vmul.f32 %v331, %v787
      %v795 = vmul.f32 %v334, %v787
      %v796 = vmul.f32 %v337, %v787
      %v797 = vmul.f32 %v340, %v787
      %v798 = vmul.f32 %v343, %v787
      %v799 = vmul.f32 %v346, %v787
      %v800 = vmul.f32 %v349, %v787
      %v801 = vmul.f32 %v352, %v787
      %v802 = vmul.f32 %v355, %v787
      %v803 = vmul.f32 %v358, %v787
      %v820 = vrot.slane %v788, 2
      %v821 = vrot.slane %v789, 2
      %v822 = vsel %vm487, %v820, %v821
      %v823 = vrot.slane %v790, 2
      %v824 = vrot.slane %v791, 2
      %v825 = vsel %vm487, %v823, %v824
      %v826 = vrot.slane %v792, 2
      %v827 = vrot.slane %v793, 2
      %v828 = vsel %vm487, %v826, %v827
      %v829 = vrot.slane %v794, 2
      %v830 = vrot.slane %v795, 2
      %v831 = vsel %vm487, %v829, %v830
      %v832 = vrot.slane %v796, 2
      %v833 = vrot.slane %v797, 2
      %v834 = vsel %vm487, %v832, %v833
      %v835 = vrot.slane %v798, 2
      %v836 = vrot.slane %v799, 2
      %v837 = vsel %vm487, %v835, %v836
      %v838 = vrot.slane %v800, 2
      %v839 = vrot.slane %v801, 2
      %v840 = vsel %vm487, %v838, %v839
      %v841 = vrot.slane %v802, 2
      %v842 = vrot.slane %v803, 2
      %v843 = vsel %vm487, %v841, %v842
      %v852 = vadd.f32 %v778, %v822
      %v853 = vadd.f32 %v779, %v825
      %v854 = vadd.f32 %v780, %v828
      %v855 = vadd.f32 %v781, %v831
      %v856 = vadd.f32 %v782, %v834
      %v857 = vadd.f32 %v783, %v837
      %v858 = vadd.f32 %v784, %v840
      %v859 = vadd.f32 %v785, %v843
      %v860 = vld [vmem:[%s3] sm:$0x1]
      %v862 = vperm.slane %v860, 0
      %v864 = vadd.f32 %v852, %v862
      %v865 = vadd.f32 %v853, %v862
      %v866 = vadd.f32 %v854, %v862
      %v867 = vadd.f32 %v855, %v862
      %v868 = vadd.f32 %v856, %v862
      %v869 = vadd.f32 %v857, %v862
      %v870 = vadd.f32 %v858, %v862
      %v871 = vadd.f32 %v859, %v862
      %v872 = vxor.u32 %v864, 2147483648
      %v873 = vxor.u32 %v865, 2147483648
      %v874 = vxor.u32 %v866, 2147483648
      %v875 = vxor.u32 %v867, 2147483648
      %v876 = vxor.u32 %v868, 2147483648
      %v877 = vxor.u32 %v869, 2147483648
      %v878 = vxor.u32 %v870, 2147483648
      %v879 = vxor.u32 %v871, 2147483648
      %v880 = vmul.f32 %v872, 1.442695
      %v881 = vpow.pop %v880
      %v882 = vmul.f32 %v873, 1.442695
      %v883 = vpow.pop %v882
      %v884 = vmul.f32 %v874, 1.442695
      %v885 = vpow.pop %v884
      %v886 = vmul.f32 %v875, 1.442695
      %v887 = vpow.pop %v886
      %v888 = vmul.f32 %v876, 1.442695
      %v889 = vpow.pop %v888
      %v890 = vmul.f32 %v877, 1.442695
      %v891 = vpow.pop %v890
      %v892 = vmul.f32 %v878, 1.442695
      %v893 = vpow.pop %v892
      %v894 = vmul.f32 %v879, 1.442695
      %v895 = vpow.pop %v894
      %v896 = vadd.f32 %v881, 1.0
      %v897 = vadd.f32 %v883, 1.0
      %v898 = vadd.f32 %v885, 1.0
      %v899 = vadd.f32 %v887, 1.0
      %v900 = vadd.f32 %v889, 1.0
      %v901 = vadd.f32 %v891, 1.0
      %v902 = vadd.f32 %v893, 1.0
      %v903 = vadd.f32 %v895, 1.0
      %v904 = vrcp.pop %v896
      %v905 = vmul.f32 %v896, %v904
      %v906 = vsub.f32 1.0, %v905
      %v907 = vmul.f32 %v904, %v906
      %v908 = vadd.f32 %v904, %v907
      %vm909 = vweird.f32 %v896
      %vm910 = vweird.f32 %v904
      %vm911 = vmor %vm909, %vm910
      %v912 = vsel %vm911, %v904, %v908
      %v913 = vand.u32 2147483647, %v896
      %vm914 = vcmp.eq.f32.partialorder %v913, 8.507059e+37
      %v915 = vand.u32 %v896, 2147483648
      %v916 = vor.u32 1.1754944e-38, %v915
      %v917 = vsel %vm914, %v916, %v912
      %v918 = vmul.f32 1.0, %v917
      %v919 = vrcp.pop %v897
      %v920 = vmul.f32 %v897, %v919
      %v921 = vsub.f32 1.0, %v920
      %v922 = vmul.f32 %v919, %v921
      %v923 = vadd.f32 %v919, %v922
      %vm924 = vweird.f32 %v897
      %vm925 = vweird.f32 %v919
      %vm926 = vmor %vm924, %vm925
      %v927 = vsel %vm926, %v919, %v923
      %v928 = vand.u32 2147483647, %v897
      %vm929 = vcmp.eq.f32.partialorder %v928, 8.507059e+37
      %v930 = vand.u32 %v897, 2147483648
      %v931 = vor.u32 1.1754944e-38, %v930
      %v932 = vsel %vm929, %v931, %v927
      %v933 = vmul.f32 1.0, %v932
      %v934 = vrcp.pop %v898
      %v935 = vmul.f32 %v898, %v934
      %v936 = vsub.f32 1.0, %v935
      %v937 = vmul.f32 %v934, %v936
      %v938 = vadd.f32 %v934, %v937
      %vm939 = vweird.f32 %v898
      %vm940 = vweird.f32 %v934
      %vm941 = vmor %vm939, %vm940
      %v942 = vsel %vm941, %v934, %v938
      %v943 = vand.u32 2147483647, %v898
      %vm944 = vcmp.eq.f32.partialorder %v943, 8.507059e+37
      %v945 = vand.u32 %v898, 2147483648
      %v946 = vor.u32 1.1754944e-38, %v945
      %v947 = vsel %vm944, %v946, %v942
      %v948 = vmul.f32 1.0, %v947
      %v949 = vrcp.pop %v899
      %v950 = vmul.f32 %v899, %v949
      %v951 = vsub.f32 1.0, %v950
      %v952 = vmul.f32 %v949, %v951
      %v953 = vadd.f32 %v949, %v952
      %vm954 = vweird.f32 %v899
      %vm955 = vweird.f32 %v949
      %vm956 = vmor %vm954, %vm955
      %v957 = vsel %vm956, %v949, %v953
      %v958 = vand.u32 2147483647, %v899
      %vm959 = vcmp.eq.f32.partialorder %v958, 8.507059e+37
      %v960 = vand.u32 %v899, 2147483648
      %v961 = vor.u32 1.1754944e-38, %v960
      %v962 = vsel %vm959, %v961, %v957
      %v963 = vmul.f32 1.0, %v962
      %v964 = vrcp.pop %v900
      %v965 = vmul.f32 %v900, %v964
      %v966 = vsub.f32 1.0, %v965
      %v967 = vmul.f32 %v964, %v966
      %v968 = vadd.f32 %v964, %v967
      %vm969 = vweird.f32 %v900
      %vm970 = vweird.f32 %v964
      %vm971 = vmor %vm969, %vm970
      %v972 = vsel %vm971, %v964, %v968
      %v973 = vand.u32 2147483647, %v900
      %vm974 = vcmp.eq.f32.partialorder %v973, 8.507059e+37
      %v975 = vand.u32 %v900, 2147483648
      %v976 = vor.u32 1.1754944e-38, %v975
      %v977 = vsel %vm974, %v976, %v972
      %v978 = vmul.f32 1.0, %v977
      %v979 = vrcp.pop %v901
      %v980 = vmul.f32 %v901, %v979
      %v981 = vsub.f32 1.0, %v980
      %v982 = vmul.f32 %v979, %v981
      %v983 = vadd.f32 %v979, %v982
      %vm984 = vweird.f32 %v901
      %vm985 = vweird.f32 %v979
      %vm986 = vmor %vm984, %vm985
      %v987 = vsel %vm986, %v979, %v983
      %v988 = vand.u32 2147483647, %v901
      %vm989 = vcmp.eq.f32.partialorder %v988, 8.507059e+37
      %v990 = vand.u32 %v901, 2147483648
      %v991 = vor.u32 1.1754944e-38, %v990
      %v992 = vsel %vm989, %v991, %v987
      %v993 = vmul.f32 1.0, %v992
      %v994 = vrcp.pop %v902
      %v995 = vmul.f32 %v902, %v994
      %v996 = vsub.f32 1.0, %v995
      %v997 = vmul.f32 %v994, %v996
      %v998 = vadd.f32 %v994, %v997
      %vm999 = vweird.f32 %v902
      %vm1000 = vweird.f32 %v994
      %vm1001 = vmor %vm999, %vm1000
      %v1002 = vsel %vm1001, %v994, %v998
      %v1003 = vand.u32 2147483647, %v902
      %vm1004 = vcmp.eq.f32.partialorder %v1003, 8.507059e+37
      %v1005 = vand.u32 %v902, 2147483648
      %v1006 = vor.u32 1.1754944e-38, %v1005
      %v1007 = vsel %vm1004, %v1006, %v1002
      %v1008 = vmul.f32 1.0, %v1007
      %v1009 = vrcp.pop %v903
      %v1010 = vmul.f32 %v903, %v1009
      %v1011 = vsub.f32 1.0, %v1010
      %v1012 = vmul.f32 %v1009, %v1011
      %v1013 = vadd.f32 %v1009, %v1012
      %vm1014 = vweird.f32 %v903
      %vm1015 = vweird.f32 %v1009
      %vm1016 = vmor %vm1014, %vm1015
      %v1017 = vsel %vm1016, %v1009, %v1013
      %v1018 = vand.u32 2147483647, %v903
      %vm1019 = vcmp.eq.f32.partialorder %v1018, 8.507059e+37
      %v1020 = vand.u32 %v903, 2147483648
      %v1021 = vor.u32 1.1754944e-38, %v1020
      %v1022 = vsel %vm1019, %v1021, %v1017
      %v1023 = vmul.f32 1.0, %v1022
      %v1024 = vmul.f32 %v864, %v918
      %v1025 = vmul.f32 %v865, %v933
      %v1026 = vmul.f32 %v866, %v948
      %v1027 = vmul.f32 %v867, %v963
      %v1028 = vmul.f32 %v868, %v978
      %v1029 = vmul.f32 %v869, %v993
      %v1030 = vmul.f32 %v870, %v1008
      %v1031 = vmul.f32 %v871, %v1023
      %v1032 = vlaneseq
      %v1033 = vand.u32 %v1032, 127
      %vm1034 = vcmp.lt.s32.totalorder %v1033, 32
      %v1035 = vsel %vm1034, %v1024, %v864
      %v1036 = vsel %vm1034, %v1025, %v865
      %v1037 = vsel %vm1034, %v1026, %v866
      %v1038 = vsel %vm1034, %v1027, %v867
      %v1039 = vsel %vm1034, %v1028, %v868
      %v1040 = vsel %vm1034, %v1029, %v869
      %v1041 = vsel %vm1034, %v1030, %v870
      %v1042 = vsel %vm1034, %v1031, %v871
      %vm1043 = vcmask 523264
      %1044 = vst.msk [vmem:[%s199] sm:$0xff] %vm1043, %v1035
      %1045 = vst.msk [vmem:[%s199 + $0x8] sm:$0xff] %vm1043, %v1036
      %1046 = vst.msk [vmem:[%s199 + $0x10] sm:$0xff] %vm1043, %v1037
      %1047 = vst.msk [vmem:[%s199 + $0x18] sm:$0xff] %vm1043, %v1038
      %1048 = vst.msk [vmem:[%s199 + $0x20] sm:$0xff] %vm1043, %v1039
      %1049 = vst.msk [vmem:[%s199 + $0x28] sm:$0xff] %vm1043, %v1040
      %1050 = vst.msk [vmem:[%s199 + $0x30] sm:$0xff] %vm1043, %v1041
      %1051 = vst.msk [vmem:[%s199 + $0x38] sm:$0xff] %vm1043, %v1042
      %p1052 = scmp.lt.s32.totalorder %s15, 1
      %s1053 = scalar_select %p1052, %s15, 1
      %s1054 = smul.addr %s1053, 8
      %s1055 = smul.addr %s1054, 8
      %s1056 = scalar_lea.vmem %s4, %s1055
      // Predicated region
      $region37: #{_lambda_.3} parent=35 // pred_check
        %p1057 = pneg %p122
      $region38: #{_lambda_.3} parent=35 // pred_check_branch
        %1059 = sbr.rel (%p1057) target = $region40
      $region39: #{_lambda_.3} parent=35 // pred_region
        _
      $region40: #{_lambda_.3} parent=35 // pred_fallthru
        _
    $region36: #{_lambda_.3} parent=5 // pred_fallthru
      _
    %p1060 = scmp.le.s32.totalorder 2, %s10
    // Predicated region
    $region41: #{_lambda_.3} parent=5 // pred_check
      %p1061 = pneg %p1060
    $region42: #{_lambda_.3} parent=5 // pred_check_branch
      %1063 = sbr.rel (%p1061) target = $region44
    $region43: #{_lambda_.3} parent=5 // pred_region
      %s1064 = ssub.s32 %s10, 2
      // Predicated region
      $region45: #{_lambda_.3} parent=43 // pred_check
        %p1065 = pneg %p128
      $region46: #{_lambda_.3} parent=43 // pred_check_branch
        %1067 = sbr.rel (%p1065) target = $region48
      $region47: #{_lambda_.3} parent=43 // pred_region
        %p1068 = scmp.lt.s32.totalorder %s16, 1
        %s1069 = scalar_select %p1068, %s16, 1
        %s1070 = smul.addr %s1069, 8
        %s1071 = smul.addr %s1070, 8
        %s1072 = scalar_lea.vmem %s4, %s1071
      $region48: #{_lambda_.3} parent=43 // pred_fallthru
        _
    $region44: #{_lambda_.3} parent=5 // pred_fallthru
      _
  $region6: #{_lambda_.3} parent=0 // loop_footer
    %s14 = sadd.s32 1, %s10
  $region7: #{_lambda_.3} parent=0 // loop_footer_branch
    %9 = sbr.rel target = $region3
  $region8: #{_lambda_.3} parent=0 // loop_exit
    _

// kernel: _lambda_.5
$region0: #{_lambda_.5}
  #allocation0 [shape = 'u32[]', space=smem, size = 0x4, offset = 0x4, fixed_abs, tag = 'smem constant byte address 0x4 - core index']
  #allocation1 [shape = 'u32[72,128]{1,0:T(1,128)}', space=vmem, size = 0x9000, scoped, tag = 'internal scratch']
  %s0 = inlined_call_operand.vmem [shape: f32[128,32], index: 0, kind: input, shape index: {}]
  %s1 = inlined_call_operand.vmem [shape: f32[128,32], index: 1, kind: input, shape index: {}]
  %s2 = inlined_call_operand.vmem [shape: f32[128,32], index: 2, kind: input, shape index: {}]
  %s3 = inlined_call_operand.vmem [shape: f32[1,32], index: 3, kind: input, shape index: {}]
  %s4 = inlined_call_operand.vmem [shape: f32[1,32], index: 4, kind: input, shape index: {}]
  %s5 = inlined_call_operand.vmem [shape: f32[1,32], index: 5, kind: input, shape index: {}]
  %s6 = inlined_call_operand.vmem [shape: f32[32,32], index: 6, kind: input, shape index: {}]
  %s7 = inlined_call_operand.hbm [shape: f32[128,32], index: 7, kind: output, shape index: {}]
  %s8 = sld [smem:[#allocation0]]
  $region61: #{_lambda_.5} parent=0
    _
  %s10 = ssub.s32 1, %s8
  %s11 = scalar_select 0, %s10, %s8
  $region1: #{_lambda_.5} parent=0
    #allocation2 [shape = 'u8[65536]{0}', space=vmem, size = 0x10000, scoped, tag = 'output window, operand 0']
    #allocation3 [shape = 's32[2]{0}', space=sflag, size = 0x8, scoped, tag = 'scoped memory for _lambda_.5']
    %12 = vsyncpa [#allocation3], 0
    %s13 = scalar_lea.sflag [#allocation3], 1
    %14 = vsyncpa %s13, 0
    loop: start=0, step=1, limit=4
    $region2: #{_lambda_.5} parent=1 // loop_pre_header
      _
    $region3: #{_lambda_.5} parent=1 // loop_header
      %s16 = sphi 0, %s20
      %p17 = scmp.ge.s32.totalorder %s16, 4
      %s26 = sphi 0, %s28
      %s29 = sphi 0, %s26
      %s30 = sphi 0, %s29
      %s46 = sphi 0, %s30
      %s52 = sphi 0, %s54
      %s55 = sphi 0, %s52
      %s56 = sphi 0, %s55
      %s72 = sphi 0, %s56
      %s78 = sphi 0, %s80
      %s81 = sphi 0, %s78
      %s82 = sphi 0, %s81
      %s98 = sphi 0, %s82
      %s102 = sphi 0, %s102
      %s104 = sphi 0, %s102
      %s105 = sphi 0, %s104
      %s119 = sphi 0, %s105
      %s123 = sphi 0, %s123
      %s125 = sphi 0, %s123
      %s126 = sphi 0, %s125
      %s140 = sphi 0, %s126
      %s144 = sphi 0, %s144
      %s146 = sphi 0, %s144
      %s147 = sphi 0, %s146
      %s161 = sphi 0, %s147
      %s165 = sphi 0, %s165
      %s167 = sphi 0, %s165
      %s168 = sphi 0, %s167
      %s182 = sphi 0, %s168
      %s188 = sphi 0, %s190
      %s191 = sphi 0, %s188
      %s192 = sphi 0, %s191
      %s208 = sphi 0, %s192
    $region4: #{_lambda_.5} parent=1 // loop_header_branch
      %19 = sbr.rel (%p17) target = $region8
    $region5: #{_lambda_.5} parent=1 // loop_body
      %s21 = ssub.s32 %s16, 1
      %s22 = ssub.s32 %s16, 2
      %s23 = sadd.s32 %s16, 1
      %s24 = ssub.s32 %s16, %s23
      %p25 = scmp.eq.s32.totalorder %s24, 0
      %s27 = sadd.s32 %s26, 1
      %s28 = scalar_select %p25, %s26, %s27
      %p31 = pneg %p25
      %p32 = scmp.eq.s32.totalorder %s16, 1
      %p33 = por %p31, %p32
      %p34 = scmp.ne.s32.totalorder %s26, %s29
      %p35 = scmp.eq.s32.totalorder %s16, 0
      %p36 = por %p34, %p35
      %p37 = scmp.ne.s32.totalorder %s26, %s29
      %p38 = scmp.eq.s32.totalorder %s21, 1
      %p39 = por %p37, %p38
      %p40 = scmp.ne.s32.totalorder %s29, %s30
      %p41 = scmp.eq.s32.totalorder %s21, 0
      %p42 = por %p40, %p41
      %p43 = scmp.ne.s32.totalorder %s29, %s30
      %p44 = scmp.eq.s32.totalorder %s22, 1
      %p45 = por %p43, %p44
      %p47 = scmp.ne.s32.totalorder %s30, %s46
      %p48 = scmp.eq.s32.totalorder %s22, 0
      %p49 = por %p47, %p48
      %s50 = ssub.s32 %s16, %s23
      %p51 = scmp.eq.s32.totalorder %s50, 0
      %s53 = sadd.s32 %s52, 1
      %s54 = scalar_select %p51, %s52, %s53
      %p57 = pneg %p51
      %p58 = scmp.eq.s32.totalorder %s16, 1
      %p59 = por %p57, %p58
      %p60 = scmp.ne.s32.totalorder %s52, %s55
      %p61 = scmp.eq.s32.totalorder %s16, 0
      %p62 = por %p60, %p61
      %p63 = scmp.ne.s32.totalorder %s52, %s55
      %p64 = scmp.eq.s32.totalorder %s21, 1
      %p65 = por %p63, %p64
      %p66 = scmp.ne.s32.totalorder %s55, %s56
      %p67 = scmp.eq.s32.totalorder %s21, 0
      %p68 = por %p66, %p67
      %p69 = scmp.ne.s32.totalorder %s55, %s56
      %p70 = scmp.eq.s32.totalorder %s22, 1
      %p71 = por %p69, %p70
      %p73 = scmp.ne.s32.totalorder %s56, %s72
      %p74 = scmp.eq.s32.totalorder %s22, 0
      %p75 = por %p73, %p74
      %s76 = ssub.s32 %s16, %s23
      %p77 = scmp.eq.s32.totalorder %s76, 0
      %s79 = sadd.s32 %s78, 1
      %s80 = scalar_select %p77, %s78, %s79
      %p83 = pneg %p77
      %p84 = scmp.eq.s32.totalorder %s16, 1
      %p85 = por %p83, %p84
      %p86 = scmp.ne.s32.totalorder %s78, %s81
      %p87 = scmp.eq.s32.totalorder %s16, 0
      %p88 = por %p86, %p87
      %p89 = scmp.ne.s32.totalorder %s78, %s81
      %p90 = scmp.eq.s32.totalorder %s21, 1
      %p91 = por %p89, %p90
      %p92 = scmp.ne.s32.totalorder %s81, %s82
      %p93 = scmp.eq.s32.totalorder %s21, 0
      %p94 = por %p92, %p93
      %p95 = scmp.ne.s32.totalorder %s81, %s82
      %p96 = scmp.eq.s32.totalorder %s22, 1
      %p97 = por %p95, %p96
      %p99 = scmp.ne.s32.totalorder %s82, %s98
      %p100 = scmp.eq.s32.totalorder %s22, 0
      %p101 = por %p99, %p100
      %s103 = sadd.s32 %s102, 1
      %p106 = scmp.eq.s32.totalorder %s16, 1
      %p107 = scmp.ne.s32.totalorder %s102, %s104
      %p108 = scmp.eq.s32.totalorder %s16, 0
      %p109 = por %p107, %p108
      %p110 = scmp.ne.s32.totalorder %s102, %s104
      %p111 = scmp.eq.s32.totalorder %s21, 1
      %p112 = por %p110, %p111
      %p113 = scmp.ne.s32.totalorder %s104, %s105
      %p114 = scmp.eq.s32.totalorder %s21, 0
      %p115 = por %p113, %p114
      %p116 = scmp.ne.s32.totalorder %s104, %s105
      %p117 = scmp.eq.s32.totalorder %s22, 1
      %p118 = por %p116, %p117
      %p120 = scmp.ne.s32.totalorder %s105, %s119
      %p121 = scmp.eq.s32.totalorder %s22, 0
      %p122 = por %p120, %p121
      %s124 = sadd.s32 %s123, 1
      %p127 = scmp.eq.s32.totalorder %s16, 1
      %p128 = scmp.ne.s32.totalorder %s123, %s125
      %p129 = scmp.eq.s32.totalorder %s16, 0
      %p130 = por %p128, %p129
      %p131 = scmp.ne.s32.totalorder %s123, %s125
      %p132 = scmp.eq.s32.totalorder %s21, 1
      %p133 = por %p131, %p132
      %p134 = scmp.ne.s32.totalorder %s125, %s126
      %p135 = scmp.eq.s32.totalorder %s21, 0
      %p136 = por %p134, %p135
      %p137 = scmp.ne.s32.totalorder %s125, %s126
      %p138 = scmp.eq.s32.totalorder %s22, 1
      %p139 = por %p137, %p138
      %p141 = scmp.ne.s32.totalorder %s126, %s140
      %p142 = scmp.eq.s32.totalorder %s22, 0
      %p143 = por %p141, %p142
      %s145 = sadd.s32 %s144, 1
      %p148 = scmp.eq.s32.totalorder %s16, 1
      %p149 = scmp.ne.s32.totalorder %s144, %s146
      %p150 = scmp.eq.s32.totalorder %s16, 0
      %p151 = por %p149, %p150
      %p152 = scmp.ne.s32.totalorder %s144, %s146
      %p153 = scmp.eq.s32.totalorder %s21, 1
      %p154 = por %p152, %p153
      %p155 = scmp.ne.s32.totalorder %s146, %s147
      %p156 = scmp.eq.s32.totalorder %s21, 0
      %p157 = por %p155, %p156
      %p158 = scmp.ne.s32.totalorder %s146, %s147
      %p159 = scmp.eq.s32.totalorder %s22, 1
      %p160 = por %p158, %p159
      %p162 = scmp.ne.s32.totalorder %s147, %s161
      %p163 = scmp.eq.s32.totalorder %s22, 0
      %p164 = por %p162, %p163
      %s166 = sadd.s32 %s165, 1
      %p169 = scmp.eq.s32.totalorder %s16, 1
      %p170 = scmp.ne.s32.totalorder %s165, %s167
      %p171 = scmp.eq.s32.totalorder %s16, 0
      %p172 = por %p170, %p171
      %p173 = scmp.ne.s32.totalorder %s165, %s167
      %p174 = scmp.eq.s32.totalorder %s21, 1
      %p175 = por %p173, %p174
      %p176 = scmp.ne.s32.totalorder %s167, %s168
      %p177 = scmp.eq.s32.totalorder %s21, 0
      %p178 = por %p176, %p177
      %p179 = scmp.ne.s32.totalorder %s167, %s168
      %p180 = scmp.eq.s32.totalorder %s22, 1
      %p181 = por %p179, %p180
      %p183 = scmp.ne.s32.totalorder %s168, %s182
      %p184 = scmp.eq.s32.totalorder %s22, 0
      %p185 = por %p183, %p184
      %s186 = ssub.s32 %s16, %s23
      %p187 = scmp.eq.s32.totalorder %s186, 0
      %s189 = sadd.s32 %s188, 1
      %s190 = scalar_select %p187, %s188, %s189
      %p193 = pneg %p187
      %p194 = scmp.eq.s32.totalorder %s16, 1
      %p195 = por %p193, %p194
      %p196 = scmp.ne.s32.totalorder %s188, %s191
      %p197 = scmp.eq.s32.totalorder %s16, 0
      %p198 = por %p196, %p197
      %p199 = scmp.ne.s32.totalorder %s188, %s191
      %p200 = scmp.eq.s32.totalorder %s21, 1
      %p201 = por %p199, %p200
      %p202 = scmp.ne.s32.totalorder %s191, %s192
      %p203 = scmp.eq.s32.totalorder %s21, 0
      %p204 = por %p202, %p203
      %p205 = scmp.ne.s32.totalorder %s191, %s192
      %p206 = scmp.eq.s32.totalorder %s22, 1
      %p207 = por %p205, %p206
      %p209 = scmp.ne.s32.totalorder %s192, %s208
      %p210 = scmp.eq.s32.totalorder %s22, 0
      %p211 = por %p209, %p210
      %p212 = scmp.le.s32.totalorder 1, %s16
      %p213 = scmp.lt.s32.totalorder %s16, 3
      %p214 = pnand %p212, %p213
      %p215 = pneg %p214
      // Predicated region
      $region9: #{_lambda_.5} parent=5 // pred_check
        _
      $region10: #{_lambda_.5} parent=5 // pred_check_branch
        %217 = sbr.rel (%p214) target = $region12
      $region11: #{_lambda_.5} parent=5 // pred_region
        %s218 = ssub.s32 %s16, 1
        // Predicated region
        $region13: #{_lambda_.5} parent=11 // pred_check
          %p219 = pneg %p115
        $region14: #{_lambda_.5} parent=11 // pred_check_branch
          %221 = sbr.rel (%p219) target = $region16
        $region15: #{_lambda_.5} parent=11 // pred_region
          _
        $region16: #{_lambda_.5} parent=11 // pred_fallthru
          _
        // Predicated region
        $region17: #{_lambda_.5} parent=11 // pred_check
          %p222 = pneg %p136
        $region18: #{_lambda_.5} parent=11 // pred_check_branch
          %224 = sbr.rel (%p222) target = $region20
        $region19: #{_lambda_.5} parent=11 // pred_region
          _
        $region20: #{_lambda_.5} parent=11 // pred_fallthru
          _
        // Predicated region
        $region21: #{_lambda_.5} parent=11 // pred_check
          %p225 = pneg %p157
        $region22: #{_lambda_.5} parent=11 // pred_check_branch
          %227 = sbr.rel (%p225) target = $region24
        $region23: #{_lambda_.5} parent=11 // pred_region
          _
        $region24: #{_lambda_.5} parent=11 // pred_fallthru
          _
        // Predicated region
        $region25: #{_lambda_.5} parent=11 // pred_check
          %p228 = pneg %p178
        $region26: #{_lambda_.5} parent=11 // pred_check_branch
          %230 = sbr.rel (%p228) target = $region28
        $region27: #{_lambda_.5} parent=11 // pred_region
          _
        $region28: #{_lambda_.5} parent=11 // pred_fallthru
          _
      $region12: #{_lambda_.5} parent=5 // pred_fallthru
        _
      %p231 = scmp.lt.s32.totalorder %s16, 2
      // Predicated region
      $region29: #{_lambda_.5} parent=5 // pred_check
        %p232 = pneg %p231
      $region30: #{_lambda_.5} parent=5 // pred_check_branch
        %234 = sbr.rel (%p232) target = $region32
      $region31: #{_lambda_.5} parent=5 // pred_region
        // Predicated region
        $region33: #{_lambda_.5} parent=31 // pred_check
          %p235 = pneg %p36
        $region34: #{_lambda_.5} parent=31 // pred_check_branch
          %237 = sbr.rel (%p235) target = $region36
        $region35: #{_lambda_.5} parent=31 // pred_region
          %s238 = smul.u32 8, %s16
          %p239 = scmp.lt.s32.totalorder %s238, 15
          %s240 = scalar_select %p239, %s238, 15
          %s241 = smul.addr %s240, 8
          %s242 = scalar_lea.vmem %s0, %s241
          %s243 = smul.u32 8, %s16
        $region36: #{_lambda_.5} parent=31 // pred_fallthru
          _
        // Predicated region
        $region37: #{_lambda_.5} parent=31 // pred_check
          %p244 = pneg %p62
        $region38: #{_lambda_.5} parent=31 // pred_check_branch
          %246 = sbr.rel (%p244) target = $region40
        $region39: #{_lambda_.5} parent=31 // pred_region
          %s247 = smul.u32 8, %s16
          %p248 = scmp.lt.s32.totalorder %s247, 15
          %s249 = scalar_select %p248, %s247, 15
          %s250 = smul.addr %s249, 8
          %s251 = scalar_lea.vmem %s1, %s250
          %s252 = smul.u32 8, %s16
        $region40: #{_lambda_.5} parent=31 // pred_fallthru
          _
        // Predicated region
        $region41: #{_lambda_.5} parent=31 // pred_check
          %p253 = pneg %p88
        $region42: #{_lambda_.5} parent=31 // pred_check_branch
          %255 = sbr.rel (%p253) target = $region44
        $region43: #{_lambda_.5} parent=31 // pred_region
          %s256 = smul.u32 8, %s16
          %p257 = scmp.lt.s32.totalorder %s256, 15
          %s258 = scalar_select %p257, %s256, 15
          %s259 = smul.addr %s258, 8
          %s260 = scalar_lea.vmem %s2, %s259
          %s261 = smul.u32 8, %s16
        $region44: #{_lambda_.5} parent=31 // pred_fallthru
          _
      $region32: #{_lambda_.5} parent=5 // pred_fallthru
        _
      %p262 = scmp.le.s32.totalorder 1, %s16
      %p263 = scmp.lt.s32.totalorder %s16, 3
      %p264 = pnand %p262, %p263
      %p265 = pneg %p264
      // Predicated region
      $region45: #{_lambda_.5} parent=5 // pred_check
        _
      $region46: #{_lambda_.5} parent=5 // pred_check_branch
        %267 = sbr.rel (%p264) target = $region48
      $region47: #{_lambda_.5} parent=5 // pred_region
        %s268 = ssub.s32 %s16, 1
        %s269 = smul.u32 8, %s21
        %p270 = scmp.lt.s32.totalorder %s269, 15
        %s271 = scalar_select %p270, %s269, 15
        %s272 = smul.addr %s271, 8
        %s273 = scalar_lea.vmem %s0, %s272
        %p274 = pneg %p42
        %p275 = pneg %p39
        %s276 = smul.u32 8, %s21
        %p277 = scmp.lt.s32.totalorder %s276, 15
        %s278 = scalar_select %p277, %s276, 15
        %s279 = smul.addr %s278, 8
        %s280 = scalar_lea.vmem %s1, %s279
        %p281 = pneg %p68
        %p282 = pneg %p65
        %s283 = smul.u32 8, %s21
        %p284 = scmp.lt.s32.totalorder %s283, 15
        %s285 = scalar_select %p284, %s283, 15
        %s286 = smul.addr %s285, 8
        %s287 = scalar_lea.vmem %s2, %s286
        %p288 = pneg %p94
        %p289 = pneg %p91
        %p290 = pneg %p115
        %p291 = pneg %p112
        %p292 = pneg %p136
        %p293 = pneg %p133
        %p294 = pneg %p157
        %p295 = pneg %p154
        %p296 = pneg %p178
        %p297 = pneg %p175
        %p298 = pneg %p204
        %p299 = pneg %p201
        %s300 = sand.u32 %s191, 1
        %s301 = scalar_lea.sflag [#allocation3], %s300
        %s302 = sand.u32 %s191, 1
        %s303 = smul.addr %s302, 64
        %s304 = scalar_lea.vmem [#allocation2], %s303
        %s305 = smul.u32 8, %s21
        %p306 = scmp.lt.s32.totalorder %s305, 15
        %s307 = scalar_select %p306, %s305, 15
        %s308 = smul.addr %s307, 8
        %s309 = scalar_lea.vmem %s0, %s308
        %s310 = smul.u32 8, %s21
        %s311 = smul.u32 8, %s21
        %p312 = scmp.lt.s32.totalorder %s311, 15
        %s313 = scalar_select %p312, %s311, 15
        %s314 = smul.addr %s313, 8
        %s315 = scalar_lea.vmem %s1, %s314
        %s316 = smul.u32 8, %s21
        %s317 = smul.u32 8, %s21
        %p318 = scmp.lt.s32.totalorder %s317, 15
        %s319 = scalar_select %p318, %s317, 15
        %s320 = smul.addr %s319, 8
        %s321 = scalar_lea.vmem %s2, %s320
        %s322 = smul.u32 8, %s21
        %s323 = smul.u32 8, %s21
        %v324 = vld [vmem:[%s309] sm:$0xff]
        %v325 = vld [vmem:[%s309 + $0x8] sm:$0xff]
        %v326 = vld [vmem:[%s309 + $0x10] sm:$0xff]
        %v327 = vld [vmem:[%s309 + $0x18] sm:$0xff]
        %v328 = vld [vmem:[%s309 + $0x20] sm:$0xff]
        %v329 = vld [vmem:[%s309 + $0x28] sm:$0xff]
        %v330 = vld [vmem:[%s309 + $0x30] sm:$0xff]
        %v331 = vld [vmem:[%s309 + $0x38] sm:$0xff]
        %v332 = vld [vmem:[%s315] sm:$0xff]
        %v333 = vld [vmem:[%s315 + $0x8] sm:$0xff]
        %v334 = vld [vmem:[%s315 + $0x10] sm:$0xff]
        %v335 = vld [vmem:[%s315 + $0x18] sm:$0xff]
        %v336 = vld [vmem:[%s315 + $0x20] sm:$0xff]
        %v337 = vld [vmem:[%s315 + $0x28] sm:$0xff]
        %v338 = vld [vmem:[%s315 + $0x30] sm:$0xff]
        %v339 = vld [vmem:[%s315 + $0x38] sm:$0xff]
        %v340 = vld [vmem:[%s3] sm:$0x1]
        %v342 = vperm.slane %v340, 0
        %v344 = vmul.f32 %v332, %v342
        %v345 = vmul.f32 %v333, %v342
        %v346 = vmul.f32 %v334, %v342
        %v347 = vmul.f32 %v335, %v342
        %v348 = vmul.f32 %v336, %v342
        %v349 = vmul.f32 %v337, %v342
        %v350 = vmul.f32 %v338, %v342
        %v351 = vmul.f32 %v339, %v342
        %v352 = vadd.f32 %v324, %v344
        %v353 = vadd.f32 %v325, %v345
        %v354 = vadd.f32 %v326, %v346
        %v355 = vadd.f32 %v327, %v347
        %v356 = vadd.f32 %v328, %v348
        %v357 = vadd.f32 %v329, %v349
        %v358 = vadd.f32 %v330, %v350
        %v359 = vadd.f32 %v331, %v351
        %vm360 = vcmask 261120
        %v361 = vsel %vm360, %v352, 0.0
        %362 = vadd.xlane.f32.xlu0 %v361
        %v363 = vpop.xlane.xlu0 %362
        %v364 = vsel %vm360, %v353, 0.0
        %365 = vadd.xlane.f32.xlu0 %v364
        %v366 = vpop.xlane.xlu0 %365
        %v367 = vsel %vm360, %v354, 0.0
        %368 = vadd.xlane.f32.xlu0 %v367
        %v369 = vpop.xlane.xlu0 %368
        %v370 = vsel %vm360, %v355, 0.0
        %371 = vadd.xlane.f32.xlu0 %v370
        %v372 = vpop.xlane.xlu0 %371
        %v373 = vsel %vm360, %v356, 0.0
        %374 = vadd.xlane.f32.xlu0 %v373
        %v375 = vpop.xlane.xlu0 %374
        %v376 = vsel %vm360, %v357, 0.0
        %377 = vadd.xlane.f32.xlu0 %v376
        %v378 = vpop.xlane.xlu0 %377
        %v379 = vsel %vm360, %v358, 0.0
        %380 = vadd.xlane.f32.xlu0 %v379
        %v381 = vpop.xlane.xlu0 %380
        %v382 = vsel %vm360, %v359, 0.0
        %383 = vadd.xlane.f32.xlu0 %v382
        %v384 = vpop.xlane.xlu0 %383
        %v385 = vrcp.pop 32.0
        %v386 = vmul.f32 32.0, %v385
        %v387 = vsub.f32 1.0, %v386
        %v388 = vmul.f32 %v385, %v387
        %v389 = vadd.f32 %v385, %v388
        %vm390 = vweird.f32 %v385
        %v391 = vsel %vm390, %v385, %v389
        %v392 = vmul.f32 %v363, %v391
        %v393 = vmul.f32 %v366, %v391
        %v394 = vmul.f32 %v369, %v391
        %v395 = vmul.f32 %v372, %v391
        %v396 = vmul.f32 %v375, %v391
        %v397 = vmul.f32 %v378, %v391
        %v398 = vmul.f32 %v381, %v391
        %v399 = vmul.f32 %v384, %v391
        %v400 = vsub.f32 %v352, %v392
        %v401 = vsub.f32 %v353, %v393
        %v402 = vsub.f32 %v354, %v394
        %v403 = vsub.f32 %v355, %v395
        %v404 = vsub.f32 %v356, %v396
        %v405 = vsub.f32 %v357, %v397
        %v406 = vsub.f32 %v358, %v398
        %v407 = vsub.f32 %v359, %v399
        %v408 = vmul.f32 %v400, %v400
        %v409 = vmul.f32 %v401, %v401
        %v410 = vmul.f32 %v402, %v402
        %v411 = vmul.f32 %v403, %v403
        %v412 = vmul.f32 %v404, %v404
        %v413 = vmul.f32 %v405, %v405
        %v414 = vmul.f32 %v406, %v406
        %v415 = vmul.f32 %v407, %v407
        %v416 = vsel %vm360, %v408, 0.0
        %417 = vadd.xlane.f32.xlu0 %v416
        %v418 = vpop.xlane.xlu0 %417
        %v419 = vsel %vm360, %v409, 0.0
        %420 = vadd.xlane.f32.xlu0 %v419
        %v421 = vpop.xlane.xlu0 %420
        %v422 = vsel %vm360, %v410, 0.0
        %423 = vadd.xlane.f32.xlu0 %v422
        %v424 = vpop.xlane.xlu0 %423
        %v425 = vsel %vm360, %v411, 0.0
        %426 = vadd.xlane.f32.xlu0 %v425
        %v427 = vpop.xlane.xlu0 %426
        %v428 = vsel %vm360, %v412, 0.0
        %429 = vadd.xlane.f32.xlu0 %v428
        %v430 = vpop.xlane.xlu0 %429
        %v431 = vsel %vm360, %v413, 0.0
        %432 = vadd.xlane.f32.xlu0 %v431
        %v433 = vpop.xlane.xlu0 %432
        %v434 = vsel %vm360, %v414, 0.0
        %435 = vadd.xlane.f32.xlu0 %v434
        %v436 = vpop.xlane.xlu0 %435
        %v437 = vsel %vm360, %v415, 0.0
        %438 = vadd.xlane.f32.xlu0 %v437
        %v439 = vpop.xlane.xlu0 %438
        %v440 = vmul.f32 %v418, %v391
        %v441 = vmul.f32 %v421, %v391
        %v442 = vmul.f32 %v424, %v391
        %v443 = vmul.f32 %v427, %v391
        %v444 = vmul.f32 %v430, %v391
        %v445 = vmul.f32 %v433, %v391
        %v446 = vmul.f32 %v436, %v391
        %v447 = vmul.f32 %v439, %v391
        %v448 = vadd.f32 %v440, 1e-05
        %v449 = vadd.f32 %v441, 1e-05
        %v450 = vadd.f32 %v442, 1e-05
        %v451 = vadd.f32 %v443, 1e-05
        %v452 = vadd.f32 %v444, 1e-05
        %v453 = vadd.f32 %v445, 1e-05
        %v454 = vadd.f32 %v446, 1e-05
        %v455 = vadd.f32 %v447, 1e-05
        %v456 = vrsqrt.pop %v448
        %v457 = vmul.f32 %v456, %v448
        %v458 = vmul.f32 %v457, %v456
        %v459 = vmul.f32 0.5, %v458
        %v460 = vsub.f32 1.5, %v459
        %v461 = vmul.f32 %v456, %v460
        %vm462 = vweird.f32 %v448
        %vm463 = vweird.f32 %v456
        %vm464 = vmor %vm462, %vm463
        %v465 = vsel %vm464, %v456, %v461
        %v466 = vrsqrt.pop %v449
        %v467 = vmul.f32 %v466, %v449
        %v468 = vmul.f32 %v467, %v466
        %v469 = vmul.f32 0.5, %v468
        %v470 = vsub.f32 1.5, %v469
        %v471 = vmul.f32 %v466, %v470
        %vm472 = vweird.f32 %v449
        %vm473 = vweird.f32 %v466
        %vm474 = vmor %vm472, %vm473
        %v475 = vsel %vm474, %v466, %v471
        %v476 = vrsqrt.pop %v450
        %v477 = vmul.f32 %v476, %v450
        %v478 = vmul.f32 %v477, %v476
        %v479 = vmul.f32 0.5, %v478
        %v480 = vsub.f32 1.5, %v479
        %v481 = vmul.f32 %v476, %v480
        %vm482 = vweird.f32 %v450
        %vm483 = vweird.f32 %v476
        %vm484 = vmor %vm482, %vm483
        %v485 = vsel %vm484, %v476, %v481
        %v486 = vrsqrt.pop %v451
        %v487 = vmul.f32 %v486, %v451
        %v488 = vmul.f32 %v487, %v486
        %v489 = vmul.f32 0.5, %v488
        %v490 = vsub.f32 1.5, %v489
        %v491 = vmul.f32 %v486, %v490
        %vm492 = vweird.f32 %v451
        %vm493 = vweird.f32 %v486
        %vm494 = vmor %vm492, %vm493
        %v495 = vsel %vm494, %v486, %v491
        %v496 = vrsqrt.pop %v452
        %v497 = vmul.f32 %v496, %v452
        %v498 = vmul.f32 %v497, %v496
        %v499 = vmul.f32 0.5, %v498
        %v500 = vsub.f32 1.5, %v499
        %v501 = vmul.f32 %v496, %v500
        %vm502 = vweird.f32 %v452
        %vm503 = vweird.f32 %v496
        %vm504 = vmor %vm502, %vm503
        %v505 = vsel %vm504, %v496, %v501
        %v506 = vrsqrt.pop %v453
        %v507 = vmul.f32 %v506, %v453
        %v508 = vmul.f32 %v507, %v506
        %v509 = vmul.f32 0.5, %v508
        %v510 = vsub.f32 1.5, %v509
        %v511 = vmul.f32 %v506, %v510
        %vm512 = vweird.f32 %v453
        %vm513 = vweird.f32 %v506
        %vm514 = vmor %vm512, %vm513
        %v515 = vsel %vm514, %v506, %v511
        %v516 = vrsqrt.pop %v454
        %v517 = vmul.f32 %v516, %v454
        %v518 = vmul.f32 %v517, %v516
        %v519 = vmul.f32 0.5, %v518
        %v520 = vsub.f32 1.5, %v519
        %v521 = vmul.f32 %v516, %v520
        %vm522 = vweird.f32 %v454
        %vm523 = vweird.f32 %v516
        %vm524 = vmor %vm522, %vm523
        %v525 = vsel %vm524, %v516, %v521
        %v526 = vrsqrt.pop %v455
        %v527 = vmul.f32 %v526, %v455
        %v528 = vmul.f32 %v527, %v526
        %v529 = vmul.f32 0.5, %v528
        %v530 = vsub.f32 1.5, %v529
        %v531 = vmul.f32 %v526, %v530
        %vm532 = vweird.f32 %v455
        %vm533 = vweird.f32 %v526
        %vm534 = vmor %vm532, %vm533
        %v535 = vsel %vm534, %v526, %v531
        %v536 = vmul.f32 %v400, %v465
        %v537 = vmul.f32 %v401, %v475
        %v538 = vmul.f32 %v402, %v485
        %v539 = vmul.f32 %v403, %v495
        %v540 = vmul.f32 %v404, %v505
        %v541 = vmul.f32 %v405, %v515
        %v542 = vmul.f32 %v406, %v525
        %v543 = vmul.f32 %v407, %v535
        %v544 = vld [vmem:[%s4] sm:$0x1]
        %v546 = vperm.slane %v544, 0
        %v548 = vmul.f32 %v536, %v546
        %v549 = vmul.f32 %v537, %v546
        %v550 = vmul.f32 %v538, %v546
        %v551 = vmul.f32 %v539, %v546
        %v552 = vmul.f32 %v540, %v546
        %v553 = vmul.f32 %v541, %v546
        %v554 = vmul.f32 %v542, %v546
        %v555 = vmul.f32 %v543, %v546
        %v556 = vld [vmem:[%s5] sm:$0x1]
        %v558 = vperm.slane %v556, 0
        %v560 = vadd.f32 %v548, %v558
        %v561 = vadd.f32 %v549, %v558
        %v562 = vadd.f32 %v550, %v558
        %v563 = vadd.f32 %v551, %v558
        %v564 = vadd.f32 %v552, %v558
        %v565 = vadd.f32 %v553, %v558
        %v566 = vadd.f32 %v554, %v558
        %v567 = vadd.f32 %v555, %v558
        %v568 = vld [vmem:[%s321] sm:$0xff]
        %v569 = vld [vmem:[%s321 + $0x8] sm:$0xff]
        %v570 = vld [vmem:[%s321 + $0x10] sm:$0xff]
        %v571 = vld [vmem:[%s321 + $0x18] sm:$0xff]
        %v572 = vld [vmem:[%s321 + $0x20] sm:$0xff]
        %v573 = vld [vmem:[%s321 + $0x28] sm:$0xff]
        %v574 = vld [vmem:[%s321 + $0x30] sm:$0xff]
        %v575 = vld [vmem:[%s321 + $0x38] sm:$0xff]
        %v576 = vxor.u32 %v568, 2147483648
        %v577 = vxor.u32 %v569, 2147483648
        %v578 = vxor.u32 %v570, 2147483648
        %v579 = vxor.u32 %v571, 2147483648
        %v580 = vxor.u32 %v572, 2147483648
        %v581 = vxor.u32 %v573, 2147483648
        %v582 = vxor.u32 %v574, 2147483648
        %v583 = vxor.u32 %v575, 2147483648
        %v584 = vmul.f32 %v576, 1.442695
        %v585 = vpow.pop %v584
        %v586 = vmul.f32 %v577, 1.442695
        %v587 = vpow.pop %v586
        %v588 = vmul.f32 %v578, 1.442695
        %v589 = vpow.pop %v588
        %v590 = vmul.f32 %v579, 1.442695
        %v591 = vpow.pop %v590
        %v592 = vmul.f32 %v580, 1.442695
        %v593 = vpow.pop %v592
        %v594 = vmul.f32 %v581, 1.442695
        %v595 = vpow.pop %v594
        %v596 = vmul.f32 %v582, 1.442695
        %v597 = vpow.pop %v596
        %v598 = vmul.f32 %v583, 1.442695
        %v599 = vpow.pop %v598
        %v600 = vadd.f32 %v585, 1.0
        %v601 = vadd.f32 %v587, 1.0
        %v602 = vadd.f32 %v589, 1.0
        %v603 = vadd.f32 %v591, 1.0
        %v604 = vadd.f32 %v593, 1.0
        %v605 = vadd.f32 %v595, 1.0
        %v606 = vadd.f32 %v597, 1.0
        %v607 = vadd.f32 %v599, 1.0
        %v608 = vrcp.pop %v600
        %v609 = vmul.f32 %v600, %v608
        %v610 = vsub.f32 1.0, %v609
        %v611 = vmul.f32 %v608, %v610
        %v612 = vadd.f32 %v608, %v611
        %vm613 = vweird.f32 %v600
        %vm614 = vweird.f32 %v608
        %vm615 = vmor %vm613, %vm614
        %v616 = vsel %vm615, %v608, %v612
        %v617 = vand.u32 2147483647, %v600
        %vm618 = vcmp.eq.f32.partialorder %v617, 8.507059e+37
        %v619 = vand.u32 %v600, 2147483648
        %v620 = vor.u32 1.1754944e-38, %v619
        %v621 = vsel %vm618, %v620, %v616
        %v622 = vmul.f32 1.0, %v621
        %v623 = vrcp.pop %v601
        %v624 = vmul.f32 %v601, %v623
        %v625 = vsub.f32 1.0, %v624
        %v626 = vmul.f32 %v623, %v625
        %v627 = vadd.f32 %v623, %v626
        %vm628 = vweird.f32 %v601
        %vm629 = vweird.f32 %v623
        %vm630 = vmor %vm628, %vm629
        %v631 = vsel %vm630, %v623, %v627
        %v632 = vand.u32 2147483647, %v601
        %vm633 = vcmp.eq.f32.partialorder %v632, 8.507059e+37
        %v634 = vand.u32 %v601, 2147483648
        %v635 = vor.u32 1.1754944e-38, %v634
        %v636 = vsel %vm633, %v635, %v631
        %v637 = vmul.f32 1.0, %v636
        %v638 = vrcp.pop %v602
        %v639 = vmul.f32 %v602, %v638
        %v640 = vsub.f32 1.0, %v639
        %v641 = vmul.f32 %v638, %v640
        %v642 = vadd.f32 %v638, %v641
        %vm643 = vweird.f32 %v602
        %vm644 = vweird.f32 %v638
        %vm645 = vmor %vm643, %vm644
        %v646 = vsel %vm645, %v638, %v642
        %v647 = vand.u32 2147483647, %v602
        %vm648 = vcmp.eq.f32.partialorder %v647, 8.507059e+37
        %v649 = vand.u32 %v602, 2147483648
        %v650 = vor.u32 1.1754944e-38, %v649
        %v651 = vsel %vm648, %v650, %v646
        %v652 = vmul.f32 1.0, %v651
        %v653 = vrcp.pop %v603
        %v654 = vmul.f32 %v603, %v653
        %v655 = vsub.f32 1.0, %v654
        %v656 = vmul.f32 %v653, %v655
        %v657 = vadd.f32 %v653, %v656
        %vm658 = vweird.f32 %v603
        %vm659 = vweird.f32 %v653
        %vm660 = vmor %vm658, %vm659
        %v661 = vsel %vm660, %v653, %v657
        %v662 = vand.u32 2147483647, %v603
        %vm663 = vcmp.eq.f32.partialorder %v662, 8.507059e+37
        %v664 = vand.u32 %v603, 2147483648
        %v665 = vor.u32 1.1754944e-38, %v664
        %v666 = vsel %vm663, %v665, %v661
        %v667 = vmul.f32 1.0, %v666
        %v668 = vrcp.pop %v604
        %v669 = vmul.f32 %v604, %v668
        %v670 = vsub.f32 1.0, %v669
        %v671 = vmul.f32 %v668, %v670
        %v672 = vadd.f32 %v668, %v671
        %vm673 = vweird.f32 %v604
        %vm674 = vweird.f32 %v668
        %vm675 = vmor %vm673, %vm674
        %v676 = vsel %vm675, %v668, %v672
        %v677 = vand.u32 2147483647, %v604
        %vm678 = vcmp.eq.f32.partialorder %v677, 8.507059e+37
        %v679 = vand.u32 %v604, 2147483648
        %v680 = vor.u32 1.1754944e-38, %v679
        %v681 = vsel %vm678, %v680, %v676
        %v682 = vmul.f32 1.0, %v681
        %v683 = vrcp.pop %v605
        %v684 = vmul.f32 %v605, %v683
        %v685 = vsub.f32 1.0, %v684
        %v686 = vmul.f32 %v683, %v685
        %v687 = vadd.f32 %v683, %v686
        %vm688 = vweird.f32 %v605
        %vm689 = vweird.f32 %v683
        %vm690 = vmor %vm688, %vm689
        %v691 = vsel %vm690, %v683, %v687
        %v692 = vand.u32 2147483647, %v605
        %vm693 = vcmp.eq.f32.partialorder %v692, 8.507059e+37
        %v694 = vand.u32 %v605, 2147483648
        %v695 = vor.u32 1.1754944e-38, %v694
        %v696 = vsel %vm693, %v695, %v691
        %v697 = vmul.f32 1.0, %v696
        %v698 = vrcp.pop %v606
        %v699 = vmul.f32 %v606, %v698
        %v700 = vsub.f32 1.0, %v699
        %v701 = vmul.f32 %v698, %v700
        %v702 = vadd.f32 %v698, %v701
        %vm703 = vweird.f32 %v606
        %vm704 = vweird.f32 %v698
        %vm705 = vmor %vm703, %vm704
        %v706 = vsel %vm705, %v698, %v702
        %v707 = vand.u32 2147483647, %v606
        %vm708 = vcmp.eq.f32.partialorder %v707, 8.507059e+37
        %v709 = vand.u32 %v606, 2147483648
        %v710 = vor.u32 1.1754944e-38, %v709
        %v711 = vsel %vm708, %v710, %v706
        %v712 = vmul.f32 1.0, %v711
        %v713 = vrcp.pop %v607
        %v714 = vmul.f32 %v607, %v713
        %v715 = vsub.f32 1.0, %v714
        %v716 = vmul.f32 %v713, %v715
        %v717 = vadd.f32 %v713, %v716
        %vm718 = vweird.f32 %v607
        %vm719 = vweird.f32 %v713
        %vm720 = vmor %vm718, %vm719
        %v721 = vsel %vm720, %v713, %v717
        %v722 = vand.u32 2147483647, %v607
        %vm723 = vcmp.eq.f32.partialorder %v722, 8.507059e+37
        %v724 = vand.u32 %v607, 2147483648
        %v725 = vor.u32 1.1754944e-38, %v724
        %v726 = vsel %vm723, %v725, %v721
        %v727 = vmul.f32 1.0, %v726
        %v728 = vmul.f32 %v568, %v622
        %v729 = vmul.f32 %v569, %v637
        %v730 = vmul.f32 %v570, %v652
        %v731 = vmul.f32 %v571, %v667
        %v732 = vmul.f32 %v572, %v682
        %v733 = vmul.f32 %v573, %v697
        %v734 = vmul.f32 %v574, %v712
        %v735 = vmul.f32 %v575, %v727
        %v736 = vmul.f32 %v560, %v728
        %v737 = vmul.f32 %v561, %v729
        %v738 = vmul.f32 %v562, %v730
        %v739 = vmul.f32 %v563, %v731
        %v740 = vmul.f32 %v564, %v732
        %v741 = vmul.f32 %v565, %v733
        %v742 = vmul.f32 %v566, %v734
        %v743 = vmul.f32 %v567, %v735
        %v744 = vld [vmem:[%s6] sm:$0xff]
        %v745 = vld [vmem:[%s6 + $0x8] sm:$0xff]
        %v746 = vld [vmem:[%s6 + $0x10] sm:$0xff]
        %v747 = vld [vmem:[%s6 + $0x18] sm:$0xff]
        %v749 = vsel %vm360, %v736, 0
        %v752 = vsel %vm360, %v737, 0
        %v755 = vsel %vm360, %v738, 0
        %v758 = vsel %vm360, %v739, 0
        %v761 = vsel %vm360, %v740, 0
        %v764 = vsel %vm360, %v741, 0
        %v767 = vsel %vm360, %v742, 0
        %v770 = vsel %vm360, %v743, 0
        %772 = vmatpush.msra.mxu0 0.0
        %773 = vmatpush.msra.mxu0 0.0
        %774 = vmatpush.msra.mxu0 0.0
        %775 = vmatpush.msra.mxu0 0.0
        %776 = vmatpush.msra.mxu0 0.0
        %777 = vmatpush.msra.mxu0 0.0
        %778 = vmatpush.msra.mxu0 0.0
        %779 = vmatpush.msra.mxu0 0.0
        %780 = vmatpush.msra.mxu0 0.0
        %781 = vmatpush.msra.mxu0 0.0
        %782 = vmatpush.msra.mxu0 0.0
        %783 = vmatpush.msra.mxu0 0.0
        %784 = vmatpush.msra.mxu0 %v747
        %785 = vmatpush.msra.mxu0 %v746
        %786 = vmatpush.msra.mxu0 %v745
        %787 = vmatpush.msra.mxu0 %v744
        %788 = vmatmul.f32.gmra.mxu0 %v749
        %v789 = vpop.f32.mrf.mxu0
        %v790 = vadd.f32 0.0, %v789
        %791 = vmatmul.f32.gmra.mxu0 %v752
        %v792 = vpop.f32.mrf.mxu0
        %v793 = vadd.f32 0.0, %v792
        %794 = vmatmul.f32.gmra.mxu0 %v755
        %v795 = vpop.f32.mrf.mxu0
        %v796 = vadd.f32 0.0, %v795
        %797 = vmatmul.f32.gmra.mxu0 %v758
        %v798 = vpop.f32.mrf.mxu0
        %v799 = vadd.f32 0.0, %v798
        %800 = vmatmul.f32.gmra.mxu0 %v761
        %v801 = vpop.f32.mrf.mxu0
        %v802 = vadd.f32 0.0, %v801
        %803 = vmatmul.f32.gmra.mxu0 %v764
        %v804 = vpop.f32.mrf.mxu0
        %v805 = vadd.f32 0.0, %v804
        %806 = vmatmul.f32.gmra.mxu0 %v767
        %v807 = vpop.f32.mrf.mxu0
        %v808 = vadd.f32 0.0, %v807
        %809 = vmatmul.f32.gmra.mxu0 %v770
        %v810 = vpop.f32.mrf.mxu0
        %v811 = vadd.f32 0.0, %v810
        %812 = vdwg.mxu0
        %813 = vst.msk [vmem:[%s304] sm:$0xff] %vm360, %v790
        %814 = vst.msk [vmem:[%s304 + $0x8] sm:$0xff] %vm360, %v793
        %815 = vst.msk [vmem:[%s304 + $0x10] sm:$0xff] %vm360, %v796
        %816 = vst.msk [vmem:[%s304 + $0x18] sm:$0xff] %vm360, %v799
        %817 = vst.msk [vmem:[%s304 + $0x20] sm:$0xff] %vm360, %v802
        %818 = vst.msk [vmem:[%s304 + $0x28] sm:$0xff] %vm360, %v805
        %819 = vst.msk [vmem:[%s304 + $0x30] sm:$0xff] %vm360, %v808
        %820 = vst.msk [vmem:[%s304 + $0x38] sm:$0xff] %vm360, %v811
        %s821 = sand.u32 %s191, 1
        %s822 = scalar_lea.sflag [#allocation3], %s821
        %s823 = sand.u32 %s191, 1
        %s824 = smul.addr %s823, 64
        %s825 = scalar_lea.vmem [#allocation2], %s824
        // Predicated region
        $region49: #{_lambda_.5} parent=47 // pred_check
          %p826 = pneg %p201
        $region50: #{_lambda_.5} parent=47 // pred_check_branch
          %828 = sbr.rel (%p826) target = $region52
        $region51: #{_lambda_.5} parent=47 // pred_region
          %s829 = smul.u32 8, %s21
          %831 = vsyncadd %s822, 0
          %s832 = smul.addr %s829, 8
          %s833 = scalar_lea.hbm %s7, %s832
          %s834 = sshll.u32 %s825, 4
          %s835 = int_to_ptr.vmem [resolvable:$true] %s834
          %s836 = sshll.u32 %s833, 4
          %s837 = int_to_ptr.hbm [resolvable:$true] %s836
          %842 = dma.vmem_to_hbm [thread:$0]  %s835, 1024, %s837, %s822, 128, 128, 8
        $region52: #{_lambda_.5} parent=47 // pred_fallthru
          _
      $region48: #{_lambda_.5} parent=5 // pred_fallthru
        _
      %p843 = scmp.le.s32.totalorder 2, %s16
      // Predicated region
      $region53: #{_lambda_.5} parent=5 // pred_check
        %p844 = pneg %p843
      $region54: #{_lambda_.5} parent=5 // pred_check_branch
        %846 = sbr.rel (%p844) target = $region56
      $region55: #{_lambda_.5} parent=5 // pred_region
        %s847 = ssub.s32 %s16, 2
        // Predicated region
        $region57: #{_lambda_.5} parent=55 // pred_check
          %p848 = pneg %p207
        $region58: #{_lambda_.5} parent=55 // pred_check_branch
          %850 = sbr.rel (%p848) target = $region60
        $region59: #{_lambda_.5} parent=55 // pred_region
          %s851 = sand.u32 %s192, 1
          %s852 = scalar_lea.sflag [#allocation3], %s851
          %s853 = sand.u32 %s192, 1
          %s854 = smul.addr %s853, 64
          %s855 = scalar_lea.vmem [#allocation2], %s854
          %857 = dma.done %s852, 1024
        $region60: #{_lambda_.5} parent=55 // pred_fallthru
          _
      $region56: #{_lambda_.5} parent=5 // pred_fallthru
        _
    $region6: #{_lambda_.5} parent=1 // loop_footer
      %s20 = sadd.s32 1, %s16
    $region7: #{_lambda_.5} parent=1 // loop_footer_branch
      %15 = sbr.rel target = $region3
    $region8: #{_lambda_.5} parent=1 // loop_exit
      _
    %858 = vsyncpa [#allocation3], 1
    %s859 = scalar_lea.sflag [#allocation3], 1
    %860 = vsyncpa %s859, 1

// kernel: _lambda_.4
$region0: #{_lambda_.4}
  #allocation0 [shape = 'u32[]', space=smem, size = 0x4, offset = 0x4, fixed_abs, tag = 'smem constant byte address 0x4 - core index']
  #allocation1 [shape = 'u32[72,128]{1,0:T(1,128)}', space=vmem, size = 0x9000, scoped, tag = 'internal scratch']
  #allocation2 [shape = 'f32[32,8,128]{2,1,0:T(8,128)}', space=vmem, size = 0x20000, scoped, tag = 'scratch operand']
  #allocation3 [shape = 'f32[32,8,128]{2,1,0:T(8,128)}', space=vmem, size = 0x20000, scoped, tag = 'scratch operand']
  #allocation4 [shape = 'f32[32,8,128]{2,1,0:T(8,128)}', space=vmem, size = 0x20000, scoped, tag = 'scratch operand']
  %s0 = inlined_call_operand.vmem [shape: f32[2,256,128], index: 0, kind: input, shape index: {}]
  %s1 = inlined_call_operand.vmem [shape: f32[128,16], index: 1, kind: input, shape index: {}]
  %s2 = inlined_call_operand.vmem [shape: f32[16,128], index: 2, kind: input, shape index: {}]
  %s3 = inlined_call_operand.vmem [shape: f32[1,128], index: 3, kind: input, shape index: {}]
  %s4 = inlined_call_operand.vmem [shape: f32[8,128], index: 4, kind: input, shape index: {}]
  %s5 = inlined_call_operand.vmem [shape: f32[128,16], index: 5, kind: input, shape index: {}]
  %s6 = inlined_call_operand.vmem [shape: f32[128,16], index: 6, kind: input, shape index: {}]
  %s7 = inlined_call_operand.vmem [shape: f32[8,16], index: 7, kind: input, shape index: {}]
  %s8 = inlined_call_operand.vmem [shape: f32[16,128], index: 8, kind: input, shape index: {}]
  %s9 = inlined_call_operand.vmem [shape: f32[2,64,128], index: 9, kind: output, shape index: {}]
  %s10 = sld [smem:[#allocation0]]
  $region69: #{_lambda_.4} parent=0
    _
  %s12 = ssub.s32 1, %s10
  %s13 = scalar_select 0, %s12, %s10
  loop: start=0, step=1, limit=4
  $region2: #{_lambda_.4} parent=0 // loop_pre_header
    _
  $region3: #{_lambda_.4} parent=0 // loop_header
    %s15 = sphi 0, %s19
    %p16 = scmp.ge.s32.totalorder %s15, 4
    %s25 = sphi 0, %s27
    %s28 = sphi 0, %s25
    %s29 = sphi 0, %s28
    %s45 = sphi 0, %s29
    %s49 = sphi 0, %s49
    %s51 = sphi 0, %s49
    %s52 = sphi 0, %s51
    %s66 = sphi 0, %s52
    %s70 = sphi 0, %s70
    %s72 = sphi 0, %s70
    %s73 = sphi 0, %s72
    %s87 = sphi 0, %s73
    %s91 = sphi 0, %s91
    %s93 = sphi 0, %s91
    %s94 = sphi 0, %s93
    %s108 = sphi 0, %s94
    %s112 = sphi 0, %s112
    %s114 = sphi 0, %s112
    %s115 = sphi 0, %s114
    %s129 = sphi 0, %s115
    %s133 = sphi 0, %s133
    %s135 = sphi 0, %s133
    %s136 = sphi 0, %s135
    %s150 = sphi 0, %s136
    %s154 = sphi 0, %s154
    %s156 = sphi 0, %s154
    %s157 = sphi 0, %s156
    %s171 = sphi 0, %s157
    %s175 = sphi 0, %s175
    %s177 = sphi 0, %s175
    %s178 = sphi 0, %s177
    %s192 = sphi 0, %s178
    %s196 = sphi 0, %s196
    %s198 = sphi 0, %s196
    %s199 = sphi 0, %s198
    %s213 = sphi 0, %s199
    %s219 = sphi 0, %s221
    %s222 = sphi 0, %s219
    %s223 = sphi 0, %s222
    %s239 = sphi 0, %s223
  $region4: #{_lambda_.4} parent=0 // loop_header_branch
    %18 = sbr.rel (%p16) target = $region8
  $region5: #{_lambda_.4} parent=0 // loop_body
    %s20 = ssub.s32 %s15, 1
    %s21 = ssub.s32 %s15, 2
    %s22 = sadd.s32 %s15, 1
    %s23 = ssub.s32 %s15, %s22
    %p24 = scmp.eq.s32.totalorder %s23, 0
    %s26 = sadd.s32 %s25, 1
    %s27 = scalar_select %p24, %s25, %s26
    %p30 = pneg %p24
    %p31 = scmp.eq.s32.totalorder %s15, 1
    %p32 = por %p30, %p31
    %p33 = scmp.ne.s32.totalorder %s25, %s28
    %p34 = scmp.eq.s32.totalorder %s15, 0
    %p35 = por %p33, %p34
    %p36 = scmp.ne.s32.totalorder %s25, %s28
    %p37 = scmp.eq.s32.totalorder %s20, 1
    %p38 = por %p36, %p37
    %p39 = scmp.ne.s32.totalorder %s28, %s29
    %p40 = scmp.eq.s32.totalorder %s20, 0
    %p41 = por %p39, %p40
    %p42 = scmp.ne.s32.totalorder %s28, %s29
    %p43 = scmp.eq.s32.totalorder %s21, 1
    %p44 = por %p42, %p43
    %p46 = scmp.ne.s32.totalorder %s29, %s45
    %p47 = scmp.eq.s32.totalorder %s21, 0
    %p48 = por %p46, %p47
    %s50 = sadd.s32 %s49, 1
    %p53 = scmp.eq.s32.totalorder %s15, 1
    %p54 = scmp.ne.s32.totalorder %s49, %s51
    %p55 = scmp.eq.s32.totalorder %s15, 0
    %p56 = por %p54, %p55
    %p57 = scmp.ne.s32.totalorder %s49, %s51
    %p58 = scmp.eq.s32.totalorder %s20, 1
    %p59 = por %p57, %p58
    %p60 = scmp.ne.s32.totalorder %s51, %s52
    %p61 = scmp.eq.s32.totalorder %s20, 0
    %p62 = por %p60, %p61
    %p63 = scmp.ne.s32.totalorder %s51, %s52
    %p64 = scmp.eq.s32.totalorder %s21, 1
    %p65 = por %p63, %p64
    %p67 = scmp.ne.s32.totalorder %s52, %s66
    %p68 = scmp.eq.s32.totalorder %s21, 0
    %p69 = por %p67, %p68
    %s71 = sadd.s32 %s70, 1
    %p74 = scmp.eq.s32.totalorder %s15, 1
    %p75 = scmp.ne.s32.totalorder %s70, %s72
    %p76 = scmp.eq.s32.totalorder %s15, 0
    %p77 = por %p75, %p76
    %p78 = scmp.ne.s32.totalorder %s70, %s72
    %p79 = scmp.eq.s32.totalorder %s20, 1
    %p80 = por %p78, %p79
    %p81 = scmp.ne.s32.totalorder %s72, %s73
    %p82 = scmp.eq.s32.totalorder %s20, 0
    %p83 = por %p81, %p82
    %p84 = scmp.ne.s32.totalorder %s72, %s73
    %p85 = scmp.eq.s32.totalorder %s21, 1
    %p86 = por %p84, %p85
    %p88 = scmp.ne.s32.totalorder %s73, %s87
    %p89 = scmp.eq.s32.totalorder %s21, 0
    %p90 = por %p88, %p89
    %s92 = sadd.s32 %s91, 1
    %p95 = scmp.eq.s32.totalorder %s15, 1
    %p96 = scmp.ne.s32.totalorder %s91, %s93
    %p97 = scmp.eq.s32.totalorder %s15, 0
    %p98 = por %p96, %p97
    %p99 = scmp.ne.s32.totalorder %s91, %s93
    %p100 = scmp.eq.s32.totalorder %s20, 1
    %p101 = por %p99, %p100
    %p102 = scmp.ne.s32.totalorder %s93, %s94
    %p103 = scmp.eq.s32.totalorder %s20, 0
    %p104 = por %p102, %p103
    %p105 = scmp.ne.s32.totalorder %s93, %s94
    %p106 = scmp.eq.s32.totalorder %s21, 1
    %p107 = por %p105, %p106
    %p109 = scmp.ne.s32.totalorder %s94, %s108
    %p110 = scmp.eq.s32.totalorder %s21, 0
    %p111 = por %p109, %p110
    %s113 = sadd.s32 %s112, 1
    %p116 = scmp.eq.s32.totalorder %s15, 1
    %p117 = scmp.ne.s32.totalorder %s112, %s114
    %p118 = scmp.eq.s32.totalorder %s15, 0
    %p119 = por %p117, %p118
    %p120 = scmp.ne.s32.totalorder %s112, %s114
    %p121 = scmp.eq.s32.totalorder %s20, 1
    %p122 = por %p120, %p121
    %p123 = scmp.ne.s32.totalorder %s114, %s115
    %p124 = scmp.eq.s32.totalorder %s20, 0
    %p125 = por %p123, %p124
    %p126 = scmp.ne.s32.totalorder %s114, %s115
    %p127 = scmp.eq.s32.totalorder %s21, 1
    %p128 = por %p126, %p127
    %p130 = scmp.ne.s32.totalorder %s115, %s129
    %p131 = scmp.eq.s32.totalorder %s21, 0
    %p132 = por %p130, %p131
    %s134 = sadd.s32 %s133, 1
    %p137 = scmp.eq.s32.totalorder %s15, 1
    %p138 = scmp.ne.s32.totalorder %s133, %s135
    %p139 = scmp.eq.s32.totalorder %s15, 0
    %p140 = por %p138, %p139
    %p141 = scmp.ne.s32.totalorder %s133, %s135
    %p142 = scmp.eq.s32.totalorder %s20, 1
    %p143 = por %p141, %p142
    %p144 = scmp.ne.s32.totalorder %s135, %s136
    %p145 = scmp.eq.s32.totalorder %s20, 0
    %p146 = por %p144, %p145
    %p147 = scmp.ne.s32.totalorder %s135, %s136
    %p148 = scmp.eq.s32.totalorder %s21, 1
    %p149 = por %p147, %p148
    %p151 = scmp.ne.s32.totalorder %s136, %s150
    %p152 = scmp.eq.s32.totalorder %s21, 0
    %p153 = por %p151, %p152
    %s155 = sadd.s32 %s154, 1
    %p158 = scmp.eq.s32.totalorder %s15, 1
    %p159 = scmp.ne.s32.totalorder %s154, %s156
    %p160 = scmp.eq.s32.totalorder %s15, 0
    %p161 = por %p159, %p160
    %p162 = scmp.ne.s32.totalorder %s154, %s156
    %p163 = scmp.eq.s32.totalorder %s20, 1
    %p164 = por %p162, %p163
    %p165 = scmp.ne.s32.totalorder %s156, %s157
    %p166 = scmp.eq.s32.totalorder %s20, 0
    %p167 = por %p165, %p166
    %p168 = scmp.ne.s32.totalorder %s156, %s157
    %p169 = scmp.eq.s32.totalorder %s21, 1
    %p170 = por %p168, %p169
    %p172 = scmp.ne.s32.totalorder %s157, %s171
    %p173 = scmp.eq.s32.totalorder %s21, 0
    %p174 = por %p172, %p173
    %s176 = sadd.s32 %s175, 1
    %p179 = scmp.eq.s32.totalorder %s15, 1
    %p180 = scmp.ne.s32.totalorder %s175, %s177
    %p181 = scmp.eq.s32.totalorder %s15, 0
    %p182 = por %p180, %p181
    %p183 = scmp.ne.s32.totalorder %s175, %s177
    %p184 = scmp.eq.s32.totalorder %s20, 1
    %p185 = por %p183, %p184
    %p186 = scmp.ne.s32.totalorder %s177, %s178
    %p187 = scmp.eq.s32.totalorder %s20, 0
    %p188 = por %p186, %p187
    %p189 = scmp.ne.s32.totalorder %s177, %s178
    %p190 = scmp.eq.s32.totalorder %s21, 1
    %p191 = por %p189, %p190
    %p193 = scmp.ne.s32.totalorder %s178, %s192
    %p194 = scmp.eq.s32.totalorder %s21, 0
    %p195 = por %p193, %p194
    %s197 = sadd.s32 %s196, 1
    %p200 = scmp.eq.s32.totalorder %s15, 1
    %p201 = scmp.ne.s32.totalorder %s196, %s198
    %p202 = scmp.eq.s32.totalorder %s15, 0
    %p203 = por %p201, %p202
    %p204 = scmp.ne.s32.totalorder %s196, %s198
    %p205 = scmp.eq.s32.totalorder %s20, 1
    %p206 = por %p204, %p205
    %p207 = scmp.ne.s32.totalorder %s198, %s199
    %p208 = scmp.eq.s32.totalorder %s20, 0
    %p209 = por %p207, %p208
    %p210 = scmp.ne.s32.totalorder %s198, %s199
    %p211 = scmp.eq.s32.totalorder %s21, 1
    %p212 = por %p210, %p211
    %p214 = scmp.ne.s32.totalorder %s199, %s213
    %p215 = scmp.eq.s32.totalorder %s21, 0
    %p216 = por %p214, %p215
    %s217 = ssub.s32 %s15, %s22
    %p218 = scmp.eq.s32.totalorder %s217, 0
    %s220 = sadd.s32 %s219, 1
    %s221 = scalar_select %p218, %s219, %s220
    %p224 = pneg %p218
    %p225 = scmp.eq.s32.totalorder %s15, 1
    %p226 = por %p224, %p225
    %p227 = scmp.ne.s32.totalorder %s219, %s222
    %p228 = scmp.eq.s32.totalorder %s15, 0
    %p229 = por %p227, %p228
    %p230 = scmp.ne.s32.totalorder %s219, %s222
    %p231 = scmp.eq.s32.totalorder %s20, 1
    %p232 = por %p230, %p231
    %p233 = scmp.ne.s32.totalorder %s222, %s223
    %p234 = scmp.eq.s32.totalorder %s20, 0
    %p235 = por %p233, %p234
    %p236 = scmp.ne.s32.totalorder %s222, %s223
    %p237 = scmp.eq.s32.totalorder %s21, 1
    %p238 = por %p236, %p237
    %p240 = scmp.ne.s32.totalorder %s223, %s239
    %p241 = scmp.eq.s32.totalorder %s21, 0
    %p242 = por %p240, %p241
    %p243 = scmp.le.s32.totalorder 1, %s15
    %p244 = scmp.lt.s32.totalorder %s15, 3
    %p245 = pnand %p243, %p244
    %p246 = pneg %p245
    // Predicated region
    $region9: #{_lambda_.4} parent=5 // pred_check
      _
    $region10: #{_lambda_.4} parent=5 // pred_check_branch
      %248 = sbr.rel (%p245) target = $region12
    $region11: #{_lambda_.4} parent=5 // pred_region
      %s249 = ssub.s32 %s15, 1
      // Predicated region
      $region13: #{_lambda_.4} parent=11 // pred_check
        %p250 = pneg %p62
      $region14: #{_lambda_.4} parent=11 // pred_check_branch
        %252 = sbr.rel (%p250) target = $region16
      $region15: #{_lambda_.4} parent=11 // pred_region
        _
      $region16: #{_lambda_.4} parent=11 // pred_fallthru
        _
      // Predicated region
      $region17: #{_lambda_.4} parent=11 // pred_check
        %p253 = pneg %p83
      $region18: #{_lambda_.4} parent=11 // pred_check_branch
        %255 = sbr.rel (%p253) target = $region20
      $region19: #{_lambda_.4} parent=11 // pred_region
        _
      $region20: #{_lambda_.4} parent=11 // pred_fallthru
        _
      // Predicated region
      $region21: #{_lambda_.4} parent=11 // pred_check
        %p256 = pneg %p104
      $region22: #{_lambda_.4} parent=11 // pred_check_branch
        %258 = sbr.rel (%p256) target = $region24
      $region23: #{_lambda_.4} parent=11 // pred_region
        _
      $region24: #{_lambda_.4} parent=11 // pred_fallthru
        _
      // Predicated region
      $region25: #{_lambda_.4} parent=11 // pred_check
        %p259 = pneg %p125
      $region26: #{_lambda_.4} parent=11 // pred_check_branch
        %261 = sbr.rel (%p259) target = $region28
      $region27: #{_lambda_.4} parent=11 // pred_region
        _
      $region28: #{_lambda_.4} parent=11 // pred_fallthru
        _
      // Predicated region
      $region29: #{_lambda_.4} parent=11 // pred_check
        %p262 = pneg %p146
      $region30: #{_lambda_.4} parent=11 // pred_check_branch
        %264 = sbr.rel (%p262) target = $region32
      $region31: #{_lambda_.4} parent=11 // pred_region
        _
      $region32: #{_lambda_.4} parent=11 // pred_fallthru
        _
      // Predicated region
      $region33: #{_lambda_.4} parent=11 // pred_check
        %p265 = pneg %p167
      $region34: #{_lambda_.4} parent=11 // pred_check_branch
        %267 = sbr.rel (%p265) target = $region36
      $region35: #{_lambda_.4} parent=11 // pred_region
        _
      $region36: #{_lambda_.4} parent=11 // pred_fallthru
        _
      // Predicated region
      $region37: #{_lambda_.4} parent=11 // pred_check
        %p268 = pneg %p188
      $region38: #{_lambda_.4} parent=11 // pred_check_branch
        %270 = sbr.rel (%p268) target = $region40
      $region39: #{_lambda_.4} parent=11 // pred_region
        _
      $region40: #{_lambda_.4} parent=11 // pred_fallthru
        _
      // Predicated region
      $region41: #{_lambda_.4} parent=11 // pred_check
        %p271 = pneg %p209
      $region42: #{_lambda_.4} parent=11 // pred_check_branch
        %273 = sbr.rel (%p271) target = $region44
      $region43: #{_lambda_.4} parent=11 // pred_region
        _
      $region44: #{_lambda_.4} parent=11 // pred_fallthru
        _
    $region12: #{_lambda_.4} parent=5 // pred_fallthru
      _
    %p274 = scmp.lt.s32.totalorder %s15, 2
    // Predicated region
    $region45: #{_lambda_.4} parent=5 // pred_check
      %p275 = pneg %p274
    $region46: #{_lambda_.4} parent=5 // pred_check_branch
      %277 = sbr.rel (%p275) target = $region48
    $region47: #{_lambda_.4} parent=5 // pred_region
      // Predicated region
      $region49: #{_lambda_.4} parent=47 // pred_check
        %p278 = pneg %p35
      $region50: #{_lambda_.4} parent=47 // pred_check_branch
        %280 = sbr.rel (%p278) target = $region52
      $region51: #{_lambda_.4} parent=47 // pred_region
        %p281 = scmp.lt.s32.totalorder %s15, 1
        %s282 = scalar_select %p281, %s15, 1
        %s283 = smul.addr %s282, 32
        %s284 = smul.addr %s283, 8
        %s285 = scalar_lea.vmem %s0, %s284
      $region52: #{_lambda_.4} parent=47 // pred_fallthru
        _
    $region48: #{_lambda_.4} parent=5 // pred_fallthru
      _
    %p286 = scmp.le.s32.totalorder 1, %s15
    %p287 = scmp.lt.s32.totalorder %s15, 3
    %p288 = pnand %p286, %p287
    %p289 = pneg %p288
    // Predicated region
    $region53: #{_lambda_.4} parent=5 // pred_check
      _
    $region54: #{_lambda_.4} parent=5 // pred_check_branch
      %291 = sbr.rel (%p288) target = $region56
    $region55: #{_lambda_.4} parent=5 // pred_region
      %s292 = ssub.s32 %s15, 1
      %p293 = scmp.lt.s32.totalorder %s20, 1
      %s294 = scalar_select %p293, %s20, 1
      %s295 = smul.addr %s294, 32
      %s296 = smul.addr %s295, 8
      %s297 = scalar_lea.vmem %s0, %s296
      %p298 = pneg %p41
      %p299 = pneg %p38
      %p300 = pneg %p62
      %p301 = pneg %p59
      %p302 = pneg %p83
      %p303 = pneg %p80
      %p304 = pneg %p104
      %p305 = pneg %p101
      %p306 = pneg %p125
      %p307 = pneg %p122
      %p308 = pneg %p146
      %p309 = pneg %p143
      %p310 = pneg %p167
      %p311 = pneg %p164
      %p312 = pneg %p188
      %p313 = pneg %p185
      %p314 = pneg %p209
      %p315 = pneg %p206
      %p316 = pneg %p235
      %p317 = pneg %p232
      %p318 = scmp.lt.s32.totalorder %s20, 1
      %s319 = scalar_select %p318, %s20, 1
      %s320 = smul.addr %s319, 8
      %s321 = smul.addr %s320, 8
      %s322 = scalar_lea.vmem %s9, %s321
      %p323 = scmp.lt.s32.totalorder %s20, 1
      %s324 = scalar_select %p323, %s20, 1
      %s325 = smul.addr %s324, 32
      %s326 = smul.addr %s325, 8
      %s327 = scalar_lea.vmem %s0, %s326
      %p328 = scmp.lt.s32.totalorder %s20, 1
      %s329 = scalar_select %p328, %s20, 1
      %s330 = smul.addr %s329, 8
      %s331 = smul.addr %s330, 8
      %s332 = scalar_lea.vmem %s9, %s331
      %v333 = vld [vmem:[%s327] sm:$0xff]
      %v334 = vld [vmem:[%s327 + $0x8] sm:$0xff]
      %v335 = vld [vmem:[%s327 + $0x10] sm:$0xff]
      %v336 = vld [vmem:[%s327 + $0x18] sm:$0xff]
      %v337 = vld [vmem:[%s327 + $0x20] sm:$0xff]
      %v338 = vld [vmem:[%s327 + $0x28] sm:$0xff]
      %v339 = vld [vmem:[%s327 + $0x30] sm:$0xff]
      %v340 = vld [vmem:[%s327 + $0x38] sm:$0xff]
      %v341 = vld [vmem:[%s327 + $0x40] sm:$0xff]
      %v342 = vld [vmem:[%s327 + $0x48] sm:$0xff]
      %v343 = vld [vmem:[%s327 + $0x50] sm:$0xff]
      %v344 = vld [vmem:[%s327 + $0x58] sm:$0xff]
      %v345 = vld [vmem:[%s327 + $0x60] sm:$0xff]
      %v346 = vld [vmem:[%s327 + $0x68] sm:$0xff]
      %v347 = vld [vmem:[%s327 + $0x70] sm:$0xff]
      %v348 = vld [vmem:[%s327 + $0x78] sm:$0xff]
      %v349 = vld [vmem:[%s327 + $0x80] sm:$0xff]
      %v350 = vld [vmem:[%s327 + $0x88] sm:$0xff]
      %v351 = vld [vmem:[%s327 + $0x90] sm:$0xff]
      %v352 = vld [vmem:[%s327 + $0x98] sm:$0xff]
      %v353 = vld [vmem:[%s327 + $0xa0] sm:$0xff]
      %v354 = vld [vmem:[%s327 + $0xa8] sm:$0xff]
      %v355 = vld [vmem:[%s327 + $0xb0] sm:$0xff]
      %v356 = vld [vmem:[%s327 + $0xb8] sm:$0xff]
      %v357 = vld [vmem:[%s327 + $0xc0] sm:$0xff]
      %v358 = vld [vmem:[%s327 + $0xc8] sm:$0xff]
      %v359 = vld [vmem:[%s327 + $0xd0] sm:$0xff]
      %v360 = vld [vmem:[%s327 + $0xd8] sm:$0xff]
      %v361 = vld [vmem:[%s327 + $0xe0] sm:$0xff]
      %v362 = vld [vmem:[%s327 + $0xe8] sm:$0xff]
      %v363 = vld [vmem:[%s327 + $0xf0] sm:$0xff]
      %v364 = vld [vmem:[%s327 + $0xf8] sm:$0xff]
      %v365 = vld [vmem:[%s1] sm:$0xff]
      %v366 = vld [vmem:[%s1 + $0x8] sm:$0xff]
      %v367 = vld [vmem:[%s1 + $0x10] sm:$0xff]
      %v368 = vld [vmem:[%s1 + $0x18] sm:$0xff]
      %v369 = vld [vmem:[%s1 + $0x20] sm:$0xff]
      %v370 = vld [vmem:[%s1 + $0x28] sm:$0xff]
      %v371 = vld [vmem:[%s1 + $0x30] sm:$0xff]
      %v372 = vld [vmem:[%s1 + $0x38] sm:$0xff]
      %v373 = vld [vmem:[%s1 + $0x40] sm:$0xff]
      %v374 = vld [vmem:[%s1 + $0x48] sm:$0xff]
      %v375 = vld [vmem:[%s1 + $0x50] sm:$0xff]
      %v376 = vld [vmem:[%s1 + $0x58] sm:$0xff]
      %v377 = vld [vmem:[%s1 + $0x60] sm:$0xff]
      %v378 = vld [vmem:[%s1 + $0x68] sm:$0xff]
      %v379 = vld [vmem:[%s1 + $0x70] sm:$0xff]
      %v380 = vld [vmem:[%s1 + $0x78] sm:$0xff]
      %381 = vmatpush.msra.mxu0 %v380
      %382 = vmatpush.msra.mxu0 %v379
      %383 = vmatpush.msra.mxu0 %v378
      %384 = vmatpush.msra.mxu0 %v377
      %385 = vmatpush.msra.mxu0 %v376
      %386 = vmatpush.msra.mxu0 %v375
      %387 = vmatpush.msra.mxu0 %v374
      %388 = vmatpush.msra.mxu0 %v373
      %389 = vmatpush.msra.mxu0 %v372
      %390 = vmatpush.msra.mxu0 %v371
      %391 = vmatpush.msra.mxu0 %v370
      %392 = vmatpush.msra.mxu0 %v369
      %393 = vmatpush.msra.mxu0 %v368
      %394 = vmatpush.msra.mxu0 %v367
      %395 = vmatpush.msra.mxu0 %v366
      %396 = vmatpush.msra.mxu0 %v365
      %397 = vmatmul.f32.gmra.mxu0 %v333
      %v398 = vpop.f32.mrf.mxu0
      %v399 = vadd.f32 0.0, %v398
      %400 = vmatmul.f32.gmra.mxu0 %v334
      %v401 = vpop.f32.mrf.mxu0
      %v402 = vadd.f32 0.0, %v401
      %403 = vmatmul.f32.gmra.mxu0 %v335
      %v404 = vpop.f32.mrf.mxu0
      %v405 = vadd.f32 0.0, %v404
      %406 = vmatmul.f32.gmra.mxu0 %v336
      %v407 = vpop.f32.mrf.mxu0
      %v408 = vadd.f32 0.0, %v407
      %409 = vmatmul.f32.gmra.mxu0 %v337
      %v410 = vpop.f32.mrf.mxu0
      %v411 = vadd.f32 0.0, %v410
      %412 = vmatmul.f32.gmra.mxu0 %v338
      %v413 = vpop.f32.mrf.mxu0
      %v414 = vadd.f32 0.0, %v413
      %415 = vmatmul.f32.gmra.mxu0 %v339
      %v416 = vpop.f32.mrf.mxu0
      %v417 = vadd.f32 0.0, %v416
      %418 = vmatmul.f32.gmra.mxu0 %v340
      %v419 = vpop.f32.mrf.mxu0
      %v420 = vadd.f32 0.0, %v419
      %421 = vmatmul.f32.gmra.mxu0 %v341
      %v422 = vpop.f32.mrf.mxu0
      %v423 = vadd.f32 0.0, %v422
      %424 = vmatmul.f32.gmra.mxu0 %v342
      %v425 = vpop.f32.mrf.mxu0
      %v426 = vadd.f32 0.0, %v425
      %427 = vmatmul.f32.gmra.mxu0 %v343
      %v428 = vpop.f32.mrf.mxu0
      %v429 = vadd.f32 0.0, %v428
      %430 = vmatmul.f32.gmra.mxu0 %v344
      %v431 = vpop.f32.mrf.mxu0
      %v432 = vadd.f32 0.0, %v431
      %433 = vmatmul.f32.gmra.mxu0 %v345
      %v434 = vpop.f32.mrf.mxu0
      %v435 = vadd.f32 0.0, %v434
      %436 = vmatmul.f32.gmra.mxu0 %v346
      %v437 = vpop.f32.mrf.mxu0
      %v438 = vadd.f32 0.0, %v437
      %439 = vmatmul.f32.gmra.mxu0 %v347
      %v440 = vpop.f32.mrf.mxu0
      %v441 = vadd.f32 0.0, %v440
      %442 = vmatmul.f32.gmra.mxu0 %v348
      %v443 = vpop.f32.mrf.mxu0
      %v444 = vadd.f32 0.0, %v443
      %445 = vmatmul.f32.gmra.mxu0 %v349
      %v446 = vpop.f32.mrf.mxu0
      %v447 = vadd.f32 0.0, %v446
      %448 = vmatmul.f32.gmra.mxu0 %v350
      %v449 = vpop.f32.mrf.mxu0
      %v450 = vadd.f32 0.0, %v449
      %451 = vmatmul.f32.gmra.mxu0 %v351
      %v452 = vpop.f32.mrf.mxu0
      %v453 = vadd.f32 0.0, %v452
      %454 = vmatmul.f32.gmra.mxu0 %v352
      %v455 = vpop.f32.mrf.mxu0
      %v456 = vadd.f32 0.0, %v455
      %457 = vmatmul.f32.gmra.mxu0 %v353
      %v458 = vpop.f32.mrf.mxu0
      %v459 = vadd.f32 0.0, %v458
      %460 = vmatmul.f32.gmra.mxu0 %v354
      %v461 = vpop.f32.mrf.mxu0
      %v462 = vadd.f32 0.0, %v461
      %463 = vmatmul.f32.gmra.mxu0 %v355
      %v464 = vpop.f32.mrf.mxu0
      %v465 = vadd.f32 0.0, %v464
      %466 = vmatmul.f32.gmra.mxu0 %v356
      %v467 = vpop.f32.mrf.mxu0
      %v468 = vadd.f32 0.0, %v467
      %469 = vmatmul.f32.gmra.mxu0 %v357
      %v470 = vpop.f32.mrf.mxu0
      %v471 = vadd.f32 0.0, %v470
      %472 = vmatmul.f32.gmra.mxu0 %v358
      %v473 = vpop.f32.mrf.mxu0
      %v474 = vadd.f32 0.0, %v473
      %475 = vmatmul.f32.gmra.mxu0 %v359
      %v476 = vpop.f32.mrf.mxu0
      %v477 = vadd.f32 0.0, %v476
      %478 = vmatmul.f32.gmra.mxu0 %v360
      %v479 = vpop.f32.mrf.mxu0
      %v480 = vadd.f32 0.0, %v479
      %481 = vmatmul.f32.gmra.mxu0 %v361
      %v482 = vpop.f32.mrf.mxu0
      %v483 = vadd.f32 0.0, %v482
      %484 = vmatmul.f32.gmra.mxu0 %v362
      %v485 = vpop.f32.mrf.mxu0
      %v486 = vadd.f32 0.0, %v485
      %487 = vmatmul.f32.gmra.mxu0 %v363
      %v488 = vpop.f32.mrf.mxu0
      %v489 = vadd.f32 0.0, %v488
      %490 = vmatmul.f32.gmra.mxu0 %v364
      %v491 = vpop.f32.mrf.mxu0
      %v492 = vadd.f32 0.0, %v491
      %493 = vdwg.mxu0
      %v494 = vld [vmem:[%s2] sm:$0xff]
      %v495 = vld [vmem:[%s2 + $0x8] sm:$0xff]
      %v496 = vld [vmem:[%s3] sm:$0x1]
      %v498 = vperm.slane %v496, 0
      %vm500 = vcmask 130048
      %v502 = vsel %vm500, %v399, 0
      %v505 = vsel %vm500, %v402, 0
      %v508 = vsel %vm500, %v405, 0
      %v511 = vsel %vm500, %v408, 0
      %v514 = vsel %vm500, %v411, 0
      %v517 = vsel %vm500, %v414, 0
      %v520 = vsel %vm500, %v417, 0
      %v523 = vsel %vm500, %v420, 0
      %v526 = vsel %vm500, %v423, 0
      %v529 = vsel %vm500, %v426, 0
      %v532 = vsel %vm500, %v429, 0
      %v535 = vsel %vm500, %v432, 0
      %v538 = vsel %vm500, %v435, 0
      %v541 = vsel %vm500, %v438, 0
      %v544 = vsel %vm500, %v441, 0
      %v547 = vsel %vm500, %v444, 0
      %v550 = vsel %vm500, %v447, 0
      %v553 = vsel %vm500, %v450, 0
      %v556 = vsel %vm500, %v453, 0
      %v559 = vsel %vm500, %v456, 0
      %v562 = vsel %vm500, %v459, 0
      %v565 = vsel %vm500, %v462, 0
      %v568 = vsel %vm500, %v465, 0
      %v571 = vsel %vm500, %v468, 0
      %v574 = vsel %vm500, %v471, 0
      %v577 = vsel %vm500, %v474, 0
      %v580 = vsel %vm500, %v477, 0
      %v583 = vsel %vm500, %v480, 0
      %v586 = vsel %vm500, %v483, 0
      %v589 = vsel %vm500, %v486, 0
      %v592 = vsel %vm500, %v489, 0
      %v595 = vsel %vm500, %v492, 0
      %597 = vmatpush.msra.mxu0 0.0
      %598 = vmatpush.msra.mxu0 0.0
      %599 = vmatpush.msra.mxu0 0.0
      %600 = vmatpush.msra.mxu0 0.0
      %601 = vmatpush.msra.mxu0 0.0
      %602 = vmatpush.msra.mxu0 0.0
      %603 = vmatpush.msra.mxu0 0.0
      %604 = vmatpush.msra.mxu0 0.0
      %605 = vmatpush.msra.mxu0 0.0
      %606 = vmatpush.msra.mxu0 0.0
      %607 = vmatpush.msra.mxu0 0.0
      %608 = vmatpush.msra.mxu0 0.0
      %609 = vmatpush.msra.mxu0 0.0
      %610 = vmatpush.msra.mxu0 0.0
      %611 = vmatpush.msra.mxu0 %v495
      %612 = vmatpush.msra.mxu0 %v494
      %613 = vmatmul.f32.gmra.mxu0 %v502
      %v614 = vpop.f32.mrf.mxu0
      %v615 = vadd.f32 %v498, %v614
      %616 = vmatmul.f32.gmra.mxu0 %v505
      %v617 = vpop.f32.mrf.mxu0
      %v618 = vadd.f32 %v498, %v617
      %619 = vmatmul.f32.gmra.mxu0 %v508
      %v620 = vpop.f32.mrf.mxu0
      %v621 = vadd.f32 %v498, %v620
      %622 = vmatmul.f32.gmra.mxu0 %v511
      %v623 = vpop.f32.mrf.mxu0
      %v624 = vadd.f32 %v498, %v623
      %625 = vmatmul.f32.gmra.mxu0 %v514
      %v626 = vpop.f32.mrf.mxu0
      %v627 = vadd.f32 %v498, %v626
      %628 = vmatmul.f32.gmra.mxu0 %v517
      %v629 = vpop.f32.mrf.mxu0
      %v630 = vadd.f32 %v498, %v629
      %631 = vmatmul.f32.gmra.mxu0 %v520
      %v632 = vpop.f32.mrf.mxu0
      %v633 = vadd.f32 %v498, %v632
      %634 = vmatmul.f32.gmra.mxu0 %v523
      %v635 = vpop.f32.mrf.mxu0
      %v636 = vadd.f32 %v498, %v635
      %637 = vmatmul.f32.gmra.mxu0 %v526
      %v638 = vpop.f32.mrf.mxu0
      %v639 = vadd.f32 %v498, %v638
      %640 = vmatmul.f32.gmra.mxu0 %v529
      %v641 = vpop.f32.mrf.mxu0
      %v642 = vadd.f32 %v498, %v641
      %643 = vmatmul.f32.gmra.mxu0 %v532
      %v644 = vpop.f32.mrf.mxu0
      %v645 = vadd.f32 %v498, %v644
      %646 = vmatmul.f32.gmra.mxu0 %v535
      %v647 = vpop.f32.mrf.mxu0
      %v648 = vadd.f32 %v498, %v647
      %649 = vmatmul.f32.gmra.mxu0 %v538
      %v650 = vpop.f32.mrf.mxu0
      %v651 = vadd.f32 %v498, %v650
      %652 = vmatmul.f32.gmra.mxu0 %v541
      %v653 = vpop.f32.mrf.mxu0
      %v654 = vadd.f32 %v498, %v653
      %655 = vmatmul.f32.gmra.mxu0 %v544
      %v656 = vpop.f32.mrf.mxu0
      %v657 = vadd.f32 %v498, %v656
      %658 = vmatmul.f32.gmra.mxu0 %v547
      %v659 = vpop.f32.mrf.mxu0
      %v660 = vadd.f32 %v498, %v659
      %661 = vmatmul.f32.gmra.mxu0 %v550
      %v662 = vpop.f32.mrf.mxu0
      %v663 = vadd.f32 %v498, %v662
      %664 = vmatmul.f32.gmra.mxu0 %v553
      %v665 = vpop.f32.mrf.mxu0
      %v666 = vadd.f32 %v498, %v665
      %667 = vmatmul.f32.gmra.mxu0 %v556
      %v668 = vpop.f32.mrf.mxu0
      %v669 = vadd.f32 %v498, %v668
      %670 = vmatmul.f32.gmra.mxu0 %v559
      %v671 = vpop.f32.mrf.mxu0
      %v672 = vadd.f32 %v498, %v671
      %673 = vmatmul.f32.gmra.mxu0 %v562
      %v674 = vpop.f32.mrf.mxu0
      %v675 = vadd.f32 %v498, %v674
      %676 = vmatmul.f32.gmra.mxu0 %v565
      %v677 = vpop.f32.mrf.mxu0
      %v678 = vadd.f32 %v498, %v677
      %679 = vmatmul.f32.gmra.mxu0 %v568
      %v680 = vpop.f32.mrf.mxu0
      %v681 = vadd.f32 %v498, %v680
      %682 = vmatmul.f32.gmra.mxu0 %v571
      %v683 = vpop.f32.mrf.mxu0
      %v684 = vadd.f32 %v498, %v683
      %685 = vmatmul.f32.gmra.mxu0 %v574
      %v686 = vpop.f32.mrf.mxu0
      %v687 = vadd.f32 %v498, %v686
      %688 = vmatmul.f32.gmra.mxu0 %v577
      %v689 = vpop.f32.mrf.mxu0
      %v690 = vadd.f32 %v498, %v689
      %691 = vmatmul.f32.gmra.mxu0 %v580
      %v692 = vpop.f32.mrf.mxu0
      %v693 = vadd.f32 %v498, %v692
      %694 = vmatmul.f32.gmra.mxu0 %v583
      %v695 = vpop.f32.mrf.mxu0
      %v696 = vadd.f32 %v498, %v695
      %697 = vmatmul.f32.gmra.mxu0 %v586
      %v698 = vpop.f32.mrf.mxu0
      %v699 = vadd.f32 %v498, %v698
      %700 = vmatmul.f32.gmra.mxu0 %v589
      %v701 = vpop.f32.mrf.mxu0
      %v702 = vadd.f32 %v498, %v701
      %703 = vmatmul.f32.gmra.mxu0 %v592
      %v704 = vpop.f32.mrf.mxu0
      %v705 = vadd.f32 %v498, %v704
      %706 = vmatmul.f32.gmra.mxu0 %v595
      %v707 = vpop.f32.mrf.mxu0
      %v708 = vadd.f32 %v498, %v707
      %709 = vdwg.mxu0
      %v710 = vmax.f32 %v615, 0.0
      %v711 = vmax.f32 %v618, 0.0
      %v712 = vmax.f32 %v621, 0.0
      %v713 = vmax.f32 %v624, 0.0
      %v714 = vmax.f32 %v627, 0.0
      %v715 = vmax.f32 %v630, 0.0
      %v716 = vmax.f32 %v633, 0.0
      %v717 = vmax.f32 %v636, 0.0
      %v718 = vmax.f32 %v639, 0.0
      %v719 = vmax.f32 %v642, 0.0
      %v720 = vmax.f32 %v645, 0.0
      %v721 = vmax.f32 %v648, 0.0
      %v722 = vmax.f32 %v651, 0.0
      %v723 = vmax.f32 %v654, 0.0
      %v724 = vmax.f32 %v657, 0.0
      %v725 = vmax.f32 %v660, 0.0
      %v726 = vmax.f32 %v663, 0.0
      %v727 = vmax.f32 %v666, 0.0
      %v728 = vmax.f32 %v669, 0.0
      %v729 = vmax.f32 %v672, 0.0
      %v730 = vmax.f32 %v675, 0.0
      %v731 = vmax.f32 %v678, 0.0
      %v732 = vmax.f32 %v681, 0.0
      %v733 = vmax.f32 %v684, 0.0
      %v734 = vmax.f32 %v687, 0.0
      %v735 = vmax.f32 %v690, 0.0
      %v736 = vmax.f32 %v693, 0.0
      %v737 = vmax.f32 %v696, 0.0
      %v738 = vmax.f32 %v699, 0.0
      %v739 = vmax.f32 %v702, 0.0
      %v740 = vmax.f32 %v705, 0.0
      %v741 = vmax.f32 %v708, 0.0
      %vm742 = vcmp.ne.f32.partialorder %v615, %v615
      %vm743 = vcmp.ne.f32.partialorder %v618, %v618
      %vm744 = vcmp.ne.f32.partialorder %v621, %v621
      %vm745 = vcmp.ne.f32.partialorder %v624, %v624
      %vm746 = vcmp.ne.f32.partialorder %v627, %v627
      %vm747 = vcmp.ne.f32.partialorder %v630, %v630
      %vm748 = vcmp.ne.f32.partialorder %v633, %v633
      %vm749 = vcmp.ne.f32.partialorder %v636, %v636
      %vm750 = vcmp.ne.f32.partialorder %v639, %v639
      %vm751 = vcmp.ne.f32.partialorder %v642, %v642
      %vm752 = vcmp.ne.f32.partialorder %v645, %v645
      %vm753 = vcmp.ne.f32.partialorder %v648, %v648
      %vm754 = vcmp.ne.f32.partialorder %v651, %v651
      %vm755 = vcmp.ne.f32.partialorder %v654, %v654
      %vm756 = vcmp.ne.f32.partialorder %v657, %v657
      %vm757 = vcmp.ne.f32.partialorder %v660, %v660
      %vm758 = vcmp.ne.f32.partialorder %v663, %v663
      %vm759 = vcmp.ne.f32.partialorder %v666, %v666
      %vm760 = vcmp.ne.f32.partialorder %v669, %v669
      %vm761 = vcmp.ne.f32.partialorder %v672, %v672
      %vm762 = vcmp.ne.f32.partialorder %v675, %v675
      %vm763 = vcmp.ne.f32.partialorder %v678, %v678
      %vm764 = vcmp.ne.f32.partialorder %v681, %v681
      %vm765 = vcmp.ne.f32.partialorder %v684, %v684
      %vm766 = vcmp.ne.f32.partialorder %v687, %v687
      %vm767 = vcmp.ne.f32.partialorder %v690, %v690
      %vm768 = vcmp.ne.f32.partialorder %v693, %v693
      %vm769 = vcmp.ne.f32.partialorder %v696, %v696
      %vm770 = vcmp.ne.f32.partialorder %v699, %v699
      %vm771 = vcmp.ne.f32.partialorder %v702, %v702
      %vm772 = vcmp.ne.f32.partialorder %v705, %v705
      %vm773 = vcmp.ne.f32.partialorder %v708, %v708
      %v774 = vadd.f32 %v615, 0.0
      %v775 = vadd.f32 %v618, 0.0
      %v776 = vadd.f32 %v621, 0.0
      %v777 = vadd.f32 %v624, 0.0
      %v778 = vadd.f32 %v627, 0.0
      %v779 = vadd.f32 %v630, 0.0
      %v780 = vadd.f32 %v633, 0.0
      %v781 = vadd.f32 %v636, 0.0
      %v782 = vadd.f32 %v639, 0.0
      %v783 = vadd.f32 %v642, 0.0
      %v784 = vadd.f32 %v645, 0.0
      %v785 = vadd.f32 %v648, 0.0
      %v786 = vadd.f32 %v651, 0.0
      %v787 = vadd.f32 %v654, 0.0
      %v788 = vadd.f32 %v657, 0.0
      %v789 = vadd.f32 %v660, 0.0
      %v790 = vadd.f32 %v663, 0.0
      %v791 = vadd.f32 %v666, 0.0
      %v792 = vadd.f32 %v669, 0.0
      %v793 = vadd.f32 %v672, 0.0
      %v794 = vadd.f32 %v675, 0.0
      %v795 = vadd.f32 %v678, 0.0
      %v796 = vadd.f32 %v681, 0.0
      %v797 = vadd.f32 %v684, 0.0
      %v798 = vadd.f32 %v687, 0.0
      %v799 = vadd.f32 %v690, 0.0
      %v800 = vadd.f32 %v693, 0.0
      %v801 = vadd.f32 %v696, 0.0
      %v802 = vadd.f32 %v699, 0.0
      %v803 = vadd.f32 %v702, 0.0
      %v804 = vadd.f32 %v705, 0.0
      %v805 = vadd.f32 %v708, 0.0
      %v806 = vand.u32 2147483647, %v615
      %v807 = vand.u32 2147483647, %v618
      %v808 = vand.u32 2147483647, %v621
      %v809 = vand.u32 2147483647, %v624
      %v810 = vand.u32 2147483647, %v627
      %v811 = vand.u32 2147483647, %v630
      %v812 = vand.u32 2147483647, %v633
      %v813 = vand.u32 2147483647, %v636
      %v814 = vand.u32 2147483647, %v639
      %v815 = vand.u32 2147483647, %v642
      %v816 = vand.u32 2147483647, %v645
      %v817 = vand.u32 2147483647, %v648
      %v818 = vand.u32 2147483647, %v651
      %v819 = vand.u32 2147483647, %v654
      %v820 = vand.u32 2147483647, %v657
      %v821 = vand.u32 2147483647, %v660
      %v822 = vand.u32 2147483647, %v663
      %v823 = vand.u32 2147483647, %v666
      %v824 = vand.u32 2147483647, %v669
      %v825 = vand.u32 2147483647, %v672
      %v826 = vand.u32 2147483647, %v675
      %v827 = vand.u32 2147483647, %v678
      %v828 = vand.u32 2147483647, %v681
      %v829 = vand.u32 2147483647, %v684
      %v830 = vand.u32 2147483647, %v687
      %v831 = vand.u32 2147483647, %v690
      %v832 = vand.u32 2147483647, %v693
      %v833 = vand.u32 2147483647, %v696
      %v834 = vand.u32 2147483647, %v699
      %v835 = vand.u32 2147483647, %v702
      %v836 = vand.u32 2147483647, %v705
      %v837 = vand.u32 2147483647, %v708
      %v838 = vsub.f32 0.0, %v806
      %v839 = vsub.f32 0.0, %v807
      %v840 = vsub.f32 0.0, %v808
      %v841 = vsub.f32 0.0, %v809
      %v842 = vsub.f32 0.0, %v810
      %v843 = vsub.f32 0.0, %v811
      %v844 = vsub.f32 0.0, %v812
      %v845 = vsub.f32 0.0, %v813
      %v846 = vsub.f32 0.0, %v814
      %v847 = vsub.f32 0.0, %v815
      %v848 = vsub.f32 0.0, %v816
      %v849 = vsub.f32 0.0, %v817
      %v850 = vsub.f32 0.0, %v818
      %v851 = vsub.f32 0.0, %v819
      %v852 = vsub.f32 0.0, %v820
      %v853 = vsub.f32 0.0, %v821
      %v854 = vsub.f32 0.0, %v822
      %v855 = vsub.f32 0.0, %v823
      %v856 = vsub.f32 0.0, %v824
      %v857 = vsub.f32 0.0, %v825
      %v858 = vsub.f32 0.0, %v826
      %v859 = vsub.f32 0.0, %v827
      %v860 = vsub.f32 0.0, %v828
      %v861 = vsub.f32 0.0, %v829
      %v862 = vsub.f32 0.0, %v830
      %v863 = vsub.f32 0.0, %v831
      %v864 = vsub.f32 0.0, %v832
      %v865 = vsub.f32 0.0, %v833
      %v866 = vsub.f32 0.0, %v834
      %v867 = vsub.f32 0.0, %v835
      %v868 = vsub.f32 0.0, %v836
      %v869 = vsub.f32 0.0, %v837
      %v870 = vmul.f32 %v838, 1.442695
      %v871 = vpow.pop %v870
      %v872 = vmul.f32 %v839, 1.442695
      %v873 = vpow.pop %v872
      %v874 = vmul.f32 %v840, 1.442695
      %v875 = vpow.pop %v874
      %v876 = vmul.f32 %v841, 1.442695
      %v877 = vpow.pop %v876
      %v878 = vmul.f32 %v842, 1.442695
      %v879 = vpow.pop %v878
      %v880 = vmul.f32 %v843, 1.442695
      %v881 = vpow.pop %v880
      %v882 = vmul.f32 %v844, 1.442695
      %v883 = vpow.pop %v882
      %v884 = vmul.f32 %v845, 1.442695
      %v885 = vpow.pop %v884
      %v886 = vmul.f32 %v846, 1.442695
      %v887 = vpow.pop %v886
      %v888 = vmul.f32 %v847, 1.442695
      %v889 = vpow.pop %v888
      %v890 = vmul.f32 %v848, 1.442695
      %v891 = vpow.pop %v890
      %v892 = vmul.f32 %v849, 1.442695
      %v893 = vpow.pop %v892
      %v894 = vmul.f32 %v850, 1.442695
      %v895 = vpow.pop %v894
      %v896 = vmul.f32 %v851, 1.442695
      %v897 = vpow.pop %v896
      %v898 = vmul.f32 %v852, 1.442695
      %v899 = vpow.pop %v898
      %v900 = vmul.f32 %v853, 1.442695
      %v901 = vpow.pop %v900
      %v902 = vmul.f32 %v854, 1.442695
      %v903 = vpow.pop %v902
      %v904 = vmul.f32 %v855, 1.442695
      %v905 = vpow.pop %v904
      %v906 = vmul.f32 %v856, 1.442695
      %v907 = vpow.pop %v906
      %v908 = vmul.f32 %v857, 1.442695
      %v909 = vpow.pop %v908
      %v910 = vmul.f32 %v858, 1.442695
      %v911 = vpow.pop %v910
      %v912 = vmul.f32 %v859, 1.442695
      %v913 = vpow.pop %v912
      %v914 = vmul.f32 %v860, 1.442695
      %v915 = vpow.pop %v914
      %v916 = vmul.f32 %v861, 1.442695
      %v917 = vpow.pop %v916
      %v918 = vmul.f32 %v862, 1.442695
      %v919 = vpow.pop %v918
      %v920 = vmul.f32 %v863, 1.442695
      %v921 = vpow.pop %v920
      %v922 = vmul.f32 %v864, 1.442695
      %v923 = vpow.pop %v922
      %v924 = vmul.f32 %v865, 1.442695
      %v925 = vpow.pop %v924
      %v926 = vmul.f32 %v866, 1.442695
      %v927 = vpow.pop %v926
      %v928 = vmul.f32 %v867, 1.442695
      %v929 = vpow.pop %v928
      %v930 = vmul.f32 %v868, 1.442695
      %v931 = vpow.pop %v930
      %v932 = vmul.f32 %v869, 1.442695
      %v933 = vpow.pop %v932
      %v934 = vadd.f32 %v871, 1.0
      %v935 = vlog2.pop %v934
      %v936 = vmul.f32 %v935, 0.6931472
      %v937 = vmul.f32 -0.5, %v871
      %v938 = vadd.f32 %v937, 1.0
      %v939 = vmul.f32 %v938, %v871
      %v940 = vand.u32 2147483647, %v871
      %vm941 = vcmp.lt.f32.partialorder %v940, 0.0004427343
      %v942 = vsel %vm941, %v939, %v936
      %v943 = vadd.f32 %v873, 1.0
      %v944 = vlog2.pop %v943
      %v945 = vmul.f32 %v944, 0.6931472
      %v946 = vmul.f32 -0.5, %v873
      %v947 = vadd.f32 %v946, 1.0
      %v948 = vmul.f32 %v947, %v873
      %v949 = vand.u32 2147483647, %v873
      %vm950 = vcmp.lt.f32.partialorder %v949, 0.0004427343
      %v951 = vsel %vm950, %v948, %v945
      %v952 = vadd.f32 %v875, 1.0
      %v953 = vlog2.pop %v952
      %v954 = vmul.f32 %v953, 0.6931472
      %v955 = vmul.f32 -0.5, %v875
      %v956 = vadd.f32 %v955, 1.0
      %v957 = vmul.f32 %v956, %v875
      %v958 = vand.u32 2147483647, %v875
      %vm959 = vcmp.lt.f32.partialorder %v958, 0.0004427343
      %v960 = vsel %vm959, %v957, %v954
      %v961 = vadd.f32 %v877, 1.0
      %v962 = vlog2.pop %v961
      %v963 = vmul.f32 %v962, 0.6931472
      %v964 = vmul.f32 -0.5, %v877
      %v965 = vadd.f32 %v964, 1.0
      %v966 = vmul.f32 %v965, %v877
      %v967 = vand.u32 2147483647, %v877
      %vm968 = vcmp.lt.f32.partialorder %v967, 0.0004427343
      %v969 = vsel %vm968, %v966, %v963
      %v970 = vadd.f32 %v879, 1.0
      %v971 = vlog2.pop %v970
      %v972 = vmul.f32 %v971, 0.6931472
      %v973 = vmul.f32 -0.5, %v879
      %v974 = vadd.f32 %v973, 1.0
      %v975 = vmul.f32 %v974, %v879
      %v976 = vand.u32 2147483647, %v879
      %vm977 = vcmp.lt.f32.partialorder %v976, 0.0004427343
      %v978 = vsel %vm977, %v975, %v972
      %v979 = vadd.f32 %v881, 1.0
      %v980 = vlog2.pop %v979
      %v981 = vmul.f32 %v980, 0.6931472
      %v982 = vmul.f32 -0.5, %v881
      %v983 = vadd.f32 %v982, 1.0
      %v984 = vmul.f32 %v983, %v881
      %v985 = vand.u32 2147483647, %v881
      %vm986 = vcmp.lt.f32.partialorder %v985, 0.0004427343
      %v987 = vsel %vm986, %v984, %v981
      %v988 = vadd.f32 %v883, 1.0
      %v989 = vlog2.pop %v988
      %v990 = vmul.f32 %v989, 0.6931472
      %v991 = vmul.f32 -0.5, %v883
      %v992 = vadd.f32 %v991, 1.0
      %v993 = vmul.f32 %v992, %v883
      %v994 = vand.u32 2147483647, %v883
      %vm995 = vcmp.lt.f32.partialorder %v994, 0.0004427343
      %v996 = vsel %vm995, %v993, %v990
      %v997 = vadd.f32 %v885, 1.0
      %v998 = vlog2.pop %v997
      %v999 = vmul.f32 %v998, 0.6931472
      %v1000 = vmul.f32 -0.5, %v885
      %v1001 = vadd.f32 %v1000, 1.0
      %v1002 = vmul.f32 %v1001, %v885
      %v1003 = vand.u32 2147483647, %v885
      %vm1004 = vcmp.lt.f32.partialorder %v1003, 0.0004427343
      %v1005 = vsel %vm1004, %v1002, %v999
      %v1006 = vadd.f32 %v887, 1.0
      %v1007 = vlog2.pop %v1006
      %v1008 = vmul.f32 %v1007, 0.6931472
      %v1009 = vmul.f32 -0.5, %v887
      %v1010 = vadd.f32 %v1009, 1.0
      %v1011 = vmul.f32 %v1010, %v887
      %v1012 = vand.u32 2147483647, %v887
      %vm1013 = vcmp.lt.f32.partialorder %v1012, 0.0004427343
      %v1014 = vsel %vm1013, %v1011, %v1008
      %v1015 = vadd.f32 %v889, 1.0
      %v1016 = vlog2.pop %v1015
      %v1017 = vmul.f32 %v1016, 0.6931472
      %v1018 = vmul.f32 -0.5, %v889
      %v1019 = vadd.f32 %v1018, 1.0
      %v1020 = vmul.f32 %v1019, %v889
      %v1021 = vand.u32 2147483647, %v889
      %vm1022 = vcmp.lt.f32.partialorder %v1021, 0.0004427343
      %v1023 = vsel %vm1022, %v1020, %v1017
      %v1024 = vadd.f32 %v891, 1.0
      %v1025 = vlog2.pop %v1024
      %v1026 = vmul.f32 %v1025, 0.6931472
      %v1027 = vmul.f32 -0.5, %v891
      %v1028 = vadd.f32 %v1027, 1.0
      %v1029 = vmul.f32 %v1028, %v891
      %v1030 = vand.u32 2147483647, %v891
      %vm1031 = vcmp.lt.f32.partialorder %v1030, 0.0004427343
      %v1032 = vsel %vm1031, %v1029, %v1026
      %v1033 = vadd.f32 %v893, 1.0
      %v1034 = vlog2.pop %v1033
      %v1035 = vmul.f32 %v1034, 0.6931472
      %v1036 = vmul.f32 -0.5, %v893
      %v1037 = vadd.f32 %v1036, 1.0
      %v1038 = vmul.f32 %v1037, %v893
      %v1039 = vand.u32 2147483647, %v893
      %vm1040 = vcmp.lt.f32.partialorder %v1039, 0.0004427343
      %v1041 = vsel %vm1040, %v1038, %v1035
      %v1042 = vadd.f32 %v895, 1.0
      %v1043 = vlog2.pop %v1042
      %v1044 = vmul.f32 %v1043, 0.6931472
      %v1045 = vmul.f32 -0.5, %v895
      %v1046 = vadd.f32 %v1045, 1.0
      %v1047 = vmul.f32 %v1046, %v895
      %v1048 = vand.u32 2147483647, %v895
      %vm1049 = vcmp.lt.f32.partialorder %v1048, 0.0004427343
      %v1050 = vsel %vm1049, %v1047, %v1044
      %v1051 = vadd.f32 %v897, 1.0
      %v1052 = vlog2.pop %v1051
      %v1053 = vmul.f32 %v1052, 0.6931472
      %v1054 = vmul.f32 -0.5, %v897
      %v1055 = vadd.f32 %v1054, 1.0
      %v1056 = vmul.f32 %v1055, %v897
      %v1057 = vand.u32 2147483647, %v897
      %vm1058 = vcmp.lt.f32.partialorder %v1057, 0.0004427343
      %v1059 = vsel %vm1058, %v1056, %v1053
      %v1060 = vadd.f32 %v899, 1.0
      %v1061 = vlog2.pop %v1060
      %v1062 = vmul.f32 %v1061, 0.6931472
      %v1063 = vmul.f32 -0.5, %v899
      %v1064 = vadd.f32 %v1063, 1.0
      %v1065 = vmul.f32 %v1064, %v899
      %v1066 = vand.u32 2147483647, %v899
      %vm1067 = vcmp.lt.f32.partialorder %v1066, 0.0004427343
      %v1068 = vsel %vm1067, %v1065, %v1062
      %v1069 = vadd.f32 %v901, 1.0
      %v1070 = vlog2.pop %v1069
      %v1071 = vmul.f32 %v1070, 0.6931472
      %v1072 = vmul.f32 -0.5, %v901
      %v1073 = vadd.f32 %v1072, 1.0
      %v1074 = vmul.f32 %v1073, %v901
      %v1075 = vand.u32 2147483647, %v901
      %vm1076 = vcmp.lt.f32.partialorder %v1075, 0.0004427343
      %v1077 = vsel %vm1076, %v1074, %v1071
      %v1078 = vadd.f32 %v903, 1.0
      %v1079 = vlog2.pop %v1078
      %v1080 = vmul.f32 %v1079, 0.6931472
      %v1081 = vmul.f32 -0.5, %v903
      %v1082 = vadd.f32 %v1081, 1.0
      %v1083 = vmul.f32 %v1082, %v903
      %v1084 = vand.u32 2147483647, %v903
      %vm1085 = vcmp.lt.f32.partialorder %v1084, 0.0004427343
      %v1086 = vsel %vm1085, %v1083, %v1080
      %v1087 = vadd.f32 %v905, 1.0
      %v1088 = vlog2.pop %v1087
      %v1089 = vmul.f32 %v1088, 0.6931472
      %v1090 = vmul.f32 -0.5, %v905
      %v1091 = vadd.f32 %v1090, 1.0
      %v1092 = vmul.f32 %v1091, %v905
      %v1093 = vand.u32 2147483647, %v905
      %vm1094 = vcmp.lt.f32.partialorder %v1093, 0.0004427343
      %v1095 = vsel %vm1094, %v1092, %v1089
      %v1096 = vadd.f32 %v907, 1.0
      %v1097 = vlog2.pop %v1096
      %v1098 = vmul.f32 %v1097, 0.6931472
      %v1099 = vmul.f32 -0.5, %v907
      %v1100 = vadd.f32 %v1099, 1.0
      %v1101 = vmul.f32 %v1100, %v907
      %v1102 = vand.u32 2147483647, %v907
      %vm1103 = vcmp.lt.f32.partialorder %v1102, 0.0004427343
      %v1104 = vsel %vm1103, %v1101, %v1098
      %v1105 = vadd.f32 %v909, 1.0
      %v1106 = vlog2.pop %v1105
      %v1107 = vmul.f32 %v1106, 0.6931472
      %v1108 = vmul.f32 -0.5, %v909
      %v1109 = vadd.f32 %v1108, 1.0
      %v1110 = vmul.f32 %v1109, %v909
      %v1111 = vand.u32 2147483647, %v909
      %vm1112 = vcmp.lt.f32.partialorder %v1111, 0.0004427343
      %v1113 = vsel %vm1112, %v1110, %v1107
      %v1114 = vadd.f32 %v911, 1.0
      %v1115 = vlog2.pop %v1114
      %v1116 = vmul.f32 %v1115, 0.6931472
      %v1117 = vmul.f32 -0.5, %v911
      %v1118 = vadd.f32 %v1117, 1.0
      %v1119 = vmul.f32 %v1118, %v911
      %v1120 = vand.u32 2147483647, %v911
      %vm1121 = vcmp.lt.f32.partialorder %v1120, 0.0004427343
      %v1122 = vsel %vm1121, %v1119, %v1116
      %v1123 = vadd.f32 %v913, 1.0
      %v1124 = vlog2.pop %v1123
      %v1125 = vmul.f32 %v1124, 0.6931472
      %v1126 = vmul.f32 -0.5, %v913
      %v1127 = vadd.f32 %v1126, 1.0
      %v1128 = vmul.f32 %v1127, %v913
      %v1129 = vand.u32 2147483647, %v913
      %vm1130 = vcmp.lt.f32.partialorder %v1129, 0.0004427343
      %v1131 = vsel %vm1130, %v1128, %v1125
      %v1132 = vadd.f32 %v915, 1.0
      %v1133 = vlog2.pop %v1132
      %v1134 = vmul.f32 %v1133, 0.6931472
      %v1135 = vmul.f32 -0.5, %v915
      %v1136 = vadd.f32 %v1135, 1.0
      %v1137 = vmul.f32 %v1136, %v915
      %v1138 = vand.u32 2147483647, %v915
      %vm1139 = vcmp.lt.f32.partialorder %v1138, 0.0004427343
      %v1140 = vsel %vm1139, %v1137, %v1134
      %v1141 = vadd.f32 %v917, 1.0
      %v1142 = vlog2.pop %v1141
      %v1143 = vmul.f32 %v1142, 0.6931472
      %v1144 = vmul.f32 -0.5, %v917
      %v1145 = vadd.f32 %v1144, 1.0
      %v1146 = vmul.f32 %v1145, %v917
      %v1147 = vand.u32 2147483647, %v917
      %vm1148 = vcmp.lt.f32.partialorder %v1147, 0.0004427343
      %v1149 = vsel %vm1148, %v1146, %v1143
      %v1150 = vadd.f32 %v919, 1.0
      %v1151 = vlog2.pop %v1150
      %v1152 = vmul.f32 %v1151, 0.6931472
      %v1153 = vmul.f32 -0.5, %v919
      %v1154 = vadd.f32 %v1153, 1.0
      %v1155 = vmul.f32 %v1154, %v919
      %v1156 = vand.u32 2147483647, %v919
      %vm1157 = vcmp.lt.f32.partialorder %v1156, 0.0004427343
      %v1158 = vsel %vm1157, %v1155, %v1152
      %v1159 = vadd.f32 %v921, 1.0
      %v1160 = vlog2.pop %v1159
      %v1161 = vmul.f32 %v1160, 0.6931472
      %v1162 = vmul.f32 -0.5, %v921
      %v1163 = vadd.f32 %v1162, 1.0
      %v1164 = vmul.f32 %v1163, %v921
      %v1165 = vand.u32 2147483647, %v921
      %vm1166 = vcmp.lt.f32.partialorder %v1165, 0.0004427343
      %v1167 = vsel %vm1166, %v1164, %v1161
      %v1168 = vadd.f32 %v923, 1.0
      %v1169 = vlog2.pop %v1168
      %v1170 = vmul.f32 %v1169, 0.6931472
      %v1171 = vmul.f32 -0.5, %v923
      %v1172 = vadd.f32 %v1171, 1.0
      %v1173 = vmul.f32 %v1172, %v923
      %v1174 = vand.u32 2147483647, %v923
      %vm1175 = vcmp.lt.f32.partialorder %v1174, 0.0004427343
      %v1176 = vsel %vm1175, %v1173, %v1170
      %v1177 = vadd.f32 %v925, 1.0
      %v1178 = vlog2.pop %v1177
      %v1179 = vmul.f32 %v1178, 0.6931472
      %v1180 = vmul.f32 -0.5, %v925
      %v1181 = vadd.f32 %v1180, 1.0
      %v1182 = vmul.f32 %v1181, %v925
      %v1183 = vand.u32 2147483647, %v925
      %vm1184 = vcmp.lt.f32.partialorder %v1183, 0.0004427343
      %v1185 = vsel %vm1184, %v1182, %v1179
      %v1186 = vadd.f32 %v927, 1.0
      %v1187 = vlog2.pop %v1186
      %v1188 = vmul.f32 %v1187, 0.6931472
      %v1189 = vmul.f32 -0.5, %v927
      %v1190 = vadd.f32 %v1189, 1.0
      %v1191 = vmul.f32 %v1190, %v927
      %v1192 = vand.u32 2147483647, %v927
      %vm1193 = vcmp.lt.f32.partialorder %v1192, 0.0004427343
      %v1194 = vsel %vm1193, %v1191, %v1188
      %v1195 = vadd.f32 %v929, 1.0
      %v1196 = vlog2.pop %v1195
      %v1197 = vmul.f32 %v1196, 0.6931472
      %v1198 = vmul.f32 -0.5, %v929
      %v1199 = vadd.f32 %v1198, 1.0
      %v1200 = vmul.f32 %v1199, %v929
      %v1201 = vand.u32 2147483647, %v929
      %vm1202 = vcmp.lt.f32.partialorder %v1201, 0.0004427343
      %v1203 = vsel %vm1202, %v1200, %v1197
      %v1204 = vadd.f32 %v931, 1.0
      %v1205 = vlog2.pop %v1204
      %v1206 = vmul.f32 %v1205, 0.6931472
      %v1207 = vmul.f32 -0.5, %v931
      %v1208 = vadd.f32 %v1207, 1.0
      %v1209 = vmul.f32 %v1208, %v931
      %v1210 = vand.u32 2147483647, %v931
      %vm1211 = vcmp.lt.f32.partialorder %v1210, 0.0004427343
      %v1212 = vsel %vm1211, %v1209, %v1206
      %v1213 = vadd.f32 %v933, 1.0
      %v1214 = vlog2.pop %v1213
      %v1215 = vmul.f32 %v1214, 0.6931472
      %v1216 = vmul.f32 -0.5, %v933
      %v1217 = vadd.f32 %v1216, 1.0
      %v1218 = vmul.f32 %v1217, %v933
      %v1219 = vand.u32 2147483647, %v933
      %vm1220 = vcmp.lt.f32.partialorder %v1219, 0.0004427343
      %v1221 = vsel %vm1220, %v1218, %v1215
      %v1222 = vadd.f32 %v710, %v942
      %v1223 = vadd.f32 %v711, %v951
      %v1224 = vadd.f32 %v712, %v960
      %v1225 = vadd.f32 %v713, %v969
      %v1226 = vadd.f32 %v714, %v978
      %v1227 = vadd.f32 %v715, %v987
      %v1228 = vadd.f32 %v716, %v996
      %v1229 = vadd.f32 %v717, %v1005
      %v1230 = vadd.f32 %v718, %v1014
      %v1231 = vadd.f32 %v719, %v1023
      %v1232 = vadd.f32 %v720, %v1032
      %v1233 = vadd.f32 %v721, %v1041
      %v1234 = vadd.f32 %v722, %v1050
      %v1235 = vadd.f32 %v723, %v1059
      %v1236 = vadd.f32 %v724, %v1068
      %v1237 = vadd.f32 %v725, %v1077
      %v1238 = vadd.f32 %v726, %v1086
      %v1239 = vadd.f32 %v727, %v1095
      %v1240 = vadd.f32 %v728, %v1104
      %v1241 = vadd.f32 %v729, %v1113
      %v1242 = vadd.f32 %v730, %v1122
      %v1243 = vadd.f32 %v731, %v1131
      %v1244 = vadd.f32 %v732, %v1140
      %v1245 = vadd.f32 %v733, %v1149
      %v1246 = vadd.f32 %v734, %v1158
      %v1247 = vadd.f32 %v735, %v1167
      %v1248 = vadd.f32 %v736, %v1176
      %v1249 = vadd.f32 %v737, %v1185
      %v1250 = vadd.f32 %v738, %v1194
      %v1251 = vadd.f32 %v739, %v1203
      %v1252 = vadd.f32 %v740, %v1212
      %v1253 = vadd.f32 %v741, %v1221
      %v1254 = vsel %vm742, %v774, %v1222
      %v1255 = vsel %vm743, %v775, %v1223
      %v1256 = vsel %vm744, %v776, %v1224
      %v1257 = vsel %vm745, %v777, %v1225
      %v1258 = vsel %vm746, %v778, %v1226
      %v1259 = vsel %vm747, %v779, %v1227
      %v1260 = vsel %vm748, %v780, %v1228
      %v1261 = vsel %vm749, %v781, %v1229
      %v1262 = vsel %vm750, %v782, %v1230
      %v1263 = vsel %vm751, %v783, %v1231
      %v1264 = vsel %vm752, %v784, %v1232
      %v1265 = vsel %vm753, %v785, %v1233
      %v1266 = vsel %vm754, %v786, %v1234
      %v1267 = vsel %vm755, %v787, %v1235
      %v1268 = vsel %vm756, %v788, %v1236
      %v1269 = vsel %vm757, %v789, %v1237
      %v1270 = vsel %vm758, %v790, %v1238
      %v1271 = vsel %vm759, %v791, %v1239
      %v1272 = vsel %vm760, %v792, %v1240
      %v1273 = vsel %vm761, %v793, %v1241
      %v1274 = vsel %vm762, %v794, %v1242
      %v1275 = vsel %vm763, %v795, %v1243
      %v1276 = vsel %vm764, %v796, %v1244
      %v1277 = vsel %vm765, %v797, %v1245
      %v1278 = vsel %vm766, %v798, %v1246
      %v1279 = vsel %vm767, %v799, %v1247
      %v1280 = vsel %vm768, %v800, %v1248
      %v1281 = vsel %vm769, %v801, %v1249
      %v1282 = vsel %vm770, %v802, %v1250
      %v1283 = vsel %vm771, %v803, %v1251
      %v1284 = vsel %vm772, %v804, %v1252
      %v1285 = vsel %vm773, %v805, %v1253
      %v1286 = vmul.f32 %v1254, %v333
      %v1287 = vmul.f32 %v1255, %v334
      %v1288 = vmul.f32 %v1256, %v335
      %v1289 = vmul.f32 %v1257, %v336
      %v1290 = vmul.f32 %v1258, %v337
      %v1291 = vmul.f32 %v1259, %v338
      %v1292 = vmul.f32 %v1260, %v339
      %v1293 = vmul.f32 %v1261, %v340
      %v1294 = vmul.f32 %v1262, %v341
      %v1295 = vmul.f32 %v1263, %v342
      %v1296 = vmul.f32 %v1264, %v343
      %v1297 = vmul.f32 %v1265, %v344
      %v1298 = vmul.f32 %v1266, %v345
      %v1299 = vmul.f32 %v1267, %v346
      %v1300 = vmul.f32 %v1268, %v347
      %v1301 = vmul.f32 %v1269, %v348
      %v1302 = vmul.f32 %v1270, %v349
      %v1303 = vmul.f32 %v1271, %v350
      %v1304 = vmul.f32 %v1272, %v351
      %v1305 = vmul.f32 %v1273, %v352
      %v1306 = vmul.f32 %v1274, %v353
      %v1307 = vmul.f32 %v1275, %v354
      %v1308 = vmul.f32 %v1276, %v355
      %v1309 = vmul.f32 %v1277, %v356
      %v1310 = vmul.f32 %v1278, %v357
      %v1311 = vmul.f32 %v1279, %v358
      %v1312 = vmul.f32 %v1280, %v359
      %v1313 = vmul.f32 %v1281, %v360
      %v1314 = vmul.f32 %v1282, %v361
      %v1315 = vmul.f32 %v1283, %v362
      %v1316 = vmul.f32 %v1284, %v363
      %v1317 = vmul.f32 %v1285, %v364
      %v1318 = vld [vmem:[%s4] sm:$0xff]
      %v1319 = vmul.f32 %v1254, %v1318
      %v1320 = vmul.f32 %v1255, %v1318
      %v1321 = vmul.f32 %v1256, %v1318
      %v1322 = vmul.f32 %v1257, %v1318
      %v1323 = vmul.f32 %v1258, %v1318
      %v1324 = vmul.f32 %v1259, %v1318
      %v1325 = vmul.f32 %v1260, %v1318
      %v1326 = vmul.f32 %v1261, %v1318
      %v1327 = vmul.f32 %v1262, %v1318
      %v1328 = vmul.f32 %v1263, %v1318
      %v1329 = vmul.f32 %v1264, %v1318
      %v1330 = vmul.f32 %v1265, %v1318
      %v1331 = vmul.f32 %v1266, %v1318
      %v1332 = vmul.f32 %v1267, %v1318
      %v1333 = vmul.f32 %v1268, %v1318
      %v1334 = vmul.f32 %v1269, %v1318
      %v1335 = vmul.f32 %v1270, %v1318
      %v1336 = vmul.f32 %v1271, %v1318
      %v1337 = vmul.f32 %v1272, %v1318
      %v1338 = vmul.f32 %v1273, %v1318
      %v1339 = vmul.f32 %v1274, %v1318
      %v1340 = vmul.f32 %v1275, %v1318
      %v1341 = vmul.f32 %v1276, %v1318
      %v1342 = vmul.f32 %v1277, %v1318
      %v1343 = vmul.f32 %v1278, %v1318
      %v1344 = vmul.f32 %v1279, %v1318
      %v1345 = vmul.f32 %v1280, %v1318
      %v1346 = vmul.f32 %v1281, %v1318
      %v1347 = vmul.f32 %v1282, %v1318
      %v1348 = vmul.f32 %v1283, %v1318
      %v1349 = vmul.f32 %v1284, %v1318
      %v1350 = vmul.f32 %v1285, %v1318
      %v1351 = vmul.f32 %v1319, 1.442695
      %v1352 = vpow.pop %v1351
      %v1353 = vmul.f32 %v1320, 1.442695
      %v1354 = vpow.pop %v1353
      %v1355 = vmul.f32 %v1321, 1.442695
      %v1356 = vpow.pop %v1355
      %v1357 = vmul.f32 %v1322, 1.442695
      %v1358 = vpow.pop %v1357
      %v1359 = vmul.f32 %v1323, 1.442695
      %v1360 = vpow.pop %v1359
      %v1361 = vmul.f32 %v1324, 1.442695
      %v1362 = vpow.pop %v1361
      %v1363 = vmul.f32 %v1325, 1.442695
      %v1364 = vpow.pop %v1363
      %v1365 = vmul.f32 %v1326, 1.442695
      %v1366 = vpow.pop %v1365
      %v1367 = vmul.f32 %v1327, 1.442695
      %v1368 = vpow.pop %v1367
      %v1369 = vmul.f32 %v1328, 1.442695
      %v1370 = vpow.pop %v1369
      %v1371 = vmul.f32 %v1329, 1.442695
      %v1372 = vpow.pop %v1371
      %v1373 = vmul.f32 %v1330, 1.442695
      %v1374 = vpow.pop %v1373
      %v1375 = vmul.f32 %v1331, 1.442695
      %v1376 = vpow.pop %v1375
      %v1377 = vmul.f32 %v1332, 1.442695
      %v1378 = vpow.pop %v1377
      %v1379 = vmul.f32 %v1333, 1.442695
      %v1380 = vpow.pop %v1379
      %v1381 = vmul.f32 %v1334, 1.442695
      %v1382 = vpow.pop %v1381
      %v1383 = vmul.f32 %v1335, 1.442695
      %v1384 = vpow.pop %v1383
      %v1385 = vmul.f32 %v1336, 1.442695
      %v1386 = vpow.pop %v1385
      %v1387 = vmul.f32 %v1337, 1.442695
      %v1388 = vpow.pop %v1387
      %v1389 = vmul.f32 %v1338, 1.442695
      %v1390 = vpow.pop %v1389
      %v1391 = vmul.f32 %v1339, 1.442695
      %v1392 = vpow.pop %v1391
      %v1393 = vmul.f32 %v1340, 1.442695
      %v1394 = vpow.pop %v1393
      %v1395 = vmul.f32 %v1341, 1.442695
      %v1396 = vpow.pop %v1395
      %v1397 = vmul.f32 %v1342, 1.442695
      %v1398 = vpow.pop %v1397
      %v1399 = vmul.f32 %v1343, 1.442695
      %v1400 = vpow.pop %v1399
      %v1401 = vmul.f32 %v1344, 1.442695
      %v1402 = vpow.pop %v1401
      %v1403 = vmul.f32 %v1345, 1.442695
      %v1404 = vpow.pop %v1403
      %v1405 = vmul.f32 %v1346, 1.442695
      %v1406 = vpow.pop %v1405
      %v1407 = vmul.f32 %v1347, 1.442695
      %v1408 = vpow.pop %v1407
      %v1409 = vmul.f32 %v1348, 1.442695
      %v1410 = vpow.pop %v1409
      %v1411 = vmul.f32 %v1349, 1.442695
      %v1412 = vpow.pop %v1411
      %v1413 = vmul.f32 %v1350, 1.442695
      %v1414 = vpow.pop %v1413
      %1415 = vst [vmem:[#allocation2] sm:$0xff] %v1352
      %1416 = vst [vmem:[#allocation2 + $0x8] sm:$0xff] %v1354
      %1417 = vst [vmem:[#allocation2 + $0x10] sm:$0xff] %v1356
      %1418 = vst [vmem:[#allocation2 + $0x18] sm:$0xff] %v1358
      %1419 = vst [vmem:[#allocation2 + $0x20] sm:$0xff] %v1360
      %1420 = vst [vmem:[#allocation2 + $0x28] sm:$0xff] %v1362
      %1421 = vst [vmem:[#allocation2 + $0x30] sm:$0xff] %v1364
      %1422 = vst [vmem:[#allocation2 + $0x38] sm:$0xff] %v1366
      %1423 = vst [vmem:[#allocation2 + $0x40] sm:$0xff] %v1368
      %1424 = vst [vmem:[#allocation2 + $0x48] sm:$0xff] %v1370
      %1425 = vst [vmem:[#allocation2 + $0x50] sm:$0xff] %v1372
      %1426 = vst [vmem:[#allocation2 + $0x58] sm:$0xff] %v1374
      %1427 = vst [vmem:[#allocation2 + $0x60] sm:$0xff] %v1376
      %1428 = vst [vmem:[#allocation2 + $0x68] sm:$0xff] %v1378
      %1429 = vst [vmem:[#allocation2 + $0x70] sm:$0xff] %v1380
      %1430 = vst [vmem:[#allocation2 + $0x78] sm:$0xff] %v1382
      %1431 = vst [vmem:[#allocation2 + $0x80] sm:$0xff] %v1384
      %1432 = vst [vmem:[#allocation2 + $0x88] sm:$0xff] %v1386
      %1433 = vst [vmem:[#allocation2 + $0x90] sm:$0xff] %v1388
      %1434 = vst [vmem:[#allocation2 + $0x98] sm:$0xff] %v1390
      %1435 = vst [vmem:[#allocation2 + $0xa0] sm:$0xff] %v1392
      %1436 = vst [vmem:[#allocation2 + $0xa8] sm:$0xff] %v1394
      %1437 = vst [vmem:[#allocation2 + $0xb0] sm:$0xff] %v1396
      %1438 = vst [vmem:[#allocation2 + $0xb8] sm:$0xff] %v1398
      %1439 = vst [vmem:[#allocation2 + $0xc0] sm:$0xff] %v1400
      %1440 = vst [vmem:[#allocation2 + $0xc8] sm:$0xff] %v1402
      %1441 = vst [vmem:[#allocation2 + $0xd0] sm:$0xff] %v1404
      %1442 = vst [vmem:[#allocation2 + $0xd8] sm:$0xff] %v1406
      %1443 = vst [vmem:[#allocation2 + $0xe0] sm:$0xff] %v1408
      %1444 = vst [vmem:[#allocation2 + $0xe8] sm:$0xff] %v1410
      %1445 = vst [vmem:[#allocation2 + $0xf0] sm:$0xff] %v1412
      %1446 = vst [vmem:[#allocation2 + $0xf8] sm:$0xff] %v1414
      %v1447 = vld [vmem:[%s5] sm:$0xff]
      %v1448 = vld [vmem:[%s5 + $0x8] sm:$0xff]
      %v1449 = vld [vmem:[%s5 + $0x10] sm:$0xff]
      %v1450 = vld [vmem:[%s5 + $0x18] sm:$0xff]
      %v1451 = vld [vmem:[%s5 + $0x20] sm:$0xff]
      %v1452 = vld [vmem:[%s5 + $0x28] sm:$0xff]
      %v1453 = vld [vmem:[%s5 + $0x30] sm:$0xff]
      %v1454 = vld [vmem:[%s5 + $0x38] sm:$0xff]
      %v1455 = vld [vmem:[%s5 + $0x40] sm:$0xff]
      %v1456 = vld [vmem:[%s5 + $0x48] sm:$0xff]
      %v1457 = vld [vmem:[%s5 + $0x50] sm:$0xff]
      %v1458 = vld [vmem:[%s5 + $0x58] sm:$0xff]
      %v1459 = vld [vmem:[%s5 + $0x60] sm:$0xff]
      %v1460 = vld [vmem:[%s5 + $0x68] sm:$0xff]
      %v1461 = vld [vmem:[%s5 + $0x70] sm:$0xff]
      %v1462 = vld [vmem:[%s5 + $0x78] sm:$0xff]
      %1463 = vmatpush.msra.mxu0 %v1462
      %1464 = vmatpush.msra.mxu0 %v1461
      %1465 = vmatpush.msra.mxu0 %v1460
      %1466 = vmatpush.msra.mxu0 %v1459
      %1467 = vmatpush.msra.mxu0 %v1458
      %1468 = vmatpush.msra.mxu0 %v1457
      %1469 = vmatpush.msra.mxu0 %v1456
      %1470 = vmatpush.msra.mxu0 %v1455
      %1471 = vmatpush.msra.mxu0 %v1454
      %1472 = vmatpush.msra.mxu0 %v1453
      %1473 = vmatpush.msra.mxu0 %v1452
      %1474 = vmatpush.msra.mxu0 %v1451
      %1475 = vmatpush.msra.mxu0 %v1450
      %1476 = vmatpush.msra.mxu0 %v1449
      %1477 = vmatpush.msra.mxu0 %v1448
      %1478 = vmatpush.msra.mxu0 %v1447
      %1479 = vmatmul.f32.gmra.mxu0 %v333
      %v1480 = vpop.f32.mrf.mxu0
      %v1481 = vadd.f32 0.0, %v1480
      %1482 = vmatmul.f32.gmra.mxu0 %v334
      %v1483 = vpop.f32.mrf.mxu0
      %v1484 = vadd.f32 0.0, %v1483
      %1485 = vmatmul.f32.gmra.mxu0 %v335
      %v1486 = vpop.f32.mrf.mxu0
      %v1487 = vadd.f32 0.0, %v1486
      %1488 = vmatmul.f32.gmra.mxu0 %v336
      %v1489 = vpop.f32.mrf.mxu0
      %v1490 = vadd.f32 0.0, %v1489
      %1491 = vmatmul.f32.gmra.mxu0 %v337
      %v1492 = vpop.f32.mrf.mxu0
      %v1493 = vadd.f32 0.0, %v1492
      %1494 = vmatmul.f32.gmra.mxu0 %v338
      %v1495 = vpop.f32.mrf.mxu0
      %v1496 = vadd.f32 0.0, %v1495
      %1497 = vmatmul.f32.gmra.mxu0 %v339
      %v1498 = vpop.f32.mrf.mxu0
      %v1499 = vadd.f32 0.0, %v1498
      %1500 = vmatmul.f32.gmra.mxu0 %v340
      %v1501 = vpop.f32.mrf.mxu0
      %v1502 = vadd.f32 0.0, %v1501
      %1503 = vmatmul.f32.gmra.mxu0 %v341
      %v1504 = vpop.f32.mrf.mxu0
      %v1505 = vadd.f32 0.0, %v1504
      %1506 = vmatmul.f32.gmra.mxu0 %v342
      %v1507 = vpop.f32.mrf.mxu0
      %v1508 = vadd.f32 0.0, %v1507
      %1509 = vmatmul.f32.gmra.mxu0 %v343
      %v1510 = vpop.f32.mrf.mxu0
      %v1511 = vadd.f32 0.0, %v1510
      %1512 = vmatmul.f32.gmra.mxu0 %v344
      %v1513 = vpop.f32.mrf.mxu0
      %v1514 = vadd.f32 0.0, %v1513
      %1515 = vmatmul.f32.gmra.mxu0 %v345
      %v1516 = vpop.f32.mrf.mxu0
      %v1517 = vadd.f32 0.0, %v1516
      %1518 = vmatmul.f32.gmra.mxu0 %v346
      %v1519 = vpop.f32.mrf.mxu0
      %v1520 = vadd.f32 0.0, %v1519
      %1521 = vmatmul.f32.gmra.mxu0 %v347
      %v1522 = vpop.f32.mrf.mxu0
      %v1523 = vadd.f32 0.0, %v1522
      %1524 = vmatmul.f32.gmra.mxu0 %v348
      %v1525 = vpop.f32.mrf.mxu0
      %v1526 = vadd.f32 0.0, %v1525
      %1527 = vmatmul.f32.gmra.mxu0 %v349
      %v1528 = vpop.f32.mrf.mxu0
      %v1529 = vadd.f32 0.0, %v1528
      %1530 = vmatmul.f32.gmra.mxu0 %v350
      %v1531 = vpop.f32.mrf.mxu0
      %v1532 = vadd.f32 0.0, %v1531
      %1533 = vmatmul.f32.gmra.mxu0 %v351
      %v1534 = vpop.f32.mrf.mxu0
      %v1535 = vadd.f32 0.0, %v1534
      %1536 = vmatmul.f32.gmra.mxu0 %v352
      %v1537 = vpop.f32.mrf.mxu0
      %v1538 = vadd.f32 0.0, %v1537
      %1539 = vmatmul.f32.gmra.mxu0 %v353
      %v1540 = vpop.f32.mrf.mxu0
      %v1541 = vadd.f32 0.0, %v1540
      %1542 = vmatmul.f32.gmra.mxu0 %v354
      %v1543 = vpop.f32.mrf.mxu0
      %v1544 = vadd.f32 0.0, %v1543
      %1545 = vmatmul.f32.gmra.mxu0 %v355
      %v1546 = vpop.f32.mrf.mxu0
      %v1547 = vadd.f32 0.0, %v1546
      %1548 = vmatmul.f32.gmra.mxu0 %v356
      %v1549 = vpop.f32.mrf.mxu0
      %v1550 = vadd.f32 0.0, %v1549
      %1551 = vmatmul.f32.gmra.mxu0 %v357
      %v1552 = vpop.f32.mrf.mxu0
      %v1553 = vadd.f32 0.0, %v1552
      %1554 = vmatmul.f32.gmra.mxu0 %v358
      %v1555 = vpop.f32.mrf.mxu0
      %v1556 = vadd.f32 0.0, %v1555
      %1557 = vmatmul.f32.gmra.mxu0 %v359
      %v1558 = vpop.f32.mrf.mxu0
      %v1559 = vadd.f32 0.0, %v1558
      %1560 = vmatmul.f32.gmra.mxu0 %v360
      %v1561 = vpop.f32.mrf.mxu0
      %v1562 = vadd.f32 0.0, %v1561
      %1563 = vmatmul.f32.gmra.mxu0 %v361
      %v1564 = vpop.f32.mrf.mxu0
      %v1565 = vadd.f32 0.0, %v1564
      %1566 = vmatmul.f32.gmra.mxu0 %v362
      %v1567 = vpop.f32.mrf.mxu0
      %v1568 = vadd.f32 0.0, %v1567
      %1569 = vmatmul.f32.gmra.mxu0 %v363
      %v1570 = vpop.f32.mrf.mxu0
      %v1571 = vadd.f32 0.0, %v1570
      %1572 = vmatmul.f32.gmra.mxu0 %v364
      %v1573 = vpop.f32.mrf.mxu0
      %v1574 = vadd.f32 0.0, %v1573
      %1575 = vdwg.mxu0
      %v1576 = vld [vmem:[%s7] sm:$0xff]
      %v1577 = vmul.f32 %v1481, %v1576
      %v1578 = vmul.f32 %v1484, %v1576
      %v1579 = vmul.f32 %v1487, %v1576
      %v1580 = vmul.f32 %v1490, %v1576
      %v1581 = vmul.f32 %v1493, %v1576
      %v1582 = vmul.f32 %v1496, %v1576
      %v1583 = vmul.f32 %v1499, %v1576
      %v1584 = vmul.f32 %v1502, %v1576
      %v1585 = vmul.f32 %v1505, %v1576
      %v1586 = vmul.f32 %v1508, %v1576
      %v1587 = vmul.f32 %v1511, %v1576
      %v1588 = vmul.f32 %v1514, %v1576
      %v1589 = vmul.f32 %v1517, %v1576
      %v1590 = vmul.f32 %v1520, %v1576
      %v1591 = vmul.f32 %v1523, %v1576
      %v1592 = vmul.f32 %v1526, %v1576
      %v1593 = vmul.f32 %v1529, %v1576
      %v1594 = vmul.f32 %v1532, %v1576
      %v1595 = vmul.f32 %v1535, %v1576
      %v1596 = vmul.f32 %v1538, %v1576
      %v1597 = vmul.f32 %v1541, %v1576
      %v1598 = vmul.f32 %v1544, %v1576
      %v1599 = vmul.f32 %v1547, %v1576
      %v1600 = vmul.f32 %v1550, %v1576
      %v1601 = vmul.f32 %v1553, %v1576
      %v1602 = vmul.f32 %v1556, %v1576
      %v1603 = vmul.f32 %v1559, %v1576
      %v1604 = vmul.f32 %v1562, %v1576
      %v1605 = vmul.f32 %v1565, %v1576
      %v1606 = vmul.f32 %v1568, %v1576
      %v1607 = vmul.f32 %v1571, %v1576
      %v1608 = vmul.f32 %v1574, %v1576
      %v1609 = vld [vmem:[%s8] sm:$0xff]
      %v1610 = vld [vmem:[%s8 + $0x8] sm:$0xff]
      %v1612 = vsel %vm500, %v1577, 0
      %v1615 = vsel %vm500, %v1578, 0
      %v1618 = vsel %vm500, %v1579, 0
      %v1621 = vsel %vm500, %v1580, 0
      %v1624 = vsel %vm500, %v1581, 0
      %v1627 = vsel %vm500, %v1582, 0
      %v1630 = vsel %vm500, %v1583, 0
      %v1633 = vsel %vm500, %v1584, 0
      %v1636 = vsel %vm500, %v1585, 0
      %v1639 = vsel %vm500, %v1586, 0
      %v1642 = vsel %vm500, %v1587, 0
      %v1645 = vsel %vm500, %v1588, 0
      %v1648 = vsel %vm500, %v1589, 0
      %v1651 = vsel %vm500, %v1590, 0
      %v1654 = vsel %vm500, %v1591, 0
      %v1657 = vsel %vm500, %v1592, 0
      %v1660 = vsel %vm500, %v1593, 0
      %v1663 = vsel %vm500, %v1594, 0
      %v1666 = vsel %vm500, %v1595, 0
      %v1669 = vsel %vm500, %v1596, 0
      %v1672 = vsel %vm500, %v1597, 0
      %v1675 = vsel %vm500, %v1598, 0
      %v1678 = vsel %vm500, %v1599, 0
      %v1681 = vsel %vm500, %v1600, 0
      %v1684 = vsel %vm500, %v1601, 0
      %v1687 = vsel %vm500, %v1602, 0
      %v1690 = vsel %vm500, %v1603, 0
      %v1693 = vsel %vm500, %v1604, 0
      %v1696 = vsel %vm500, %v1605, 0
      %v1699 = vsel %vm500, %v1606, 0
      %v1702 = vsel %vm500, %v1607, 0
      %v1705 = vsel %vm500, %v1608, 0
      %1707 = vmatpush.msra.mxu0 0.0
      %1708 = vmatpush.msra.mxu0 0.0
      %1709 = vmatpush.msra.mxu0 0.0
      %1710 = vmatpush.msra.mxu0 0.0
      %1711 = vmatpush.msra.mxu0 0.0
      %1712 = vmatpush.msra.mxu0 0.0
      %1713 = vmatpush.msra.mxu0 0.0
      %1714 = vmatpush.msra.mxu0 0.0
      %1715 = vmatpush.msra.mxu0 0.0
      %1716 = vmatpush.msra.mxu0 0.0
      %1717 = vmatpush.msra.mxu0 0.0
      %1718 = vmatpush.msra.mxu0 0.0
      %1719 = vmatpush.msra.mxu0 0.0
      %1720 = vmatpush.msra.mxu0 0.0
      %1721 = vmatpush.msra.mxu0 %v1610
      %1722 = vmatpush.msra.mxu0 %v1609
      %1723 = vmatmul.f32.gmra.mxu0 %v1612
      %v1724 = vpop.f32.mrf.mxu0
      %v1725 = vadd.f32 0.0, %v1724
      %1726 = vmatmul.f32.gmra.mxu0 %v1615
      %v1727 = vpop.f32.mrf.mxu0
      %v1728 = vadd.f32 0.0, %v1727
      %1729 = vmatmul.f32.gmra.mxu0 %v1618
      %v1730 = vpop.f32.mrf.mxu0
      %v1731 = vadd.f32 0.0, %v1730
      %1732 = vmatmul.f32.gmra.mxu0 %v1621
      %v1733 = vpop.f32.mrf.mxu0
      %v1734 = vadd.f32 0.0, %v1733
      %1735 = vmatmul.f32.gmra.mxu0 %v1624
      %v1736 = vpop.f32.mrf.mxu0
      %v1737 = vadd.f32 0.0, %v1736
      %1738 = vmatmul.f32.gmra.mxu0 %v1627
      %v1739 = vpop.f32.mrf.mxu0
      %v1740 = vadd.f32 0.0, %v1739
      %1741 = vmatmul.f32.gmra.mxu0 %v1630
      %v1742 = vpop.f32.mrf.mxu0
      %v1743 = vadd.f32 0.0, %v1742
      %1744 = vmatmul.f32.gmra.mxu0 %v1633
      %v1745 = vpop.f32.mrf.mxu0
      %v1746 = vadd.f32 0.0, %v1745
      %1747 = vmatmul.f32.gmra.mxu0 %v1636
      %v1748 = vpop.f32.mrf.mxu0
      %v1749 = vadd.f32 0.0, %v1748
      %1750 = vmatmul.f32.gmra.mxu0 %v1639
      %v1751 = vpop.f32.mrf.mxu0
      %v1752 = vadd.f32 0.0, %v1751
      %1753 = vmatmul.f32.gmra.mxu0 %v1642
      %v1754 = vpop.f32.mrf.mxu0
      %v1755 = vadd.f32 0.0, %v1754
      %1756 = vmatmul.f32.gmra.mxu0 %v1645
      %v1757 = vpop.f32.mrf.mxu0
      %v1758 = vadd.f32 0.0, %v1757
      %1759 = vmatmul.f32.gmra.mxu0 %v1648
      %v1760 = vpop.f32.mrf.mxu0
      %v1761 = vadd.f32 0.0, %v1760
      %1762 = vmatmul.f32.gmra.mxu0 %v1651
      %v1763 = vpop.f32.mrf.mxu0
      %v1764 = vadd.f32 0.0, %v1763
      %1765 = vmatmul.f32.gmra.mxu0 %v1654
      %v1766 = vpop.f32.mrf.mxu0
      %v1767 = vadd.f32 0.0, %v1766
      %1768 = vmatmul.f32.gmra.mxu0 %v1657
      %v1769 = vpop.f32.mrf.mxu0
      %v1770 = vadd.f32 0.0, %v1769
      %1771 = vmatmul.f32.gmra.mxu0 %v1660
      %v1772 = vpop.f32.mrf.mxu0
      %v1773 = vadd.f32 0.0, %v1772
      %1774 = vmatmul.f32.gmra.mxu0 %v1663
      %v1775 = vpop.f32.mrf.mxu0
      %v1776 = vadd.f32 0.0, %v1775
      %1777 = vmatmul.f32.gmra.mxu0 %v1666
      %v1778 = vpop.f32.mrf.mxu0
      %v1779 = vadd.f32 0.0, %v1778
      %1780 = vmatmul.f32.gmra.mxu0 %v1669
      %v1781 = vpop.f32.mrf.mxu0
      %v1782 = vadd.f32 0.0, %v1781
      %1783 = vmatmul.f32.gmra.mxu0 %v1672
      %v1784 = vpop.f32.mrf.mxu0
      %v1785 = vadd.f32 0.0, %v1784
      %1786 = vmatmul.f32.gmra.mxu0 %v1675
      %v1787 = vpop.f32.mrf.mxu0
      %v1788 = vadd.f32 0.0, %v1787
      %1789 = vmatmul.f32.gmra.mxu0 %v1678
      %v1790 = vpop.f32.mrf.mxu0
      %v1791 = vadd.f32 0.0, %v1790
      %1792 = vmatmul.f32.gmra.mxu0 %v1681
      %v1793 = vpop.f32.mrf.mxu0
      %v1794 = vadd.f32 0.0, %v1793
      %1795 = vmatmul.f32.gmra.mxu0 %v1684
      %v1796 = vpop.f32.mrf.mxu0
      %v1797 = vadd.f32 0.0, %v1796
      %1798 = vmatmul.f32.gmra.mxu0 %v1687
      %v1799 = vpop.f32.mrf.mxu0
      %v1800 = vadd.f32 0.0, %v1799
      %1801 = vmatmul.f32.gmra.mxu0 %v1690
      %v1802 = vpop.f32.mrf.mxu0
      %v1803 = vadd.f32 0.0, %v1802
      %1804 = vmatmul.f32.gmra.mxu0 %v1693
      %v1805 = vpop.f32.mrf.mxu0
      %v1806 = vadd.f32 0.0, %v1805
      %1807 = vmatmul.f32.gmra.mxu0 %v1696
      %v1808 = vpop.f32.mrf.mxu0
      %v1809 = vadd.f32 0.0, %v1808
      %1810 = vmatmul.f32.gmra.mxu0 %v1699
      %v1811 = vpop.f32.mrf.mxu0
      %v1812 = vadd.f32 0.0, %v1811
      %1813 = vmatmul.f32.gmra.mxu0 %v1702
      %v1814 = vpop.f32.mrf.mxu0
      %v1815 = vadd.f32 0.0, %v1814
      %1816 = vmatmul.f32.gmra.mxu0 %v1705
      %v1817 = vpop.f32.mrf.mxu0
      %v1818 = vadd.f32 0.0, %v1817
      %1819 = vdwg.mxu0
      %v1820 = vmul.f32 %v1286, %v1725
      %v1821 = vmul.f32 %v1287, %v1728
      %v1822 = vmul.f32 %v1288, %v1731
      %v1823 = vmul.f32 %v1289, %v1734
      %v1824 = vmul.f32 %v1290, %v1737
      %v1825 = vmul.f32 %v1291, %v1740
      %v1826 = vmul.f32 %v1292, %v1743
      %v1827 = vmul.f32 %v1293, %v1746
      %v1828 = vmul.f32 %v1294, %v1749
      %v1829 = vmul.f32 %v1295, %v1752
      %v1830 = vmul.f32 %v1296, %v1755
      %v1831 = vmul.f32 %v1297, %v1758
      %v1832 = vmul.f32 %v1298, %v1761
      %v1833 = vmul.f32 %v1299, %v1764
      %v1834 = vmul.f32 %v1300, %v1767
      %v1835 = vmul.f32 %v1301, %v1770
      %v1836 = vmul.f32 %v1302, %v1773
      %v1837 = vmul.f32 %v1303, %v1776
      %v1838 = vmul.f32 %v1304, %v1779
      %v1839 = vmul.f32 %v1305, %v1782
      %v1840 = vmul.f32 %v1306, %v1785
      %v1841 = vmul.f32 %v1307, %v1788
      %v1842 = vmul.f32 %v1308, %v1791
      %v1843 = vmul.f32 %v1309, %v1794
      %v1844 = vmul.f32 %v1310, %v1797
      %v1845 = vmul.f32 %v1311, %v1800
      %v1846 = vmul.f32 %v1312, %v1803
      %v1847 = vmul.f32 %v1313, %v1806
      %v1848 = vmul.f32 %v1314, %v1809
      %v1849 = vmul.f32 %v1315, %v1812
      %v1850 = vmul.f32 %v1316, %v1815
      %v1851 = vmul.f32 %v1317, %v1818
      %1852 = vst [vmem:[#allocation3] sm:$0xff] %v1820
      %1853 = vst [vmem:[#allocation3 + $0x8] sm:$0xff] %v1821
      %1854 = vst [vmem:[#allocation3 + $0x10] sm:$0xff] %v1822
      %1855 = vst [vmem:[#allocation3 + $0x18] sm:$0xff] %v1823
      %1856 = vst [vmem:[#allocation3 + $0x20] sm:$0xff] %v1824
      %1857 = vst [vmem:[#allocation3 + $0x28] sm:$0xff] %v1825
      %1858 = vst [vmem:[#allocation3 + $0x30] sm:$0xff] %v1826
      %1859 = vst [vmem:[#allocation3 + $0x38] sm:$0xff] %v1827
      %1860 = vst [vmem:[#allocation3 + $0x40] sm:$0xff] %v1828
      %1861 = vst [vmem:[#allocation3 + $0x48] sm:$0xff] %v1829
      %1862 = vst [vmem:[#allocation3 + $0x50] sm:$0xff] %v1830
      %1863 = vst [vmem:[#allocation3 + $0x58] sm:$0xff] %v1831
      %1864 = vst [vmem:[#allocation3 + $0x60] sm:$0xff] %v1832
      %1865 = vst [vmem:[#allocation3 + $0x68] sm:$0xff] %v1833
      %1866 = vst [vmem:[#allocation3 + $0x70] sm:$0xff] %v1834
      %1867 = vst [vmem:[#allocation3 + $0x78] sm:$0xff] %v1835
      %1868 = vst [vmem:[#allocation3 + $0x80] sm:$0xff] %v1836
      %1869 = vst [vmem:[#allocation3 + $0x88] sm:$0xff] %v1837
      %1870 = vst [vmem:[#allocation3 + $0x90] sm:$0xff] %v1838
      %1871 = vst [vmem:[#allocation3 + $0x98] sm:$0xff] %v1839
      %1872 = vst [vmem:[#allocation3 + $0xa0] sm:$0xff] %v1840
      %1873 = vst [vmem:[#allocation3 + $0xa8] sm:$0xff] %v1841
      %1874 = vst [vmem:[#allocation3 + $0xb0] sm:$0xff] %v1842
      %1875 = vst [vmem:[#allocation3 + $0xb8] sm:$0xff] %v1843
      %1876 = vst [vmem:[#allocation3 + $0xc0] sm:$0xff] %v1844
      %1877 = vst [vmem:[#allocation3 + $0xc8] sm:$0xff] %v1845
      %1878 = vst [vmem:[#allocation3 + $0xd0] sm:$0xff] %v1846
      %1879 = vst [vmem:[#allocation3 + $0xd8] sm:$0xff] %v1847
      %1880 = vst [vmem:[#allocation3 + $0xe0] sm:$0xff] %v1848
      %1881 = vst [vmem:[#allocation3 + $0xe8] sm:$0xff] %v1849
      %1882 = vst [vmem:[#allocation3 + $0xf0] sm:$0xff] %v1850
      %1883 = vst [vmem:[#allocation3 + $0xf8] sm:$0xff] %v1851
      %v1884 = vld [vmem:[%s6] sm:$0xff]
      %v1885 = vld [vmem:[%s6 + $0x8] sm:$0xff]
      %v1886 = vld [vmem:[%s6 + $0x10] sm:$0xff]
      %v1887 = vld [vmem:[%s6 + $0x18] sm:$0xff]
      %v1888 = vld [vmem:[%s6 + $0x20] sm:$0xff]
      %v1889 = vld [vmem:[%s6 + $0x28] sm:$0xff]
      %v1890 = vld [vmem:[%s6 + $0x30] sm:$0xff]
      %v1891 = vld [vmem:[%s6 + $0x38] sm:$0xff]
      %v1892 = vld [vmem:[%s6 + $0x40] sm:$0xff]
      %v1893 = vld [vmem:[%s6 + $0x48] sm:$0xff]
      %v1894 = vld [vmem:[%s6 + $0x50] sm:$0xff]
      %v1895 = vld [vmem:[%s6 + $0x58] sm:$0xff]
      %v1896 = vld [vmem:[%s6 + $0x60] sm:$0xff]
      %v1897 = vld [vmem:[%s6 + $0x68] sm:$0xff]
      %v1898 = vld [vmem:[%s6 + $0x70] sm:$0xff]
      %v1899 = vld [vmem:[%s6 + $0x78] sm:$0xff]
      %1900 = vmatpush.msra.mxu0 %v1899
      %1901 = vmatpush.msra.mxu0 %v1898
      %1902 = vmatpush.msra.mxu0 %v1897
      %1903 = vmatpush.msra.mxu0 %v1896
      %1904 = vmatpush.msra.mxu0 %v1895
      %1905 = vmatpush.msra.mxu0 %v1894
      %1906 = vmatpush.msra.mxu0 %v1893
      %1907 = vmatpush.msra.mxu0 %v1892
      %1908 = vmatpush.msra.mxu0 %v1891
      %1909 = vmatpush.msra.mxu0 %v1890
      %1910 = vmatpush.msra.mxu0 %v1889
      %1911 = vmatpush.msra.mxu0 %v1888
      %1912 = vmatpush.msra.mxu0 %v1887
      %1913 = vmatpush.msra.mxu0 %v1886
      %1914 = vmatpush.msra.mxu0 %v1885
      %1915 = vmatpush.msra.mxu0 %v1884
      %1916 = vmatmul.f32.gmra.mxu0 %v333
      %v1917 = vpop.f32.mrf.mxu0
      %v1918 = vadd.f32 0.0, %v1917
      %1919 = vmatmul.f32.gmra.mxu0 %v334
      %v1920 = vpop.f32.mrf.mxu0
      %v1921 = vadd.f32 0.0, %v1920
      %1922 = vmatmul.f32.gmra.mxu0 %v335
      %v1923 = vpop.f32.mrf.mxu0
      %v1924 = vadd.f32 0.0, %v1923
      %1925 = vmatmul.f32.gmra.mxu0 %v336
      %v1926 = vpop.f32.mrf.mxu0
      %v1927 = vadd.f32 0.0, %v1926
      %1928 = vmatmul.f32.gmra.mxu0 %v337
      %v1929 = vpop.f32.mrf.mxu0
      %v1930 = vadd.f32 0.0, %v1929
      %1931 = vmatmul.f32.gmra.mxu0 %v338
      %v1932 = vpop.f32.mrf.mxu0
      %v1933 = vadd.f32 0.0, %v1932
      %1934 = vmatmul.f32.gmra.mxu0 %v339
      %v1935 = vpop.f32.mrf.mxu0
      %v1936 = vadd.f32 0.0, %v1935
      %1937 = vmatmul.f32.gmra.mxu0 %v340
      %v1938 = vpop.f32.mrf.mxu0
      %v1939 = vadd.f32 0.0, %v1938
      %1940 = vmatmul.f32.gmra.mxu0 %v341
      %v1941 = vpop.f32.mrf.mxu0
      %v1942 = vadd.f32 0.0, %v1941
      %1943 = vmatmul.f32.gmra.mxu0 %v342
      %v1944 = vpop.f32.mrf.mxu0
      %v1945 = vadd.f32 0.0, %v1944
      %1946 = vmatmul.f32.gmra.mxu0 %v343
      %v1947 = vpop.f32.mrf.mxu0
      %v1948 = vadd.f32 0.0, %v1947
      %1949 = vmatmul.f32.gmra.mxu0 %v344
      %v1950 = vpop.f32.mrf.mxu0
      %v1951 = vadd.f32 0.0, %v1950
      %1952 = vmatmul.f32.gmra.mxu0 %v345
      %v1953 = vpop.f32.mrf.mxu0
      %v1954 = vadd.f32 0.0, %v1953
      %1955 = vmatmul.f32.gmra.mxu0 %v346
      %v1956 = vpop.f32.mrf.mxu0
      %v1957 = vadd.f32 0.0, %v1956
      %1958 = vmatmul.f32.gmra.mxu0 %v347
      %v1959 = vpop.f32.mrf.mxu0
      %v1960 = vadd.f32 0.0, %v1959
      %1961 = vmatmul.f32.gmra.mxu0 %v348
      %v1962 = vpop.f32.mrf.mxu0
      %v1963 = vadd.f32 0.0, %v1962
      %1964 = vmatmul.f32.gmra.mxu0 %v349
      %v1965 = vpop.f32.mrf.mxu0
      %v1966 = vadd.f32 0.0, %v1965
      %1967 = vmatmul.f32.gmra.mxu0 %v350
      %v1968 = vpop.f32.mrf.mxu0
      %v1969 = vadd.f32 0.0, %v1968
      %1970 = vmatmul.f32.gmra.mxu0 %v351
      %v1971 = vpop.f32.mrf.mxu0
      %v1972 = vadd.f32 0.0, %v1971
      %1973 = vmatmul.f32.gmra.mxu0 %v352
      %v1974 = vpop.f32.mrf.mxu0
      %v1975 = vadd.f32 0.0, %v1974
      %1976 = vmatmul.f32.gmra.mxu0 %v353
      %v1977 = vpop.f32.mrf.mxu0
      %v1978 = vadd.f32 0.0, %v1977
      %1979 = vmatmul.f32.gmra.mxu0 %v354
      %v1980 = vpop.f32.mrf.mxu0
      %v1981 = vadd.f32 0.0, %v1980
      %1982 = vmatmul.f32.gmra.mxu0 %v355
      %v1983 = vpop.f32.mrf.mxu0
      %v1984 = vadd.f32 0.0, %v1983
      %1985 = vmatmul.f32.gmra.mxu0 %v356
      %v1986 = vpop.f32.mrf.mxu0
      %v1987 = vadd.f32 0.0, %v1986
      %1988 = vmatmul.f32.gmra.mxu0 %v357
      %v1989 = vpop.f32.mrf.mxu0
      %v1990 = vadd.f32 0.0, %v1989
      %1991 = vmatmul.f32.gmra.mxu0 %v358
      %v1992 = vpop.f32.mrf.mxu0
      %v1993 = vadd.f32 0.0, %v1992
      %1994 = vmatmul.f32.gmra.mxu0 %v359
      %v1995 = vpop.f32.mrf.mxu0
      %v1996 = vadd.f32 0.0, %v1995
      %1997 = vmatmul.f32.gmra.mxu0 %v360
      %v1998 = vpop.f32.mrf.mxu0
      %v1999 = vadd.f32 0.0, %v1998
      %2000 = vmatmul.f32.gmra.mxu0 %v361
      %v2001 = vpop.f32.mrf.mxu0
      %v2002 = vadd.f32 0.0, %v2001
      %2003 = vmatmul.f32.gmra.mxu0 %v362
      %v2004 = vpop.f32.mrf.mxu0
      %v2005 = vadd.f32 0.0, %v2004
      %2006 = vmatmul.f32.gmra.mxu0 %v363
      %v2007 = vpop.f32.mrf.mxu0
      %v2008 = vadd.f32 0.0, %v2007
      %2009 = vmatmul.f32.gmra.mxu0 %v364
      %v2010 = vpop.f32.mrf.mxu0
      %v2011 = vadd.f32 0.0, %v2010
      %2012 = vdwg.mxu0
      %v2013 = vld [vmem:[%s7] sm:$0xff]
      %v2014 = vmul.f32 %v1918, %v2013
      %v2015 = vmul.f32 %v1921, %v2013
      %v2016 = vmul.f32 %v1924, %v2013
      %v2017 = vmul.f32 %v1927, %v2013
      %v2018 = vmul.f32 %v1930, %v2013
      %v2019 = vmul.f32 %v1933, %v2013
      %v2020 = vmul.f32 %v1936, %v2013
      %v2021 = vmul.f32 %v1939, %v2013
      %v2022 = vmul.f32 %v1942, %v2013
      %v2023 = vmul.f32 %v1945, %v2013
      %v2024 = vmul.f32 %v1948, %v2013
      %v2025 = vmul.f32 %v1951, %v2013
      %v2026 = vmul.f32 %v1954, %v2013
      %v2027 = vmul.f32 %v1957, %v2013
      %v2028 = vmul.f32 %v1960, %v2013
      %v2029 = vmul.f32 %v1963, %v2013
      %v2030 = vmul.f32 %v1966, %v2013
      %v2031 = vmul.f32 %v1969, %v2013
      %v2032 = vmul.f32 %v1972, %v2013
      %v2033 = vmul.f32 %v1975, %v2013
      %v2034 = vmul.f32 %v1978, %v2013
      %v2035 = vmul.f32 %v1981, %v2013
      %v2036 = vmul.f32 %v1984, %v2013
      %v2037 = vmul.f32 %v1987, %v2013
      %v2038 = vmul.f32 %v1990, %v2013
      %v2039 = vmul.f32 %v1993, %v2013
      %v2040 = vmul.f32 %v1996, %v2013
      %v2041 = vmul.f32 %v1999, %v2013
      %v2042 = vmul.f32 %v2002, %v2013
      %v2043 = vmul.f32 %v2005, %v2013
      %v2044 = vmul.f32 %v2008, %v2013
      %v2045 = vmul.f32 %v2011, %v2013
      %v2046 = vld [vmem:[%s8] sm:$0xff]
      %v2047 = vld [vmem:[%s8 + $0x8] sm:$0xff]
      %v2049 = vsel %vm500, %v2014, 0
      %v2052 = vsel %vm500, %v2015, 0
      %v2055 = vsel %vm500, %v2016, 0
      %v2058 = vsel %vm500, %v2017, 0
      %v2061 = vsel %vm500, %v2018, 0
      %v2064 = vsel %vm500, %v2019, 0
      %v2067 = vsel %vm500, %v2020, 0
      %v2070 = vsel %vm500, %v2021, 0
      %v2073 = vsel %vm500, %v2022, 0
      %v2076 = vsel %vm500, %v2023, 0
      %v2079 = vsel %vm500, %v2024, 0
      %v2082 = vsel %vm500, %v2025, 0
      %v2085 = vsel %vm500, %v2026, 0
      %v2088 = vsel %vm500, %v2027, 0
      %v2091 = vsel %vm500, %v2028, 0
      %v2094 = vsel %vm500, %v2029, 0
      %v2097 = vsel %vm500, %v2030, 0
      %v2100 = vsel %vm500, %v2031, 0
      %v2103 = vsel %vm500, %v2032, 0
      %v2106 = vsel %vm500, %v2033, 0
      %v2109 = vsel %vm500, %v2034, 0
      %v2112 = vsel %vm500, %v2035, 0
      %v2115 = vsel %vm500, %v2036, 0
      %v2118 = vsel %vm500, %v2037, 0
      %v2121 = vsel %vm500, %v2038, 0
      %v2124 = vsel %vm500, %v2039, 0
      %v2127 = vsel %vm500, %v2040, 0
      %v2130 = vsel %vm500, %v2041, 0
      %v2133 = vsel %vm500, %v2042, 0
      %v2136 = vsel %vm500, %v2043, 0
      %v2139 = vsel %vm500, %v2044, 0
      %v2142 = vsel %vm500, %v2045, 0
      %2144 = vmatpush.msra.mxu0 0.0
      %2145 = vmatpush.msra.mxu0 0.0
      %2146 = vmatpush.msra.mxu0 0.0
      %2147 = vmatpush.msra.mxu0 0.0
      %2148 = vmatpush.msra.mxu0 0.0
      %2149 = vmatpush.msra.mxu0 0.0
      %2150 = vmatpush.msra.mxu0 0.0
      %2151 = vmatpush.msra.mxu0 0.0
      %2152 = vmatpush.msra.mxu0 0.0
      %2153 = vmatpush.msra.mxu0 0.0
      %2154 = vmatpush.msra.mxu0 0.0
      %2155 = vmatpush.msra.mxu0 0.0
      %2156 = vmatpush.msra.mxu0 0.0
      %2157 = vmatpush.msra.mxu0 0.0
      %2158 = vmatpush.msra.mxu0 %v2047
      %2159 = vmatpush.msra.mxu0 %v2046
      %2160 = vmatmul.f32.gmra.mxu0 %v2049
      %v2161 = vpop.f32.mrf.mxu0
      %v2162 = vadd.f32 0.0, %v2161
      %2163 = vmatmul.f32.gmra.mxu0 %v2052
      %v2164 = vpop.f32.mrf.mxu0
      %v2165 = vadd.f32 0.0, %v2164
      %2166 = vmatmul.f32.gmra.mxu0 %v2055
      %v2167 = vpop.f32.mrf.mxu0
      %v2168 = vadd.f32 0.0, %v2167
      %2169 = vmatmul.f32.gmra.mxu0 %v2058
      %v2170 = vpop.f32.mrf.mxu0
      %v2171 = vadd.f32 0.0, %v2170
      %2172 = vmatmul.f32.gmra.mxu0 %v2061
      %v2173 = vpop.f32.mrf.mxu0
      %v2174 = vadd.f32 0.0, %v2173
      %2175 = vmatmul.f32.gmra.mxu0 %v2064
      %v2176 = vpop.f32.mrf.mxu0
      %v2177 = vadd.f32 0.0, %v2176
      %2178 = vmatmul.f32.gmra.mxu0 %v2067
      %v2179 = vpop.f32.mrf.mxu0
      %v2180 = vadd.f32 0.0, %v2179
      %2181 = vmatmul.f32.gmra.mxu0 %v2070
      %v2182 = vpop.f32.mrf.mxu0
      %v2183 = vadd.f32 0.0, %v2182
      %2184 = vmatmul.f32.gmra.mxu0 %v2073
      %v2185 = vpop.f32.mrf.mxu0
      %v2186 = vadd.f32 0.0, %v2185
      %2187 = vmatmul.f32.gmra.mxu0 %v2076
      %v2188 = vpop.f32.mrf.mxu0
      %v2189 = vadd.f32 0.0, %v2188
      %2190 = vmatmul.f32.gmra.mxu0 %v2079
      %v2191 = vpop.f32.mrf.mxu0
      %v2192 = vadd.f32 0.0, %v2191
      %2193 = vmatmul.f32.gmra.mxu0 %v2082
      %v2194 = vpop.f32.mrf.mxu0
      %v2195 = vadd.f32 0.0, %v2194
      %2196 = vmatmul.f32.gmra.mxu0 %v2085
      %v2197 = vpop.f32.mrf.mxu0
      %v2198 = vadd.f32 0.0, %v2197
      %2199 = vmatmul.f32.gmra.mxu0 %v2088
      %v2200 = vpop.f32.mrf.mxu0
      %v2201 = vadd.f32 0.0, %v2200
      %2202 = vmatmul.f32.gmra.mxu0 %v2091
      %v2203 = vpop.f32.mrf.mxu0
      %v2204 = vadd.f32 0.0, %v2203
      %2205 = vmatmul.f32.gmra.mxu0 %v2094
      %v2206 = vpop.f32.mrf.mxu0
      %v2207 = vadd.f32 0.0, %v2206
      %2208 = vmatmul.f32.gmra.mxu0 %v2097
      %v2209 = vpop.f32.mrf.mxu0
      %v2210 = vadd.f32 0.0, %v2209
      %2211 = vmatmul.f32.gmra.mxu0 %v2100
      %v2212 = vpop.f32.mrf.mxu0
      %v2213 = vadd.f32 0.0, %v2212
      %2214 = vmatmul.f32.gmra.mxu0 %v2103
      %v2215 = vpop.f32.mrf.mxu0
      %v2216 = vadd.f32 0.0, %v2215
      %2217 = vmatmul.f32.gmra.mxu0 %v2106
      %v2218 = vpop.f32.mrf.mxu0
      %v2219 = vadd.f32 0.0, %v2218
      %2220 = vmatmul.f32.gmra.mxu0 %v2109
      %v2221 = vpop.f32.mrf.mxu0
      %v2222 = vadd.f32 0.0, %v2221
      %2223 = vmatmul.f32.gmra.mxu0 %v2112
      %v2224 = vpop.f32.mrf.mxu0
      %v2225 = vadd.f32 0.0, %v2224
      %2226 = vmatmul.f32.gmra.mxu0 %v2115
      %v2227 = vpop.f32.mrf.mxu0
      %v2228 = vadd.f32 0.0, %v2227
      %2229 = vmatmul.f32.gmra.mxu0 %v2118
      %v2230 = vpop.f32.mrf.mxu0
      %v2231 = vadd.f32 0.0, %v2230
      %2232 = vmatmul.f32.gmra.mxu0 %v2121
      %v2233 = vpop.f32.mrf.mxu0
      %v2234 = vadd.f32 0.0, %v2233
      %2235 = vmatmul.f32.gmra.mxu0 %v2124
      %v2236 = vpop.f32.mrf.mxu0
      %v2237 = vadd.f32 0.0, %v2236
      %2238 = vmatmul.f32.gmra.mxu0 %v2127
      %v2239 = vpop.f32.mrf.mxu0
      %v2240 = vadd.f32 0.0, %v2239
      %2241 = vmatmul.f32.gmra.mxu0 %v2130
      %v2242 = vpop.f32.mrf.mxu0
      %v2243 = vadd.f32 0.0, %v2242
      %2244 = vmatmul.f32.gmra.mxu0 %v2133
      %v2245 = vpop.f32.mrf.mxu0
      %v2246 = vadd.f32 0.0, %v2245
      %2247 = vmatmul.f32.gmra.mxu0 %v2136
      %v2248 = vpop.f32.mrf.mxu0
      %v2249 = vadd.f32 0.0, %v2248
      %2250 = vmatmul.f32.gmra.mxu0 %v2139
      %v2251 = vpop.f32.mrf.mxu0
      %v2252 = vadd.f32 0.0, %v2251
      %2253 = vmatmul.f32.gmra.mxu0 %v2142
      %v2254 = vpop.f32.mrf.mxu0
      %v2255 = vadd.f32 0.0, %v2254
      %2256 = vdwg.mxu0
      %2257 = vst [vmem:[#allocation4] sm:$0xff] %v2162
      %2258 = vst [vmem:[#allocation4 + $0x8] sm:$0xff] %v2165
      %2259 = vst [vmem:[#allocation4 + $0x10] sm:$0xff] %v2168
      %2260 = vst [vmem:[#allocation4 + $0x18] sm:$0xff] %v2171
      %2261 = vst [vmem:[#allocation4 + $0x20] sm:$0xff] %v2174
      %2262 = vst [vmem:[#allocation4 + $0x28] sm:$0xff] %v2177
      %2263 = vst [vmem:[#allocation4 + $0x30] sm:$0xff] %v2180
      %2264 = vst [vmem:[#allocation4 + $0x38] sm:$0xff] %v2183
      %2265 = vst [vmem:[#allocation4 + $0x40] sm:$0xff] %v2186
      %2266 = vst [vmem:[#allocation4 + $0x48] sm:$0xff] %v2189
      %2267 = vst [vmem:[#allocation4 + $0x50] sm:$0xff] %v2192
      %2268 = vst [vmem:[#allocation4 + $0x58] sm:$0xff] %v2195
      %2269 = vst [vmem:[#allocation4 + $0x60] sm:$0xff] %v2198
      %2270 = vst [vmem:[#allocation4 + $0x68] sm:$0xff] %v2201
      %2271 = vst [vmem:[#allocation4 + $0x70] sm:$0xff] %v2204
      %2272 = vst [vmem:[#allocation4 + $0x78] sm:$0xff] %v2207
      %2273 = vst [vmem:[#allocation4 + $0x80] sm:$0xff] %v2210
      %2274 = vst [vmem:[#allocation4 + $0x88] sm:$0xff] %v2213
      %2275 = vst [vmem:[#allocation4 + $0x90] sm:$0xff] %v2216
      %2276 = vst [vmem:[#allocation4 + $0x98] sm:$0xff] %v2219
      %2277 = vst [vmem:[#allocation4 + $0xa0] sm:$0xff] %v2222
      %2278 = vst [vmem:[#allocation4 + $0xa8] sm:$0xff] %v2225
      %2279 = vst [vmem:[#allocation4 + $0xb0] sm:$0xff] %v2228
      %2280 = vst [vmem:[#allocation4 + $0xb8] sm:$0xff] %v2231
      %2281 = vst [vmem:[#allocation4 + $0xc0] sm:$0xff] %v2234
      %2282 = vst [vmem:[#allocation4 + $0xc8] sm:$0xff] %v2237
      %2283 = vst [vmem:[#allocation4 + $0xd0] sm:$0xff] %v2240
      %2284 = vst [vmem:[#allocation4 + $0xd8] sm:$0xff] %v2243
      %2285 = vst [vmem:[#allocation4 + $0xe0] sm:$0xff] %v2246
      %2286 = vst [vmem:[#allocation4 + $0xe8] sm:$0xff] %v2249
      %2287 = vst [vmem:[#allocation4 + $0xf0] sm:$0xff] %v2252
      %2288 = vst [vmem:[#allocation4 + $0xf8] sm:$0xff] %v2255
      %v2289 = vld [vmem:[#allocation2] sm:$0xff]
      %v2290 = vld [vmem:[#allocation3] sm:$0xff]
      %v2291 = vld [vmem:[#allocation4] sm:$0xff]
      %v2292 = vmul.f32 %v2289, 0.0
      %v2293 = vadd.f32 %v2292, %v2290
      %v2294 = vmul.f32 %v2291, %v2293
      %vm2295 = vcmask 1043456
      %v2296 = vsel %vm2295, %v2294, 0.0
      %v2297 = vrot.slane %v2296, 4
      %v2298 = vadd.f32 %v2296, %v2297
      %v2299 = vrot.slane %v2298, 2
      %v2300 = vadd.f32 %v2298, %v2299
      %v2301 = vrot.slane %v2300, 1
      %v2302 = vadd.f32 %v2300, %v2301
      %v2304 = vrot.slane %v2289, 4
      %v2306 = vmul.f32 %v2293, %v2304
      %v2308 = vrot.slane %v2290, 4
      %v2310 = vadd.f32 %v2306, %v2308
      %v2312 = vrot.slane %v2310, 4
      %v2314 = vmul.f32 %v2291, %v2312
      %v2316 = vrot.slane %v2314, 4
      %v2318 = vsel %vm2295, %v2316, 0.0
      %v2319 = vrot.slane %v2318, 4
      %v2320 = vadd.f32 %v2318, %v2319
      %v2321 = vrot.slane %v2320, 2
      %v2322 = vadd.f32 %v2320, %v2321
      %v2323 = vrot.slane %v2322, 1
      %v2324 = vadd.f32 %v2322, %v2323
      %s2325 = scalar_lea.vmem [#allocation2], 8
      %v2326 = vld [vmem:[%s2325] sm:$0xff]
      %s2327 = scalar_lea.vmem [#allocation3], 8
      %v2328 = vld [vmem:[%s2327] sm:$0xff]
      %s2329 = scalar_lea.vmem [#allocation4], 8
      %v2330 = vld [vmem:[%s2329] sm:$0xff]
      %v2331 = vmul.f32 %v2310, %v2326
      %v2332 = vadd.f32 %v2331, %v2328
      %v2333 = vmul.f32 %v2330, %v2332
      %v2334 = vsel %vm2295, %v2333, 0.0
      %v2335 = vrot.slane %v2334, 4
      %v2336 = vadd.f32 %v2334, %v2335
      %v2337 = vrot.slane %v2336, 2
      %v2338 = vadd.f32 %v2336, %v2337
      %v2339 = vrot.slane %v2338, 1
      %v2340 = vadd.f32 %v2338, %v2339
      %v2342 = vrot.slane %v2326, 4
      %v2344 = vmul.f32 %v2332, %v2342
      %v2346 = vrot.slane %v2328, 4
      %v2348 = vadd.f32 %v2344, %v2346
      %v2350 = vrot.slane %v2348, 4
      %v2352 = vmul.f32 %v2330, %v2350
      %v2354 = vrot.slane %v2352, 4
      %v2356 = vsel %vm2295, %v2354, 0.0
      %v2357 = vrot.slane %v2356, 4
      %v2358 = vadd.f32 %v2356, %v2357
      %v2359 = vrot.slane %v2358, 2
      %v2360 = vadd.f32 %v2358, %v2359
      %v2361 = vrot.slane %v2360, 1
      %v2362 = vadd.f32 %v2360, %v2361
      %s2363 = scalar_lea.vmem [#allocation2], 16
      %v2364 = vld [vmem:[%s2363] sm:$0xff]
      %s2365 = scalar_lea.vmem [#allocation3], 16
      %v2366 = vld [vmem:[%s2365] sm:$0xff]
      %s2367 = scalar_lea.vmem [#allocation4], 16
      %v2368 = vld [vmem:[%s2367] sm:$0xff]
      %v2369 = vmul.f32 %v2348, %v2364
      %v2370 = vadd.f32 %v2369, %v2366
      %v2371 = vmul.f32 %v2368, %v2370
      %v2372 = vsel %vm2295, %v2371, 0.0
      %v2373 = vrot.slane %v2372, 4
      %v2374 = vadd.f32 %v2372, %v2373
      %v2375 = vrot.slane %v2374, 2
      %v2376 = vadd.f32 %v2374, %v2375
      %v2377 = vrot.slane %v2376, 1
      %v2378 = vadd.f32 %v2376, %v2377
      %v2380 = vrot.slane %v2364, 4
      %v2382 = vmul.f32 %v2370, %v2380
      %v2384 = vrot.slane %v2366, 4
      %v2386 = vadd.f32 %v2382, %v2384
      %v2388 = vrot.slane %v2386, 4
      %v2390 = vmul.f32 %v2368, %v2388
      %v2392 = vrot.slane %v2390, 4
      %v2394 = vsel %vm2295, %v2392, 0.0
      %v2395 = vrot.slane %v2394, 4
      %v2396 = vadd.f32 %v2394, %v2395
      %v2397 = vrot.slane %v2396, 2
      %v2398 = vadd.f32 %v2396, %v2397
      %v2399 = vrot.slane %v2398, 1
      %v2400 = vadd.f32 %v2398, %v2399
      %s2401 = scalar_lea.vmem [#allocation2], 24
      %v2402 = vld [vmem:[%s2401] sm:$0xff]
      %s2403 = scalar_lea.vmem [#allocation3], 24
      %v2404 = vld [vmem:[%s2403] sm:$0xff]
      %s2405 = scalar_lea.vmem [#allocation4], 24
      %v2406 = vld [vmem:[%s2405] sm:$0xff]
      %v2407 = vmul.f32 %v2386, %v2402
      %v2408 = vadd.f32 %v2407, %v2404
      %v2409 = vmul.f32 %v2406, %v2408
      %v2410 = vsel %vm2295, %v2409, 0.0
      %v2411 = vrot.slane %v2410, 4
      %v2412 = vadd.f32 %v2410, %v2411
      %v2413 = vrot.slane %v2412, 2
      %v2414 = vadd.f32 %v2412, %v2413
      %v2415 = vrot.slane %v2414, 1
      %v2416 = vadd.f32 %v2414, %v2415
      %v2418 = vrot.slane %v2402, 4
      %v2420 = vmul.f32 %v2408, %v2418
      %v2422 = vrot.slane %v2404, 4
      %v2424 = vadd.f32 %v2420, %v2422
      %v2426 = vrot.slane %v2424, 4
      %v2428 = vmul.f32 %v2406, %v2426
      %v2430 = vrot.slane %v2428, 4
      %v2432 = vsel %vm2295, %v2430, 0.0
      %v2433 = vrot.slane %v2432, 4
      %v2434 = vadd.f32 %v2432, %v2433
      %v2435 = vrot.slane %v2434, 2
      %v2436 = vadd.f32 %v2434, %v2435
      %v2437 = vrot.slane %v2436, 1
      %v2438 = vadd.f32 %v2436, %v2437
      %vm2439 = vcmask 1040384
      %v2440 = vsel %vm2439, %v2302, %v2324
      %vm2441 = vcmask 1041408
      %v2442 = vsel %vm2441, %v2440, %v2340
      %vm2443 = vcmask 1042432
      %v2444 = vsel %vm2443, %v2442, %v2362
      %v2445 = vsel %vm2295, %v2444, %v2378
      %vm2446 = vcmask 1044480
      %v2447 = vsel %vm2446, %v2445, %v2400
      %vm2448 = vcmask 1045504
      %v2449 = vsel %vm2448, %v2447, %v2416
      %vm2450 = vcmask 1046528
      %v2451 = vsel %vm2450, %v2449, %v2438
      %2452 = vst [vmem:[%s332] sm:$0xff] %v2451
      %s2453 = scalar_lea.vmem [#allocation2], 32
      %v2454 = vld [vmem:[%s2453] sm:$0xff]
      %s2455 = scalar_lea.vmem [#allocation3], 32
      %v2456 = vld [vmem:[%s2455] sm:$0xff]
      %s2457 = scalar_lea.vmem [#allocation4], 32
      %v2458 = vld [vmem:[%s2457] sm:$0xff]
      %v2459 = vmul.f32 %v2424, %v2454
      %v2460 = vadd.f32 %v2459, %v2456
      %v2461 = vmul.f32 %v2458, %v2460
      %v2462 = vsel %vm2295, %v2461, 0.0
      %v2463 = vrot.slane %v2462, 4
      %v2464 = vadd.f32 %v2462, %v2463
      %v2465 = vrot.slane %v2464, 2
      %v2466 = vadd.f32 %v2464, %v2465
      %v2467 = vrot.slane %v2466, 1
      %v2468 = vadd.f32 %v2466, %v2467
      %v2470 = vrot.slane %v2454, 4
      %v2472 = vmul.f32 %v2460, %v2470
      %v2474 = vrot.slane %v2456, 4
      %v2476 = vadd.f32 %v2472, %v2474
      %v2478 = vrot.slane %v2476, 4
      %v2480 = vmul.f32 %v2458, %v2478
      %v2482 = vrot.slane %v2480, 4
      %v2484 = vsel %vm2295, %v2482, 0.0
      %v2485 = vrot.slane %v2484, 4
      %v2486 = vadd.f32 %v2484, %v2485
      %v2487 = vrot.slane %v2486, 2
      %v2488 = vadd.f32 %v2486, %v2487
      %v2489 = vrot.slane %v2488, 1
      %v2490 = vadd.f32 %v2488, %v2489
      %s2491 = scalar_lea.vmem [#allocation2], 40
      %v2492 = vld [vmem:[%s2491] sm:$0xff]
      %s2493 = scalar_lea.vmem [#allocation3], 40
      %v2494 = vld [vmem:[%s2493] sm:$0xff]
      %s2495 = scalar_lea.vmem [#allocation4], 40
      %v2496 = vld [vmem:[%s2495] sm:$0xff]
      %v2497 = vmul.f32 %v2476, %v2492
      %v2498 = vadd.f32 %v2497, %v2494
      %v2499 = vmul.f32 %v2496, %v2498
      %v2500 = vsel %vm2295, %v2499, 0.0
      %v2501 = vrot.slane %v2500, 4
      %v2502 = vadd.f32 %v2500, %v2501
      %v2503 = vrot.slane %v2502, 2
      %v2504 = vadd.f32 %v2502, %v2503
      %v2505 = vrot.slane %v2504, 1
      %v2506 = vadd.f32 %v2504, %v2505
      %v2508 = vrot.slane %v2492, 4
      %v2510 = vmul.f32 %v2498, %v2508
      %v2512 = vrot.slane %v2494, 4
      %v2514 = vadd.f32 %v2510, %v2512
      %v2516 = vrot.slane %v2514, 4
      %v2518 = vmul.f32 %v2496, %v2516
      %v2520 = vrot.slane %v2518, 4
      %v2522 = vsel %vm2295, %v2520, 0.0
      %v2523 = vrot.slane %v2522, 4
      %v2524 = vadd.f32 %v2522, %v2523
      %v2525 = vrot.slane %v2524, 2
      %v2526 = vadd.f32 %v2524, %v2525
      %v2527 = vrot.slane %v2526, 1
      %v2528 = vadd.f32 %v2526, %v2527
      %s2529 = scalar_lea.vmem [#allocation2], 48
      %v2530 = vld [vmem:[%s2529] sm:$0xff]
      %s2531 = scalar_lea.vmem [#allocation3], 48
      %v2532 = vld [vmem:[%s2531] sm:$0xff]
      %s2533 = scalar_lea.vmem [#allocation4], 48
      %v2534 = vld [vmem:[%s2533] sm:$0xff]
      %v2535 = vmul.f32 %v2514, %v2530
      %v2536 = vadd.f32 %v2535, %v2532
      %v2537 = vmul.f32 %v2534, %v2536
      %v2538 = vsel %vm2295, %v2537, 0.0
      %v2539 = vrot.slane %v2538, 4
      %v2540 = vadd.f32 %v2538, %v2539
      %v2541 = vrot.slane %v2540, 2
      %v2542 = vadd.f32 %v2540, %v2541
      %v2543 = vrot.slane %v2542, 1
      %v2544 = vadd.f32 %v2542, %v2543
      %v2546 = vrot.slane %v2530, 4
      %v2548 = vmul.f32 %v2536, %v2546
      %v2550 = vrot.slane %v2532, 4
      %v2552 = vadd.f32 %v2548, %v2550
      %v2554 = vrot.slane %v2552, 4
      %v2556 = vmul.f32 %v2534, %v2554
      %v2558 = vrot.slane %v2556, 4
      %v2560 = vsel %vm2295, %v2558, 0.0
      %v2561 = vrot.slane %v2560, 4
      %v2562 = vadd.f32 %v2560, %v2561
      %v2563 = vrot.slane %v2562, 2
      %v2564 = vadd.f32 %v2562, %v2563
      %v2565 = vrot.slane %v2564, 1
      %v2566 = vadd.f32 %v2564, %v2565
      %s2567 = scalar_lea.vmem [#allocation2], 56
      %v2568 = vld [vmem:[%s2567] sm:$0xff]
      %s2569 = scalar_lea.vmem [#allocation3], 56
      %v2570 = vld [vmem:[%s2569] sm:$0xff]
      %s2571 = scalar_lea.vmem [#allocation4], 56
      %v2572 = vld [vmem:[%s2571] sm:$0xff]
      %v2573 = vmul.f32 %v2552, %v2568
      %v2574 = vadd.f32 %v2573, %v2570
      %v2575 = vmul.f32 %v2572, %v2574
      %v2576 = vsel %vm2295, %v2575, 0.0
      %v2577 = vrot.slane %v2576, 4
      %v2578 = vadd.f32 %v2576, %v2577
      %v2579 = vrot.slane %v2578, 2
      %v2580 = vadd.f32 %v2578, %v2579
      %v2581 = vrot.slane %v2580, 1
      %v2582 = vadd.f32 %v2580, %v2581
      %v2584 = vrot.slane %v2568, 4
      %v2586 = vmul.f32 %v2574, %v2584
      %v2588 = vrot.slane %v2570, 4
      %v2590 = vadd.f32 %v2586, %v2588
      %v2592 = vrot.slane %v2590, 4
      %v2594 = vmul.f32 %v2572, %v2592
      %v2596 = vrot.slane %v2594, 4
      %v2598 = vsel %vm2295, %v2596, 0.0
      %v2599 = vrot.slane %v2598, 4
      %v2600 = vadd.f32 %v2598, %v2599
      %v2601 = vrot.slane %v2600, 2
      %v2602 = vadd.f32 %v2600, %v2601
      %v2603 = vrot.slane %v2602, 1
      %v2604 = vadd.f32 %v2602, %v2603
      %v2605 = vsel %vm2439, %v2468, %v2490
      %v2606 = vsel %vm2441, %v2605, %v2506
      %v2607 = vsel %vm2443, %v2606, %v2528
      %v2608 = vsel %vm2295, %v2607, %v2544
      %v2609 = vsel %vm2446, %v2608, %v2566
      %v2610 = vsel %vm2448, %v2609, %v2582
      %v2611 = vsel %vm2450, %v2610, %v2604
      %2612 = vst [vmem:[%s332 + $0x8] sm:$0xff] %v2611
      %s2613 = scalar_lea.vmem [#allocation2], 64
      %v2614 = vld [vmem:[%s2613] sm:$0xff]
      %s2615 = scalar_lea.vmem [#allocation3], 64
      %v2616 = vld [vmem:[%s2615] sm:$0xff]
      %s2617 = scalar_lea.vmem [#allocation4], 64
      %v2618 = vld [vmem:[%s2617] sm:$0xff]
      %v2619 = vmul.f32 %v2590, %v2614
      %v2620 = vadd.f32 %v2619, %v2616
      %v2621 = vmul.f32 %v2618, %v2620
      %v2622 = vsel %vm2295, %v2621, 0.0
      %v2623 = vrot.slane %v2622, 4
      %v2624 = vadd.f32 %v2622, %v2623
      %v2625 = vrot.slane %v2624, 2
      %v2626 = vadd.f32 %v2624, %v2625
      %v2627 = vrot.slane %v2626, 1
      %v2628 = vadd.f32 %v2626, %v2627
      %v2630 = vrot.slane %v2614, 4
      %v2632 = vmul.f32 %v2620, %v2630
      %v2634 = vrot.slane %v2616, 4
      %v2636 = vadd.f32 %v2632, %v2634
      %v2638 = vrot.slane %v2636, 4
      %v2640 = vmul.f32 %v2618, %v2638
      %v2642 = vrot.slane %v2640, 4
      %v2644 = vsel %vm2295, %v2642, 0.0
      %v2645 = vrot.slane %v2644, 4
      %v2646 = vadd.f32 %v2644, %v2645
      %v2647 = vrot.slane %v2646, 2
      %v2648 = vadd.f32 %v2646, %v2647
      %v2649 = vrot.slane %v2648, 1
      %v2650 = vadd.f32 %v2648, %v2649
      %s2651 = scalar_lea.vmem [#allocation2], 72
      %v2652 = vld [vmem:[%s2651] sm:$0xff]
      %s2653 = scalar_lea.vmem [#allocation3], 72
      %v2654 = vld [vmem:[%s2653] sm:$0xff]
      %s2655 = scalar_lea.vmem [#allocation4], 72
      %v2656 = vld [vmem:[%s2655] sm:$0xff]
      %v2657 = vmul.f32 %v2636, %v2652
      %v2658 = vadd.f32 %v2657, %v2654
      %v2659 = vmul.f32 %v2656, %v2658
      %v2660 = vsel %vm2295, %v2659, 0.0
      %v2661 = vrot.slane %v2660, 4
      %v2662 = vadd.f32 %v2660, %v2661
      %v2663 = vrot.slane %v2662, 2
      %v2664 = vadd.f32 %v2662, %v2663
      %v2665 = vrot.slane %v2664, 1
      %v2666 = vadd.f32 %v2664, %v2665
      %v2668 = vrot.slane %v2652, 4
      %v2670 = vmul.f32 %v2658, %v2668
      %v2672 = vrot.slane %v2654, 4
      %v2674 = vadd.f32 %v2670, %v2672
      %v2676 = vrot.slane %v2674, 4
      %v2678 = vmul.f32 %v2656, %v2676
      %v2680 = vrot.slane %v2678, 4
      %v2682 = vsel %vm2295, %v2680, 0.0
      %v2683 = vrot.slane %v2682, 4
      %v2684 = vadd.f32 %v2682, %v2683
      %v2685 = vrot.slane %v2684, 2
      %v2686 = vadd.f32 %v2684, %v2685
      %v2687 = vrot.slane %v2686, 1
      %v2688 = vadd.f32 %v2686, %v2687
      %s2689 = scalar_lea.vmem [#allocation2], 80
      %v2690 = vld [vmem:[%s2689] sm:$0xff]
      %s2691 = scalar_lea.vmem [#allocation3], 80
      %v2692 = vld [vmem:[%s2691] sm:$0xff]
      %s2693 = scalar_lea.vmem [#allocation4], 80
      %v2694 = vld [vmem:[%s2693] sm:$0xff]
      %v2695 = vmul.f32 %v2674, %v2690
      %v2696 = vadd.f32 %v2695, %v2692
      %v2697 = vmul.f32 %v2694, %v2696
      %v2698 = vsel %vm2295, %v2697, 0.0
      %v2699 = vrot.slane %v2698, 4
      %v2700 = vadd.f32 %v2698, %v2699
      %v2701 = vrot.slane %v2700, 2
      %v2702 = vadd.f32 %v2700, %v2701
      %v2703 = vrot.slane %v2702, 1
      %v2704 = vadd.f32 %v2702, %v2703
      %v2706 = vrot.slane %v2690, 4
      %v2708 = vmul.f32 %v2696, %v2706
      %v2710 = vrot.slane %v2692, 4
      %v2712 = vadd.f32 %v2708, %v2710
      %v2714 = vrot.slane %v2712, 4
      %v2716 = vmul.f32 %v2694, %v2714
      %v2718 = vrot.slane %v2716, 4
      %v2720 = vsel %vm2295, %v2718, 0.0
      %v2721 = vrot.slane %v2720, 4
      %v2722 = vadd.f32 %v2720, %v2721
      %v2723 = vrot.slane %v2722, 2
      %v2724 = vadd.f32 %v2722, %v2723
      %v2725 = vrot.slane %v2724, 1
      %v2726 = vadd.f32 %v2724, %v2725
      %s2727 = scalar_lea.vmem [#allocation2], 88
      %v2728 = vld [vmem:[%s2727] sm:$0xff]
      %s2729 = scalar_lea.vmem [#allocation3], 88
      %v2730 = vld [vmem:[%s2729] sm:$0xff]
      %s2731 = scalar_lea.vmem [#allocation4], 88
      %v2732 = vld [vmem:[%s2731] sm:$0xff]
      %v2733 = vmul.f32 %v2712, %v2728
      %v2734 = vadd.f32 %v2733, %v2730
      %v2735 = vmul.f32 %v2732, %v2734
      %v2736 = vsel %vm2295, %v2735, 0.0
      %v2737 = vrot.slane %v2736, 4
      %v2738 = vadd.f32 %v2736, %v2737
      %v2739 = vrot.slane %v2738, 2
      %v2740 = vadd.f32 %v2738, %v2739
      %v2741 = vrot.slane %v2740, 1
      %v2742 = vadd.f32 %v2740, %v2741
      %v2744 = vrot.slane %v2728, 4
      %v2746 = vmul.f32 %v2734, %v2744
      %v2748 = vrot.slane %v2730, 4
      %v2750 = vadd.f32 %v2746, %v2748
      %v2752 = vrot.slane %v2750, 4
      %v2754 = vmul.f32 %v2732, %v2752
      %v2756 = vrot.slane %v2754, 4
      %v2758 = vsel %vm2295, %v2756, 0.0
      %v2759 = vrot.slane %v2758, 4
      %v2760 = vadd.f32 %v2758, %v2759
      %v2761 = vrot.slane %v2760, 2
      %v2762 = vadd.f32 %v2760, %v2761
      %v2763 = vrot.slane %v2762, 1
      %v2764 = vadd.f32 %v2762, %v2763
      %v2765 = vsel %vm2439, %v2628, %v2650
      %v2766 = vsel %vm2441, %v2765, %v2666
      %v2767 = vsel %vm2443, %v2766, %v2688
      %v2768 = vsel %vm2295, %v2767, %v2704
      %v2769 = vsel %vm2446, %v2768, %v2726
      %v2770 = vsel %vm2448, %v2769, %v2742
      %v2771 = vsel %vm2450, %v2770, %v2764
      %2772 = vst [vmem:[%s332 + $0x10] sm:$0xff] %v2771
      %s2773 = scalar_lea.vmem [#allocation2], 96
      %v2774 = vld [vmem:[%s2773] sm:$0xff]
      %s2775 = scalar_lea.vmem [#allocation3], 96
      %v2776 = vld [vmem:[%s2775] sm:$0xff]
      %s2777 = scalar_lea.vmem [#allocation4], 96
      %v2778 = vld [vmem:[%s2777] sm:$0xff]
      %v2779 = vmul.f32 %v2750, %v2774
      %v2780 = vadd.f32 %v2779, %v2776
      %v2781 = vmul.f32 %v2778, %v2780
      %v2782 = vsel %vm2295, %v2781, 0.0
      %v2783 = vrot.slane %v2782, 4
      %v2784 = vadd.f32 %v2782, %v2783
      %v2785 = vrot.slane %v2784, 2
      %v2786 = vadd.f32 %v2784, %v2785
      %v2787 = vrot.slane %v2786, 1
      %v2788 = vadd.f32 %v2786, %v2787
      %v2790 = vrot.slane %v2774, 4
      %v2792 = vmul.f32 %v2780, %v2790
      %v2794 = vrot.slane %v2776, 4
      %v2796 = vadd.f32 %v2792, %v2794
      %v2798 = vrot.slane %v2796, 4
      %v2800 = vmul.f32 %v2778, %v2798
      %v2802 = vrot.slane %v2800, 4
      %v2804 = vsel %vm2295, %v2802, 0.0
      %v2805 = vrot.slane %v2804, 4
      %v2806 = vadd.f32 %v2804, %v2805
      %v2807 = vrot.slane %v2806, 2
      %v2808 = vadd.f32 %v2806, %v2807
      %v2809 = vrot.slane %v2808, 1
      %v2810 = vadd.f32 %v2808, %v2809
      %s2811 = scalar_lea.vmem [#allocation2], 104
      %v2812 = vld [vmem:[%s2811] sm:$0xff]
      %s2813 = scalar_lea.vmem [#allocation3], 104
      %v2814 = vld [vmem:[%s2813] sm:$0xff]
      %s2815 = scalar_lea.vmem [#allocation4], 104
      %v2816 = vld [vmem:[%s2815] sm:$0xff]
      %v2817 = vmul.f32 %v2796, %v2812
      %v2818 = vadd.f32 %v2817, %v2814
      %v2819 = vmul.f32 %v2816, %v2818
      %v2820 = vsel %vm2295, %v2819, 0.0
      %v2821 = vrot.slane %v2820, 4
      %v2822 = vadd.f32 %v2820, %v2821
      %v2823 = vrot.slane %v2822, 2
      %v2824 = vadd.f32 %v2822, %v2823
      %v2825 = vrot.slane %v2824, 1
      %v2826 = vadd.f32 %v2824, %v2825
      %v2828 = vrot.slane %v2812, 4
      %v2830 = vmul.f32 %v2818, %v2828
      %v2832 = vrot.slane %v2814, 4
      %v2834 = vadd.f32 %v2830, %v2832
      %v2836 = vrot.slane %v2834, 4
      %v2838 = vmul.f32 %v2816, %v2836
      %v2840 = vrot.slane %v2838, 4
      %v2842 = vsel %vm2295, %v2840, 0.0
      %v2843 = vrot.slane %v2842, 4
      %v2844 = vadd.f32 %v2842, %v2843
      %v2845 = vrot.slane %v2844, 2
      %v2846 = vadd.f32 %v2844, %v2845
      %v2847 = vrot.slane %v2846, 1
      %v2848 = vadd.f32 %v2846, %v2847
      %s2849 = scalar_lea.vmem [#allocation2], 112
      %v2850 = vld [vmem:[%s2849] sm:$0xff]
      %s2851 = scalar_lea.vmem [#allocation3], 112
      %v2852 = vld [vmem:[%s2851] sm:$0xff]
      %s2853 = scalar_lea.vmem [#allocation4], 112
      %v2854 = vld [vmem:[%s2853] sm:$0xff]
      %v2855 = vmul.f32 %v2834, %v2850
      %v2856 = vadd.f32 %v2855, %v2852
      %v2857 = vmul.f32 %v2854, %v2856
      %v2858 = vsel %vm2295, %v2857, 0.0
      %v2859 = vrot.slane %v2858, 4
      %v2860 = vadd.f32 %v2858, %v2859
      %v2861 = vrot.slane %v2860, 2
      %v2862 = vadd.f32 %v2860, %v2861
      %v2863 = vrot.slane %v2862, 1
      %v2864 = vadd.f32 %v2862, %v2863
      %v2866 = vrot.slane %v2850, 4
      %v2868 = vmul.f32 %v2856, %v2866
      %v2870 = vrot.slane %v2852, 4
      %v2872 = vadd.f32 %v2868, %v2870
      %v2874 = vrot.slane %v2872, 4
      %v2876 = vmul.f32 %v2854, %v2874
      %v2878 = vrot.slane %v2876, 4
      %v2880 = vsel %vm2295, %v2878, 0.0
      %v2881 = vrot.slane %v2880, 4
      %v2882 = vadd.f32 %v2880, %v2881
      %v2883 = vrot.slane %v2882, 2
      %v2884 = vadd.f32 %v2882, %v2883
      %v2885 = vrot.slane %v2884, 1
      %v2886 = vadd.f32 %v2884, %v2885
      %s2887 = scalar_lea.vmem [#allocation2], 120
      %v2888 = vld [vmem:[%s2887] sm:$0xff]
      %s2889 = scalar_lea.vmem [#allocation3], 120
      %v2890 = vld [vmem:[%s2889] sm:$0xff]
      %s2891 = scalar_lea.vmem [#allocation4], 120
      %v2892 = vld [vmem:[%s2891] sm:$0xff]
      %v2893 = vmul.f32 %v2872, %v2888
      %v2894 = vadd.f32 %v2893, %v2890
      %v2895 = vmul.f32 %v2892, %v2894
      %v2896 = vsel %vm2295, %v2895, 0.0
      %v2897 = vrot.slane %v2896, 4
      %v2898 = vadd.f32 %v2896, %v2897
      %v2899 = vrot.slane %v2898, 2
      %v2900 = vadd.f32 %v2898, %v2899
      %v2901 = vrot.slane %v2900, 1
      %v2902 = vadd.f32 %v2900, %v2901
      %v2904 = vrot.slane %v2888, 4
      %v2906 = vmul.f32 %v2894, %v2904
      %v2908 = vrot.slane %v2890, 4
      %v2910 = vadd.f32 %v2906, %v2908
      %v2912 = vrot.slane %v2910, 4
      %v2914 = vmul.f32 %v2892, %v2912
      %v2916 = vrot.slane %v2914, 4
      %v2918 = vsel %vm2295, %v2916, 0.0
      %v2919 = vrot.slane %v2918, 4
      %v2920 = vadd.f32 %v2918, %v2919
      %v2921 = vrot.slane %v2920, 2
      %v2922 = vadd.f32 %v2920, %v2921
      %v2923 = vrot.slane %v2922, 1
      %v2924 = vadd.f32 %v2922, %v2923
      %v2925 = vsel %vm2439, %v2788, %v2810
      %v2926 = vsel %vm2441, %v2925, %v2826
      %v2927 = vsel %vm2443, %v2926, %v2848
      %v2928 = vsel %vm2295, %v2927, %v2864
      %v2929 = vsel %vm2446, %v2928, %v2886
      %v2930 = vsel %vm2448, %v2929, %v2902
      %v2931 = vsel %vm2450, %v2930, %v2924
      %2932 = vst [vmem:[%s332 + $0x18] sm:$0xff] %v2931
      %s2933 = scalar_lea.vmem [#allocation2], 128
      %v2934 = vld [vmem:[%s2933] sm:$0xff]
      %s2935 = scalar_lea.vmem [#allocation3], 128
      %v2936 = vld [vmem:[%s2935] sm:$0xff]
      %s2937 = scalar_lea.vmem [#allocation4], 128
      %v2938 = vld [vmem:[%s2937] sm:$0xff]
      %v2939 = vmul.f32 %v2910, %v2934
      %v2940 = vadd.f32 %v2939, %v2936
      %v2941 = vmul.f32 %v2938, %v2940
      %v2942 = vsel %vm2295, %v2941, 0.0
      %v2943 = vrot.slane %v2942, 4
      %v2944 = vadd.f32 %v2942, %v2943
      %v2945 = vrot.slane %v2944, 2
      %v2946 = vadd.f32 %v2944, %v2945
      %v2947 = vrot.slane %v2946, 1
      %v2948 = vadd.f32 %v2946, %v2947
      %v2950 = vrot.slane %v2934, 4
      %v2952 = vmul.f32 %v2940, %v2950
      %v2954 = vrot.slane %v2936, 4
      %v2956 = vadd.f32 %v2952, %v2954
      %v2958 = vrot.slane %v2956, 4
      %v2960 = vmul.f32 %v2938, %v2958
      %v2962 = vrot.slane %v2960, 4
      %v2964 = vsel %vm2295, %v2962, 0.0
      %v2965 = vrot.slane %v2964, 4
      %v2966 = vadd.f32 %v2964, %v2965
      %v2967 = vrot.slane %v2966, 2
      %v2968 = vadd.f32 %v2966, %v2967
      %v2969 = vrot.slane %v2968, 1
      %v2970 = vadd.f32 %v2968, %v2969
      %s2971 = scalar_lea.vmem [#allocation2], 136
      %v2972 = vld [vmem:[%s2971] sm:$0xff]
      %s2973 = scalar_lea.vmem [#allocation3], 136
      %v2974 = vld [vmem:[%s2973] sm:$0xff]
      %s2975 = scalar_lea.vmem [#allocation4], 136
      %v2976 = vld [vmem:[%s2975] sm:$0xff]
      %v2977 = vmul.f32 %v2956, %v2972
      %v2978 = vadd.f32 %v2977, %v2974
      %v2979 = vmul.f32 %v2976, %v2978
      %v2980 = vsel %vm2295, %v2979, 0.0
      %v2981 = vrot.slane %v2980, 4
      %v2982 = vadd.f32 %v2980, %v2981
      %v2983 = vrot.slane %v2982, 2
      %v2984 = vadd.f32 %v2982, %v2983
      %v2985 = vrot.slane %v2984, 1
      %v2986 = vadd.f32 %v2984, %v2985
      %v2988 = vrot.slane %v2972, 4
      %v2990 = vmul.f32 %v2978, %v2988
      %v2992 = vrot.slane %v2974, 4
      %v2994 = vadd.f32 %v2990, %v2992
      %v2996 = vrot.slane %v2994, 4
      %v2998 = vmul.f32 %v2976, %v2996
      %v3000 = vrot.slane %v2998, 4
      %v3002 = vsel %vm2295, %v3000, 0.0
      %v3003 = vrot.slane %v3002, 4
      %v3004 = vadd.f32 %v3002, %v3003
      %v3005 = vrot.slane %v3004, 2
      %v3006 = vadd.f32 %v3004, %v3005
      %v3007 = vrot.slane %v3006, 1
      %v3008 = vadd.f32 %v3006, %v3007
      %s3009 = scalar_lea.vmem [#allocation2], 144
      %v3010 = vld [vmem:[%s3009] sm:$0xff]
      %s3011 = scalar_lea.vmem [#allocation3], 144
      %v3012 = vld [vmem:[%s3011] sm:$0xff]
      %s3013 = scalar_lea.vmem [#allocation4], 144
      %v3014 = vld [vmem:[%s3013] sm:$0xff]
      %v3015 = vmul.f32 %v2994, %v3010
      %v3016 = vadd.f32 %v3015, %v3012
      %v3017 = vmul.f32 %v3014, %v3016
      %v3018 = vsel %vm2295, %v3017, 0.0
      %v3019 = vrot.slane %v3018, 4
      %v3020 = vadd.f32 %v3018, %v3019
      %v3021 = vrot.slane %v3020, 2
      %v3022 = vadd.f32 %v3020, %v3021
      %v3023 = vrot.slane %v3022, 1
      %v3024 = vadd.f32 %v3022, %v3023
      %v3026 = vrot.slane %v3010, 4
      %v3028 = vmul.f32 %v3016, %v3026
      %v3030 = vrot.slane %v3012, 4
      %v3032 = vadd.f32 %v3028, %v3030
      %v3034 = vrot.slane %v3032, 4
      %v3036 = vmul.f32 %v3014, %v3034
      %v3038 = vrot.slane %v3036, 4
      %v3040 = vsel %vm2295, %v3038, 0.0
      %v3041 = vrot.slane %v3040, 4
      %v3042 = vadd.f32 %v3040, %v3041
      %v3043 = vrot.slane %v3042, 2
      %v3044 = vadd.f32 %v3042, %v3043
      %v3045 = vrot.slane %v3044, 1
      %v3046 = vadd.f32 %v3044, %v3045
      %s3047 = scalar_lea.vmem [#allocation2], 152
      %v3048 = vld [vmem:[%s3047] sm:$0xff]
      %s3049 = scalar_lea.vmem [#allocation3], 152
      %v3050 = vld [vmem:[%s3049] sm:$0xff]
      %s3051 = scalar_lea.vmem [#allocation4], 152
      %v3052 = vld [vmem:[%s3051] sm:$0xff]
      %v3053 = vmul.f32 %v3032, %v3048
      %v3054 = vadd.f32 %v3053, %v3050
      %v3055 = vmul.f32 %v3052, %v3054
      %v3056 = vsel %vm2295, %v3055, 0.0
      %v3057 = vrot.slane %v3056, 4
      %v3058 = vadd.f32 %v3056, %v3057
      %v3059 = vrot.slane %v3058, 2
      %v3060 = vadd.f32 %v3058, %v3059
      %v3061 = vrot.slane %v3060, 1
      %v3062 = vadd.f32 %v3060, %v3061
      %v3064 = vrot.slane %v3048, 4
      %v3066 = vmul.f32 %v3054, %v3064
      %v3068 = vrot.slane %v3050, 4
      %v3070 = vadd.f32 %v3066, %v3068
      %v3072 = vrot.slane %v3070, 4
      %v3074 = vmul.f32 %v3052, %v3072
      %v3076 = vrot.slane %v3074, 4
      %v3078 = vsel %vm2295, %v3076, 0.0
      %v3079 = vrot.slane %v3078, 4
      %v3080 = vadd.f32 %v3078, %v3079
      %v3081 = vrot.slane %v3080, 2
      %v3082 = vadd.f32 %v3080, %v3081
      %v3083 = vrot.slane %v3082, 1
      %v3084 = vadd.f32 %v3082, %v3083
      %v3085 = vsel %vm2439, %v2948, %v2970
      %v3086 = vsel %vm2441, %v3085, %v2986
      %v3087 = vsel %vm2443, %v3086, %v3008
      %v3088 = vsel %vm2295, %v3087, %v3024
      %v3089 = vsel %vm2446, %v3088, %v3046
      %v3090 = vsel %vm2448, %v3089, %v3062
      %v3091 = vsel %vm2450, %v3090, %v3084
      %3092 = vst [vmem:[%s332 + $0x20] sm:$0xff] %v3091
      %s3093 = scalar_lea.vmem [#allocation2], 160
      %v3094 = vld [vmem:[%s3093] sm:$0xff]
      %s3095 = scalar_lea.vmem [#allocation3], 160
      %v3096 = vld [vmem:[%s3095] sm:$0xff]
      %s3097 = scalar_lea.vmem [#allocation4], 160
      %v3098 = vld [vmem:[%s3097] sm:$0xff]
      %v3099 = vmul.f32 %v3070, %v3094
      %v3100 = vadd.f32 %v3099, %v3096
      %v3101 = vmul.f32 %v3098, %v3100
      %v3102 = vsel %vm2295, %v3101, 0.0
      %v3103 = vrot.slane %v3102, 4
      %v3104 = vadd.f32 %v3102, %v3103
      %v3105 = vrot.slane %v3104, 2
      %v3106 = vadd.f32 %v3104, %v3105
      %v3107 = vrot.slane %v3106, 1
      %v3108 = vadd.f32 %v3106, %v3107
      %v3110 = vrot.slane %v3094, 4
      %v3112 = vmul.f32 %v3100, %v3110
      %v3114 = vrot.slane %v3096, 4
      %v3116 = vadd.f32 %v3112, %v3114
      %v3118 = vrot.slane %v3116, 4
      %v3120 = vmul.f32 %v3098, %v3118
      %v3122 = vrot.slane %v3120, 4
      %v3124 = vsel %vm2295, %v3122, 0.0
      %v3125 = vrot.slane %v3124, 4
      %v3126 = vadd.f32 %v3124, %v3125
      %v3127 = vrot.slane %v3126, 2
      %v3128 = vadd.f32 %v3126, %v3127
      %v3129 = vrot.slane %v3128, 1
      %v3130 = vadd.f32 %v3128, %v3129
      %s3131 = scalar_lea.vmem [#allocation2], 168
      %v3132 = vld [vmem:[%s3131] sm:$0xff]
      %s3133 = scalar_lea.vmem [#allocation3], 168
      %v3134 = vld [vmem:[%s3133] sm:$0xff]
      %s3135 = scalar_lea.vmem [#allocation4], 168
      %v3136 = vld [vmem:[%s3135] sm:$0xff]
      %v3137 = vmul.f32 %v3116, %v3132
      %v3138 = vadd.f32 %v3137, %v3134
      %v3139 = vmul.f32 %v3136, %v3138
      %v3140 = vsel %vm2295, %v3139, 0.0
      %v3141 = vrot.slane %v3140, 4
      %v3142 = vadd.f32 %v3140, %v3141
      %v3143 = vrot.slane %v3142, 2
      %v3144 = vadd.f32 %v3142, %v3143
      %v3145 = vrot.slane %v3144, 1
      %v3146 = vadd.f32 %v3144, %v3145
      %v3148 = vrot.slane %v3132, 4
      %v3150 = vmul.f32 %v3138, %v3148
      %v3152 = vrot.slane %v3134, 4
      %v3154 = vadd.f32 %v3150, %v3152
      %v3156 = vrot.slane %v3154, 4
      %v3158 = vmul.f32 %v3136, %v3156
      %v3160 = vrot.slane %v3158, 4
      %v3162 = vsel %vm2295, %v3160, 0.0
      %v3163 = vrot.slane %v3162, 4
      %v3164 = vadd.f32 %v3162, %v3163
      %v3165 = vrot.slane %v3164, 2
      %v3166 = vadd.f32 %v3164, %v3165
      %v3167 = vrot.slane %v3166, 1
      %v3168 = vadd.f32 %v3166, %v3167
      %s3169 = scalar_lea.vmem [#allocation2], 176
      %v3170 = vld [vmem:[%s3169] sm:$0xff]
      %s3171 = scalar_lea.vmem [#allocation3], 176
      %v3172 = vld [vmem:[%s3171] sm:$0xff]
      %s3173 = scalar_lea.vmem [#allocation4], 176
      %v3174 = vld [vmem:[%s3173] sm:$0xff]
      %v3175 = vmul.f32 %v3154, %v3170
      %v3176 = vadd.f32 %v3175, %v3172
      %v3177 = vmul.f32 %v3174, %v3176
      %v3178 = vsel %vm2295, %v3177, 0.0
      %v3179 = vrot.slane %v3178, 4
      %v3180 = vadd.f32 %v3178, %v3179
      %v3181 = vrot.slane %v3180, 2
      %v3182 = vadd.f32 %v3180, %v3181
      %v3183 = vrot.slane %v3182, 1
      %v3184 = vadd.f32 %v3182, %v3183
      %v3186 = vrot.slane %v3170, 4
      %v3188 = vmul.f32 %v3176, %v3186
      %v3190 = vrot.slane %v3172, 4
      %v3192 = vadd.f32 %v3188, %v3190
      %v3194 = vrot.slane %v3192, 4
      %v3196 = vmul.f32 %v3174, %v3194
      %v3198 = vrot.slane %v3196, 4
      %v3200 = vsel %vm2295, %v3198, 0.0
      %v3201 = vrot.slane %v3200, 4
      %v3202 = vadd.f32 %v3200, %v3201
      %v3203 = vrot.slane %v3202, 2
      %v3204 = vadd.f32 %v3202, %v3203
      %v3205 = vrot.slane %v3204, 1
      %v3206 = vadd.f32 %v3204, %v3205
      %s3207 = scalar_lea.vmem [#allocation2], 184
      %v3208 = vld [vmem:[%s3207] sm:$0xff]
      %s3209 = scalar_lea.vmem [#allocation3], 184
      %v3210 = vld [vmem:[%s3209] sm:$0xff]
      %s3211 = scalar_lea.vmem [#allocation4], 184
      %v3212 = vld [vmem:[%s3211] sm:$0xff]
      %v3213 = vmul.f32 %v3192, %v3208
      %v3214 = vadd.f32 %v3213, %v3210
      %v3215 = vmul.f32 %v3212, %v3214
      %v3216 = vsel %vm2295, %v3215, 0.0
      %v3217 = vrot.slane %v3216, 4
      %v3218 = vadd.f32 %v3216, %v3217
      %v3219 = vrot.slane %v3218, 2
      %v3220 = vadd.f32 %v3218, %v3219
      %v3221 = vrot.slane %v3220, 1
      %v3222 = vadd.f32 %v3220, %v3221
      %v3224 = vrot.slane %v3208, 4
      %v3226 = vmul.f32 %v3214, %v3224
      %v3228 = vrot.slane %v3210, 4
      %v3230 = vadd.f32 %v3226, %v3228
      %v3232 = vrot.slane %v3230, 4
      %v3234 = vmul.f32 %v3212, %v3232
      %v3236 = vrot.slane %v3234, 4
      %v3238 = vsel %vm2295, %v3236, 0.0
      %v3239 = vrot.slane %v3238, 4
      %v3240 = vadd.f32 %v3238, %v3239
      %v3241 = vrot.slane %v3240, 2
      %v3242 = vadd.f32 %v3240, %v3241
      %v3243 = vrot.slane %v3242, 1
      %v3244 = vadd.f32 %v3242, %v3243
      %v3245 = vsel %vm2439, %v3108, %v3130
      %v3246 = vsel %vm2441, %v3245, %v3146
      %v3247 = vsel %vm2443, %v3246, %v3168
      %v3248 = vsel %vm2295, %v3247, %v3184
      %v3249 = vsel %vm2446, %v3248, %v3206
      %v3250 = vsel %vm2448, %v3249, %v3222
      %v3251 = vsel %vm2450, %v3250, %v3244
      %3252 = vst [vmem:[%s332 + $0x28] sm:$0xff] %v3251
      %s3253 = scalar_lea.vmem [#allocation2], 192
      %v3254 = vld [vmem:[%s3253] sm:$0xff]
      %s3255 = scalar_lea.vmem [#allocation3], 192
      %v3256 = vld [vmem:[%s3255] sm:$0xff]
      %s3257 = scalar_lea.vmem [#allocation4], 192
      %v3258 = vld [vmem:[%s3257] sm:$0xff]
      %v3259 = vmul.f32 %v3230, %v3254
      %v3260 = vadd.f32 %v3259, %v3256
      %v3261 = vmul.f32 %v3258, %v3260
      %v3262 = vsel %vm2295, %v3261, 0.0
      %v3263 = vrot.slane %v3262, 4
      %v3264 = vadd.f32 %v3262, %v3263
      %v3265 = vrot.slane %v3264, 2
      %v3266 = vadd.f32 %v3264, %v3265
      %v3267 = vrot.slane %v3266, 1
      %v3268 = vadd.f32 %v3266, %v3267
      %v3270 = vrot.slane %v3254, 4
      %v3272 = vmul.f32 %v3260, %v3270
      %v3274 = vrot.slane %v3256, 4
      %v3276 = vadd.f32 %v3272, %v3274
      %v3278 = vrot.slane %v3276, 4
      %v3280 = vmul.f32 %v3258, %v3278
      %v3282 = vrot.slane %v3280, 4
      %v3284 = vsel %vm2295, %v3282, 0.0
      %v3285 = vrot.slane %v3284, 4
      %v3286 = vadd.f32 %v3284, %v3285
      %v3287 = vrot.slane %v3286, 2
      %v3288 = vadd.f32 %v3286, %v3287
      %v3289 = vrot.slane %v3288, 1
      %v3290 = vadd.f32 %v3288, %v3289
      %s3291 = scalar_lea.vmem [#allocation2], 200
      %v3292 = vld [vmem:[%s3291] sm:$0xff]
      %s3293 = scalar_lea.vmem [#allocation3], 200
      %v3294 = vld [vmem:[%s3293] sm:$0xff]
      %s3295 = scalar_lea.vmem [#allocation4], 200
      %v3296 = vld [vmem:[%s3295] sm:$0xff]
      %v3297 = vmul.f32 %v3276, %v3292
      %v3298 = vadd.f32 %v3297, %v3294
      %v3299 = vmul.f32 %v3296, %v3298
      %v3300 = vsel %vm2295, %v3299, 0.0
      %v3301 = vrot.slane %v3300, 4
      %v3302 = vadd.f32 %v3300, %v3301
      %v3303 = vrot.slane %v3302, 2
      %v3304 = vadd.f32 %v3302, %v3303
      %v3305 = vrot.slane %v3304, 1
      %v3306 = vadd.f32 %v3304, %v3305
      %v3308 = vrot.slane %v3292, 4
      %v3310 = vmul.f32 %v3298, %v3308
      %v3312 = vrot.slane %v3294, 4
      %v3314 = vadd.f32 %v3310, %v3312
      %v3316 = vrot.slane %v3314, 4
      %v3318 = vmul.f32 %v3296, %v3316
      %v3320 = vrot.slane %v3318, 4
      %v3322 = vsel %vm2295, %v3320, 0.0
      %v3323 = vrot.slane %v3322, 4
      %v3324 = vadd.f32 %v3322, %v3323
      %v3325 = vrot.slane %v3324, 2
      %v3326 = vadd.f32 %v3324, %v3325
      %v3327 = vrot.slane %v3326, 1
      %v3328 = vadd.f32 %v3326, %v3327
      %s3329 = scalar_lea.vmem [#allocation2], 208
      %v3330 = vld [vmem:[%s3329] sm:$0xff]
      %s3331 = scalar_lea.vmem [#allocation3], 208
      %v3332 = vld [vmem:[%s3331] sm:$0xff]
      %s3333 = scalar_lea.vmem [#allocation4], 208
      %v3334 = vld [vmem:[%s3333] sm:$0xff]
      %v3335 = vmul.f32 %v3314, %v3330
      %v3336 = vadd.f32 %v3335, %v3332
      %v3337 = vmul.f32 %v3334, %v3336
      %v3338 = vsel %vm2295, %v3337, 0.0
      %v3339 = vrot.slane %v3338, 4
      %v3340 = vadd.f32 %v3338, %v3339
      %v3341 = vrot.slane %v3340, 2
      %v3342 = vadd.f32 %v3340, %v3341
      %v3343 = vrot.slane %v3342, 1
      %v3344 = vadd.f32 %v3342, %v3343
      %v3346 = vrot.slane %v3330, 4
      %v3348 = vmul.f32 %v3336, %v3346
      %v3350 = vrot.slane %v3332, 4
      %v3352 = vadd.f32 %v3348, %v3350
      %v3354 = vrot.slane %v3352, 4
      %v3356 = vmul.f32 %v3334, %v3354
      %v3358 = vrot.slane %v3356, 4
      %v3360 = vsel %vm2295, %v3358, 0.0
      %v3361 = vrot.slane %v3360, 4
      %v3362 = vadd.f32 %v3360, %v3361
      %v3363 = vrot.slane %v3362, 2
      %v3364 = vadd.f32 %v3362, %v3363
      %v3365 = vrot.slane %v3364, 1
      %v3366 = vadd.f32 %v3364, %v3365
      %s3367 = scalar_lea.vmem [#allocation2], 216
      %v3368 = vld [vmem:[%s3367] sm:$0xff]
      %s3369 = scalar_lea.vmem [#allocation3], 216
      %v3370 = vld [vmem:[%s3369] sm:$0xff]
      %s3371 = scalar_lea.vmem [#allocation4], 216
      %v3372 = vld [vmem:[%s3371] sm:$0xff]
      %v3373 = vmul.f32 %v3352, %v3368
      %v3374 = vadd.f32 %v3373, %v3370
      %v3375 = vmul.f32 %v3372, %v3374
      %v3376 = vsel %vm2295, %v3375, 0.0
      %v3377 = vrot.slane %v3376, 4
      %v3378 = vadd.f32 %v3376, %v3377
      %v3379 = vrot.slane %v3378, 2
      %v3380 = vadd.f32 %v3378, %v3379
      %v3381 = vrot.slane %v3380, 1
      %v3382 = vadd.f32 %v3380, %v3381
      %v3384 = vrot.slane %v3368, 4
      %v3386 = vmul.f32 %v3374, %v3384
      %v3388 = vrot.slane %v3370, 4
      %v3390 = vadd.f32 %v3386, %v3388
      %v3392 = vrot.slane %v3390, 4
      %v3394 = vmul.f32 %v3372, %v3392
      %v3396 = vrot.slane %v3394, 4
      %v3398 = vsel %vm2295, %v3396, 0.0
      %v3399 = vrot.slane %v3398, 4
      %v3400 = vadd.f32 %v3398, %v3399
      %v3401 = vrot.slane %v3400, 2
      %v3402 = vadd.f32 %v3400, %v3401
      %v3403 = vrot.slane %v3402, 1
      %v3404 = vadd.f32 %v3402, %v3403
      %v3405 = vsel %vm2439, %v3268, %v3290
      %v3406 = vsel %vm2441, %v3405, %v3306
      %v3407 = vsel %vm2443, %v3406, %v3328
      %v3408 = vsel %vm2295, %v3407, %v3344
      %v3409 = vsel %vm2446, %v3408, %v3366
      %v3410 = vsel %vm2448, %v3409, %v3382
      %v3411 = vsel %vm2450, %v3410, %v3404
      %3412 = vst [vmem:[%s332 + $0x30] sm:$0xff] %v3411
      %s3413 = scalar_lea.vmem [#allocation2], 224
      %v3414 = vld [vmem:[%s3413] sm:$0xff]
      %s3415 = scalar_lea.vmem [#allocation3], 224
      %v3416 = vld [vmem:[%s3415] sm:$0xff]
      %s3417 = scalar_lea.vmem [#allocation4], 224
      %v3418 = vld [vmem:[%s3417] sm:$0xff]
      %v3419 = vmul.f32 %v3390, %v3414
      %v3420 = vadd.f32 %v3419, %v3416
      %v3421 = vmul.f32 %v3418, %v3420
      %v3422 = vsel %vm2295, %v3421, 0.0
      %v3423 = vrot.slane %v3422, 4
      %v3424 = vadd.f32 %v3422, %v3423
      %v3425 = vrot.slane %v3424, 2
      %v3426 = vadd.f32 %v3424, %v3425
      %v3427 = vrot.slane %v3426, 1
      %v3428 = vadd.f32 %v3426, %v3427
      %v3430 = vrot.slane %v3414, 4
      %v3432 = vmul.f32 %v3420, %v3430
      %v3434 = vrot.slane %v3416, 4
      %v3436 = vadd.f32 %v3432, %v3434
      %v3438 = vrot.slane %v3436, 4
      %v3440 = vmul.f32 %v3418, %v3438
      %v3442 = vrot.slane %v3440, 4
      %v3444 = vsel %vm2295, %v3442, 0.0
      %v3445 = vrot.slane %v3444, 4
      %v3446 = vadd.f32 %v3444, %v3445
      %v3447 = vrot.slane %v3446, 2
      %v3448 = vadd.f32 %v3446, %v3447
      %v3449 = vrot.slane %v3448, 1
      %v3450 = vadd.f32 %v3448, %v3449
      %s3451 = scalar_lea.vmem [#allocation2], 232
      %v3452 = vld [vmem:[%s3451] sm:$0xff]
      %s3453 = scalar_lea.vmem [#allocation3], 232
      %v3454 = vld [vmem:[%s3453] sm:$0xff]
      %s3455 = scalar_lea.vmem [#allocation4], 232
      %v3456 = vld [vmem:[%s3455] sm:$0xff]
      %v3457 = vmul.f32 %v3436, %v3452
      %v3458 = vadd.f32 %v3457, %v3454
      %v3459 = vmul.f32 %v3456, %v3458
      %v3460 = vsel %vm2295, %v3459, 0.0
      %v3461 = vrot.slane %v3460, 4
      %v3462 = vadd.f32 %v3460, %v3461
      %v3463 = vrot.slane %v3462, 2
      %v3464 = vadd.f32 %v3462, %v3463
      %v3465 = vrot.slane %v3464, 1
      %v3466 = vadd.f32 %v3464, %v3465
      %v3468 = vrot.slane %v3452, 4
      %v3470 = vmul.f32 %v3458, %v3468
      %v3472 = vrot.slane %v3454, 4
      %v3474 = vadd.f32 %v3470, %v3472
      %v3476 = vrot.slane %v3474, 4
      %v3478 = vmul.f32 %v3456, %v3476
      %v3480 = vrot.slane %v3478, 4
      %v3482 = vsel %vm2295, %v3480, 0.0
      %v3483 = vrot.slane %v3482, 4
      %v3484 = vadd.f32 %v3482, %v3483
      %v3485 = vrot.slane %v3484, 2
      %v3486 = vadd.f32 %v3484, %v3485
      %v3487 = vrot.slane %v3486, 1
      %v3488 = vadd.f32 %v3486, %v3487
      %s3489 = scalar_lea.vmem [#allocation2], 240
      %v3490 = vld [vmem:[%s3489] sm:$0xff]
      %s3491 = scalar_lea.vmem [#allocation3], 240
      %v3492 = vld [vmem:[%s3491] sm:$0xff]
      %s3493 = scalar_lea.vmem [#allocation4], 240
      %v3494 = vld [vmem:[%s3493] sm:$0xff]
      %v3495 = vmul.f32 %v3474, %v3490
      %v3496 = vadd.f32 %v3495, %v3492
      %v3497 = vmul.f32 %v3494, %v3496
      %v3498 = vsel %vm2295, %v3497, 0.0
      %v3499 = vrot.slane %v3498, 4
      %v3500 = vadd.f32 %v3498, %v3499
      %v3501 = vrot.slane %v3500, 2
      %v3502 = vadd.f32 %v3500, %v3501
      %v3503 = vrot.slane %v3502, 1
      %v3504 = vadd.f32 %v3502, %v3503
      %v3506 = vrot.slane %v3490, 4
      %v3508 = vmul.f32 %v3496, %v3506
      %v3510 = vrot.slane %v3492, 4
      %v3512 = vadd.f32 %v3508, %v3510
      %v3514 = vrot.slane %v3512, 4
      %v3516 = vmul.f32 %v3494, %v3514
      %v3518 = vrot.slane %v3516, 4
      %v3520 = vsel %vm2295, %v3518, 0.0
      %v3521 = vrot.slane %v3520, 4
      %v3522 = vadd.f32 %v3520, %v3521
      %v3523 = vrot.slane %v3522, 2
      %v3524 = vadd.f32 %v3522, %v3523
      %v3525 = vrot.slane %v3524, 1
      %v3526 = vadd.f32 %v3524, %v3525
      %s3527 = scalar_lea.vmem [#allocation2], 248
      %v3528 = vld [vmem:[%s3527] sm:$0xff]
      %s3529 = scalar_lea.vmem [#allocation3], 248
      %v3530 = vld [vmem:[%s3529] sm:$0xff]
      %s3531 = scalar_lea.vmem [#allocation4], 248
      %v3532 = vld [vmem:[%s3531] sm:$0xff]
      %v3533 = vmul.f32 %v3512, %v3528
      %v3534 = vadd.f32 %v3533, %v3530
      %v3535 = vmul.f32 %v3532, %v3534
      %v3536 = vsel %vm2295, %v3535, 0.0
      %v3537 = vrot.slane %v3536, 4
      %v3538 = vadd.f32 %v3536, %v3537
      %v3539 = vrot.slane %v3538, 2
      %v3540 = vadd.f32 %v3538, %v3539
      %v3541 = vrot.slane %v3540, 1
      %v3542 = vadd.f32 %v3540, %v3541
      %v3544 = vrot.slane %v3528, 4
      %v3546 = vmul.f32 %v3534, %v3544
      %v3548 = vrot.slane %v3530, 4
      %v3550 = vadd.f32 %v3546, %v3548
      %v3552 = vrot.slane %v3550, 4
      %v3554 = vmul.f32 %v3532, %v3552
      %v3556 = vrot.slane %v3554, 4
      %v3558 = vsel %vm2295, %v3556, 0.0
      %v3559 = vrot.slane %v3558, 4
      %v3560 = vadd.f32 %v3558, %v3559
      %v3561 = vrot.slane %v3560, 2
      %v3562 = vadd.f32 %v3560, %v3561
      %v3563 = vrot.slane %v3562, 1
      %v3564 = vadd.f32 %v3562, %v3563
      %v3565 = vsel %vm2439, %v3428, %v3450
      %v3566 = vsel %vm2441, %v3565, %v3466
      %v3567 = vsel %vm2443, %v3566, %v3488
      %v3568 = vsel %vm2295, %v3567, %v3504
      %v3569 = vsel %vm2446, %v3568, %v3526
      %v3570 = vsel %vm2448, %v3569, %v3542
      %v3571 = vsel %vm2450, %v3570, %v3564
      %3572 = vst [vmem:[%s332 + $0x38] sm:$0xff] %v3571
      %p3573 = scmp.lt.s32.totalorder %s20, 1
      %s3574 = scalar_select %p3573, %s20, 1
      %s3575 = smul.addr %s3574, 8
      %s3576 = smul.addr %s3575, 8
      %s3577 = scalar_lea.vmem %s9, %s3576
      // Predicated region
      $region57: #{_lambda_.4} parent=55 // pred_check
        %p3578 = pneg %p232
      $region58: #{_lambda_.4} parent=55 // pred_check_branch
        %3580 = sbr.rel (%p3578) target = $region60
      $region59: #{_lambda_.4} parent=55 // pred_region
        _
      $region60: #{_lambda_.4} parent=55 // pred_fallthru
        _
    $region56: #{_lambda_.4} parent=5 // pred_fallthru
      _
    %p3581 = scmp.le.s32.totalorder 2, %s15
    // Predicated region
    $region61: #{_lambda_.4} parent=5 // pred_check
      %p3582 = pneg %p3581
    $region62: #{_lambda_.4} parent=5 // pred_check_branch
      %3584 = sbr.rel (%p3582) target = $region64
    $region63: #{_lambda_.4} parent=5 // pred_region
      %s3585 = ssub.s32 %s15, 2
      // Predicated region
      $region65: #{_lambda_.4} parent=63 // pred_check
        %p3586 = pneg %p238
      $region66: #{_lambda_.4} parent=63 // pred_check_branch
        %3588 = sbr.rel (%p3586) target = $region68
      $region67: #{_lambda_.4} parent=63 // pred_region
        %p3589 = scmp.lt.s32.totalorder %s21, 1
        %s3590 = scalar_select %p3589, %s21, 1
        %s3591 = smul.addr %s3590, 8
        %s3592 = smul.addr %s3591, 8
        %s3593 = scalar_lea.vmem %s9, %s3592
      $region68: #{_lambda_.4} parent=63 // pred_fallthru
        _
    $region64: #{_lambda_.4} parent=5 // pred_fallthru
      _
  $region6: #{_lambda_.4} parent=0 // loop_footer
    %s19 = sadd.s32 1, %s15
  $region7: #{_lambda_.4} parent=0 // loop_footer_branch
    %14 = sbr.rel target = $region3
  $region8: #{_lambda_.4} parent=0 // loop_exit
    _

</llo_original>
